<compile_context>
chip_gen: v7x
topology: tpu7x:2x2x1
jax: 0.10.0
libtpu: 0.0.40
codegen_flags: <defaults>
</compile_context>

<pallas_src>
import functools

import jax
import jax.numpy as jnp
from jax.experimental import pallas as pl
from jax.experimental.pallas import tpu as pltpu

BN_EPS = 1e-5
LANE = 128            # TPU lane width: channel dim is padded to this


# ---------------------------------------------------------------------------
# conv3x3 (+ optional fused input BN/ReLU) + per-image BN partial statistics
# ---------------------------------------------------------------------------
def _conv_core(a, w_ref, z_ref, s_ref, ss_ref, xp_ref, col_ref, h, w, cp):
    # a:       (h, w, cp) f32  -- already pre-transformed conv input tile
    # w_ref:   (9*cp, cp) bf16 -- tap-major packed weights (K = 9*cp)
    # z_ref:   (1, h, w, cp)   -- raw conv output (bf16)
    # s_ref/ss_ref: (1, 1, cp) f32 per-image sum / sum-of-squares of the f32 result
    # xp_ref:  (h+2, w+2, cp) f32  VMEM scratch: zero-padded tile ("same" padding)
    # col_ref: (h*w, 9*cp)   bf16  VMEM scratch: im2col patch
    xp_ref[...] = jnp.zeros(xp_ref.shape, xp_ref.dtype)
    xp_ref[1:h + 1, 1:w + 1, :] = a
    # im2col: lane-block k = (dh*3+dw) holds the (dh, dw)-shifted tile, so a single
    # MXU matmul with K = 9*cp performs the whole 3x3 convolution.
    for dh in range(3):
        for dw in range(3):
            k = dh * 3 + dw
            col_ref[:, k * cp:(k + 1) * cp] = (
                xp_ref[dh:dh + h, dw:dw + w, :].reshape(h * w, cp)
                .astype(jnp.bfloat16))
    acc = jnp.dot(col_ref[...], w_ref[...], preferred_element_type=jnp.float32)
    z_ref[0] = acc.reshape(h, w, cp).astype(z_ref.dtype)
    s_ref[0] = jnp.sum(acc, axis=0, keepdims=True)
    ss_ref[0] = jnp.sum(acc * acc, axis=0, keepdims=True)


def _conv_plain_kernel(x_ref, w_ref, z_ref, s_ref, ss_ref, xp_ref, col_ref,
                       *, h, w, cp):
    a = x_ref[0].astype(jnp.float32)
    _conv_core(a, w_ref, z_ref, s_ref, ss_ref, xp_ref, col_ref, h, w, cp)


def _conv_bnrelu_kernel(x_ref, w_ref, sc_ref, sh_ref, z_ref, s_ref, ss_ref,
                        xp_ref, col_ref, *, h, w, cp):
    # fused BN + ReLU on the previous conv's raw output, applied on the fly
    a = jnp.maximum(x_ref[0].astype(jnp.float32) * sc_ref[...] + sh_ref[...], 0.0)
    _conv_core(a, w_ref, z_ref, s_ref, ss_ref, xp_ref, col_ref, h, w, cp)


def conv3x3(x, w_packed, scale_shift=None):
    """x: (N,H,W,Cp) bf16, Cp lane-padded. Returns (z bf16, sums f32, sumsqs f32)."""
    n, h, w, cp = x.shape
    assert cp % LANE == 0
    img_spec = pl.BlockSpec((1, h, w, cp), lambda i: (i, 0, 0, 0))
    w_spec = pl.BlockSpec((9 * cp, cp), lambda i: (0, 0))
    vec_spec = pl.BlockSpec((1, cp), lambda i: (0, 0))

    if scale_shift is None:
        kernel = functools.partial(_conv_plain_kernel, h=h, w=w, cp=cp)
        in_specs = [img_spec, w_spec]
        operands = (x, w_packed)
    else:
        kernel = functools.partial(_conv_bnrelu_kernel, h=h, w=w, cp=cp)
        in_specs = [img_spec, w_spec, vec_spec, vec_spec]
        operands = (x, w_packed) + tuple(scale_shift)

    return pl.pallas_call(
        kernel,
        out_shape=(jax.ShapeDtypeStruct((n, h, w, cp), jnp.bfloat16),
                   jax.ShapeDtypeStruct((n, 1, cp), jnp.float32),
                   jax.ShapeDtypeStruct((n, 1, cp), jnp.float32)),
        grid=(n,),
        in_specs=in_specs,
        out_specs=(img_spec,
                   pl.BlockSpec((1, 1, cp), lambda i: (i, 0, 0)),
                   pl.BlockSpec((1, 1, cp), lambda i: (i, 0, 0))),
        scratch_shapes=[pltpu.VMEM((h + 2, w + 2, cp), jnp.float32),
                        pltpu.VMEM((h * w, 9 * cp), jnp.bfloat16)],
        compiler_params=pltpu.CompilerParams(
            dimension_semantics=("parallel",)),
    )(*operands)


# ---------------------------------------------------------------------------
# fused BN2-normalize + mini-block skip (+ optional maxi-block outer skip)
# ---------------------------------------------------------------------------
def _finalize_kernel(z_ref, x_ref, sc_ref, sh_ref, o_ref):
    y = (z_ref[0].astype(jnp.float32) * sc_ref[...] + sh_ref[...]
         + x_ref[0].astype(jnp.float32))
    o_ref[0] = y.astype(o_ref.dtype)


def _finalize_outer_kernel(z_ref, x_ref, x0_ref, sc_ref, sh_ref, o_ref):
    y = (z_ref[0].astype(jnp.float32) * sc_ref[...] + sh_ref[...]
         + x_ref[0].astype(jnp.float32) + x0_ref[0].astype(jnp.float32))
    o_ref[0] = y.astype(o_ref.dtype)


def bn_skip(z, x, scale, shift, x0=None):
    n, h, w, cp = z.shape
    img_spec = pl.BlockSpec((1, h, w, cp), lambda i: (i, 0, 0, 0))
    vec_spec = pl.BlockSpec((1, cp), lambda i: (0, 0))
    if x0 is None:
        kernel = _finalize_kernel
        in_specs = [img_spec, img_spec, vec_spec, vec_spec]
        operands = (z, x, scale, shift)
        out_dtype = jnp.bfloat16              # feeds the next mini block
    else:
        kernel = _finalize_outer_kernel
        in_specs = [img_spec, img_spec, img_spec, vec_spec, vec_spec]
        operands = (z, x, x0, scale, shift)
        out_dtype = jnp.float32               # module output
    return pl.pallas_call(
        kernel,
        out_shape=jax.ShapeDtypeStruct((n, h, w, cp), out_dtype),
        grid=(n,),
        in_specs=in_specs,
        out_specs=img_spec,
        compiler_params=pltpu.CompilerParams(
            dimension_semantics=("parallel",)),
    )(*operands)


# ---------------------------------------------------------------------------
# tiny XLA reduce: per-image partial sums -> global batch-norm affine (scale, shift)
# ---------------------------------------------------------------------------
def _bn_affine(s, ss, gamma, beta, count):
    mean = jnp.sum(s, axis=(0, 1)) / count
    var = jnp.maximum(jnp.sum(ss, axis=(0, 1)) / count - mean * mean, 0.0)
    scale = gamma * jax.lax.rsqrt(var + BN_EPS)
    shift = beta - mean * scale
    cp = scale.shape[0]
    return (scale.reshape(1, cp).astype(jnp.float32),
            shift.reshape(1, cp).astype(jnp.float32))


# ---------------------------------------------------------------------------
# ResidualMiniBlock / ResidualMaxiBlock forward
# ---------------------------------------------------------------------------
def residual_mini_block(x, blk, x0=None):
    (w1, g1, b1), (w2, g2, b2) = blk
    n, h, w, cp = x.shape
    m = n * h * w
    z1, s1, ss1 = conv3x3(x, w1)                              # conv1
    sc1, sh1 = _bn_affine(s1, ss1, g1, b1, m)
    z2, s2, ss2 = conv3x3(z1, w2, scale_shift=(sc1, sh1))     # BN1+ReLU fused, conv2
    sc2, sh2 = _bn_affine(s2, ss2, g2, b2, m)
    return bn_skip(z2, x, sc2, sh2, x0=x0)                    # BN2 + skip (+ outer skip)


def residual_maxi_block(x0, params):
    x = residual_mini_block(x0, params[0])
    x = residual_mini_block(x, params[1])
    return residual_mini_block(x, params[2], x0=x0)           # outer skip fused here


@jax.jit
def residual_maxi_block_nchw(x_nchw, params):
    n, c, h, w = x_nchw.shape
    assert c <= LANE   # TODO(synk): C > 128 needs channel (K/N) tiling in the conv kernel
    x = jnp.transpose(x_nchw, (0, 2, 3, 1))
    x = jnp.pad(x, ((0, 0), (0, 0), (0, 0), (0, LANE - c))).astype(jnp.bfloat16)
    y = residual_maxi_block(x, params)
    return jnp.transpose(y[..., :c].astype(jnp.float32), (0, 3, 1, 2))


# ---------------------------------------------------------------------------
# Parameters (PyTorch Conv2d-style init; BN gamma=1, beta=0).
# Weights are stored pre-packed for the K=9*Cp im2col matmul:
#   w_packed[(dh*3+dw)*Cp + cin, cout] = W[cout, cin, dh, dw]
# Conv bias omitted: train-mode BN subtracts the batch mean immediately after,
# so a per-channel bias cancels exactly (BN(z + b) == BN(z)).
# ---------------------------------------------------------------------------
def init_params(key, channels):
    fan_in = channels * 9
    bound = 1.0 / (fan_in ** 0.5)
    params = []
    for _ in range(3):                                   # 3 ResidualMiniBlocks
        blk = []
        for _ in range(2):                               # 2 convs per mini block
            key, kw = jax.random.split(key)
            wr = jax.random.uniform(kw, (3, 3, channels, channels),
                                    jnp.float32, -bound, bound)   # (kh, kw, cin, cout)
            wp = jnp.zeros((9 * LANE, LANE), jnp.float32)
            for k in range(9):
                wp = wp.at[k * LANE:k * LANE + channels, :channels].set(
                    wr[k // 3, k % 3])
            gamma = jnp.ones((LANE,), jnp.float32)
            beta = jnp.zeros((LANE,), jnp.float32)
            blk.append((wp.astype(jnp.bfloat16), gamma, beta))
        params.append(tuple(blk))
    return params


# ---------------------------------------------------------------------------
# Plain-JAX reference mirroring the kernel's precision choices (bf16 GEMM operands,
# bf16 inter-layer storage, f32 statistics/affine math) for a sanity check.
# ---------------------------------------------------------------------------
def _ref_conv3x3(x_bf16, w_packed):
    n, h, w, cp = x_bf16.shape
    xp = jnp.pad(x_bf16, ((0, 0), (1, 1), (1, 1), (0, 0)))
    acc = jnp.zeros((n, h, w, cp), jnp.float32)
    for k in range(9):
        dh, dw = k // 3, k % 3
        acc = acc + jnp.einsum("nhwc,cd->nhwd",
                               xp[:, dh:dh + h, dw:dw + w, :],
                               w_packed[k * cp:(k + 1) * cp, :],
                               preferred_element_type=jnp.float32)
    return acc


def _ref_affine(z, gamma, beta):
    mean = jnp.mean(z, axis=(0, 1, 2))
    var = jnp.maximum(jnp.mean(z * z, axis=(0, 1, 2)) - mean * mean, 0.0)
    scale = gamma * jax.lax.rsqrt(var + BN_EPS)
    return scale, beta - mean * scale


def _ref_mini(x, blk, x0=None):
    (w1, g1, b1), (w2, g2, b2) = blk
    z1 = _ref_conv3x3(x, w1)
    sc1, sh1 = _ref_affine(z1, g1, b1)
    a1 = jnp.maximum(z1.astype(jnp.bfloat16).astype(jnp.float32) * sc1 + sh1, 0.0)
    z2 = _ref_conv3x3(a1.astype(jnp.bfloat16), w2)
    sc2, sh2 = _ref_affine(z2, g2, b2)
    y = (x.astype(jnp.float32)
         + z2.astype(jnp.bfloat16).astype(jnp.float32) * sc2 + sh2)
    if x0 is None:
        return y.astype(jnp.bfloat16)
    return y + x0.astype(jnp.float32)


def _ref_maxi(x0, params):
    x = _ref_mini(x0, params[0])
    x = _ref_mini(x, params[1])
    return _ref_mini(x, params[2], x0=x0)


if __name__ == "__main__":
    N, C, H, W = 2, 4, 16, 16

    key = jax.random.PRNGKey(0)
    key, kx = jax.random.split(key)
    x_nchw = jax.random.normal(kx, (N, C, H, W), jnp.float32)
    params = init_params(key, C)

    y_nchw = residual_maxi_block_nchw(x_nchw, params)
    jax.block_until_ready(y_nchw)

    assert y_nchw.shape == (N, C, H, W)
    assert bool(jnp.all(jnp.isfinite(y_nchw)))

    # numerical sanity check against the precision-mirrored plain-JAX reference.
    # bf16 inter-layer storage means a value sitting on a bf16 rounding boundary can
    # round differently under the two (equally valid) f32 accumulation orders, so the
    # max-error bound is a few bf16 ulps of the output magnitude; the mean-error bound
    # is the tight structural check.
    x_nhwc = jnp.pad(jnp.transpose(x_nchw, (0, 2, 3, 1)),
                     ((0, 0), (0, 0), (0, 0), (0, LANE - C))).astype(jnp.bfloat16)
    y_ref = jnp.transpose(_ref_maxi(x_nhwc, params)[..., :C].astype(jnp.float32),
                          (0, 3, 1, 2))
    diff = jnp.abs(y_nchw - y_ref)
    err_max = float(jnp.max(diff))
    err_mean = float(jnp.mean(diff))
    assert err_max < 2e-1, f"kernel/reference mismatch: max abs err = {err_max}"
    assert err_mean < 2e-3, f"kernel/reference mismatch: mean abs err = {err_mean}"

    print("KERNEL_OK")
</pallas_src>

<mosaic_0001>
module attributes {stable_mosaic.version = 11 : i64} {
  func.func @_conv_plain_kernel(%arg0: i32, %arg1: memref<1x16x16x128xbf16, #tpu.memory_space<vmem>>, %arg2: memref<1152x128xbf16, #tpu.memory_space<vmem>>, %arg3: memref<1x16x16x128xbf16, #tpu.memory_space<vmem>>, %arg4: memref<1x1x128xf32, #tpu.memory_space<vmem>>, %arg5: memref<1x1x128xf32, #tpu.memory_space<vmem>>, %arg6: memref<18x18x128xf32, #tpu.memory_space<vmem>>, %arg7: memref<256x1152xbf16, #tpu.memory_space<vmem>>) attributes {dimension_semantics = [#tpu.dimension_semantics<parallel>], iteration_bounds = array<i64: 2>, scalar_prefetch = 0 : i64, scratch_operands = 2 : i64, tpu.core_type = #tpu.core_type<tc>, window_params = [{transform_indices = @transform_0, window_bounds = array<i64: 1, 16, 16, 128>}, {pipeline_mode = #tpu.pipeline_mode<synchronous>, transform_indices = @transform_1, window_bounds = array<i64: 1152, 128>}, {transform_indices = @transform_2, window_bounds = array<i64: 1, 16, 16, 128>}, {transform_indices = @transform_3, window_bounds = array<i64: 1, 1, 128>}, {transform_indices = @transform_4, window_bounds = array<i64: 1, 1, 128>}]} {
    %c0 = arith.constant 0 : index
    %c0_0 = arith.constant 0 : index
    %c0_1 = arith.constant 0 : index
    %c0_2 = arith.constant 0 : index
    %0 = vector.load %arg1[%c0, %c0_0, %c0_1, %c0_2] : memref<1x16x16x128xbf16, #tpu.memory_space<vmem>>, vector<1x16x16x128xbf16>
    %1 = vector.shape_cast %0 : vector<1x16x16x128xbf16> to vector<16x16x128xbf16>
    %2 = arith.extf %1 : vector<16x16x128xbf16> to vector<16x16x128xf32>
    %cst = arith.constant 0.000000e+00 : f32
    %3 = vector.broadcast %cst : f32 to vector<18x18x128xf32>
    %c0_3 = arith.constant 0 : index
    %c0_4 = arith.constant 0 : index
    %c0_5 = arith.constant 0 : index
    %4 = vector.load %arg6[%c0_3, %c0_4, %c0_5] : memref<18x18x128xf32, #tpu.memory_space<vmem>>, vector<18x18x128xf32>
    tpu.vector_store %arg6[%c0_3, %c0_4, %c0_5], %3 {strides = array<i32>} : memref<18x18x128xf32, #tpu.memory_space<vmem>>, vector<18x18x128xf32>,
    %c1 = arith.constant 1 : index
    %c1_6 = arith.constant 1 : index
    %c0_7 = arith.constant 0 : index
    %5 = vector.load %arg6[%c1, %c1_6, %c0_7] : memref<18x18x128xf32, #tpu.memory_space<vmem>>, vector<16x16x128xf32>
    tpu.vector_store %arg6[%c1, %c1_6, %c0_7], %2 {strides = array<i32>} : memref<18x18x128xf32, #tpu.memory_space<vmem>>, vector<16x16x128xf32>,
    %c0_8 = arith.constant 0 : index
    %c0_9 = arith.constant 0 : index
    %c0_10 = arith.constant 0 : index
    %6 = vector.load %arg6[%c0_8, %c0_9, %c0_10] : memref<18x18x128xf32, #tpu.memory_space<vmem>>, vector<16x16x128xf32>
    %7 = vector.shape_cast %6 : vector<16x16x128xf32> to vector<256x128xf32>
    %8 = arith.truncf %7 : vector<256x128xf32> to vector<256x128xbf16>
    %c0_11 = arith.constant 0 : index
    %c0_12 = arith.constant 0 : index
    %9 = vector.load %arg7[%c0_11, %c0_12] : memref<256x1152xbf16, #tpu.memory_space<vmem>>, vector<256x128xbf16>
    tpu.vector_store %arg7[%c0_11, %c0_12], %8 {strides = array<i32>} : memref<256x1152xbf16, #tpu.memory_space<vmem>>, vector<256x128xbf16>,
    %c0_13 = arith.constant 0 : index
    %c1_14 = arith.constant 1 : index
    %c0_15 = arith.constant 0 : index
    %10 = vector.load %arg6[%c0_13, %c1_14, %c0_15] : memref<18x18x128xf32, #tpu.memory_space<vmem>>, vector<16x16x128xf32>
    %11 = vector.shape_cast %10 : vector<16x16x128xf32> to vector<256x128xf32>
    %12 = arith.truncf %11 : vector<256x128xf32> to vector<256x128xbf16>
    %c0_16 = arith.constant 0 : index
    %c128 = arith.constant 128 : index
    %13 = vector.load %arg7[%c0_16, %c128] : memref<256x1152xbf16, #tpu.memory_space<vmem>>, vector<256x128xbf16>
    tpu.vector_store %arg7[%c0_16, %c128], %12 {strides = array<i32>} : memref<256x1152xbf16, #tpu.memory_space<vmem>>, vector<256x128xbf16>,
    %c0_17 = arith.constant 0 : index
    %c2 = arith.constant 2 : index
    %c0_18 = arith.constant 0 : index
    %14 = vector.load %arg6[%c0_17, %c2, %c0_18] : memref<18x18x128xf32, #tpu.memory_space<vmem>>, vector<16x16x128xf32>
    %15 = vector.shape_cast %14 : vector<16x16x128xf32> to vector<256x128xf32>
    %16 = arith.truncf %15 : vector<256x128xf32> to vector<256x128xbf16>
    %c0_19 = arith.constant 0 : index
    %c256 = arith.constant 256 : index
    %17 = vector.load %arg7[%c0_19, %c256] : memref<256x1152xbf16, #tpu.memory_space<vmem>>, vector<256x128xbf16>
    tpu.vector_store %arg7[%c0_19, %c256], %16 {strides = array<i32>} : memref<256x1152xbf16, #tpu.memory_space<vmem>>, vector<256x128xbf16>,
    %c1_20 = arith.constant 1 : index
    %c0_21 = arith.constant 0 : index
    %c0_22 = arith.constant 0 : index
    %18 = vector.load %arg6[%c1_20, %c0_21, %c0_22] : memref<18x18x128xf32, #tpu.memory_space<vmem>>, vector<16x16x128xf32>
    %19 = vector.shape_cast %18 : vector<16x16x128xf32> to vector<256x128xf32>
    %20 = arith.truncf %19 : vector<256x128xf32> to vector<256x128xbf16>
    %c0_23 = arith.constant 0 : index
    %c384 = arith.constant 384 : index
    %21 = vector.load %arg7[%c0_23, %c384] : memref<256x1152xbf16, #tpu.memory_space<vmem>>, vector<256x128xbf16>
    tpu.vector_store %arg7[%c0_23, %c384], %20 {strides = array<i32>} : memref<256x1152xbf16, #tpu.memory_space<vmem>>, vector<256x128xbf16>,
    %c1_24 = arith.constant 1 : index
    %c1_25 = arith.constant 1 : index
    %c0_26 = arith.constant 0 : index
    %22 = vector.load %arg6[%c1_24, %c1_25, %c0_26] : memref<18x18x128xf32, #tpu.memory_space<vmem>>, vector<16x16x128xf32>
    %23 = vector.shape_cast %22 : vector<16x16x128xf32> to vector<256x128xf32>
    %24 = arith.truncf %23 : vector<256x128xf32> to vector<256x128xbf16>
    %c0_27 = arith.constant 0 : index
    %c512 = arith.constant 512 : index
    %25 = vector.load %arg7[%c0_27, %c512] : memref<256x1152xbf16, #tpu.memory_space<vmem>>, vector<256x128xbf16>
    tpu.vector_store %arg7[%c0_27, %c512], %24 {strides = array<i32>} : memref<256x1152xbf16, #tpu.memory_space<vmem>>, vector<256x128xbf16>,
    %c1_28 = arith.constant 1 : index
    %c2_29 = arith.constant 2 : index
    %c0_30 = arith.constant 0 : index
    %26 = vector.load %arg6[%c1_28, %c2_29, %c0_30] : memref<18x18x128xf32, #tpu.memory_space<vmem>>, vector<16x16x128xf32>
    %27 = vector.shape_cast %26 : vector<16x16x128xf32> to vector<256x128xf32>
    %28 = arith.truncf %27 : vector<256x128xf32> to vector<256x128xbf16>
    %c0_31 = arith.constant 0 : index
    %c640 = arith.constant 640 : index
    %29 = vector.load %arg7[%c0_31, %c640] : memref<256x1152xbf16, #tpu.memory_space<vmem>>, vector<256x128xbf16>
    tpu.vector_store %arg7[%c0_31, %c640], %28 {strides = array<i32>} : memref<256x1152xbf16, #tpu.memory_space<vmem>>, vector<256x128xbf16>,
    %c2_32 = arith.constant 2 : index
    %c0_33 = arith.constant 0 : index
    %c0_34 = arith.constant 0 : index
    %30 = vector.load %arg6[%c2_32, %c0_33, %c0_34] : memref<18x18x128xf32, #tpu.memory_space<vmem>>, vector<16x16x128xf32>
    %31 = vector.shape_cast %30 : vector<16x16x128xf32> to vector<256x128xf32>
    %32 = arith.truncf %31 : vector<256x128xf32> to vector<256x128xbf16>
    %c0_35 = arith.constant 0 : index
    %c768 = arith.constant 768 : index
    %33 = vector.load %arg7[%c0_35, %c768] : memref<256x1152xbf16, #tpu.memory_space<vmem>>, vector<256x128xbf16>
    tpu.vector_store %arg7[%c0_35, %c768], %32 {strides = array<i32>} : memref<256x1152xbf16, #tpu.memory_space<vmem>>, vector<256x128xbf16>,
    %c2_36 = arith.constant 2 : index
    %c1_37 = arith.constant 1 : index
    %c0_38 = arith.constant 0 : index
    %34 = vector.load %arg6[%c2_36, %c1_37, %c0_38] : memref<18x18x128xf32, #tpu.memory_space<vmem>>, vector<16x16x128xf32>
    %35 = vector.shape_cast %34 : vector<16x16x128xf32> to vector<256x128xf32>
    %36 = arith.truncf %35 : vector<256x128xf32> to vector<256x128xbf16>
    %c0_39 = arith.constant 0 : index
    %c896 = arith.constant 896 : index
    %37 = vector.load %arg7[%c0_39, %c896] : memref<256x1152xbf16, #tpu.memory_space<vmem>>, vector<256x128xbf16>
    tpu.vector_store %arg7[%c0_39, %c896], %36 {strides = array<i32>} : memref<256x1152xbf16, #tpu.memory_space<vmem>>, vector<256x128xbf16>,
    %c2_40 = arith.constant 2 : index
    %c2_41 = arith.constant 2 : index
    %c0_42 = arith.constant 0 : index
    %38 = vector.load %arg6[%c2_40, %c2_41, %c0_42] : memref<18x18x128xf32, #tpu.memory_space<vmem>>, vector<16x16x128xf32>
    %39 = vector.shape_cast %38 : vector<16x16x128xf32> to vector<256x128xf32>
    %40 = arith.truncf %39 : vector<256x128xf32> to vector<256x128xbf16>
    %c0_43 = arith.constant 0 : index
    %c1024 = arith.constant 1024 : index
    %41 = vector.load %arg7[%c0_43, %c1024] : memref<256x1152xbf16, #tpu.memory_space<vmem>>, vector<256x128xbf16>
    tpu.vector_store %arg7[%c0_43, %c1024], %40 {strides = array<i32>} : memref<256x1152xbf16, #tpu.memory_space<vmem>>, vector<256x128xbf16>,
    %c0_44 = arith.constant 0 : index
    %c0_45 = arith.constant 0 : index
    %42 = vector.load %arg7[%c0_44, %c0_45] : memref<256x1152xbf16, #tpu.memory_space<vmem>>, vector<256x1152xbf16>
    %c0_46 = arith.constant 0 : index
    %c0_47 = arith.constant 0 : index
    %43 = vector.load %arg2[%c0_46, %c0_47] : memref<1152x128xbf16, #tpu.memory_space<vmem>>, vector<1152x128xbf16>
    %cst_48 = arith.constant dense<0.000000e+00> : vector<256x128xf32>
    %44 = tpu.matmul %42, %43, %cst_48 {dimension_numbers = #tpu.dot_dimension_numbers<[1], [0], [0], [1], [0, 0, 1, 1], [], []>} : vector<256x1152xbf16>, vector<1152x128xbf16>, vector<256x128xf32> -> vector<256x128xf32>
    %45 = vector.shape_cast %44 : vector<256x128xf32> to vector<16x16x128xf32>
    %46 = arith.truncf %45 : vector<16x16x128xf32> to vector<16x16x128xbf16>
    %c0_49 = arith.constant 0 : index
    %c0_50 = arith.constant 0 : index
    %c0_51 = arith.constant 0 : index
    %c0_52 = arith.constant 0 : index
    %47 = vector.load %arg3[%c0_49, %c0_50, %c0_51, %c0_52] : memref<1x16x16x128xbf16, #tpu.memory_space<vmem>>, vector<1x16x16x128xbf16>
    %48 = vector.shape_cast %47 : vector<1x16x16x128xbf16> to vector<16x16x128xbf16>
    %49 = vector.shape_cast %46 : vector<16x16x128xbf16> to vector<1x16x16x128xbf16>
    tpu.vector_store %arg3[%c0_49, %c0_50, %c0_51, %c0_52], %49 {strides = array<i32>} : memref<1x16x16x128xbf16, #tpu.memory_space<vmem>>, vector<1x16x16x128xbf16>,
    %cst_53 = arith.constant dense<0.000000e+00> : vector<128xf32>
    %50 = vector.multi_reduction <add>, %44, %cst_53 [0] : vector<256x128xf32> to vector<128xf32>
    %51 = vector.shape_cast %50 : vector<128xf32> to vector<1x128xf32>
    %c0_54 = arith.constant 0 : index
    %c0_55 = arith.constant 0 : index
    %c0_56 = arith.constant 0 : index
    %52 = vector.load %arg4[%c0_54, %c0_55, %c0_56] : memref<1x1x128xf32, #tpu.memory_space<vmem>>, vector<1x1x128xf32>
    %53 = vector.shape_cast %52 : vector<1x1x128xf32> to vector<1x128xf32>
    %54 = vector.shape_cast %51 : vector<1x128xf32> to vector<1x1x128xf32>
    tpu.vector_store %arg4[%c0_54, %c0_55, %c0_56], %54 {strides = array<i32>} : memref<1x1x128xf32, #tpu.memory_space<vmem>>, vector<1x1x128xf32>,
    %55 = arith.mulf %44, %44 : vector<256x128xf32>
    %cst_57 = arith.constant dense<0.000000e+00> : vector<128xf32>
    %56 = vector.multi_reduction <add>, %55, %cst_57 [0] : vector<256x128xf32> to vector<128xf32>
    %57 = vector.shape_cast %56 : vector<128xf32> to vector<1x128xf32>
    %c0_58 = arith.constant 0 : index
    %c0_59 = arith.constant 0 : index
    %c0_60 = arith.constant 0 : index
    %58 = vector.load %arg5[%c0_58, %c0_59, %c0_60] : memref<1x1x128xf32, #tpu.memory_space<vmem>>, vector<1x1x128xf32>
    %59 = vector.shape_cast %58 : vector<1x1x128xf32> to vector<1x128xf32>
    %60 = vector.shape_cast %57 : vector<1x128xf32> to vector<1x1x128xf32>
    tpu.vector_store %arg5[%c0_58, %c0_59, %c0_60], %60 {strides = array<i32>} : memref<1x1x128xf32, #tpu.memory_space<vmem>>, vector<1x1x128xf32>,
    return
  }
  func.func @transform_0(%arg0: i32) -> (i32, i32, i32, i32) {
    %c0_i32 = arith.constant 0 : i32
    %c0_i32_0 = arith.constant 0 : i32
    %c0_i32_1 = arith.constant 0 : i32
    %c0_i32_2 = arith.constant 0 : i32
    return %arg0, %c0_i32, %c0_i32_0, %c0_i32_1 : i32, i32, i32, i32
  }
  func.func @transform_1(%arg0: i32) -> (i32, i32) {
    %c0_i32 = arith.constant 0 : i32
    %c0_i32_0 = arith.constant 0 : i32
    %c0_i32_1 = arith.constant 0 : i32
    return %c0_i32, %c0_i32_0 : i32, i32
  }
  func.func @transform_2(%arg0: i32) -> (i32, i32, i32, i32) {
    %c0_i32 = arith.constant 0 : i32
    %c0_i32_0 = arith.constant 0 : i32
    %c0_i32_1 = arith.constant 0 : i32
    %c0_i32_2 = arith.constant 0 : i32
    return %arg0, %c0_i32, %c0_i32_0, %c0_i32_1 : i32, i32, i32, i32
  }
  func.func @transform_3(%arg0: i32) -> (i32, i32, i32) {
    %c0_i32 = arith.constant 0 : i32
    %c0_i32_0 = arith.constant 0 : i32
    %c0_i32_1 = arith.constant 0 : i32
    return %arg0, %c0_i32, %c0_i32_0 : i32, i32, i32
  }
  func.func @transform_4(%arg0: i32) -> (i32, i32, i32) {
    %c0_i32 = arith.constant 0 : i32
    %c0_i32_0 = arith.constant 0 : i32
    %c0_i32_1 = arith.constant 0 : i32
    return %arg0, %c0_i32, %c0_i32_0 : i32, i32, i32
  }
}

module attributes {stable_mosaic.version = 11 : i64} {
  func.func @_conv_bnrelu_kernel(%arg0: i32, %arg1: memref<1x16x16x128xbf16, #tpu.memory_space<vmem>>, %arg2: memref<1152x128xbf16, #tpu.memory_space<vmem>>, %arg3: memref<1x128xf32, #tpu.memory_space<vmem>>, %arg4: memref<1x128xf32, #tpu.memory_space<vmem>>, %arg5: memref<1x16x16x128xbf16, #tpu.memory_space<vmem>>, %arg6: memref<1x1x128xf32, #tpu.memory_space<vmem>>, %arg7: memref<1x1x128xf32, #tpu.memory_space<vmem>>, %arg8: memref<18x18x128xf32, #tpu.memory_space<vmem>>, %arg9: memref<256x1152xbf16, #tpu.memory_space<vmem>>) attributes {dimension_semantics = [#tpu.dimension_semantics<parallel>], iteration_bounds = array<i64: 2>, scalar_prefetch = 0 : i64, scratch_operands = 2 : i64, tpu.core_type = #tpu.core_type<tc>, window_params = [{transform_indices = @transform_0, window_bounds = array<i64: 1, 16, 16, 128>}, {pipeline_mode = #tpu.pipeline_mode<synchronous>, transform_indices = @transform_1, window_bounds = array<i64: 1152, 128>}, {pipeline_mode = #tpu.pipeline_mode<synchronous>, transform_indices = @transform_2, window_bounds = array<i64: 1, 128>}, {pipeline_mode = #tpu.pipeline_mode<synchronous>, transform_indices = @transform_3, window_bounds = array<i64: 1, 128>}, {transform_indices = @transform_4, window_bounds = array<i64: 1, 16, 16, 128>}, {transform_indices = @transform_5, window_bounds = array<i64: 1, 1, 128>}, {transform_indices = @transform_6, window_bounds = array<i64: 1, 1, 128>}]} {
    %c0 = arith.constant 0 : index
    %c0_0 = arith.constant 0 : index
    %c0_1 = arith.constant 0 : index
    %c0_2 = arith.constant 0 : index
    %0 = vector.load %arg1[%c0, %c0_0, %c0_1, %c0_2] : memref<1x16x16x128xbf16, #tpu.memory_space<vmem>>, vector<1x16x16x128xbf16>
    %1 = vector.shape_cast %0 : vector<1x16x16x128xbf16> to vector<16x16x128xbf16>
    %2 = arith.extf %1 : vector<16x16x128xbf16> to vector<16x16x128xf32>
    %c0_3 = arith.constant 0 : index
    %c0_4 = arith.constant 0 : index
    %3 = vector.load %arg3[%c0_3, %c0_4] : memref<1x128xf32, #tpu.memory_space<vmem>>, vector<1x128xf32>
    %4 = vector.shape_cast %3 : vector<1x128xf32> to vector<1x1x128xf32>
    %5 = vector.broadcast %4 : vector<1x1x128xf32> to vector<16x16x128xf32>
    %6 = arith.mulf %2, %5 : vector<16x16x128xf32>
    %c0_5 = arith.constant 0 : index
    %c0_6 = arith.constant 0 : index
    %7 = vector.load %arg4[%c0_5, %c0_6] : memref<1x128xf32, #tpu.memory_space<vmem>>, vector<1x128xf32>
    %8 = vector.shape_cast %7 : vector<1x128xf32> to vector<1x1x128xf32>
    %9 = vector.broadcast %8 : vector<1x1x128xf32> to vector<16x16x128xf32>
    %10 = arith.addf %6, %9 : vector<16x16x128xf32>
    %cst = arith.constant 0.000000e+00 : f32
    %11 = vector.broadcast %cst : f32 to vector<16x16x128xf32>
    %12 = arith.maximumf %10, %11 : vector<16x16x128xf32>
    %cst_7 = arith.constant 0.000000e+00 : f32
    %13 = vector.broadcast %cst_7 : f32 to vector<18x18x128xf32>
    %c0_8 = arith.constant 0 : index
    %c0_9 = arith.constant 0 : index
    %c0_10 = arith.constant 0 : index
    %14 = vector.load %arg8[%c0_8, %c0_9, %c0_10] : memref<18x18x128xf32, #tpu.memory_space<vmem>>, vector<18x18x128xf32>
    tpu.vector_store %arg8[%c0_8, %c0_9, %c0_10], %13 {strides = array<i32>} : memref<18x18x128xf32, #tpu.memory_space<vmem>>, vector<18x18x128xf32>,
    %c1 = arith.constant 1 : index
    %c1_11 = arith.constant 1 : index
    %c0_12 = arith.constant 0 : index
    %15 = vector.load %arg8[%c1, %c1_11, %c0_12] : memref<18x18x128xf32, #tpu.memory_space<vmem>>, vector<16x16x128xf32>
    tpu.vector_store %arg8[%c1, %c1_11, %c0_12], %12 {strides = array<i32>} : memref<18x18x128xf32, #tpu.memory_space<vmem>>, vector<16x16x128xf32>,
    %c0_13 = arith.constant 0 : index
    %c0_14 = arith.constant 0 : index
    %c0_15 = arith.constant 0 : index
    %16 = vector.load %arg8[%c0_13, %c0_14, %c0_15] : memref<18x18x128xf32, #tpu.memory_space<vmem>>, vector<16x16x128xf32>
    %17 = vector.shape_cast %16 : vector<16x16x128xf32> to vector<256x128xf32>
    %18 = arith.truncf %17 : vector<256x128xf32> to vector<256x128xbf16>
    %c0_16 = arith.constant 0 : index
    %c0_17 = arith.constant 0 : index
    %19 = vector.load %arg9[%c0_16, %c0_17] : memref<256x1152xbf16, #tpu.memory_space<vmem>>, vector<256x128xbf16>
    tpu.vector_store %arg9[%c0_16, %c0_17], %18 {strides = array<i32>} : memref<256x1152xbf16, #tpu.memory_space<vmem>>, vector<256x128xbf16>,
    %c0_18 = arith.constant 0 : index
    %c1_19 = arith.constant 1 : index
    %c0_20 = arith.constant 0 : index
    %20 = vector.load %arg8[%c0_18, %c1_19, %c0_20] : memref<18x18x128xf32, #tpu.memory_space<vmem>>, vector<16x16x128xf32>
    %21 = vector.shape_cast %20 : vector<16x16x128xf32> to vector<256x128xf32>
    %22 = arith.truncf %21 : vector<256x128xf32> to vector<256x128xbf16>
    %c0_21 = arith.constant 0 : index
    %c128 = arith.constant 128 : index
    %23 = vector.load %arg9[%c0_21, %c128] : memref<256x1152xbf16, #tpu.memory_space<vmem>>, vector<256x128xbf16>
    tpu.vector_store %arg9[%c0_21, %c128], %22 {strides = array<i32>} : memref<256x1152xbf16, #tpu.memory_space<vmem>>, vector<256x128xbf16>,
    %c0_22 = arith.constant 0 : index
    %c2 = arith.constant 2 : index
    %c0_23 = arith.constant 0 : index
    %24 = vector.load %arg8[%c0_22, %c2, %c0_23] : memref<18x18x128xf32, #tpu.memory_space<vmem>>, vector<16x16x128xf32>
    %25 = vector.shape_cast %24 : vector<16x16x128xf32> to vector<256x128xf32>
    %26 = arith.truncf %25 : vector<256x128xf32> to vector<256x128xbf16>
    %c0_24 = arith.constant 0 : index
    %c256 = arith.constant 256 : index
    %27 = vector.load %arg9[%c0_24, %c256] : memref<256x1152xbf16, #tpu.memory_space<vmem>>, vector<256x128xbf16>
    tpu.vector_store %arg9[%c0_24, %c256], %26 {strides = array<i32>} : memref<256x1152xbf16, #tpu.memory_space<vmem>>, vector<256x128xbf16>,
    %c1_25 = arith.constant 1 : index
    %c0_26 = arith.constant 0 : index
    %c0_27 = arith.constant 0 : index
    %28 = vector.load %arg8[%c1_25, %c0_26, %c0_27] : memref<18x18x128xf32, #tpu.memory_space<vmem>>, vector<16x16x128xf32>
    %29 = vector.shape_cast %28 : vector<16x16x128xf32> to vector<256x128xf32>
    %30 = arith.truncf %29 : vector<256x128xf32> to vector<256x128xbf16>
    %c0_28 = arith.constant 0 : index
    %c384 = arith.constant 384 : index
    %31 = vector.load %arg9[%c0_28, %c384] : memref<256x1152xbf16, #tpu.memory_space<vmem>>, vector<256x128xbf16>
    tpu.vector_store %arg9[%c0_28, %c384], %30 {strides = array<i32>} : memref<256x1152xbf16, #tpu.memory_space<vmem>>, vector<256x128xbf16>,
    %c1_29 = arith.constant 1 : index
    %c1_30 = arith.constant 1 : index
    %c0_31 = arith.constant 0 : index
    %32 = vector.load %arg8[%c1_29, %c1_30, %c0_31] : memref<18x18x128xf32, #tpu.memory_space<vmem>>, vector<16x16x128xf32>
    %33 = vector.shape_cast %32 : vector<16x16x128xf32> to vector<256x128xf32>
    %34 = arith.truncf %33 : vector<256x128xf32> to vector<256x128xbf16>
    %c0_32 = arith.constant 0 : index
    %c512 = arith.constant 512 : index
    %35 = vector.load %arg9[%c0_32, %c512] : memref<256x1152xbf16, #tpu.memory_space<vmem>>, vector<256x128xbf16>
    tpu.vector_store %arg9[%c0_32, %c512], %34 {strides = array<i32>} : memref<256x1152xbf16, #tpu.memory_space<vmem>>, vector<256x128xbf16>,
    %c1_33 = arith.constant 1 : index
    %c2_34 = arith.constant 2 : index
    %c0_35 = arith.constant 0 : index
    %36 = vector.load %arg8[%c1_33, %c2_34, %c0_35] : memref<18x18x128xf32, #tpu.memory_space<vmem>>, vector<16x16x128xf32>
    %37 = vector.shape_cast %36 : vector<16x16x128xf32> to vector<256x128xf32>
    %38 = arith.truncf %37 : vector<256x128xf32> to vector<256x128xbf16>
    %c0_36 = arith.constant 0 : index
    %c640 = arith.constant 640 : index
    %39 = vector.load %arg9[%c0_36, %c640] : memref<256x1152xbf16, #tpu.memory_space<vmem>>, vector<256x128xbf16>
    tpu.vector_store %arg9[%c0_36, %c640], %38 {strides = array<i32>} : memref<256x1152xbf16, #tpu.memory_space<vmem>>, vector<256x128xbf16>,
    %c2_37 = arith.constant 2 : index
    %c0_38 = arith.constant 0 : index
    %c0_39 = arith.constant 0 : index
    %40 = vector.load %arg8[%c2_37, %c0_38, %c0_39] : memref<18x18x128xf32, #tpu.memory_space<vmem>>, vector<16x16x128xf32>
    %41 = vector.shape_cast %40 : vector<16x16x128xf32> to vector<256x128xf32>
    %42 = arith.truncf %41 : vector<256x128xf32> to vector<256x128xbf16>
    %c0_40 = arith.constant 0 : index
    %c768 = arith.constant 768 : index
    %43 = vector.load %arg9[%c0_40, %c768] : memref<256x1152xbf16, #tpu.memory_space<vmem>>, vector<256x128xbf16>
    tpu.vector_store %arg9[%c0_40, %c768], %42 {strides = array<i32>} : memref<256x1152xbf16, #tpu.memory_space<vmem>>, vector<256x128xbf16>,
    %c2_41 = arith.constant 2 : index
    %c1_42 = arith.constant 1 : index
    %c0_43 = arith.constant 0 : index
    %44 = vector.load %arg8[%c2_41, %c1_42, %c0_43] : memref<18x18x128xf32, #tpu.memory_space<vmem>>, vector<16x16x128xf32>
    %45 = vector.shape_cast %44 : vector<16x16x128xf32> to vector<256x128xf32>
    %46 = arith.truncf %45 : vector<256x128xf32> to vector<256x128xbf16>
    %c0_44 = arith.constant 0 : index
    %c896 = arith.constant 896 : index
    %47 = vector.load %arg9[%c0_44, %c896] : memref<256x1152xbf16, #tpu.memory_space<vmem>>, vector<256x128xbf16>
    tpu.vector_store %arg9[%c0_44, %c896], %46 {strides = array<i32>} : memref<256x1152xbf16, #tpu.memory_space<vmem>>, vector<256x128xbf16>,
    %c2_45 = arith.constant 2 : index
    %c2_46 = arith.constant 2 : index
    %c0_47 = arith.constant 0 : index
    %48 = vector.load %arg8[%c2_45, %c2_46, %c0_47] : memref<18x18x128xf32, #tpu.memory_space<vmem>>, vector<16x16x128xf32>
    %49 = vector.shape_cast %48 : vector<16x16x128xf32> to vector<256x128xf32>
    %50 = arith.truncf %49 : vector<256x128xf32> to vector<256x128xbf16>
    %c0_48 = arith.constant 0 : index
    %c1024 = arith.constant 1024 : index
    %51 = vector.load %arg9[%c0_48, %c1024] : memref<256x1152xbf16, #tpu.memory_space<vmem>>, vector<256x128xbf16>
    tpu.vector_store %arg9[%c0_48, %c1024], %50 {strides = array<i32>} : memref<256x1152xbf16, #tpu.memory_space<vmem>>, vector<256x128xbf16>,
    %c0_49 = arith.constant 0 : index
    %c0_50 = arith.constant 0 : index
    %52 = vector.load %arg9[%c0_49, %c0_50] : memref<256x1152xbf16, #tpu.memory_space<vmem>>, vector<256x1152xbf16>
    %c0_51 = arith.constant 0 : index
    %c0_52 = arith.constant 0 : index
    %53 = vector.load %arg2[%c0_51, %c0_52] : memref<1152x128xbf16, #tpu.memory_space<vmem>>, vector<1152x128xbf16>
    %cst_53 = arith.constant dense<0.000000e+00> : vector<256x128xf32>
    %54 = tpu.matmul %52, %53, %cst_53 {dimension_numbers = #tpu.dot_dimension_numbers<[1], [0], [0], [1], [0, 0, 1, 1], [], []>} : vector<256x1152xbf16>, vector<1152x128xbf16>, vector<256x128xf32> -> vector<256x128xf32>
    %55 = vector.shape_cast %54 : vector<256x128xf32> to vector<16x16x128xf32>
    %56 = arith.truncf %55 : vector<16x16x128xf32> to vector<16x16x128xbf16>
    %c0_54 = arith.constant 0 : index
    %c0_55 = arith.constant 0 : index
    %c0_56 = arith.constant 0 : index
    %c0_57 = arith.constant 0 : index
    %57 = vector.load %arg5[%c0_54, %c0_55, %c0_56, %c0_57] : memref<1x16x16x128xbf16, #tpu.memory_space<vmem>>, vector<1x16x16x128xbf16>
    %58 = vector.shape_cast %57 : vector<1x16x16x128xbf16> to vector<16x16x128xbf16>
    %59 = vector.shape_cast %56 : vector<16x16x128xbf16> to vector<1x16x16x128xbf16>
    tpu.vector_store %arg5[%c0_54, %c0_55, %c0_56, %c0_57], %59 {strides = array<i32>} : memref<1x16x16x128xbf16, #tpu.memory_space<vmem>>, vector<1x16x16x128xbf16>,
    %cst_58 = arith.constant dense<0.000000e+00> : vector<128xf32>
    %60 = vector.multi_reduction <add>, %54, %cst_58 [0] : vector<256x128xf32> to vector<128xf32>
    %61 = vector.shape_cast %60 : vector<128xf32> to vector<1x128xf32>
    %c0_59 = arith.constant 0 : index
    %c0_60 = arith.constant 0 : index
    %c0_61 = arith.constant 0 : index
    %62 = vector.load %arg6[%c0_59, %c0_60, %c0_61] : memref<1x1x128xf32, #tpu.memory_space<vmem>>, vector<1x1x128xf32>
    %63 = vector.shape_cast %62 : vector<1x1x128xf32> to vector<1x128xf32>
    %64 = vector.shape_cast %61 : vector<1x128xf32> to vector<1x1x128xf32>
    tpu.vector_store %arg6[%c0_59, %c0_60, %c0_61], %64 {strides = array<i32>} : memref<1x1x128xf32, #tpu.memory_space<vmem>>, vector<1x1x128xf32>,
    %65 = arith.mulf %54, %54 : vector<256x128xf32>
    %cst_62 = arith.constant dense<0.000000e+00> : vector<128xf32>
    %66 = vector.multi_reduction <add>, %65, %cst_62 [0] : vector<256x128xf32> to vector<128xf32>
    %67 = vector.shape_cast %66 : vector<128xf32> to vector<1x128xf32>
    %c0_63 = arith.constant 0 : index
    %c0_64 = arith.constant 0 : index
    %c0_65 = arith.constant 0 : index
    %68 = vector.load %arg7[%c0_63, %c0_64, %c0_65] : memref<1x1x128xf32, #tpu.memory_space<vmem>>, vector<1x1x128xf32>
    %69 = vector.shape_cast %68 : vector<1x1x128xf32> to vector<1x128xf32>
    %70 = vector.shape_cast %67 : vector<1x128xf32> to vector<1x1x128xf32>
    tpu.vector_store %arg7[%c0_63, %c0_64, %c0_65], %70 {strides = array<i32>} : memref<1x1x128xf32, #tpu.memory_space<vmem>>, vector<1x1x128xf32>,
    return
  }
  func.func @transform_0(%arg0: i32) -> (i32, i32, i32, i32) {
    %c0_i32 = arith.constant 0 : i32
    %c0_i32_0 = arith.constant 0 : i32
    %c0_i32_1 = arith.constant 0 : i32
    %c0_i32_2 = arith.constant 0 : i32
    return %arg0, %c0_i32, %c0_i32_0, %c0_i32_1 : i32, i32, i32, i32
  }
  func.func @transform_1(%arg0: i32) -> (i32, i32) {
    %c0_i32 = arith.constant 0 : i32
    %c0_i32_0 = arith.constant 0 : i32
    %c0_i32_1 = arith.constant 0 : i32
    return %c0_i32, %c0_i32_0 : i32, i32
  }
  func.func @transform_2(%arg0: i32) -> (i32, i32) {
    %c0_i32 = arith.constant 0 : i32
    %c0_i32_0 = arith.constant 0 : i32
    %c0_i32_1 = arith.constant 0 : i32
    return %c0_i32, %c0_i32_0 : i32, i32
  }
  func.func @transform_3(%arg0: i32) -> (i32, i32) {
    %c0_i32 = arith.constant 0 : i32
    %c0_i32_0 = arith.constant 0 : i32
    %c0_i32_1 = arith.constant 0 : i32
    return %c0_i32, %c0_i32_0 : i32, i32
  }
  func.func @transform_4(%arg0: i32) -> (i32, i32, i32, i32) {
    %c0_i32 = arith.constant 0 : i32
    %c0_i32_0 = arith.constant 0 : i32
    %c0_i32_1 = arith.constant 0 : i32
    %c0_i32_2 = arith.constant 0 : i32
    return %arg0, %c0_i32, %c0_i32_0, %c0_i32_1 : i32, i32, i32, i32
  }
  func.func @transform_5(%arg0: i32) -> (i32, i32, i32) {
    %c0_i32 = arith.constant 0 : i32
    %c0_i32_0 = arith.constant 0 : i32
    %c0_i32_1 = arith.constant 0 : i32
    return %arg0, %c0_i32, %c0_i32_0 : i32, i32, i32
  }
  func.func @transform_6(%arg0: i32) -> (i32, i32, i32) {
    %c0_i32 = arith.constant 0 : i32
    %c0_i32_0 = arith.constant 0 : i32
    %c0_i32_1 = arith.constant 0 : i32
    return %arg0, %c0_i32, %c0_i32_0 : i32, i32, i32
  }
}

module attributes {stable_mosaic.version = 11 : i64} {
  func.func @_finalize_outer_kernel(%arg0: i32, %arg1: memref<1x16x16x128xbf16, #tpu.memory_space<vmem>>, %arg2: memref<1x16x16x128xbf16, #tpu.memory_space<vmem>>, %arg3: memref<1x16x16x128xbf16, #tpu.memory_space<vmem>>, %arg4: memref<1x128xf32, #tpu.memory_space<vmem>>, %arg5: memref<1x128xf32, #tpu.memory_space<vmem>>, %arg6: memref<1x16x16x128xf32, #tpu.memory_space<vmem>>) attributes {dimension_semantics = [#tpu.dimension_semantics<parallel>], iteration_bounds = array<i64: 2>, scalar_prefetch = 0 : i64, scratch_operands = 0 : i64, tpu.core_type = #tpu.core_type<tc>, window_params = [{transform_indices = @transform_0, window_bounds = array<i64: 1, 16, 16, 128>}, {transform_indices = @transform_1, window_bounds = array<i64: 1, 16, 16, 128>}, {transform_indices = @transform_2, window_bounds = array<i64: 1, 16, 16, 128>}, {pipeline_mode = #tpu.pipeline_mode<synchronous>, transform_indices = @transform_3, window_bounds = array<i64: 1, 128>}, {pipeline_mode = #tpu.pipeline_mode<synchronous>, transform_indices = @transform_4, window_bounds = array<i64: 1, 128>}, {transform_indices = @transform_5, window_bounds = array<i64: 1, 16, 16, 128>}]} {
    %c0 = arith.constant 0 : index
    %c0_0 = arith.constant 0 : index
    %c0_1 = arith.constant 0 : index
    %c0_2 = arith.constant 0 : index
    %0 = vector.load %arg1[%c0, %c0_0, %c0_1, %c0_2] : memref<1x16x16x128xbf16, #tpu.memory_space<vmem>>, vector<1x16x16x128xbf16>
    %1 = vector.shape_cast %0 : vector<1x16x16x128xbf16> to vector<16x16x128xbf16>
    %2 = arith.extf %1 : vector<16x16x128xbf16> to vector<16x16x128xf32>
    %c0_3 = arith.constant 0 : index
    %c0_4 = arith.constant 0 : index
    %3 = vector.load %arg4[%c0_3, %c0_4] : memref<1x128xf32, #tpu.memory_space<vmem>>, vector<1x128xf32>
    %4 = vector.shape_cast %3 : vector<1x128xf32> to vector<1x1x128xf32>
    %5 = vector.broadcast %4 : vector<1x1x128xf32> to vector<16x16x128xf32>
    %6 = arith.mulf %2, %5 : vector<16x16x128xf32>
    %c0_5 = arith.constant 0 : index
    %c0_6 = arith.constant 0 : index
    %7 = vector.load %arg5[%c0_5, %c0_6] : memref<1x128xf32, #tpu.memory_space<vmem>>, vector<1x128xf32>
    %8 = vector.shape_cast %7 : vector<1x128xf32> to vector<1x1x128xf32>
    %9 = vector.broadcast %8 : vector<1x1x128xf32> to vector<16x16x128xf32>
    %10 = arith.addf %6, %9 : vector<16x16x128xf32>
    %c0_7 = arith.constant 0 : index
    %c0_8 = arith.constant 0 : index
    %c0_9 = arith.constant 0 : index
    %c0_10 = arith.constant 0 : index
    %11 = vector.load %arg2[%c0_7, %c0_8, %c0_9, %c0_10] : memref<1x16x16x128xbf16, #tpu.memory_space<vmem>>, vector<1x16x16x128xbf16>
    %12 = vector.shape_cast %11 : vector<1x16x16x128xbf16> to vector<16x16x128xbf16>
    %13 = arith.extf %12 : vector<16x16x128xbf16> to vector<16x16x128xf32>
    %14 = arith.addf %10, %13 : vector<16x16x128xf32>
    %c0_11 = arith.constant 0 : index
    %c0_12 = arith.constant 0 : index
    %c0_13 = arith.constant 0 : index
    %c0_14 = arith.constant 0 : index
    %15 = vector.load %arg3[%c0_11, %c0_12, %c0_13, %c0_14] : memref<1x16x16x128xbf16, #tpu.memory_space<vmem>>, vector<1x16x16x128xbf16>
    %16 = vector.shape_cast %15 : vector<1x16x16x128xbf16> to vector<16x16x128xbf16>
    %17 = arith.extf %16 : vector<16x16x128xbf16> to vector<16x16x128xf32>
    %18 = arith.addf %14, %17 : vector<16x16x128xf32>
    %c0_15 = arith.constant 0 : index
    %c0_16 = arith.constant 0 : index
    %c0_17 = arith.constant 0 : index
    %c0_18 = arith.constant 0 : index
    %19 = vector.load %arg6[%c0_15, %c0_16, %c0_17, %c0_18] : memref<1x16x16x128xf32, #tpu.memory_space<vmem>>, vector<1x16x16x128xf32>
    %20 = vector.shape_cast %19 : vector<1x16x16x128xf32> to vector<16x16x128xf32>
    %21 = vector.shape_cast %18 : vector<16x16x128xf32> to vector<1x16x16x128xf32>
    tpu.vector_store %arg6[%c0_15, %c0_16, %c0_17, %c0_18], %21 {strides = array<i32>} : memref<1x16x16x128xf32, #tpu.memory_space<vmem>>, vector<1x16x16x128xf32>,
    return
  }
  func.func @transform_0(%arg0: i32) -> (i32, i32, i32, i32) {
    %c0_i32 = arith.constant 0 : i32
    %c0_i32_0 = arith.constant 0 : i32
    %c0_i32_1 = arith.constant 0 : i32
    %c0_i32_2 = arith.constant 0 : i32
    return %arg0, %c0_i32, %c0_i32_0, %c0_i32_1 : i32, i32, i32, i32
  }
  func.func @transform_1(%arg0: i32) -> (i32, i32, i32, i32) {
    %c0_i32 = arith.constant 0 : i32
    %c0_i32_0 = arith.constant 0 : i32
    %c0_i32_1 = arith.constant 0 : i32
    %c0_i32_2 = arith.constant 0 : i32
    return %arg0, %c0_i32, %c0_i32_0, %c0_i32_1 : i32, i32, i32, i32
  }
  func.func @transform_2(%arg0: i32) -> (i32, i32, i32, i32) {
    %c0_i32 = arith.constant 0 : i32
    %c0_i32_0 = arith.constant 0 : i32
    %c0_i32_1 = arith.constant 0 : i32
    %c0_i32_2 = arith.constant 0 : i32
    return %arg0, %c0_i32, %c0_i32_0, %c0_i32_1 : i32, i32, i32, i32
  }
  func.func @transform_3(%arg0: i32) -> (i32, i32) {
    %c0_i32 = arith.constant 0 : i32
    %c0_i32_0 = arith.constant 0 : i32
    %c0_i32_1 = arith.constant 0 : i32
    return %c0_i32, %c0_i32_0 : i32, i32
  }
  func.func @transform_4(%arg0: i32) -> (i32, i32) {
    %c0_i32 = arith.constant 0 : i32
    %c0_i32_0 = arith.constant 0 : i32
    %c0_i32_1 = arith.constant 0 : i32
    return %c0_i32, %c0_i32_0 : i32, i32
  }
  func.func @transform_5(%arg0: i32) -> (i32, i32, i32, i32) {
    %c0_i32 = arith.constant 0 : i32
    %c0_i32_0 = arith.constant 0 : i32
    %c0_i32_1 = arith.constant 0 : i32
    %c0_i32_2 = arith.constant 0 : i32
    return %arg0, %c0_i32, %c0_i32_0, %c0_i32_1 : i32, i32, i32, i32
  }
}

module attributes {stable_mosaic.version = 11 : i64} {
  func.func @_finalize_kernel(%arg0: i32, %arg1: memref<1x16x16x128xbf16, #tpu.memory_space<vmem>>, %arg2: memref<1x16x16x128xbf16, #tpu.memory_space<vmem>>, %arg3: memref<1x128xf32, #tpu.memory_space<vmem>>, %arg4: memref<1x128xf32, #tpu.memory_space<vmem>>, %arg5: memref<1x16x16x128xbf16, #tpu.memory_space<vmem>>) attributes {dimension_semantics = [#tpu.dimension_semantics<parallel>], iteration_bounds = array<i64: 2>, scalar_prefetch = 0 : i64, scratch_operands = 0 : i64, tpu.core_type = #tpu.core_type<tc>, window_params = [{transform_indices = @transform_0, window_bounds = array<i64: 1, 16, 16, 128>}, {transform_indices = @transform_1, window_bounds = array<i64: 1, 16, 16, 128>}, {pipeline_mode = #tpu.pipeline_mode<synchronous>, transform_indices = @transform_2, window_bounds = array<i64: 1, 128>}, {pipeline_mode = #tpu.pipeline_mode<synchronous>, transform_indices = @transform_3, window_bounds = array<i64: 1, 128>}, {transform_indices = @transform_4, window_bounds = array<i64: 1, 16, 16, 128>}]} {
    %c0 = arith.constant 0 : index
    %c0_0 = arith.constant 0 : index
    %c0_1 = arith.constant 0 : index
    %c0_2 = arith.constant 0 : index
    %0 = vector.load %arg1[%c0, %c0_0, %c0_1, %c0_2] : memref<1x16x16x128xbf16, #tpu.memory_space<vmem>>, vector<1x16x16x128xbf16>
    %1 = vector.shape_cast %0 : vector<1x16x16x128xbf16> to vector<16x16x128xbf16>
    %2 = arith.extf %1 : vector<16x16x128xbf16> to vector<16x16x128xf32>
    %c0_3 = arith.constant 0 : index
    %c0_4 = arith.constant 0 : index
    %3 = vector.load %arg3[%c0_3, %c0_4] : memref<1x128xf32, #tpu.memory_space<vmem>>, vector<1x128xf32>
    %4 = vector.shape_cast %3 : vector<1x128xf32> to vector<1x1x128xf32>
    %5 = vector.broadcast %4 : vector<1x1x128xf32> to vector<16x16x128xf32>
    %6 = arith.mulf %2, %5 : vector<16x16x128xf32>
    %c0_5 = arith.constant 0 : index
    %c0_6 = arith.constant 0 : index
    %7 = vector.load %arg4[%c0_5, %c0_6] : memref<1x128xf32, #tpu.memory_space<vmem>>, vector<1x128xf32>
    %8 = vector.shape_cast %7 : vector<1x128xf32> to vector<1x1x128xf32>
    %9 = vector.broadcast %8 : vector<1x1x128xf32> to vector<16x16x128xf32>
    %10 = arith.addf %6, %9 : vector<16x16x128xf32>
    %c0_7 = arith.constant 0 : index
    %c0_8 = arith.constant 0 : index
    %c0_9 = arith.constant 0 : index
    %c0_10 = arith.constant 0 : index
    %11 = vector.load %arg2[%c0_7, %c0_8, %c0_9, %c0_10] : memref<1x16x16x128xbf16, #tpu.memory_space<vmem>>, vector<1x16x16x128xbf16>
    %12 = vector.shape_cast %11 : vector<1x16x16x128xbf16> to vector<16x16x128xbf16>
    %13 = arith.extf %12 : vector<16x16x128xbf16> to vector<16x16x128xf32>
    %14 = arith.addf %10, %13 : vector<16x16x128xf32>
    %15 = arith.truncf %14 : vector<16x16x128xf32> to vector<16x16x128xbf16>
    %c0_11 = arith.constant 0 : index
    %c0_12 = arith.constant 0 : index
    %c0_13 = arith.constant 0 : index
    %c0_14 = arith.constant 0 : index
    %16 = vector.load %arg5[%c0_11, %c0_12, %c0_13, %c0_14] : memref<1x16x16x128xbf16, #tpu.memory_space<vmem>>, vector<1x16x16x128xbf16>
    %17 = vector.shape_cast %16 : vector<1x16x16x128xbf16> to vector<16x16x128xbf16>
    %18 = vector.shape_cast %15 : vector<16x16x128xbf16> to vector<1x16x16x128xbf16>
    tpu.vector_store %arg5[%c0_11, %c0_12, %c0_13, %c0_14], %18 {strides = array<i32>} : memref<1x16x16x128xbf16, #tpu.memory_space<vmem>>, vector<1x16x16x128xbf16>,
    return
  }
  func.func @transform_0(%arg0: i32) -> (i32, i32, i32, i32) {
    %c0_i32 = arith.constant 0 : i32
    %c0_i32_0 = arith.constant 0 : i32
    %c0_i32_1 = arith.constant 0 : i32
    %c0_i32_2 = arith.constant 0 : i32
    return %arg0, %c0_i32, %c0_i32_0, %c0_i32_1 : i32, i32, i32, i32
  }
  func.func @transform_1(%arg0: i32) -> (i32, i32, i32, i32) {
    %c0_i32 = arith.constant 0 : i32
    %c0_i32_0 = arith.constant 0 : i32
    %c0_i32_1 = arith.constant 0 : i32
    %c0_i32_2 = arith.constant 0 : i32
    return %arg0, %c0_i32, %c0_i32_0, %c0_i32_1 : i32, i32, i32, i32
  }
  func.func @transform_2(%arg0: i32) -> (i32, i32) {
    %c0_i32 = arith.constant 0 : i32
    %c0_i32_0 = arith.constant 0 : i32
    %c0_i32_1 = arith.constant 0 : i32
    return %c0_i32, %c0_i32_0 : i32, i32
  }
  func.func @transform_3(%arg0: i32) -> (i32, i32) {
    %c0_i32 = arith.constant 0 : i32
    %c0_i32_0 = arith.constant 0 : i32
    %c0_i32_1 = arith.constant 0 : i32
    return %c0_i32, %c0_i32_0 : i32, i32
  }
  func.func @transform_4(%arg0: i32) -> (i32, i32, i32, i32) {
    %c0_i32 = arith.constant 0 : i32
    %c0_i32_0 = arith.constant 0 : i32
    %c0_i32_1 = arith.constant 0 : i32
    %c0_i32_2 = arith.constant 0 : i32
    return %arg0, %c0_i32, %c0_i32_0, %c0_i32_1 : i32, i32, i32, i32
  }
}

</mosaic_0001>

<llo_original>
// kernel: residual_maxi_block_nchw.11
$region0: #{residual_maxi_block_nchw.11}
  #allocation0 [shape = 'u32[]', space=smem, size = 0x4, offset = 0x4, fixed_abs, tag = 'smem constant byte address 0x4 - core index']
  #allocation1 [shape = 'u32[144,128]{1,0:T(1,128)}', space=vmem, size = 0x12000, scoped, tag = 'internal scratch']
  %s0 = inlined_call_operand.vmem [shape: bf16[2,16,16,128], index: 0, kind: input, shape index: {}]
  %s1 = inlined_call_operand.vmem [shape: bf16[2,16,16,128], index: 1, kind: input, shape index: {}]
  %s2 = inlined_call_operand.vmem [shape: f32[1,128], index: 2, kind: input, shape index: {}]
  %s3 = inlined_call_operand.vmem [shape: f32[1,128], index: 3, kind: input, shape index: {}]
  %s4 = inlined_call_operand.vmem [shape: bf16[2,16,16,128], index: 4, kind: output, shape index: {}]
  %s5 = sld [smem:[#allocation0]]
  $region49: #{residual_maxi_block_nchw.11} parent=0
    _
  %s7 = ssub.s32 1, %s5
  %s8 = scalar_select 0, %s7, %s5
  loop: start=0, step=1, limit=4
  $region2: #{residual_maxi_block_nchw.11} parent=0 // loop_pre_header
    _
  $region3: #{residual_maxi_block_nchw.11} parent=0 // loop_header
    %s10 = sphi 0, %s14
    %p11 = scmp.ge.s32.totalorder %s10, 4
    %s20 = sphi 0, %s22
    %s23 = sphi 0, %s20
    %s24 = sphi 0, %s23
    %s40 = sphi 0, %s24
    %s46 = sphi 0, %s48
    %s49 = sphi 0, %s46
    %s50 = sphi 0, %s49
    %s66 = sphi 0, %s50
    %s70 = sphi 0, %s70
    %s72 = sphi 0, %s70
    %s73 = sphi 0, %s72
    %s87 = sphi 0, %s73
    %s91 = sphi 0, %s91
    %s93 = sphi 0, %s91
    %s94 = sphi 0, %s93
    %s108 = sphi 0, %s94
    %s114 = sphi 0, %s116
    %s117 = sphi 0, %s114
    %s118 = sphi 0, %s117
    %s134 = sphi 0, %s118
  $region4: #{residual_maxi_block_nchw.11} parent=0 // loop_header_branch
    %13 = sbr.rel (%p11) target = $region8
  $region5: #{residual_maxi_block_nchw.11} parent=0 // loop_body
    %s15 = ssub.s32 %s10, 1
    %s16 = ssub.s32 %s10, 2
    %s17 = sadd.s32 %s10, 1
    %s18 = ssub.s32 %s10, %s17
    %p19 = scmp.eq.s32.totalorder %s18, 0
    %s21 = sadd.s32 %s20, 1
    %s22 = scalar_select %p19, %s20, %s21
    %p25 = pneg %p19
    %p26 = scmp.eq.s32.totalorder %s10, 1
    %p27 = por %p25, %p26
    %p28 = scmp.ne.s32.totalorder %s20, %s23
    %p29 = scmp.eq.s32.totalorder %s10, 0
    %p30 = por %p28, %p29
    %p31 = scmp.ne.s32.totalorder %s20, %s23
    %p32 = scmp.eq.s32.totalorder %s15, 1
    %p33 = por %p31, %p32
    %p34 = scmp.ne.s32.totalorder %s23, %s24
    %p35 = scmp.eq.s32.totalorder %s15, 0
    %p36 = por %p34, %p35
    %p37 = scmp.ne.s32.totalorder %s23, %s24
    %p38 = scmp.eq.s32.totalorder %s16, 1
    %p39 = por %p37, %p38
    %p41 = scmp.ne.s32.totalorder %s24, %s40
    %p42 = scmp.eq.s32.totalorder %s16, 0
    %p43 = por %p41, %p42
    %s44 = ssub.s32 %s10, %s17
    %p45 = scmp.eq.s32.totalorder %s44, 0
    %s47 = sadd.s32 %s46, 1
    %s48 = scalar_select %p45, %s46, %s47
    %p51 = pneg %p45
    %p52 = scmp.eq.s32.totalorder %s10, 1
    %p53 = por %p51, %p52
    %p54 = scmp.ne.s32.totalorder %s46, %s49
    %p55 = scmp.eq.s32.totalorder %s10, 0
    %p56 = por %p54, %p55
    %p57 = scmp.ne.s32.totalorder %s46, %s49
    %p58 = scmp.eq.s32.totalorder %s15, 1
    %p59 = por %p57, %p58
    %p60 = scmp.ne.s32.totalorder %s49, %s50
    %p61 = scmp.eq.s32.totalorder %s15, 0
    %p62 = por %p60, %p61
    %p63 = scmp.ne.s32.totalorder %s49, %s50
    %p64 = scmp.eq.s32.totalorder %s16, 1
    %p65 = por %p63, %p64
    %p67 = scmp.ne.s32.totalorder %s50, %s66
    %p68 = scmp.eq.s32.totalorder %s16, 0
    %p69 = por %p67, %p68
    %s71 = sadd.s32 %s70, 1
    %p74 = scmp.eq.s32.totalorder %s10, 1
    %p75 = scmp.ne.s32.totalorder %s70, %s72
    %p76 = scmp.eq.s32.totalorder %s10, 0
    %p77 = por %p75, %p76
    %p78 = scmp.ne.s32.totalorder %s70, %s72
    %p79 = scmp.eq.s32.totalorder %s15, 1
    %p80 = por %p78, %p79
    %p81 = scmp.ne.s32.totalorder %s72, %s73
    %p82 = scmp.eq.s32.totalorder %s15, 0
    %p83 = por %p81, %p82
    %p84 = scmp.ne.s32.totalorder %s72, %s73
    %p85 = scmp.eq.s32.totalorder %s16, 1
    %p86 = por %p84, %p85
    %p88 = scmp.ne.s32.totalorder %s73, %s87
    %p89 = scmp.eq.s32.totalorder %s16, 0
    %p90 = por %p88, %p89
    %s92 = sadd.s32 %s91, 1
    %p95 = scmp.eq.s32.totalorder %s10, 1
    %p96 = scmp.ne.s32.totalorder %s91, %s93
    %p97 = scmp.eq.s32.totalorder %s10, 0
    %p98 = por %p96, %p97
    %p99 = scmp.ne.s32.totalorder %s91, %s93
    %p100 = scmp.eq.s32.totalorder %s15, 1
    %p101 = por %p99, %p100
    %p102 = scmp.ne.s32.totalorder %s93, %s94
    %p103 = scmp.eq.s32.totalorder %s15, 0
    %p104 = por %p102, %p103
    %p105 = scmp.ne.s32.totalorder %s93, %s94
    %p106 = scmp.eq.s32.totalorder %s16, 1
    %p107 = por %p105, %p106
    %p109 = scmp.ne.s32.totalorder %s94, %s108
    %p110 = scmp.eq.s32.totalorder %s16, 0
    %p111 = por %p109, %p110
    %s112 = ssub.s32 %s10, %s17
    %p113 = scmp.eq.s32.totalorder %s112, 0
    %s115 = sadd.s32 %s114, 1
    %s116 = scalar_select %p113, %s114, %s115
    %p119 = pneg %p113
    %p120 = scmp.eq.s32.totalorder %s10, 1
    %p121 = por %p119, %p120
    %p122 = scmp.ne.s32.totalorder %s114, %s117
    %p123 = scmp.eq.s32.totalorder %s10, 0
    %p124 = por %p122, %p123
    %p125 = scmp.ne.s32.totalorder %s114, %s117
    %p126 = scmp.eq.s32.totalorder %s15, 1
    %p127 = por %p125, %p126
    %p128 = scmp.ne.s32.totalorder %s117, %s118
    %p129 = scmp.eq.s32.totalorder %s15, 0
    %p130 = por %p128, %p129
    %p131 = scmp.ne.s32.totalorder %s117, %s118
    %p132 = scmp.eq.s32.totalorder %s16, 1
    %p133 = por %p131, %p132
    %p135 = scmp.ne.s32.totalorder %s118, %s134
    %p136 = scmp.eq.s32.totalorder %s16, 0
    %p137 = por %p135, %p136
    %p138 = scmp.le.s32.totalorder 1, %s10
    %p139 = scmp.lt.s32.totalorder %s10, 3
    %p140 = pnand %p138, %p139
    %p141 = pneg %p140
    // Predicated region
    $region9: #{residual_maxi_block_nchw.11} parent=5 // pred_check
      _
    $region10: #{residual_maxi_block_nchw.11} parent=5 // pred_check_branch
      %143 = sbr.rel (%p140) target = $region12
    $region11: #{residual_maxi_block_nchw.11} parent=5 // pred_region
      %s144 = ssub.s32 %s10, 1
      // Predicated region
      $region13: #{residual_maxi_block_nchw.11} parent=11 // pred_check
        %p145 = pneg %p83
      $region14: #{residual_maxi_block_nchw.11} parent=11 // pred_check_branch
        %147 = sbr.rel (%p145) target = $region16
      $region15: #{residual_maxi_block_nchw.11} parent=11 // pred_region
        _
      $region16: #{residual_maxi_block_nchw.11} parent=11 // pred_fallthru
        _
      // Predicated region
      $region17: #{residual_maxi_block_nchw.11} parent=11 // pred_check
        %p148 = pneg %p104
      $region18: #{residual_maxi_block_nchw.11} parent=11 // pred_check_branch
        %150 = sbr.rel (%p148) target = $region20
      $region19: #{residual_maxi_block_nchw.11} parent=11 // pred_region
        _
      $region20: #{residual_maxi_block_nchw.11} parent=11 // pred_fallthru
        _
    $region12: #{residual_maxi_block_nchw.11} parent=5 // pred_fallthru
      _
    %p151 = scmp.lt.s32.totalorder %s10, 2
    // Predicated region
    $region21: #{residual_maxi_block_nchw.11} parent=5 // pred_check
      %p152 = pneg %p151
    $region22: #{residual_maxi_block_nchw.11} parent=5 // pred_check_branch
      %154 = sbr.rel (%p152) target = $region24
    $region23: #{residual_maxi_block_nchw.11} parent=5 // pred_region
      // Predicated region
      $region25: #{residual_maxi_block_nchw.11} parent=23 // pred_check
        %p155 = pneg %p30
      $region26: #{residual_maxi_block_nchw.11} parent=23 // pred_check_branch
        %157 = sbr.rel (%p155) target = $region28
      $region27: #{residual_maxi_block_nchw.11} parent=23 // pred_region
        %p158 = scmp.lt.s32.totalorder %s10, 1
        %s159 = scalar_select %p158, %s10, 1
        %s160 = smul.addr %s159, 32
        %s161 = smul.addr %s160, 4
        %s162 = scalar_lea.vmem %s0, %s161
      $region28: #{residual_maxi_block_nchw.11} parent=23 // pred_fallthru
        _
      // Predicated region
      $region29: #{residual_maxi_block_nchw.11} parent=23 // pred_check
        %p163 = pneg %p56
      $region30: #{residual_maxi_block_nchw.11} parent=23 // pred_check_branch
        %165 = sbr.rel (%p163) target = $region32
      $region31: #{residual_maxi_block_nchw.11} parent=23 // pred_region
        %p166 = scmp.lt.s32.totalorder %s10, 1
        %s167 = scalar_select %p166, %s10, 1
        %s168 = smul.addr %s167, 32
        %s169 = smul.addr %s168, 4
        %s170 = scalar_lea.vmem %s1, %s169
      $region32: #{residual_maxi_block_nchw.11} parent=23 // pred_fallthru
        _
    $region24: #{residual_maxi_block_nchw.11} parent=5 // pred_fallthru
      _
    %p171 = scmp.le.s32.totalorder 1, %s10
    %p172 = scmp.lt.s32.totalorder %s10, 3
    %p173 = pnand %p171, %p172
    %p174 = pneg %p173
    // Predicated region
    $region33: #{residual_maxi_block_nchw.11} parent=5 // pred_check
      _
    $region34: #{residual_maxi_block_nchw.11} parent=5 // pred_check_branch
      %176 = sbr.rel (%p173) target = $region36
    $region35: #{residual_maxi_block_nchw.11} parent=5 // pred_region
      %s177 = ssub.s32 %s10, 1
      %p178 = scmp.lt.s32.totalorder %s15, 1
      %s179 = scalar_select %p178, %s15, 1
      %s180 = smul.addr %s179, 32
      %s181 = smul.addr %s180, 4
      %s182 = scalar_lea.vmem %s0, %s181
      %p183 = pneg %p36
      %p184 = pneg %p33
      %p185 = scmp.lt.s32.totalorder %s15, 1
      %s186 = scalar_select %p185, %s15, 1
      %s187 = smul.addr %s186, 32
      %s188 = smul.addr %s187, 4
      %s189 = scalar_lea.vmem %s1, %s188
      %p190 = pneg %p62
      %p191 = pneg %p59
      %p192 = pneg %p83
      %p193 = pneg %p80
      %p194 = pneg %p104
      %p195 = pneg %p101
      %p196 = pneg %p130
      %p197 = pneg %p127
      %p198 = scmp.lt.s32.totalorder %s15, 1
      %s199 = scalar_select %p198, %s15, 1
      %s200 = smul.addr %s199, 32
      %s201 = smul.addr %s200, 4
      %s202 = scalar_lea.vmem %s4, %s201
      %p203 = scmp.lt.s32.totalorder %s15, 1
      %s204 = scalar_select %p203, %s15, 1
      %s205 = smul.addr %s204, 32
      %s206 = smul.addr %s205, 4
      %s207 = scalar_lea.vmem %s0, %s206
      %p208 = scmp.lt.s32.totalorder %s15, 1
      %s209 = scalar_select %p208, %s15, 1
      %s210 = smul.addr %s209, 32
      %s211 = smul.addr %s210, 4
      %s212 = scalar_lea.vmem %s1, %s211
      %p213 = scmp.lt.s32.totalorder %s15, 1
      %s214 = scalar_select %p213, %s15, 1
      %s215 = smul.addr %s214, 32
      %s216 = smul.addr %s215, 4
      %s217 = scalar_lea.vmem %s4, %s216
      %v218 = vld [vmem:[%s207] sm:$0xf]
      %v219 = vld [vmem:[%s207 + $0x4] sm:$0xf]
      %v220 = vld [vmem:[%s207 + $0x8] sm:$0xf]
      %v221 = vld [vmem:[%s207 + $0xc] sm:$0xf]
      %v222 = vld [vmem:[%s207 + $0x10] sm:$0xf]
      %v223 = vld [vmem:[%s207 + $0x14] sm:$0xf]
      %v224 = vld [vmem:[%s207 + $0x18] sm:$0xf]
      %v225 = vld [vmem:[%s207 + $0x1c] sm:$0xf]
      %v226 = vld [vmem:[%s207 + $0x20] sm:$0xf]
      %v227 = vld [vmem:[%s207 + $0x24] sm:$0xf]
      %v228 = vld [vmem:[%s207 + $0x28] sm:$0xf]
      %v229 = vld [vmem:[%s207 + $0x2c] sm:$0xf]
      %v230 = vld [vmem:[%s207 + $0x30] sm:$0xf]
      %v231 = vld [vmem:[%s207 + $0x34] sm:$0xf]
      %v232 = vld [vmem:[%s207 + $0x38] sm:$0xf]
      %v233 = vld [vmem:[%s207 + $0x3c] sm:$0xf]
      %v234 = vld [vmem:[%s207 + $0x40] sm:$0xf]
      %v235 = vld [vmem:[%s207 + $0x44] sm:$0xf]
      %v236 = vld [vmem:[%s207 + $0x48] sm:$0xf]
      %v237 = vld [vmem:[%s207 + $0x4c] sm:$0xf]
      %v238 = vld [vmem:[%s207 + $0x50] sm:$0xf]
      %v239 = vld [vmem:[%s207 + $0x54] sm:$0xf]
      %v240 = vld [vmem:[%s207 + $0x58] sm:$0xf]
      %v241 = vld [vmem:[%s207 + $0x5c] sm:$0xf]
      %v242 = vld [vmem:[%s207 + $0x60] sm:$0xf]
      %v243 = vld [vmem:[%s207 + $0x64] sm:$0xf]
      %v244 = vld [vmem:[%s207 + $0x68] sm:$0xf]
      %v245 = vld [vmem:[%s207 + $0x6c] sm:$0xf]
      %v246 = vld [vmem:[%s207 + $0x70] sm:$0xf]
      %v247 = vld [vmem:[%s207 + $0x74] sm:$0xf]
      %v248 = vld [vmem:[%s207 + $0x78] sm:$0xf]
      %v249 = vld [vmem:[%s207 + $0x7c] sm:$0xf]
      %v250 = vunpack.c.l.bf16 %v218
      %v251 = vunpack.c.l.bf16 %v219
      %v252 = vunpack.c.l.bf16 %v220
      %v253 = vunpack.c.l.bf16 %v221
      %v254 = vunpack.c.l.bf16 %v222
      %v255 = vunpack.c.l.bf16 %v223
      %v256 = vunpack.c.l.bf16 %v224
      %v257 = vunpack.c.l.bf16 %v225
      %v258 = vunpack.c.l.bf16 %v226
      %v259 = vunpack.c.l.bf16 %v227
      %v260 = vunpack.c.l.bf16 %v228
      %v261 = vunpack.c.l.bf16 %v229
      %v262 = vunpack.c.l.bf16 %v230
      %v263 = vunpack.c.l.bf16 %v231
      %v264 = vunpack.c.l.bf16 %v232
      %v265 = vunpack.c.l.bf16 %v233
      %v266 = vunpack.c.l.bf16 %v234
      %v267 = vunpack.c.l.bf16 %v235
      %v268 = vunpack.c.l.bf16 %v236
      %v269 = vunpack.c.l.bf16 %v237
      %v270 = vunpack.c.l.bf16 %v238
      %v271 = vunpack.c.l.bf16 %v239
      %v272 = vunpack.c.l.bf16 %v240
      %v273 = vunpack.c.l.bf16 %v241
      %v274 = vunpack.c.l.bf16 %v242
      %v275 = vunpack.c.l.bf16 %v243
      %v276 = vunpack.c.l.bf16 %v244
      %v277 = vunpack.c.l.bf16 %v245
      %v278 = vunpack.c.l.bf16 %v246
      %v279 = vunpack.c.l.bf16 %v247
      %v280 = vunpack.c.l.bf16 %v248
      %v281 = vunpack.c.l.bf16 %v249
      %v282 = vld [vmem:[%s2] sm:$0x1]
      %v284 = vlaneseq
      %v285 = vshrl.u32 %v284, 7
      %v286 = vsub.s32 0, %v285
      %v287 = vrot.slane %v282, %v286
      %v289 = vmul.f32 %v250, %v287
      %v290 = vmul.f32 %v251, %v287
      %v291 = vmul.f32 %v252, %v287
      %v292 = vmul.f32 %v253, %v287
      %v293 = vmul.f32 %v254, %v287
      %v294 = vmul.f32 %v255, %v287
      %v295 = vmul.f32 %v256, %v287
      %v296 = vmul.f32 %v257, %v287
      %v297 = vmul.f32 %v258, %v287
      %v298 = vmul.f32 %v259, %v287
      %v299 = vmul.f32 %v260, %v287
      %v300 = vmul.f32 %v261, %v287
      %v301 = vmul.f32 %v262, %v287
      %v302 = vmul.f32 %v263, %v287
      %v303 = vmul.f32 %v264, %v287
      %v304 = vmul.f32 %v265, %v287
      %v305 = vmul.f32 %v266, %v287
      %v306 = vmul.f32 %v267, %v287
      %v307 = vmul.f32 %v268, %v287
      %v308 = vmul.f32 %v269, %v287
      %v309 = vmul.f32 %v270, %v287
      %v310 = vmul.f32 %v271, %v287
      %v311 = vmul.f32 %v272, %v287
      %v312 = vmul.f32 %v273, %v287
      %v313 = vmul.f32 %v274, %v287
      %v314 = vmul.f32 %v275, %v287
      %v315 = vmul.f32 %v276, %v287
      %v316 = vmul.f32 %v277, %v287
      %v317 = vmul.f32 %v278, %v287
      %v318 = vmul.f32 %v279, %v287
      %v319 = vmul.f32 %v280, %v287
      %v320 = vmul.f32 %v281, %v287
      %v321 = vld [vmem:[%s3] sm:$0x1]
      %v323 = vlaneseq
      %v324 = vshrl.u32 %v323, 7
      %v325 = vsub.s32 0, %v324
      %v326 = vrot.slane %v321, %v325
      %v328 = vadd.f32 %v289, %v326
      %v329 = vadd.f32 %v290, %v326
      %v330 = vadd.f32 %v291, %v326
      %v331 = vadd.f32 %v292, %v326
      %v332 = vadd.f32 %v293, %v326
      %v333 = vadd.f32 %v294, %v326
      %v334 = vadd.f32 %v295, %v326
      %v335 = vadd.f32 %v296, %v326
      %v336 = vadd.f32 %v297, %v326
      %v337 = vadd.f32 %v298, %v326
      %v338 = vadd.f32 %v299, %v326
      %v339 = vadd.f32 %v300, %v326
      %v340 = vadd.f32 %v301, %v326
      %v341 = vadd.f32 %v302, %v326
      %v342 = vadd.f32 %v303, %v326
      %v343 = vadd.f32 %v304, %v326
      %v344 = vadd.f32 %v305, %v326
      %v345 = vadd.f32 %v306, %v326
      %v346 = vadd.f32 %v307, %v326
      %v347 = vadd.f32 %v308, %v326
      %v348 = vadd.f32 %v309, %v326
      %v349 = vadd.f32 %v310, %v326
      %v350 = vadd.f32 %v311, %v326
      %v351 = vadd.f32 %v312, %v326
      %v352 = vadd.f32 %v313, %v326
      %v353 = vadd.f32 %v314, %v326
      %v354 = vadd.f32 %v315, %v326
      %v355 = vadd.f32 %v316, %v326
      %v356 = vadd.f32 %v317, %v326
      %v357 = vadd.f32 %v318, %v326
      %v358 = vadd.f32 %v319, %v326
      %v359 = vadd.f32 %v320, %v326
      %v360 = vld [vmem:[%s212] sm:$0xf]
      %v361 = vld [vmem:[%s212 + $0x4] sm:$0xf]
      %v362 = vld [vmem:[%s212 + $0x8] sm:$0xf]
      %v363 = vld [vmem:[%s212 + $0xc] sm:$0xf]
      %v364 = vld [vmem:[%s212 + $0x10] sm:$0xf]
      %v365 = vld [vmem:[%s212 + $0x14] sm:$0xf]
      %v366 = vld [vmem:[%s212 + $0x18] sm:$0xf]
      %v367 = vld [vmem:[%s212 + $0x1c] sm:$0xf]
      %v368 = vld [vmem:[%s212 + $0x20] sm:$0xf]
      %v369 = vld [vmem:[%s212 + $0x24] sm:$0xf]
      %v370 = vld [vmem:[%s212 + $0x28] sm:$0xf]
      %v371 = vld [vmem:[%s212 + $0x2c] sm:$0xf]
      %v372 = vld [vmem:[%s212 + $0x30] sm:$0xf]
      %v373 = vld [vmem:[%s212 + $0x34] sm:$0xf]
      %v374 = vld [vmem:[%s212 + $0x38] sm:$0xf]
      %v375 = vld [vmem:[%s212 + $0x3c] sm:$0xf]
      %v376 = vld [vmem:[%s212 + $0x40] sm:$0xf]
      %v377 = vld [vmem:[%s212 + $0x44] sm:$0xf]
      %v378 = vld [vmem:[%s212 + $0x48] sm:$0xf]
      %v379 = vld [vmem:[%s212 + $0x4c] sm:$0xf]
      %v380 = vld [vmem:[%s212 + $0x50] sm:$0xf]
      %v381 = vld [vmem:[%s212 + $0x54] sm:$0xf]
      %v382 = vld [vmem:[%s212 + $0x58] sm:$0xf]
      %v383 = vld [vmem:[%s212 + $0x5c] sm:$0xf]
      %v384 = vld [vmem:[%s212 + $0x60] sm:$0xf]
      %v385 = vld [vmem:[%s212 + $0x64] sm:$0xf]
      %v386 = vld [vmem:[%s212 + $0x68] sm:$0xf]
      %v387 = vld [vmem:[%s212 + $0x6c] sm:$0xf]
      %v388 = vld [vmem:[%s212 + $0x70] sm:$0xf]
      %v389 = vld [vmem:[%s212 + $0x74] sm:$0xf]
      %v390 = vld [vmem:[%s212 + $0x78] sm:$0xf]
      %v391 = vld [vmem:[%s212 + $0x7c] sm:$0xf]
      %v392 = vunpack.c.l.bf16 %v360
      %v393 = vunpack.c.l.bf16 %v361
      %v394 = vunpack.c.l.bf16 %v362
      %v395 = vunpack.c.l.bf16 %v363
      %v396 = vunpack.c.l.bf16 %v364
      %v397 = vunpack.c.l.bf16 %v365
      %v398 = vunpack.c.l.bf16 %v366
      %v399 = vunpack.c.l.bf16 %v367
      %v400 = vunpack.c.l.bf16 %v368
      %v401 = vunpack.c.l.bf16 %v369
      %v402 = vunpack.c.l.bf16 %v370
      %v403 = vunpack.c.l.bf16 %v371
      %v404 = vunpack.c.l.bf16 %v372
      %v405 = vunpack.c.l.bf16 %v373
      %v406 = vunpack.c.l.bf16 %v374
      %v407 = vunpack.c.l.bf16 %v375
      %v408 = vunpack.c.l.bf16 %v376
      %v409 = vunpack.c.l.bf16 %v377
      %v410 = vunpack.c.l.bf16 %v378
      %v411 = vunpack.c.l.bf16 %v379
      %v412 = vunpack.c.l.bf16 %v380
      %v413 = vunpack.c.l.bf16 %v381
      %v414 = vunpack.c.l.bf16 %v382
      %v415 = vunpack.c.l.bf16 %v383
      %v416 = vunpack.c.l.bf16 %v384
      %v417 = vunpack.c.l.bf16 %v385
      %v418 = vunpack.c.l.bf16 %v386
      %v419 = vunpack.c.l.bf16 %v387
      %v420 = vunpack.c.l.bf16 %v388
      %v421 = vunpack.c.l.bf16 %v389
      %v422 = vunpack.c.l.bf16 %v390
      %v423 = vunpack.c.l.bf16 %v391
      %v424 = vadd.f32 %v328, %v392
      %v425 = vadd.f32 %v329, %v393
      %v426 = vadd.f32 %v330, %v394
      %v427 = vadd.f32 %v331, %v395
      %v428 = vadd.f32 %v332, %v396
      %v429 = vadd.f32 %v333, %v397
      %v430 = vadd.f32 %v334, %v398
      %v431 = vadd.f32 %v335, %v399
      %v432 = vadd.f32 %v336, %v400
      %v433 = vadd.f32 %v337, %v401
      %v434 = vadd.f32 %v338, %v402
      %v435 = vadd.f32 %v339, %v403
      %v436 = vadd.f32 %v340, %v404
      %v437 = vadd.f32 %v341, %v405
      %v438 = vadd.f32 %v342, %v406
      %v439 = vadd.f32 %v343, %v407
      %v440 = vadd.f32 %v344, %v408
      %v441 = vadd.f32 %v345, %v409
      %v442 = vadd.f32 %v346, %v410
      %v443 = vadd.f32 %v347, %v411
      %v444 = vadd.f32 %v348, %v412
      %v445 = vadd.f32 %v349, %v413
      %v446 = vadd.f32 %v350, %v414
      %v447 = vadd.f32 %v351, %v415
      %v448 = vadd.f32 %v352, %v416
      %v449 = vadd.f32 %v353, %v417
      %v450 = vadd.f32 %v354, %v418
      %v451 = vadd.f32 %v355, %v419
      %v452 = vadd.f32 %v356, %v420
      %v453 = vadd.f32 %v357, %v421
      %v454 = vadd.f32 %v358, %v422
      %v455 = vadd.f32 %v359, %v423
      %v456 = vpack.c.bf16 %v425, %v424
      %v457 = vpack.c.bf16 %v427, %v426
      %v458 = vpack.c.bf16 %v429, %v428
      %v459 = vpack.c.bf16 %v431, %v430
      %v460 = vpack.c.bf16 %v433, %v432
      %v461 = vpack.c.bf16 %v435, %v434
      %v462 = vpack.c.bf16 %v437, %v436
      %v463 = vpack.c.bf16 %v439, %v438
      %v464 = vpack.c.bf16 %v441, %v440
      %v465 = vpack.c.bf16 %v443, %v442
      %v466 = vpack.c.bf16 %v445, %v444
      %v467 = vpack.c.bf16 %v447, %v446
      %v468 = vpack.c.bf16 %v449, %v448
      %v469 = vpack.c.bf16 %v451, %v450
      %v470 = vpack.c.bf16 %v453, %v452
      %v471 = vpack.c.bf16 %v455, %v454
      %v488 = vunpack.c.l.b16 %v456
      %v489 = vunpack.c.h.b16 %v456
      %v490 = vunpack.c.l.b16 %v457
      %v491 = vunpack.c.h.b16 %v457
      %v492 = vunpack.c.l.b16 %v458
      %v493 = vunpack.c.h.b16 %v458
      %v494 = vunpack.c.l.b16 %v459
      %v495 = vunpack.c.h.b16 %v459
      %v496 = vunpack.c.l.b16 %v460
      %v497 = vunpack.c.h.b16 %v460
      %v498 = vunpack.c.l.b16 %v461
      %v499 = vunpack.c.h.b16 %v461
      %v500 = vunpack.c.l.b16 %v462
      %v501 = vunpack.c.h.b16 %v462
      %v502 = vunpack.c.l.b16 %v463
      %v503 = vunpack.c.h.b16 %v463
      %v504 = vunpack.c.l.b16 %v464
      %v505 = vunpack.c.h.b16 %v464
      %v506 = vunpack.c.l.b16 %v465
      %v507 = vunpack.c.h.b16 %v465
      %v508 = vunpack.c.l.b16 %v466
      %v509 = vunpack.c.h.b16 %v466
      %v510 = vunpack.c.l.b16 %v467
      %v511 = vunpack.c.h.b16 %v467
      %v512 = vunpack.c.l.b16 %v468
      %v513 = vunpack.c.h.b16 %v468
      %v514 = vunpack.c.l.b16 %v469
      %v515 = vunpack.c.h.b16 %v469
      %v516 = vunpack.c.l.b16 %v470
      %v517 = vunpack.c.h.b16 %v470
      %v518 = vunpack.c.l.b16 %v471
      %v519 = vunpack.c.h.b16 %v471
      %v520 = vpack.c.b16 %v488, %v488
      %v521 = vpack.c.b16 %v489, %v489
      %v522 = vpack.c.b16 %v490, %v490
      %v523 = vpack.c.b16 %v491, %v491
      %v524 = vpack.c.b16 %v492, %v492
      %v525 = vpack.c.b16 %v493, %v493
      %v526 = vpack.c.b16 %v494, %v494
      %v527 = vpack.c.b16 %v495, %v495
      %v528 = vpack.c.b16 %v496, %v496
      %v529 = vpack.c.b16 %v497, %v497
      %v530 = vpack.c.b16 %v498, %v498
      %v531 = vpack.c.b16 %v499, %v499
      %v532 = vpack.c.b16 %v500, %v500
      %v533 = vpack.c.b16 %v501, %v501
      %v534 = vpack.c.b16 %v502, %v502
      %v535 = vpack.c.b16 %v503, %v503
      %v536 = vpack.c.b16 %v504, %v504
      %v537 = vpack.c.b16 %v505, %v505
      %v538 = vpack.c.b16 %v506, %v506
      %v539 = vpack.c.b16 %v507, %v507
      %v540 = vpack.c.b16 %v508, %v508
      %v541 = vpack.c.b16 %v509, %v509
      %v542 = vpack.c.b16 %v510, %v510
      %v543 = vpack.c.b16 %v511, %v511
      %v544 = vpack.c.b16 %v512, %v512
      %v545 = vpack.c.b16 %v513, %v513
      %v546 = vpack.c.b16 %v514, %v514
      %v547 = vpack.c.b16 %v515, %v515
      %v548 = vpack.c.b16 %v516, %v516
      %v549 = vpack.c.b16 %v517, %v517
      %v550 = vpack.c.b16 %v518, %v518
      %v551 = vpack.c.b16 %v519, %v519
      %584 = vst [vmem:[%s217] sm:$0xf] %v520
      %585 = vst [vmem:[%s217 + $0x4] sm:$0xf] %v521
      %586 = vst [vmem:[%s217 + $0x8] sm:$0xf] %v522
      %587 = vst [vmem:[%s217 + $0xc] sm:$0xf] %v523
      %588 = vst [vmem:[%s217 + $0x10] sm:$0xf] %v524
      %589 = vst [vmem:[%s217 + $0x14] sm:$0xf] %v525
      %590 = vst [vmem:[%s217 + $0x18] sm:$0xf] %v526
      %591 = vst [vmem:[%s217 + $0x1c] sm:$0xf] %v527
      %592 = vst [vmem:[%s217 + $0x20] sm:$0xf] %v528
      %593 = vst [vmem:[%s217 + $0x24] sm:$0xf] %v529
      %594 = vst [vmem:[%s217 + $0x28] sm:$0xf] %v530
      %595 = vst [vmem:[%s217 + $0x2c] sm:$0xf] %v531
      %596 = vst [vmem:[%s217 + $0x30] sm:$0xf] %v532
      %597 = vst [vmem:[%s217 + $0x34] sm:$0xf] %v533
      %598 = vst [vmem:[%s217 + $0x38] sm:$0xf] %v534
      %599 = vst [vmem:[%s217 + $0x3c] sm:$0xf] %v535
      %600 = vst [vmem:[%s217 + $0x40] sm:$0xf] %v536
      %601 = vst [vmem:[%s217 + $0x44] sm:$0xf] %v537
      %602 = vst [vmem:[%s217 + $0x48] sm:$0xf] %v538
      %603 = vst [vmem:[%s217 + $0x4c] sm:$0xf] %v539
      %604 = vst [vmem:[%s217 + $0x50] sm:$0xf] %v540
      %605 = vst [vmem:[%s217 + $0x54] sm:$0xf] %v541
      %606 = vst [vmem:[%s217 + $0x58] sm:$0xf] %v542
      %607 = vst [vmem:[%s217 + $0x5c] sm:$0xf] %v543
      %608 = vst [vmem:[%s217 + $0x60] sm:$0xf] %v544
      %609 = vst [vmem:[%s217 + $0x64] sm:$0xf] %v545
      %610 = vst [vmem:[%s217 + $0x68] sm:$0xf] %v546
      %611 = vst [vmem:[%s217 + $0x6c] sm:$0xf] %v547
      %612 = vst [vmem:[%s217 + $0x70] sm:$0xf] %v548
      %613 = vst [vmem:[%s217 + $0x74] sm:$0xf] %v549
      %614 = vst [vmem:[%s217 + $0x78] sm:$0xf] %v550
      %615 = vst [vmem:[%s217 + $0x7c] sm:$0xf] %v551
      %p616 = scmp.lt.s32.totalorder %s15, 1
      %s617 = scalar_select %p616, %s15, 1
      %s618 = smul.addr %s617, 32
      %s619 = smul.addr %s618, 4
      %s620 = scalar_lea.vmem %s4, %s619
      // Predicated region
      $region37: #{residual_maxi_block_nchw.11} parent=35 // pred_check
        %p621 = pneg %p127
      $region38: #{residual_maxi_block_nchw.11} parent=35 // pred_check_branch
        %623 = sbr.rel (%p621) target = $region40
      $region39: #{residual_maxi_block_nchw.11} parent=35 // pred_region
        _
      $region40: #{residual_maxi_block_nchw.11} parent=35 // pred_fallthru
        _
    $region36: #{residual_maxi_block_nchw.11} parent=5 // pred_fallthru
      _
    %p624 = scmp.le.s32.totalorder 2, %s10
    // Predicated region
    $region41: #{residual_maxi_block_nchw.11} parent=5 // pred_check
      %p625 = pneg %p624
    $region42: #{residual_maxi_block_nchw.11} parent=5 // pred_check_branch
      %627 = sbr.rel (%p625) target = $region44
    $region43: #{residual_maxi_block_nchw.11} parent=5 // pred_region
      %s628 = ssub.s32 %s10, 2
      // Predicated region
      $region45: #{residual_maxi_block_nchw.11} parent=43 // pred_check
        %p629 = pneg %p133
      $region46: #{residual_maxi_block_nchw.11} parent=43 // pred_check_branch
        %631 = sbr.rel (%p629) target = $region48
      $region47: #{residual_maxi_block_nchw.11} parent=43 // pred_region
        %p632 = scmp.lt.s32.totalorder %s16, 1
        %s633 = scalar_select %p632, %s16, 1
        %s634 = smul.addr %s633, 32
        %s635 = smul.addr %s634, 4
        %s636 = scalar_lea.vmem %s4, %s635
      $region48: #{residual_maxi_block_nchw.11} parent=43 // pred_fallthru
        _
    $region44: #{residual_maxi_block_nchw.11} parent=5 // pred_fallthru
      _
  $region6: #{residual_maxi_block_nchw.11} parent=0 // loop_footer
    %s14 = sadd.s32 1, %s10
  $region7: #{residual_maxi_block_nchw.11} parent=0 // loop_footer_branch
    %9 = sbr.rel target = $region3
  $region8: #{residual_maxi_block_nchw.11} parent=0 // loop_exit
    _

// kernel: residual_maxi_block_nchw.17
$region0: #{residual_maxi_block_nchw.17}
  #allocation0 [shape = 'u32[]', space=smem, size = 0x4, offset = 0x4, fixed_abs, tag = 'smem constant byte address 0x4 - core index']
  #allocation1 [shape = 'u32[144,128]{1,0:T(1,128)}', space=vmem, size = 0x12000, scoped, tag = 'internal scratch']
  %s0 = inlined_call_operand.vmem [shape: bf16[2,16,16,128], index: 0, kind: input, shape index: {}]
  %s1 = inlined_call_operand.vmem [shape: bf16[2,16,16,128], index: 1, kind: input, shape index: {}]
  %s2 = inlined_call_operand.vmem [shape: bf16[2,16,16,128], index: 2, kind: input, shape index: {}]
  %s3 = inlined_call_operand.vmem [shape: f32[1,128], index: 3, kind: input, shape index: {}]
  %s4 = inlined_call_operand.vmem [shape: f32[1,128], index: 4, kind: input, shape index: {}]
  %s5 = inlined_call_operand.vmem [shape: f32[2,16,16,128], index: 5, kind: output, shape index: {}]
  %s6 = sld [smem:[#allocation0]]
  $region53: #{residual_maxi_block_nchw.17} parent=0
    _
  %s8 = ssub.s32 1, %s6
  %s9 = scalar_select 0, %s8, %s6
  loop: start=0, step=1, limit=4
  $region2: #{residual_maxi_block_nchw.17} parent=0 // loop_pre_header
    _
  $region3: #{residual_maxi_block_nchw.17} parent=0 // loop_header
    %s11 = sphi 0, %s15
    %p12 = scmp.ge.s32.totalorder %s11, 4
    %s21 = sphi 0, %s23
    %s24 = sphi 0, %s21
    %s25 = sphi 0, %s24
    %s41 = sphi 0, %s25
    %s47 = sphi 0, %s49
    %s50 = sphi 0, %s47
    %s51 = sphi 0, %s50
    %s67 = sphi 0, %s51
    %s73 = sphi 0, %s75
    %s76 = sphi 0, %s73
    %s77 = sphi 0, %s76
    %s93 = sphi 0, %s77
    %s97 = sphi 0, %s97
    %s99 = sphi 0, %s97
    %s100 = sphi 0, %s99
    %s114 = sphi 0, %s100
    %s118 = sphi 0, %s118
    %s120 = sphi 0, %s118
    %s121 = sphi 0, %s120
    %s135 = sphi 0, %s121
    %s141 = sphi 0, %s143
    %s144 = sphi 0, %s141
    %s145 = sphi 0, %s144
    %s161 = sphi 0, %s145
  $region4: #{residual_maxi_block_nchw.17} parent=0 // loop_header_branch
    %14 = sbr.rel (%p12) target = $region8
  $region5: #{residual_maxi_block_nchw.17} parent=0 // loop_body
    %s16 = ssub.s32 %s11, 1
    %s17 = ssub.s32 %s11, 2
    %s18 = sadd.s32 %s11, 1
    %s19 = ssub.s32 %s11, %s18
    %p20 = scmp.eq.s32.totalorder %s19, 0
    %s22 = sadd.s32 %s21, 1
    %s23 = scalar_select %p20, %s21, %s22
    %p26 = pneg %p20
    %p27 = scmp.eq.s32.totalorder %s11, 1
    %p28 = por %p26, %p27
    %p29 = scmp.ne.s32.totalorder %s21, %s24
    %p30 = scmp.eq.s32.totalorder %s11, 0
    %p31 = por %p29, %p30
    %p32 = scmp.ne.s32.totalorder %s21, %s24
    %p33 = scmp.eq.s32.totalorder %s16, 1
    %p34 = por %p32, %p33
    %p35 = scmp.ne.s32.totalorder %s24, %s25
    %p36 = scmp.eq.s32.totalorder %s16, 0
    %p37 = por %p35, %p36
    %p38 = scmp.ne.s32.totalorder %s24, %s25
    %p39 = scmp.eq.s32.totalorder %s17, 1
    %p40 = por %p38, %p39
    %p42 = scmp.ne.s32.totalorder %s25, %s41
    %p43 = scmp.eq.s32.totalorder %s17, 0
    %p44 = por %p42, %p43
    %s45 = ssub.s32 %s11, %s18
    %p46 = scmp.eq.s32.totalorder %s45, 0
    %s48 = sadd.s32 %s47, 1
    %s49 = scalar_select %p46, %s47, %s48
    %p52 = pneg %p46
    %p53 = scmp.eq.s32.totalorder %s11, 1
    %p54 = por %p52, %p53
    %p55 = scmp.ne.s32.totalorder %s47, %s50
    %p56 = scmp.eq.s32.totalorder %s11, 0
    %p57 = por %p55, %p56
    %p58 = scmp.ne.s32.totalorder %s47, %s50
    %p59 = scmp.eq.s32.totalorder %s16, 1
    %p60 = por %p58, %p59
    %p61 = scmp.ne.s32.totalorder %s50, %s51
    %p62 = scmp.eq.s32.totalorder %s16, 0
    %p63 = por %p61, %p62
    %p64 = scmp.ne.s32.totalorder %s50, %s51
    %p65 = scmp.eq.s32.totalorder %s17, 1
    %p66 = por %p64, %p65
    %p68 = scmp.ne.s32.totalorder %s51, %s67
    %p69 = scmp.eq.s32.totalorder %s17, 0
    %p70 = por %p68, %p69
    %s71 = ssub.s32 %s11, %s18
    %p72 = scmp.eq.s32.totalorder %s71, 0
    %s74 = sadd.s32 %s73, 1
    %s75 = scalar_select %p72, %s73, %s74
    %p78 = pneg %p72
    %p79 = scmp.eq.s32.totalorder %s11, 1
    %p80 = por %p78, %p79
    %p81 = scmp.ne.s32.totalorder %s73, %s76
    %p82 = scmp.eq.s32.totalorder %s11, 0
    %p83 = por %p81, %p82
    %p84 = scmp.ne.s32.totalorder %s73, %s76
    %p85 = scmp.eq.s32.totalorder %s16, 1
    %p86 = por %p84, %p85
    %p87 = scmp.ne.s32.totalorder %s76, %s77
    %p88 = scmp.eq.s32.totalorder %s16, 0
    %p89 = por %p87, %p88
    %p90 = scmp.ne.s32.totalorder %s76, %s77
    %p91 = scmp.eq.s32.totalorder %s17, 1
    %p92 = por %p90, %p91
    %p94 = scmp.ne.s32.totalorder %s77, %s93
    %p95 = scmp.eq.s32.totalorder %s17, 0
    %p96 = por %p94, %p95
    %s98 = sadd.s32 %s97, 1
    %p101 = scmp.eq.s32.totalorder %s11, 1
    %p102 = scmp.ne.s32.totalorder %s97, %s99
    %p103 = scmp.eq.s32.totalorder %s11, 0
    %p104 = por %p102, %p103
    %p105 = scmp.ne.s32.totalorder %s97, %s99
    %p106 = scmp.eq.s32.totalorder %s16, 1
    %p107 = por %p105, %p106
    %p108 = scmp.ne.s32.totalorder %s99, %s100
    %p109 = scmp.eq.s32.totalorder %s16, 0
    %p110 = por %p108, %p109
    %p111 = scmp.ne.s32.totalorder %s99, %s100
    %p112 = scmp.eq.s32.totalorder %s17, 1
    %p113 = por %p111, %p112
    %p115 = scmp.ne.s32.totalorder %s100, %s114
    %p116 = scmp.eq.s32.totalorder %s17, 0
    %p117 = por %p115, %p116
    %s119 = sadd.s32 %s118, 1
    %p122 = scmp.eq.s32.totalorder %s11, 1
    %p123 = scmp.ne.s32.totalorder %s118, %s120
    %p124 = scmp.eq.s32.totalorder %s11, 0
    %p125 = por %p123, %p124
    %p126 = scmp.ne.s32.totalorder %s118, %s120
    %p127 = scmp.eq.s32.totalorder %s16, 1
    %p128 = por %p126, %p127
    %p129 = scmp.ne.s32.totalorder %s120, %s121
    %p130 = scmp.eq.s32.totalorder %s16, 0
    %p131 = por %p129, %p130
    %p132 = scmp.ne.s32.totalorder %s120, %s121
    %p133 = scmp.eq.s32.totalorder %s17, 1
    %p134 = por %p132, %p133
    %p136 = scmp.ne.s32.totalorder %s121, %s135
    %p137 = scmp.eq.s32.totalorder %s17, 0
    %p138 = por %p136, %p137
    %s139 = ssub.s32 %s11, %s18
    %p140 = scmp.eq.s32.totalorder %s139, 0
    %s142 = sadd.s32 %s141, 1
    %s143 = scalar_select %p140, %s141, %s142
    %p146 = pneg %p140
    %p147 = scmp.eq.s32.totalorder %s11, 1
    %p148 = por %p146, %p147
    %p149 = scmp.ne.s32.totalorder %s141, %s144
    %p150 = scmp.eq.s32.totalorder %s11, 0
    %p151 = por %p149, %p150
    %p152 = scmp.ne.s32.totalorder %s141, %s144
    %p153 = scmp.eq.s32.totalorder %s16, 1
    %p154 = por %p152, %p153
    %p155 = scmp.ne.s32.totalorder %s144, %s145
    %p156 = scmp.eq.s32.totalorder %s16, 0
    %p157 = por %p155, %p156
    %p158 = scmp.ne.s32.totalorder %s144, %s145
    %p159 = scmp.eq.s32.totalorder %s17, 1
    %p160 = por %p158, %p159
    %p162 = scmp.ne.s32.totalorder %s145, %s161
    %p163 = scmp.eq.s32.totalorder %s17, 0
    %p164 = por %p162, %p163
    %p165 = scmp.le.s32.totalorder 1, %s11
    %p166 = scmp.lt.s32.totalorder %s11, 3
    %p167 = pnand %p165, %p166
    %p168 = pneg %p167
    // Predicated region
    $region9: #{residual_maxi_block_nchw.17} parent=5 // pred_check
      _
    $region10: #{residual_maxi_block_nchw.17} parent=5 // pred_check_branch
      %170 = sbr.rel (%p167) target = $region12
    $region11: #{residual_maxi_block_nchw.17} parent=5 // pred_region
      %s171 = ssub.s32 %s11, 1
      // Predicated region
      $region13: #{residual_maxi_block_nchw.17} parent=11 // pred_check
        %p172 = pneg %p110
      $region14: #{residual_maxi_block_nchw.17} parent=11 // pred_check_branch
        %174 = sbr.rel (%p172) target = $region16
      $region15: #{residual_maxi_block_nchw.17} parent=11 // pred_region
        _
      $region16: #{residual_maxi_block_nchw.17} parent=11 // pred_fallthru
        _
      // Predicated region
      $region17: #{residual_maxi_block_nchw.17} parent=11 // pred_check
        %p175 = pneg %p131
      $region18: #{residual_maxi_block_nchw.17} parent=11 // pred_check_branch
        %177 = sbr.rel (%p175) target = $region20
      $region19: #{residual_maxi_block_nchw.17} parent=11 // pred_region
        _
      $region20: #{residual_maxi_block_nchw.17} parent=11 // pred_fallthru
        _
    $region12: #{residual_maxi_block_nchw.17} parent=5 // pred_fallthru
      _
    %p178 = scmp.lt.s32.totalorder %s11, 2
    // Predicated region
    $region21: #{residual_maxi_block_nchw.17} parent=5 // pred_check
      %p179 = pneg %p178
    $region22: #{residual_maxi_block_nchw.17} parent=5 // pred_check_branch
      %181 = sbr.rel (%p179) target = $region24
    $region23: #{residual_maxi_block_nchw.17} parent=5 // pred_region
      // Predicated region
      $region25: #{residual_maxi_block_nchw.17} parent=23 // pred_check
        %p182 = pneg %p31
      $region26: #{residual_maxi_block_nchw.17} parent=23 // pred_check_branch
        %184 = sbr.rel (%p182) target = $region28
      $region27: #{residual_maxi_block_nchw.17} parent=23 // pred_region
        %p185 = scmp.lt.s32.totalorder %s11, 1
        %s186 = scalar_select %p185, %s11, 1
        %s187 = smul.addr %s186, 32
        %s188 = smul.addr %s187, 4
        %s189 = scalar_lea.vmem %s0, %s188
      $region28: #{residual_maxi_block_nchw.17} parent=23 // pred_fallthru
        _
      // Predicated region
      $region29: #{residual_maxi_block_nchw.17} parent=23 // pred_check
        %p190 = pneg %p57
      $region30: #{residual_maxi_block_nchw.17} parent=23 // pred_check_branch
        %192 = sbr.rel (%p190) target = $region32
      $region31: #{residual_maxi_block_nchw.17} parent=23 // pred_region
        %p193 = scmp.lt.s32.totalorder %s11, 1
        %s194 = scalar_select %p193, %s11, 1
        %s195 = smul.addr %s194, 32
        %s196 = smul.addr %s195, 4
        %s197 = scalar_lea.vmem %s1, %s196
      $region32: #{residual_maxi_block_nchw.17} parent=23 // pred_fallthru
        _
      // Predicated region
      $region33: #{residual_maxi_block_nchw.17} parent=23 // pred_check
        %p198 = pneg %p83
      $region34: #{residual_maxi_block_nchw.17} parent=23 // pred_check_branch
        %200 = sbr.rel (%p198) target = $region36
      $region35: #{residual_maxi_block_nchw.17} parent=23 // pred_region
        %p201 = scmp.lt.s32.totalorder %s11, 1
        %s202 = scalar_select %p201, %s11, 1
        %s203 = smul.addr %s202, 32
        %s204 = smul.addr %s203, 4
        %s205 = scalar_lea.vmem %s2, %s204
      $region36: #{residual_maxi_block_nchw.17} parent=23 // pred_fallthru
        _
    $region24: #{residual_maxi_block_nchw.17} parent=5 // pred_fallthru
      _
    %p206 = scmp.le.s32.totalorder 1, %s11
    %p207 = scmp.lt.s32.totalorder %s11, 3
    %p208 = pnand %p206, %p207
    %p209 = pneg %p208
    // Predicated region
    $region37: #{residual_maxi_block_nchw.17} parent=5 // pred_check
      _
    $region38: #{residual_maxi_block_nchw.17} parent=5 // pred_check_branch
      %211 = sbr.rel (%p208) target = $region40
    $region39: #{residual_maxi_block_nchw.17} parent=5 // pred_region
      %s212 = ssub.s32 %s11, 1
      %p213 = scmp.lt.s32.totalorder %s16, 1
      %s214 = scalar_select %p213, %s16, 1
      %s215 = smul.addr %s214, 32
      %s216 = smul.addr %s215, 4
      %s217 = scalar_lea.vmem %s0, %s216
      %p218 = pneg %p37
      %p219 = pneg %p34
      %p220 = scmp.lt.s32.totalorder %s16, 1
      %s221 = scalar_select %p220, %s16, 1
      %s222 = smul.addr %s221, 32
      %s223 = smul.addr %s222, 4
      %s224 = scalar_lea.vmem %s1, %s223
      %p225 = pneg %p63
      %p226 = pneg %p60
      %p227 = scmp.lt.s32.totalorder %s16, 1
      %s228 = scalar_select %p227, %s16, 1
      %s229 = smul.addr %s228, 32
      %s230 = smul.addr %s229, 4
      %s231 = scalar_lea.vmem %s2, %s230
      %p232 = pneg %p89
      %p233 = pneg %p86
      %p234 = pneg %p110
      %p235 = pneg %p107
      %p236 = pneg %p131
      %p237 = pneg %p128
      %p238 = pneg %p157
      %p239 = pneg %p154
      %p240 = scmp.lt.s32.totalorder %s16, 1
      %s241 = scalar_select %p240, %s16, 1
      %s242 = smul.addr %s241, 32
      %s243 = smul.addr %s242, 8
      %s244 = scalar_lea.vmem %s5, %s243
      %p245 = scmp.lt.s32.totalorder %s16, 1
      %s246 = scalar_select %p245, %s16, 1
      %s247 = smul.addr %s246, 32
      %s248 = smul.addr %s247, 4
      %s249 = scalar_lea.vmem %s0, %s248
      %p250 = scmp.lt.s32.totalorder %s16, 1
      %s251 = scalar_select %p250, %s16, 1
      %s252 = smul.addr %s251, 32
      %s253 = smul.addr %s252, 4
      %s254 = scalar_lea.vmem %s1, %s253
      %p255 = scmp.lt.s32.totalorder %s16, 1
      %s256 = scalar_select %p255, %s16, 1
      %s257 = smul.addr %s256, 32
      %s258 = smul.addr %s257, 4
      %s259 = scalar_lea.vmem %s2, %s258
      %p260 = scmp.lt.s32.totalorder %s16, 1
      %s261 = scalar_select %p260, %s16, 1
      %s262 = smul.addr %s261, 32
      %s263 = smul.addr %s262, 8
      %s264 = scalar_lea.vmem %s5, %s263
      %v265 = vld [vmem:[%s249] sm:$0xf]
      %v266 = vld [vmem:[%s249 + $0x4] sm:$0xf]
      %v267 = vld [vmem:[%s249 + $0x8] sm:$0xf]
      %v268 = vld [vmem:[%s249 + $0xc] sm:$0xf]
      %v269 = vld [vmem:[%s249 + $0x10] sm:$0xf]
      %v270 = vld [vmem:[%s249 + $0x14] sm:$0xf]
      %v271 = vld [vmem:[%s249 + $0x18] sm:$0xf]
      %v272 = vld [vmem:[%s249 + $0x1c] sm:$0xf]
      %v273 = vld [vmem:[%s249 + $0x20] sm:$0xf]
      %v274 = vld [vmem:[%s249 + $0x24] sm:$0xf]
      %v275 = vld [vmem:[%s249 + $0x28] sm:$0xf]
      %v276 = vld [vmem:[%s249 + $0x2c] sm:$0xf]
      %v277 = vld [vmem:[%s249 + $0x30] sm:$0xf]
      %v278 = vld [vmem:[%s249 + $0x34] sm:$0xf]
      %v279 = vld [vmem:[%s249 + $0x38] sm:$0xf]
      %v280 = vld [vmem:[%s249 + $0x3c] sm:$0xf]
      %v281 = vld [vmem:[%s249 + $0x40] sm:$0xf]
      %v282 = vld [vmem:[%s249 + $0x44] sm:$0xf]
      %v283 = vld [vmem:[%s249 + $0x48] sm:$0xf]
      %v284 = vld [vmem:[%s249 + $0x4c] sm:$0xf]
      %v285 = vld [vmem:[%s249 + $0x50] sm:$0xf]
      %v286 = vld [vmem:[%s249 + $0x54] sm:$0xf]
      %v287 = vld [vmem:[%s249 + $0x58] sm:$0xf]
      %v288 = vld [vmem:[%s249 + $0x5c] sm:$0xf]
      %v289 = vld [vmem:[%s249 + $0x60] sm:$0xf]
      %v290 = vld [vmem:[%s249 + $0x64] sm:$0xf]
      %v291 = vld [vmem:[%s249 + $0x68] sm:$0xf]
      %v292 = vld [vmem:[%s249 + $0x6c] sm:$0xf]
      %v293 = vld [vmem:[%s249 + $0x70] sm:$0xf]
      %v294 = vld [vmem:[%s249 + $0x74] sm:$0xf]
      %v295 = vld [vmem:[%s249 + $0x78] sm:$0xf]
      %v296 = vld [vmem:[%s249 + $0x7c] sm:$0xf]
      %v297 = vunpack.c.l.bf16 %v265
      %v298 = vunpack.c.l.bf16 %v266
      %v299 = vunpack.c.l.bf16 %v267
      %v300 = vunpack.c.l.bf16 %v268
      %v301 = vunpack.c.l.bf16 %v269
      %v302 = vunpack.c.l.bf16 %v270
      %v303 = vunpack.c.l.bf16 %v271
      %v304 = vunpack.c.l.bf16 %v272
      %v305 = vunpack.c.l.bf16 %v273
      %v306 = vunpack.c.l.bf16 %v274
      %v307 = vunpack.c.l.bf16 %v275
      %v308 = vunpack.c.l.bf16 %v276
      %v309 = vunpack.c.l.bf16 %v277
      %v310 = vunpack.c.l.bf16 %v278
      %v311 = vunpack.c.l.bf16 %v279
      %v312 = vunpack.c.l.bf16 %v280
      %v313 = vunpack.c.l.bf16 %v281
      %v314 = vunpack.c.l.bf16 %v282
      %v315 = vunpack.c.l.bf16 %v283
      %v316 = vunpack.c.l.bf16 %v284
      %v317 = vunpack.c.l.bf16 %v285
      %v318 = vunpack.c.l.bf16 %v286
      %v319 = vunpack.c.l.bf16 %v287
      %v320 = vunpack.c.l.bf16 %v288
      %v321 = vunpack.c.l.bf16 %v289
      %v322 = vunpack.c.l.bf16 %v290
      %v323 = vunpack.c.l.bf16 %v291
      %v324 = vunpack.c.l.bf16 %v292
      %v325 = vunpack.c.l.bf16 %v293
      %v326 = vunpack.c.l.bf16 %v294
      %v327 = vunpack.c.l.bf16 %v295
      %v328 = vunpack.c.l.bf16 %v296
      %v329 = vld [vmem:[%s3] sm:$0x1]
      %v331 = vlaneseq
      %v332 = vshrl.u32 %v331, 7
      %v333 = vsub.s32 0, %v332
      %v334 = vrot.slane %v329, %v333
      %v336 = vmul.f32 %v297, %v334
      %v337 = vmul.f32 %v298, %v334
      %v338 = vmul.f32 %v299, %v334
      %v339 = vmul.f32 %v300, %v334
      %v340 = vmul.f32 %v301, %v334
      %v341 = vmul.f32 %v302, %v334
      %v342 = vmul.f32 %v303, %v334
      %v343 = vmul.f32 %v304, %v334
      %v344 = vmul.f32 %v305, %v334
      %v345 = vmul.f32 %v306, %v334
      %v346 = vmul.f32 %v307, %v334
      %v347 = vmul.f32 %v308, %v334
      %v348 = vmul.f32 %v309, %v334
      %v349 = vmul.f32 %v310, %v334
      %v350 = vmul.f32 %v311, %v334
      %v351 = vmul.f32 %v312, %v334
      %v352 = vmul.f32 %v313, %v334
      %v353 = vmul.f32 %v314, %v334
      %v354 = vmul.f32 %v315, %v334
      %v355 = vmul.f32 %v316, %v334
      %v356 = vmul.f32 %v317, %v334
      %v357 = vmul.f32 %v318, %v334
      %v358 = vmul.f32 %v319, %v334
      %v359 = vmul.f32 %v320, %v334
      %v360 = vmul.f32 %v321, %v334
      %v361 = vmul.f32 %v322, %v334
      %v362 = vmul.f32 %v323, %v334
      %v363 = vmul.f32 %v324, %v334
      %v364 = vmul.f32 %v325, %v334
      %v365 = vmul.f32 %v326, %v334
      %v366 = vmul.f32 %v327, %v334
      %v367 = vmul.f32 %v328, %v334
      %v368 = vld [vmem:[%s4] sm:$0x1]
      %v370 = vlaneseq
      %v371 = vshrl.u32 %v370, 7
      %v372 = vsub.s32 0, %v371
      %v373 = vrot.slane %v368, %v372
      %v375 = vadd.f32 %v336, %v373
      %v376 = vadd.f32 %v337, %v373
      %v377 = vadd.f32 %v338, %v373
      %v378 = vadd.f32 %v339, %v373
      %v379 = vadd.f32 %v340, %v373
      %v380 = vadd.f32 %v341, %v373
      %v381 = vadd.f32 %v342, %v373
      %v382 = vadd.f32 %v343, %v373
      %v383 = vadd.f32 %v344, %v373
      %v384 = vadd.f32 %v345, %v373
      %v385 = vadd.f32 %v346, %v373
      %v386 = vadd.f32 %v347, %v373
      %v387 = vadd.f32 %v348, %v373
      %v388 = vadd.f32 %v349, %v373
      %v389 = vadd.f32 %v350, %v373
      %v390 = vadd.f32 %v351, %v373
      %v391 = vadd.f32 %v352, %v373
      %v392 = vadd.f32 %v353, %v373
      %v393 = vadd.f32 %v354, %v373
      %v394 = vadd.f32 %v355, %v373
      %v395 = vadd.f32 %v356, %v373
      %v396 = vadd.f32 %v357, %v373
      %v397 = vadd.f32 %v358, %v373
      %v398 = vadd.f32 %v359, %v373
      %v399 = vadd.f32 %v360, %v373
      %v400 = vadd.f32 %v361, %v373
      %v401 = vadd.f32 %v362, %v373
      %v402 = vadd.f32 %v363, %v373
      %v403 = vadd.f32 %v364, %v373
      %v404 = vadd.f32 %v365, %v373
      %v405 = vadd.f32 %v366, %v373
      %v406 = vadd.f32 %v367, %v373
      %v407 = vld [vmem:[%s254] sm:$0xf]
      %v408 = vld [vmem:[%s254 + $0x4] sm:$0xf]
      %v409 = vld [vmem:[%s254 + $0x8] sm:$0xf]
      %v410 = vld [vmem:[%s254 + $0xc] sm:$0xf]
      %v411 = vld [vmem:[%s254 + $0x10] sm:$0xf]
      %v412 = vld [vmem:[%s254 + $0x14] sm:$0xf]
      %v413 = vld [vmem:[%s254 + $0x18] sm:$0xf]
      %v414 = vld [vmem:[%s254 + $0x1c] sm:$0xf]
      %v415 = vld [vmem:[%s254 + $0x20] sm:$0xf]
      %v416 = vld [vmem:[%s254 + $0x24] sm:$0xf]
      %v417 = vld [vmem:[%s254 + $0x28] sm:$0xf]
      %v418 = vld [vmem:[%s254 + $0x2c] sm:$0xf]
      %v419 = vld [vmem:[%s254 + $0x30] sm:$0xf]
      %v420 = vld [vmem:[%s254 + $0x34] sm:$0xf]
      %v421 = vld [vmem:[%s254 + $0x38] sm:$0xf]
      %v422 = vld [vmem:[%s254 + $0x3c] sm:$0xf]
      %v423 = vld [vmem:[%s254 + $0x40] sm:$0xf]
      %v424 = vld [vmem:[%s254 + $0x44] sm:$0xf]
      %v425 = vld [vmem:[%s254 + $0x48] sm:$0xf]
      %v426 = vld [vmem:[%s254 + $0x4c] sm:$0xf]
      %v427 = vld [vmem:[%s254 + $0x50] sm:$0xf]
      %v428 = vld [vmem:[%s254 + $0x54] sm:$0xf]
      %v429 = vld [vmem:[%s254 + $0x58] sm:$0xf]
      %v430 = vld [vmem:[%s254 + $0x5c] sm:$0xf]
      %v431 = vld [vmem:[%s254 + $0x60] sm:$0xf]
      %v432 = vld [vmem:[%s254 + $0x64] sm:$0xf]
      %v433 = vld [vmem:[%s254 + $0x68] sm:$0xf]
      %v434 = vld [vmem:[%s254 + $0x6c] sm:$0xf]
      %v435 = vld [vmem:[%s254 + $0x70] sm:$0xf]
      %v436 = vld [vmem:[%s254 + $0x74] sm:$0xf]
      %v437 = vld [vmem:[%s254 + $0x78] sm:$0xf]
      %v438 = vld [vmem:[%s254 + $0x7c] sm:$0xf]
      %v439 = vunpack.c.l.bf16 %v407
      %v440 = vunpack.c.l.bf16 %v408
      %v441 = vunpack.c.l.bf16 %v409
      %v442 = vunpack.c.l.bf16 %v410
      %v443 = vunpack.c.l.bf16 %v411
      %v444 = vunpack.c.l.bf16 %v412
      %v445 = vunpack.c.l.bf16 %v413
      %v446 = vunpack.c.l.bf16 %v414
      %v447 = vunpack.c.l.bf16 %v415
      %v448 = vunpack.c.l.bf16 %v416
      %v449 = vunpack.c.l.bf16 %v417
      %v450 = vunpack.c.l.bf16 %v418
      %v451 = vunpack.c.l.bf16 %v419
      %v452 = vunpack.c.l.bf16 %v420
      %v453 = vunpack.c.l.bf16 %v421
      %v454 = vunpack.c.l.bf16 %v422
      %v455 = vunpack.c.l.bf16 %v423
      %v456 = vunpack.c.l.bf16 %v424
      %v457 = vunpack.c.l.bf16 %v425
      %v458 = vunpack.c.l.bf16 %v426
      %v459 = vunpack.c.l.bf16 %v427
      %v460 = vunpack.c.l.bf16 %v428
      %v461 = vunpack.c.l.bf16 %v429
      %v462 = vunpack.c.l.bf16 %v430
      %v463 = vunpack.c.l.bf16 %v431
      %v464 = vunpack.c.l.bf16 %v432
      %v465 = vunpack.c.l.bf16 %v433
      %v466 = vunpack.c.l.bf16 %v434
      %v467 = vunpack.c.l.bf16 %v435
      %v468 = vunpack.c.l.bf16 %v436
      %v469 = vunpack.c.l.bf16 %v437
      %v470 = vunpack.c.l.bf16 %v438
      %v471 = vadd.f32 %v375, %v439
      %v472 = vadd.f32 %v376, %v440
      %v473 = vadd.f32 %v377, %v441
      %v474 = vadd.f32 %v378, %v442
      %v475 = vadd.f32 %v379, %v443
      %v476 = vadd.f32 %v380, %v444
      %v477 = vadd.f32 %v381, %v445
      %v478 = vadd.f32 %v382, %v446
      %v479 = vadd.f32 %v383, %v447
      %v480 = vadd.f32 %v384, %v448
      %v481 = vadd.f32 %v385, %v449
      %v482 = vadd.f32 %v386, %v450
      %v483 = vadd.f32 %v387, %v451
      %v484 = vadd.f32 %v388, %v452
      %v485 = vadd.f32 %v389, %v453
      %v486 = vadd.f32 %v390, %v454
      %v487 = vadd.f32 %v391, %v455
      %v488 = vadd.f32 %v392, %v456
      %v489 = vadd.f32 %v393, %v457
      %v490 = vadd.f32 %v394, %v458
      %v491 = vadd.f32 %v395, %v459
      %v492 = vadd.f32 %v396, %v460
      %v493 = vadd.f32 %v397, %v461
      %v494 = vadd.f32 %v398, %v462
      %v495 = vadd.f32 %v399, %v463
      %v496 = vadd.f32 %v400, %v464
      %v497 = vadd.f32 %v401, %v465
      %v498 = vadd.f32 %v402, %v466
      %v499 = vadd.f32 %v403, %v467
      %v500 = vadd.f32 %v404, %v468
      %v501 = vadd.f32 %v405, %v469
      %v502 = vadd.f32 %v406, %v470
      %v503 = vld [vmem:[%s259] sm:$0xf]
      %v504 = vld [vmem:[%s259 + $0x4] sm:$0xf]
      %v505 = vld [vmem:[%s259 + $0x8] sm:$0xf]
      %v506 = vld [vmem:[%s259 + $0xc] sm:$0xf]
      %v507 = vld [vmem:[%s259 + $0x10] sm:$0xf]
      %v508 = vld [vmem:[%s259 + $0x14] sm:$0xf]
      %v509 = vld [vmem:[%s259 + $0x18] sm:$0xf]
      %v510 = vld [vmem:[%s259 + $0x1c] sm:$0xf]
      %v511 = vld [vmem:[%s259 + $0x20] sm:$0xf]
      %v512 = vld [vmem:[%s259 + $0x24] sm:$0xf]
      %v513 = vld [vmem:[%s259 + $0x28] sm:$0xf]
      %v514 = vld [vmem:[%s259 + $0x2c] sm:$0xf]
      %v515 = vld [vmem:[%s259 + $0x30] sm:$0xf]
      %v516 = vld [vmem:[%s259 + $0x34] sm:$0xf]
      %v517 = vld [vmem:[%s259 + $0x38] sm:$0xf]
      %v518 = vld [vmem:[%s259 + $0x3c] sm:$0xf]
      %v519 = vld [vmem:[%s259 + $0x40] sm:$0xf]
      %v520 = vld [vmem:[%s259 + $0x44] sm:$0xf]
      %v521 = vld [vmem:[%s259 + $0x48] sm:$0xf]
      %v522 = vld [vmem:[%s259 + $0x4c] sm:$0xf]
      %v523 = vld [vmem:[%s259 + $0x50] sm:$0xf]
      %v524 = vld [vmem:[%s259 + $0x54] sm:$0xf]
      %v525 = vld [vmem:[%s259 + $0x58] sm:$0xf]
      %v526 = vld [vmem:[%s259 + $0x5c] sm:$0xf]
      %v527 = vld [vmem:[%s259 + $0x60] sm:$0xf]
      %v528 = vld [vmem:[%s259 + $0x64] sm:$0xf]
      %v529 = vld [vmem:[%s259 + $0x68] sm:$0xf]
      %v530 = vld [vmem:[%s259 + $0x6c] sm:$0xf]
      %v531 = vld [vmem:[%s259 + $0x70] sm:$0xf]
      %v532 = vld [vmem:[%s259 + $0x74] sm:$0xf]
      %v533 = vld [vmem:[%s259 + $0x78] sm:$0xf]
      %v534 = vld [vmem:[%s259 + $0x7c] sm:$0xf]
      %v535 = vunpack.c.l.bf16 %v503
      %v536 = vunpack.c.l.bf16 %v504
      %v537 = vunpack.c.l.bf16 %v505
      %v538 = vunpack.c.l.bf16 %v506
      %v539 = vunpack.c.l.bf16 %v507
      %v540 = vunpack.c.l.bf16 %v508
      %v541 = vunpack.c.l.bf16 %v509
      %v542 = vunpack.c.l.bf16 %v510
      %v543 = vunpack.c.l.bf16 %v511
      %v544 = vunpack.c.l.bf16 %v512
      %v545 = vunpack.c.l.bf16 %v513
      %v546 = vunpack.c.l.bf16 %v514
      %v547 = vunpack.c.l.bf16 %v515
      %v548 = vunpack.c.l.bf16 %v516
      %v549 = vunpack.c.l.bf16 %v517
      %v550 = vunpack.c.l.bf16 %v518
      %v551 = vunpack.c.l.bf16 %v519
      %v552 = vunpack.c.l.bf16 %v520
      %v553 = vunpack.c.l.bf16 %v521
      %v554 = vunpack.c.l.bf16 %v522
      %v555 = vunpack.c.l.bf16 %v523
      %v556 = vunpack.c.l.bf16 %v524
      %v557 = vunpack.c.l.bf16 %v525
      %v558 = vunpack.c.l.bf16 %v526
      %v559 = vunpack.c.l.bf16 %v527
      %v560 = vunpack.c.l.bf16 %v528
      %v561 = vunpack.c.l.bf16 %v529
      %v562 = vunpack.c.l.bf16 %v530
      %v563 = vunpack.c.l.bf16 %v531
      %v564 = vunpack.c.l.bf16 %v532
      %v565 = vunpack.c.l.bf16 %v533
      %v566 = vunpack.c.l.bf16 %v534
      %v567 = vadd.f32 %v471, %v535
      %v568 = vadd.f32 %v472, %v536
      %v569 = vadd.f32 %v473, %v537
      %v570 = vadd.f32 %v474, %v538
      %v571 = vadd.f32 %v475, %v539
      %v572 = vadd.f32 %v476, %v540
      %v573 = vadd.f32 %v477, %v541
      %v574 = vadd.f32 %v478, %v542
      %v575 = vadd.f32 %v479, %v543
      %v576 = vadd.f32 %v480, %v544
      %v577 = vadd.f32 %v481, %v545
      %v578 = vadd.f32 %v482, %v546
      %v579 = vadd.f32 %v483, %v547
      %v580 = vadd.f32 %v484, %v548
      %v581 = vadd.f32 %v485, %v549
      %v582 = vadd.f32 %v486, %v550
      %v583 = vadd.f32 %v487, %v551
      %v584 = vadd.f32 %v488, %v552
      %v585 = vadd.f32 %v489, %v553
      %v586 = vadd.f32 %v490, %v554
      %v587 = vadd.f32 %v491, %v555
      %v588 = vadd.f32 %v492, %v556
      %v589 = vadd.f32 %v493, %v557
      %v590 = vadd.f32 %v494, %v558
      %v591 = vadd.f32 %v495, %v559
      %v592 = vadd.f32 %v496, %v560
      %v593 = vadd.f32 %v497, %v561
      %v594 = vadd.f32 %v498, %v562
      %v595 = vadd.f32 %v499, %v563
      %v596 = vadd.f32 %v500, %v564
      %v597 = vadd.f32 %v501, %v565
      %v598 = vadd.f32 %v502, %v566
      %599 = vst [vmem:[%s264] sm:$0xff] %v567
      %600 = vst [vmem:[%s264 + $0x8] sm:$0xff] %v568
      %601 = vst [vmem:[%s264 + $0x10] sm:$0xff] %v569
      %602 = vst [vmem:[%s264 + $0x18] sm:$0xff] %v570
      %603 = vst [vmem:[%s264 + $0x20] sm:$0xff] %v571
      %604 = vst [vmem:[%s264 + $0x28] sm:$0xff] %v572
      %605 = vst [vmem:[%s264 + $0x30] sm:$0xff] %v573
      %606 = vst [vmem:[%s264 + $0x38] sm:$0xff] %v574
      %607 = vst [vmem:[%s264 + $0x40] sm:$0xff] %v575
      %608 = vst [vmem:[%s264 + $0x48] sm:$0xff] %v576
      %609 = vst [vmem:[%s264 + $0x50] sm:$0xff] %v577
      %610 = vst [vmem:[%s264 + $0x58] sm:$0xff] %v578
      %611 = vst [vmem:[%s264 + $0x60] sm:$0xff] %v579
      %612 = vst [vmem:[%s264 + $0x68] sm:$0xff] %v580
      %613 = vst [vmem:[%s264 + $0x70] sm:$0xff] %v581
      %614 = vst [vmem:[%s264 + $0x78] sm:$0xff] %v582
      %615 = vst [vmem:[%s264 + $0x80] sm:$0xff] %v583
      %616 = vst [vmem:[%s264 + $0x88] sm:$0xff] %v584
      %617 = vst [vmem:[%s264 + $0x90] sm:$0xff] %v585
      %618 = vst [vmem:[%s264 + $0x98] sm:$0xff] %v586
      %619 = vst [vmem:[%s264 + $0xa0] sm:$0xff] %v587
      %620 = vst [vmem:[%s264 + $0xa8] sm:$0xff] %v588
      %621 = vst [vmem:[%s264 + $0xb0] sm:$0xff] %v589
      %622 = vst [vmem:[%s264 + $0xb8] sm:$0xff] %v590
      %623 = vst [vmem:[%s264 + $0xc0] sm:$0xff] %v591
      %624 = vst [vmem:[%s264 + $0xc8] sm:$0xff] %v592
      %625 = vst [vmem:[%s264 + $0xd0] sm:$0xff] %v593
      %626 = vst [vmem:[%s264 + $0xd8] sm:$0xff] %v594
      %627 = vst [vmem:[%s264 + $0xe0] sm:$0xff] %v595
      %628 = vst [vmem:[%s264 + $0xe8] sm:$0xff] %v596
      %629 = vst [vmem:[%s264 + $0xf0] sm:$0xff] %v597
      %630 = vst [vmem:[%s264 + $0xf8] sm:$0xff] %v598
      %p631 = scmp.lt.s32.totalorder %s16, 1
      %s632 = scalar_select %p631, %s16, 1
      %s633 = smul.addr %s632, 32
      %s634 = smul.addr %s633, 8
      %s635 = scalar_lea.vmem %s5, %s634
      // Predicated region
      $region41: #{residual_maxi_block_nchw.17} parent=39 // pred_check
        %p636 = pneg %p154
      $region42: #{residual_maxi_block_nchw.17} parent=39 // pred_check_branch
        %638 = sbr.rel (%p636) target = $region44
      $region43: #{residual_maxi_block_nchw.17} parent=39 // pred_region
        _
      $region44: #{residual_maxi_block_nchw.17} parent=39 // pred_fallthru
        _
    $region40: #{residual_maxi_block_nchw.17} parent=5 // pred_fallthru
      _
    %p639 = scmp.le.s32.totalorder 2, %s11
    // Predicated region
    $region45: #{residual_maxi_block_nchw.17} parent=5 // pred_check
      %p640 = pneg %p639
    $region46: #{residual_maxi_block_nchw.17} parent=5 // pred_check_branch
      %642 = sbr.rel (%p640) target = $region48
    $region47: #{residual_maxi_block_nchw.17} parent=5 // pred_region
      %s643 = ssub.s32 %s11, 2
      // Predicated region
      $region49: #{residual_maxi_block_nchw.17} parent=47 // pred_check
        %p644 = pneg %p160
      $region50: #{residual_maxi_block_nchw.17} parent=47 // pred_check_branch
        %646 = sbr.rel (%p644) target = $region52
      $region51: #{residual_maxi_block_nchw.17} parent=47 // pred_region
        %p647 = scmp.lt.s32.totalorder %s17, 1
        %s648 = scalar_select %p647, %s17, 1
        %s649 = smul.addr %s648, 32
        %s650 = smul.addr %s649, 8
        %s651 = scalar_lea.vmem %s5, %s650
      $region52: #{residual_maxi_block_nchw.17} parent=47 // pred_fallthru
        _
    $region48: #{residual_maxi_block_nchw.17} parent=5 // pred_fallthru
      _
  $region6: #{residual_maxi_block_nchw.17} parent=0 // loop_footer
    %s15 = sadd.s32 1, %s11
  $region7: #{residual_maxi_block_nchw.17} parent=0 // loop_footer_branch
    %10 = sbr.rel target = $region3
  $region8: #{residual_maxi_block_nchw.17} parent=0 // loop_exit
    _

// kernel: residual_maxi_block_nchw.9
$region0: #{residual_maxi_block_nchw.9}
  #allocation0 [shape = 'u32[]', space=smem, size = 0x4, offset = 0x4, fixed_abs, tag = 'smem constant byte address 0x4 - core index']
  #allocation1 [shape = 'u32[144,128]{1,0:T(1,128)}', space=vmem, size = 0x12000, scoped, tag = 'internal scratch']
  #allocation2 [shape = 'f32[18,18,128]{2,1,0:T(8,128)}', space=vmem, size = 0x36000, scoped, tag = 'scratch operand']
  #allocation3 [shape = 'bf16[256,1152]{1,0:T(16,128)(2,1)}', space=vmem, size = 0x90000, scoped, tag = 'scratch operand']
  %s0 = inlined_call_operand.vmem [shape: bf16[2,16,16,128], index: 0, kind: input, shape index: {}]
  %s1 = inlined_call_operand.vmem [shape: bf16[1152,128], index: 1, kind: input, shape index: {}]
  %s2 = inlined_call_operand.vmem [shape: bf16[2,16,16,128], index: 2, kind: output, shape index: {0}]
  %s3 = inlined_call_operand.vmem [shape: f32[2,1,128], index: 3, kind: output, shape index: {1}]
  %s4 = inlined_call_operand.vmem [shape: f32[2,1,128], index: 4, kind: output, shape index: {2}]
  %5 = xla_tuple %s2, %s3, %s4
  %s6 = sld [smem:[#allocation0]]
  $region57: #{residual_maxi_block_nchw.9} parent=0
    _
  %s8 = ssub.s32 1, %s6
  %s9 = scalar_select 0, %s8, %s6
  loop: start=0, step=1, limit=4
  $region2: #{residual_maxi_block_nchw.9} parent=0 // loop_pre_header
    _
  $region3: #{residual_maxi_block_nchw.9} parent=0 // loop_header
    %s11 = sphi 0, %s15
    %p12 = scmp.ge.s32.totalorder %s11, 4
    %s21 = sphi 0, %s23
    %s24 = sphi 0, %s21
    %s25 = sphi 0, %s24
    %s41 = sphi 0, %s25
    %s45 = sphi 0, %s45
    %s47 = sphi 0, %s45
    %s48 = sphi 0, %s47
    %s62 = sphi 0, %s48
    %s68 = sphi 0, %s70
    %s71 = sphi 0, %s68
    %s72 = sphi 0, %s71
    %s88 = sphi 0, %s72
    %s94 = sphi 0, %s96
    %s97 = sphi 0, %s94
    %s98 = sphi 0, %s97
    %s114 = sphi 0, %s98
    %s120 = sphi 0, %s122
    %s123 = sphi 0, %s120
    %s124 = sphi 0, %s123
    %s140 = sphi 0, %s124
  $region4: #{residual_maxi_block_nchw.9} parent=0 // loop_header_branch
    %14 = sbr.rel (%p12) target = $region8
  $region5: #{residual_maxi_block_nchw.9} parent=0 // loop_body
    %s16 = ssub.s32 %s11, 1
    %s17 = ssub.s32 %s11, 2
    %s18 = sadd.s32 %s11, 1
    %s19 = ssub.s32 %s11, %s18
    %p20 = scmp.eq.s32.totalorder %s19, 0
    %s22 = sadd.s32 %s21, 1
    %s23 = scalar_select %p20, %s21, %s22
    %p26 = pneg %p20
    %p27 = scmp.eq.s32.totalorder %s11, 1
    %p28 = por %p26, %p27
    %p29 = scmp.ne.s32.totalorder %s21, %s24
    %p30 = scmp.eq.s32.totalorder %s11, 0
    %p31 = por %p29, %p30
    %p32 = scmp.ne.s32.totalorder %s21, %s24
    %p33 = scmp.eq.s32.totalorder %s16, 1
    %p34 = por %p32, %p33
    %p35 = scmp.ne.s32.totalorder %s24, %s25
    %p36 = scmp.eq.s32.totalorder %s16, 0
    %p37 = por %p35, %p36
    %p38 = scmp.ne.s32.totalorder %s24, %s25
    %p39 = scmp.eq.s32.totalorder %s17, 1
    %p40 = por %p38, %p39
    %p42 = scmp.ne.s32.totalorder %s25, %s41
    %p43 = scmp.eq.s32.totalorder %s17, 0
    %p44 = por %p42, %p43
    %s46 = sadd.s32 %s45, 1
    %p49 = scmp.eq.s32.totalorder %s11, 1
    %p50 = scmp.ne.s32.totalorder %s45, %s47
    %p51 = scmp.eq.s32.totalorder %s11, 0
    %p52 = por %p50, %p51
    %p53 = scmp.ne.s32.totalorder %s45, %s47
    %p54 = scmp.eq.s32.totalorder %s16, 1
    %p55 = por %p53, %p54
    %p56 = scmp.ne.s32.totalorder %s47, %s48
    %p57 = scmp.eq.s32.totalorder %s16, 0
    %p58 = por %p56, %p57
    %p59 = scmp.ne.s32.totalorder %s47, %s48
    %p60 = scmp.eq.s32.totalorder %s17, 1
    %p61 = por %p59, %p60
    %p63 = scmp.ne.s32.totalorder %s48, %s62
    %p64 = scmp.eq.s32.totalorder %s17, 0
    %p65 = por %p63, %p64
    %s66 = ssub.s32 %s11, %s18
    %p67 = scmp.eq.s32.totalorder %s66, 0
    %s69 = sadd.s32 %s68, 1
    %s70 = scalar_select %p67, %s68, %s69
    %p73 = pneg %p67
    %p74 = scmp.eq.s32.totalorder %s11, 1
    %p75 = por %p73, %p74
    %p76 = scmp.ne.s32.totalorder %s68, %s71
    %p77 = scmp.eq.s32.totalorder %s11, 0
    %p78 = por %p76, %p77
    %p79 = scmp.ne.s32.totalorder %s68, %s71
    %p80 = scmp.eq.s32.totalorder %s16, 1
    %p81 = por %p79, %p80
    %p82 = scmp.ne.s32.totalorder %s71, %s72
    %p83 = scmp.eq.s32.totalorder %s16, 0
    %p84 = por %p82, %p83
    %p85 = scmp.ne.s32.totalorder %s71, %s72
    %p86 = scmp.eq.s32.totalorder %s17, 1
    %p87 = por %p85, %p86
    %p89 = scmp.ne.s32.totalorder %s72, %s88
    %p90 = scmp.eq.s32.totalorder %s17, 0
    %p91 = por %p89, %p90
    %s92 = ssub.s32 %s11, %s18
    %p93 = scmp.eq.s32.totalorder %s92, 0
    %s95 = sadd.s32 %s94, 1
    %s96 = scalar_select %p93, %s94, %s95
    %p99 = pneg %p93
    %p100 = scmp.eq.s32.totalorder %s11, 1
    %p101 = por %p99, %p100
    %p102 = scmp.ne.s32.totalorder %s94, %s97
    %p103 = scmp.eq.s32.totalorder %s11, 0
    %p104 = por %p102, %p103
    %p105 = scmp.ne.s32.totalorder %s94, %s97
    %p106 = scmp.eq.s32.totalorder %s16, 1
    %p107 = por %p105, %p106
    %p108 = scmp.ne.s32.totalorder %s97, %s98
    %p109 = scmp.eq.s32.totalorder %s16, 0
    %p110 = por %p108, %p109
    %p111 = scmp.ne.s32.totalorder %s97, %s98
    %p112 = scmp.eq.s32.totalorder %s17, 1
    %p113 = por %p111, %p112
    %p115 = scmp.ne.s32.totalorder %s98, %s114
    %p116 = scmp.eq.s32.totalorder %s17, 0
    %p117 = por %p115, %p116
    %s118 = ssub.s32 %s11, %s18
    %p119 = scmp.eq.s32.totalorder %s118, 0
    %s121 = sadd.s32 %s120, 1
    %s122 = scalar_select %p119, %s120, %s121
    %p125 = pneg %p119
    %p126 = scmp.eq.s32.totalorder %s11, 1
    %p127 = por %p125, %p126
    %p128 = scmp.ne.s32.totalorder %s120, %s123
    %p129 = scmp.eq.s32.totalorder %s11, 0
    %p130 = por %p128, %p129
    %p131 = scmp.ne.s32.totalorder %s120, %s123
    %p132 = scmp.eq.s32.totalorder %s16, 1
    %p133 = por %p131, %p132
    %p134 = scmp.ne.s32.totalorder %s123, %s124
    %p135 = scmp.eq.s32.totalorder %s16, 0
    %p136 = por %p134, %p135
    %p137 = scmp.ne.s32.totalorder %s123, %s124
    %p138 = scmp.eq.s32.totalorder %s17, 1
    %p139 = por %p137, %p138
    %p141 = scmp.ne.s32.totalorder %s124, %s140
    %p142 = scmp.eq.s32.totalorder %s17, 0
    %p143 = por %p141, %p142
    %p144 = scmp.le.s32.totalorder 1, %s11
    %p145 = scmp.lt.s32.totalorder %s11, 3
    %p146 = pnand %p144, %p145
    %p147 = pneg %p146
    // Predicated region
    $region9: #{residual_maxi_block_nchw.9} parent=5 // pred_check
      _
    $region10: #{residual_maxi_block_nchw.9} parent=5 // pred_check_branch
      %149 = sbr.rel (%p146) target = $region12
    $region11: #{residual_maxi_block_nchw.9} parent=5 // pred_region
      %s150 = ssub.s32 %s11, 1
      // Predicated region
      $region13: #{residual_maxi_block_nchw.9} parent=11 // pred_check
        %p151 = pneg %p58
      $region14: #{residual_maxi_block_nchw.9} parent=11 // pred_check_branch
        %153 = sbr.rel (%p151) target = $region16
      $region15: #{residual_maxi_block_nchw.9} parent=11 // pred_region
        _
      $region16: #{residual_maxi_block_nchw.9} parent=11 // pred_fallthru
        _
    $region12: #{residual_maxi_block_nchw.9} parent=5 // pred_fallthru
      _
    %p154 = scmp.lt.s32.totalorder %s11, 2
    // Predicated region
    $region17: #{residual_maxi_block_nchw.9} parent=5 // pred_check
      %p155 = pneg %p154
    $region18: #{residual_maxi_block_nchw.9} parent=5 // pred_check_branch
      %157 = sbr.rel (%p155) target = $region20
    $region19: #{residual_maxi_block_nchw.9} parent=5 // pred_region
      // Predicated region
      $region21: #{residual_maxi_block_nchw.9} parent=19 // pred_check
        %p158 = pneg %p31
      $region22: #{residual_maxi_block_nchw.9} parent=19 // pred_check_branch
        %160 = sbr.rel (%p158) target = $region24
      $region23: #{residual_maxi_block_nchw.9} parent=19 // pred_region
        %p161 = scmp.lt.s32.totalorder %s11, 1
        %s162 = scalar_select %p161, %s11, 1
        %s163 = smul.addr %s162, 32
        %s164 = smul.addr %s163, 4
        %s165 = scalar_lea.vmem %s0, %s164
      $region24: #{residual_maxi_block_nchw.9} parent=19 // pred_fallthru
        _
    $region20: #{residual_maxi_block_nchw.9} parent=5 // pred_fallthru
      _
    %p166 = scmp.le.s32.totalorder 1, %s11
    %p167 = scmp.lt.s32.totalorder %s11, 3
    %p168 = pnand %p166, %p167
    %p169 = pneg %p168
    // Predicated region
    $region25: #{residual_maxi_block_nchw.9} parent=5 // pred_check
      _
    $region26: #{residual_maxi_block_nchw.9} parent=5 // pred_check_branch
      %171 = sbr.rel (%p168) target = $region28
    $region27: #{residual_maxi_block_nchw.9} parent=5 // pred_region
      %s172 = ssub.s32 %s11, 1
      %p173 = scmp.lt.s32.totalorder %s16, 1
      %s174 = scalar_select %p173, %s16, 1
      %s175 = smul.addr %s174, 32
      %s176 = smul.addr %s175, 4
      %s177 = scalar_lea.vmem %s0, %s176
      %p178 = pneg %p37
      %p179 = pneg %p34
      %p180 = pneg %p58
      %p181 = pneg %p55
      %p182 = pneg %p84
      %p183 = pneg %p81
      %p184 = scmp.lt.s32.totalorder %s16, 1
      %s185 = scalar_select %p184, %s16, 1
      %s186 = smul.addr %s185, 32
      %s187 = smul.addr %s186, 4
      %s188 = scalar_lea.vmem %s2, %s187
      %p189 = pneg %p110
      %p190 = pneg %p107
      %p191 = scmp.lt.s32.totalorder %s16, 1
      %s192 = scalar_select %p191, %s16, 1
      %s193 = scalar_lea.vmem %s3, %s192
      %p194 = pneg %p136
      %p195 = pneg %p133
      %p196 = scmp.lt.s32.totalorder %s16, 1
      %s197 = scalar_select %p196, %s16, 1
      %s198 = scalar_lea.vmem %s4, %s197
      %p199 = scmp.lt.s32.totalorder %s16, 1
      %s200 = scalar_select %p199, %s16, 1
      %s201 = smul.addr %s200, 32
      %s202 = smul.addr %s201, 4
      %s203 = scalar_lea.vmem %s0, %s202
      %p204 = scmp.lt.s32.totalorder %s16, 1
      %s205 = scalar_select %p204, %s16, 1
      %s206 = smul.addr %s205, 32
      %s207 = smul.addr %s206, 4
      %s208 = scalar_lea.vmem %s2, %s207
      %p209 = scmp.lt.s32.totalorder %s16, 1
      %s210 = scalar_select %p209, %s16, 1
      %s211 = scalar_lea.vmem %s3, %s210
      %p212 = scmp.lt.s32.totalorder %s16, 1
      %s213 = scalar_select %p212, %s16, 1
      %s214 = scalar_lea.vmem %s4, %s213
      %v216 = vld [vmem:[%s203] sm:$0xf]
      %v217 = vld [vmem:[%s203 + $0x4] sm:$0xf]
      %v218 = vld [vmem:[%s203 + $0x8] sm:$0xf]
      %v219 = vld [vmem:[%s203 + $0xc] sm:$0xf]
      %v220 = vld [vmem:[%s203 + $0x10] sm:$0xf]
      %v221 = vld [vmem:[%s203 + $0x14] sm:$0xf]
      %v222 = vld [vmem:[%s203 + $0x18] sm:$0xf]
      %v223 = vld [vmem:[%s203 + $0x1c] sm:$0xf]
      %v224 = vld [vmem:[%s203 + $0x20] sm:$0xf]
      %v225 = vld [vmem:[%s203 + $0x24] sm:$0xf]
      %v226 = vld [vmem:[%s203 + $0x28] sm:$0xf]
      %v227 = vld [vmem:[%s203 + $0x2c] sm:$0xf]
      %v228 = vld [vmem:[%s203 + $0x30] sm:$0xf]
      %v229 = vld [vmem:[%s203 + $0x34] sm:$0xf]
      %v230 = vld [vmem:[%s203 + $0x38] sm:$0xf]
      %v231 = vld [vmem:[%s203 + $0x3c] sm:$0xf]
      %v232 = vld [vmem:[%s203 + $0x40] sm:$0xf]
      %v233 = vld [vmem:[%s203 + $0x44] sm:$0xf]
      %v234 = vld [vmem:[%s203 + $0x48] sm:$0xf]
      %v235 = vld [vmem:[%s203 + $0x4c] sm:$0xf]
      %v236 = vld [vmem:[%s203 + $0x50] sm:$0xf]
      %v237 = vld [vmem:[%s203 + $0x54] sm:$0xf]
      %v238 = vld [vmem:[%s203 + $0x58] sm:$0xf]
      %v239 = vld [vmem:[%s203 + $0x5c] sm:$0xf]
      %v240 = vld [vmem:[%s203 + $0x60] sm:$0xf]
      %v241 = vld [vmem:[%s203 + $0x64] sm:$0xf]
      %v242 = vld [vmem:[%s203 + $0x68] sm:$0xf]
      %v243 = vld [vmem:[%s203 + $0x6c] sm:$0xf]
      %v244 = vld [vmem:[%s203 + $0x70] sm:$0xf]
      %v245 = vld [vmem:[%s203 + $0x74] sm:$0xf]
      %v246 = vld [vmem:[%s203 + $0x78] sm:$0xf]
      %v247 = vld [vmem:[%s203 + $0x7c] sm:$0xf]
      %v248 = vunpack.c.l.bf16 %v216
      %v249 = vunpack.c.l.bf16 %v217
      %v250 = vunpack.c.l.bf16 %v218
      %v251 = vunpack.c.l.bf16 %v219
      %v252 = vunpack.c.l.bf16 %v220
      %v253 = vunpack.c.l.bf16 %v221
      %v254 = vunpack.c.l.bf16 %v222
      %v255 = vunpack.c.l.bf16 %v223
      %v256 = vunpack.c.l.bf16 %v224
      %v257 = vunpack.c.l.bf16 %v225
      %v258 = vunpack.c.l.bf16 %v226
      %v259 = vunpack.c.l.bf16 %v227
      %v260 = vunpack.c.l.bf16 %v228
      %v261 = vunpack.c.l.bf16 %v229
      %v262 = vunpack.c.l.bf16 %v230
      %v263 = vunpack.c.l.bf16 %v231
      %v264 = vunpack.c.l.bf16 %v232
      %v265 = vunpack.c.l.bf16 %v233
      %v266 = vunpack.c.l.bf16 %v234
      %v267 = vunpack.c.l.bf16 %v235
      %v268 = vunpack.c.l.bf16 %v236
      %v269 = vunpack.c.l.bf16 %v237
      %v270 = vunpack.c.l.bf16 %v238
      %v271 = vunpack.c.l.bf16 %v239
      %v272 = vunpack.c.l.bf16 %v240
      %v273 = vunpack.c.l.bf16 %v241
      %v274 = vunpack.c.l.bf16 %v242
      %v275 = vunpack.c.l.bf16 %v243
      %v276 = vunpack.c.l.bf16 %v244
      %v277 = vunpack.c.l.bf16 %v245
      %v278 = vunpack.c.l.bf16 %v246
      %v279 = vunpack.c.l.bf16 %v247
      %280 = vst [vmem:[#allocation2] sm:$0xff] 0.0
      %281 = vst [vmem:[#allocation2 + $0x8] sm:$0xff] 0.0
      %282 = vst [vmem:[#allocation2 + $0x10] sm:$0x3] 0.0
      %283 = vst [vmem:[#allocation2 + $0x18] sm:$0xff] 0.0
      %284 = vst [vmem:[#allocation2 + $0x20] sm:$0xff] 0.0
      %285 = vst [vmem:[#allocation2 + $0x28] sm:$0x3] 0.0
      %286 = vst [vmem:[#allocation2 + $0x30] sm:$0xff] 0.0
      %287 = vst [vmem:[#allocation2 + $0x38] sm:$0xff] 0.0
      %288 = vst [vmem:[#allocation2 + $0x40] sm:$0x3] 0.0
      %289 = vst [vmem:[#allocation2 + $0x48] sm:$0xff] 0.0
      %290 = vst [vmem:[#allocation2 + $0x50] sm:$0xff] 0.0
      %291 = vst [vmem:[#allocation2 + $0x58] sm:$0x3] 0.0
      %292 = vst [vmem:[#allocation2 + $0x60] sm:$0xff] 0.0
      %293 = vst [vmem:[#allocation2 + $0x68] sm:$0xff] 0.0
      %294 = vst [vmem:[#allocation2 + $0x70] sm:$0x3] 0.0
      %295 = vst [vmem:[#allocation2 + $0x78] sm:$0xff] 0.0
      %296 = vst [vmem:[#allocation2 + $0x80] sm:$0xff] 0.0
      %297 = vst [vmem:[#allocation2 + $0x88] sm:$0x3] 0.0
      %298 = vst [vmem:[#allocation2 + $0x90] sm:$0xff] 0.0
      %299 = vst [vmem:[#allocation2 + $0x98] sm:$0xff] 0.0
      %300 = vst [vmem:[#allocation2 + $0xa0] sm:$0x3] 0.0
      %301 = vst [vmem:[#allocation2 + $0xa8] sm:$0xff] 0.0
      %302 = vst [vmem:[#allocation2 + $0xb0] sm:$0xff] 0.0
      %303 = vst [vmem:[#allocation2 + $0xb8] sm:$0x3] 0.0
      %304 = vst [vmem:[#allocation2 + $0xc0] sm:$0xff] 0.0
      %305 = vst [vmem:[#allocation2 + $0xc8] sm:$0xff] 0.0
      %306 = vst [vmem:[#allocation2 + $0xd0] sm:$0x3] 0.0
      %307 = vst [vmem:[#allocation2 + $0xd8] sm:$0xff] 0.0
      %308 = vst [vmem:[#allocation2 + $0xe0] sm:$0xff] 0.0
      %309 = vst [vmem:[#allocation2 + $0xe8] sm:$0x3] 0.0
      %310 = vst [vmem:[#allocation2 + $0xf0] sm:$0xff] 0.0
      %311 = vst [vmem:[#allocation2 + $0xf8] sm:$0xff] 0.0
      %312 = vst [vmem:[#allocation2 + $0x100] sm:$0x3] 0.0
      %313 = vst [vmem:[#allocation2 + $0x108] sm:$0xff] 0.0
      %314 = vst [vmem:[#allocation2 + $0x110] sm:$0xff] 0.0
      %315 = vst [vmem:[#allocation2 + $0x118] sm:$0x3] 0.0
      %316 = vst [vmem:[#allocation2 + $0x120] sm:$0xff] 0.0
      %317 = vst [vmem:[#allocation2 + $0x128] sm:$0xff] 0.0
      %318 = vst [vmem:[#allocation2 + $0x130] sm:$0x3] 0.0
      %319 = vst [vmem:[#allocation2 + $0x138] sm:$0xff] 0.0
      %320 = vst [vmem:[#allocation2 + $0x140] sm:$0xff] 0.0
      %321 = vst [vmem:[#allocation2 + $0x148] sm:$0x3] 0.0
      %322 = vst [vmem:[#allocation2 + $0x150] sm:$0xff] 0.0
      %323 = vst [vmem:[#allocation2 + $0x158] sm:$0xff] 0.0
      %324 = vst [vmem:[#allocation2 + $0x160] sm:$0x3] 0.0
      %325 = vst [vmem:[#allocation2 + $0x168] sm:$0xff] 0.0
      %326 = vst [vmem:[#allocation2 + $0x170] sm:$0xff] 0.0
      %327 = vst [vmem:[#allocation2 + $0x178] sm:$0x3] 0.0
      %328 = vst [vmem:[#allocation2 + $0x180] sm:$0xff] 0.0
      %329 = vst [vmem:[#allocation2 + $0x188] sm:$0xff] 0.0
      %330 = vst [vmem:[#allocation2 + $0x190] sm:$0x3] 0.0
      %331 = vst [vmem:[#allocation2 + $0x198] sm:$0xff] 0.0
      %332 = vst [vmem:[#allocation2 + $0x1a0] sm:$0xff] 0.0
      %333 = vst [vmem:[#allocation2 + $0x1a8] sm:$0x3] 0.0
      %s334 = scalar_lea.vmem [#allocation2], 24
      %335 = vst [vmem:[%s334 + $0x1] sm:$0xff] %v248
      %336 = vst [vmem:[%s334 + $0x9] sm:$0xff] %v249
      %337 = vst [vmem:[%s334 + $0x19] sm:$0xff] %v250
      %338 = vst [vmem:[%s334 + $0x21] sm:$0xff] %v251
      %339 = vst [vmem:[%s334 + $0x31] sm:$0xff] %v252
      %340 = vst [vmem:[%s334 + $0x39] sm:$0xff] %v253
      %341 = vst [vmem:[%s334 + $0x49] sm:$0xff] %v254
      %342 = vst [vmem:[%s334 + $0x51] sm:$0xff] %v255
      %343 = vst [vmem:[%s334 + $0x61] sm:$0xff] %v256
      %344 = vst [vmem:[%s334 + $0x69] sm:$0xff] %v257
      %345 = vst [vmem:[%s334 + $0x79] sm:$0xff] %v258
      %346 = vst [vmem:[%s334 + $0x81] sm:$0xff] %v259
      %347 = vst [vmem:[%s334 + $0x91] sm:$0xff] %v260
      %348 = vst [vmem:[%s334 + $0x99] sm:$0xff] %v261
      %349 = vst [vmem:[%s334 + $0xa9] sm:$0xff] %v262
      %350 = vst [vmem:[%s334 + $0xb1] sm:$0xff] %v263
      %351 = vst [vmem:[%s334 + $0xc1] sm:$0xff] %v264
      %352 = vst [vmem:[%s334 + $0xc9] sm:$0xff] %v265
      %353 = vst [vmem:[%s334 + $0xd9] sm:$0xff] %v266
      %354 = vst [vmem:[%s334 + $0xe1] sm:$0xff] %v267
      %355 = vst [vmem:[%s334 + $0xf1] sm:$0xff] %v268
      %356 = vst [vmem:[%s334 + $0xf9] sm:$0xff] %v269
      %357 = vst [vmem:[%s334 + $0x109] sm:$0xff] %v270
      %358 = vst [vmem:[%s334 + $0x111] sm:$0xff] %v271
      %359 = vst [vmem:[%s334 + $0x121] sm:$0xff] %v272
      %360 = vst [vmem:[%s334 + $0x129] sm:$0xff] %v273
      %361 = vst [vmem:[%s334 + $0x139] sm:$0xff] %v274
      %362 = vst [vmem:[%s334 + $0x141] sm:$0xff] %v275
      %363 = vst [vmem:[%s334 + $0x151] sm:$0xff] %v276
      %364 = vst [vmem:[%s334 + $0x159] sm:$0xff] %v277
      %365 = vst [vmem:[%s334 + $0x169] sm:$0xff] %v278
      %366 = vst [vmem:[%s334 + $0x171] sm:$0xff] %v279
      %v367 = vld [vmem:[#allocation2] sm:$0xff]
      %v368 = vld [vmem:[#allocation2 + $0x8] sm:$0xff]
      %v369 = vld [vmem:[#allocation2 + $0x18] sm:$0xff]
      %v370 = vld [vmem:[#allocation2 + $0x20] sm:$0xff]
      %v371 = vld [vmem:[#allocation2 + $0x30] sm:$0xff]
      %v372 = vld [vmem:[#allocation2 + $0x38] sm:$0xff]
      %v373 = vld [vmem:[#allocation2 + $0x48] sm:$0xff]
      %v374 = vld [vmem:[#allocation2 + $0x50] sm:$0xff]
      %v375 = vld [vmem:[#allocation2 + $0x60] sm:$0xff]
      %v376 = vld [vmem:[#allocation2 + $0x68] sm:$0xff]
      %v377 = vld [vmem:[#allocation2 + $0x78] sm:$0xff]
      %v378 = vld [vmem:[#allocation2 + $0x80] sm:$0xff]
      %v379 = vld [vmem:[#allocation2 + $0x90] sm:$0xff]
      %v380 = vld [vmem:[#allocation2 + $0x98] sm:$0xff]
      %v381 = vld [vmem:[#allocation2 + $0xa8] sm:$0xff]
      %v382 = vld [vmem:[#allocation2 + $0xb0] sm:$0xff]
      %v383 = vld [vmem:[#allocation2 + $0xc0] sm:$0xff]
      %v384 = vld [vmem:[#allocation2 + $0xc8] sm:$0xff]
      %v385 = vld [vmem:[#allocation2 + $0xd8] sm:$0xff]
      %v386 = vld [vmem:[#allocation2 + $0xe0] sm:$0xff]
      %v387 = vld [vmem:[#allocation2 + $0xf0] sm:$0xff]
      %v388 = vld [vmem:[#allocation2 + $0xf8] sm:$0xff]
      %v389 = vld [vmem:[#allocation2 + $0x108] sm:$0xff]
      %v390 = vld [vmem:[#allocation2 + $0x110] sm:$0xff]
      %v391 = vld [vmem:[#allocation2 + $0x120] sm:$0xff]
      %v392 = vld [vmem:[#allocation2 + $0x128] sm:$0xff]
      %v393 = vld [vmem:[#allocation2 + $0x138] sm:$0xff]
      %v394 = vld [vmem:[#allocation2 + $0x140] sm:$0xff]
      %v395 = vld [vmem:[#allocation2 + $0x150] sm:$0xff]
      %v396 = vld [vmem:[#allocation2 + $0x158] sm:$0xff]
      %v397 = vld [vmem:[#allocation2 + $0x168] sm:$0xff]
      %v398 = vld [vmem:[#allocation2 + $0x170] sm:$0xff]
      %v399 = vpack.c.bf16 %v368, %v367
      %v400 = vpack.c.bf16 %v370, %v369
      %v401 = vpack.c.bf16 %v372, %v371
      %v402 = vpack.c.bf16 %v374, %v373
      %v403 = vpack.c.bf16 %v376, %v375
      %v404 = vpack.c.bf16 %v378, %v377
      %v405 = vpack.c.bf16 %v380, %v379
      %v406 = vpack.c.bf16 %v382, %v381
      %v407 = vpack.c.bf16 %v384, %v383
      %v408 = vpack.c.bf16 %v386, %v385
      %v409 = vpack.c.bf16 %v388, %v387
      %v410 = vpack.c.bf16 %v390, %v389
      %v411 = vpack.c.bf16 %v392, %v391
      %v412 = vpack.c.bf16 %v394, %v393
      %v413 = vpack.c.bf16 %v396, %v395
      %v414 = vpack.c.bf16 %v398, %v397
      %415 = vst [vmem:[#allocation3] sm:$0xff] %v399
      %416 = vst [vmem:[#allocation3 + $0x48] sm:$0xff] %v400
      %417 = vst [vmem:[#allocation3 + $0x90] sm:$0xff] %v401
      %418 = vst [vmem:[#allocation3 + $0xd8] sm:$0xff] %v402
      %419 = vst [vmem:[#allocation3 + $0x120] sm:$0xff] %v403
      %420 = vst [vmem:[#allocation3 + $0x168] sm:$0xff] %v404
      %421 = vst [vmem:[#allocation3 + $0x1b0] sm:$0xff] %v405
      %422 = vst [vmem:[#allocation3 + $0x1f8] sm:$0xff] %v406
      %423 = vst [vmem:[#allocation3 + $0x240] sm:$0xff] %v407
      %424 = vst [vmem:[#allocation3 + $0x288] sm:$0xff] %v408
      %425 = vst [vmem:[#allocation3 + $0x2d0] sm:$0xff] %v409
      %426 = vst [vmem:[#allocation3 + $0x318] sm:$0xff] %v410
      %427 = vst [vmem:[#allocation3 + $0x360] sm:$0xff] %v411
      %428 = vst [vmem:[#allocation3 + $0x3a8] sm:$0xff] %v412
      %429 = vst [vmem:[#allocation3 + $0x3f0] sm:$0xff] %v413
      %430 = vst [vmem:[#allocation3 + $0x438] sm:$0xff] %v414
      %v431 = vld [vmem:[#allocation2 + $0x1] sm:$0xff]
      %v432 = vld [vmem:[#allocation2 + $0x9] sm:$0xff]
      %v433 = vld [vmem:[#allocation2 + $0x19] sm:$0xff]
      %v434 = vld [vmem:[#allocation2 + $0x21] sm:$0xff]
      %v435 = vld [vmem:[#allocation2 + $0x31] sm:$0xff]
      %v436 = vld [vmem:[#allocation2 + $0x39] sm:$0xff]
      %v437 = vld [vmem:[#allocation2 + $0x49] sm:$0xff]
      %v438 = vld [vmem:[#allocation2 + $0x51] sm:$0xff]
      %v439 = vld [vmem:[#allocation2 + $0x61] sm:$0xff]
      %v440 = vld [vmem:[#allocation2 + $0x69] sm:$0xff]
      %v441 = vld [vmem:[#allocation2 + $0x79] sm:$0xff]
      %v442 = vld [vmem:[#allocation2 + $0x81] sm:$0xff]
      %v443 = vld [vmem:[#allocation2 + $0x91] sm:$0xff]
      %v444 = vld [vmem:[#allocation2 + $0x99] sm:$0xff]
      %v445 = vld [vmem:[#allocation2 + $0xa9] sm:$0xff]
      %v446 = vld [vmem:[#allocation2 + $0xb1] sm:$0xff]
      %v447 = vld [vmem:[#allocation2 + $0xc1] sm:$0xff]
      %v448 = vld [vmem:[#allocation2 + $0xc9] sm:$0xff]
      %v449 = vld [vmem:[#allocation2 + $0xd9] sm:$0xff]
      %v450 = vld [vmem:[#allocation2 + $0xe1] sm:$0xff]
      %v451 = vld [vmem:[#allocation2 + $0xf1] sm:$0xff]
      %v452 = vld [vmem:[#allocation2 + $0xf9] sm:$0xff]
      %v453 = vld [vmem:[#allocation2 + $0x109] sm:$0xff]
      %v454 = vld [vmem:[#allocation2 + $0x111] sm:$0xff]
      %v455 = vld [vmem:[#allocation2 + $0x121] sm:$0xff]
      %v456 = vld [vmem:[#allocation2 + $0x129] sm:$0xff]
      %v457 = vld [vmem:[#allocation2 + $0x139] sm:$0xff]
      %v458 = vld [vmem:[#allocation2 + $0x141] sm:$0xff]
      %v459 = vld [vmem:[#allocation2 + $0x151] sm:$0xff]
      %v460 = vld [vmem:[#allocation2 + $0x159] sm:$0xff]
      %v461 = vld [vmem:[#allocation2 + $0x169] sm:$0xff]
      %v462 = vld [vmem:[#allocation2 + $0x171] sm:$0xff]
      %v463 = vpack.c.bf16 %v432, %v431
      %v464 = vpack.c.bf16 %v434, %v433
      %v465 = vpack.c.bf16 %v436, %v435
      %v466 = vpack.c.bf16 %v438, %v437
      %v467 = vpack.c.bf16 %v440, %v439
      %v468 = vpack.c.bf16 %v442, %v441
      %v469 = vpack.c.bf16 %v444, %v443
      %v470 = vpack.c.bf16 %v446, %v445
      %v471 = vpack.c.bf16 %v448, %v447
      %v472 = vpack.c.bf16 %v450, %v449
      %v473 = vpack.c.bf16 %v452, %v451
      %v474 = vpack.c.bf16 %v454, %v453
      %v475 = vpack.c.bf16 %v456, %v455
      %v476 = vpack.c.bf16 %v458, %v457
      %v477 = vpack.c.bf16 %v460, %v459
      %v478 = vpack.c.bf16 %v462, %v461
      %479 = vst [vmem:[#allocation3 + $0x8] sm:$0xff] %v463
      %480 = vst [vmem:[#allocation3 + $0x50] sm:$0xff] %v464
      %481 = vst [vmem:[#allocation3 + $0x98] sm:$0xff] %v465
      %482 = vst [vmem:[#allocation3 + $0xe0] sm:$0xff] %v466
      %483 = vst [vmem:[#allocation3 + $0x128] sm:$0xff] %v467
      %484 = vst [vmem:[#allocation3 + $0x170] sm:$0xff] %v468
      %485 = vst [vmem:[#allocation3 + $0x1b8] sm:$0xff] %v469
      %486 = vst [vmem:[#allocation3 + $0x200] sm:$0xff] %v470
      %487 = vst [vmem:[#allocation3 + $0x248] sm:$0xff] %v471
      %488 = vst [vmem:[#allocation3 + $0x290] sm:$0xff] %v472
      %489 = vst [vmem:[#allocation3 + $0x2d8] sm:$0xff] %v473
      %490 = vst [vmem:[#allocation3 + $0x320] sm:$0xff] %v474
      %491 = vst [vmem:[#allocation3 + $0x368] sm:$0xff] %v475
      %492 = vst [vmem:[#allocation3 + $0x3b0] sm:$0xff] %v476
      %493 = vst [vmem:[#allocation3 + $0x3f8] sm:$0xff] %v477
      %494 = vst [vmem:[#allocation3 + $0x440] sm:$0xff] %v478
      %v495 = vld [vmem:[#allocation2 + $0x2] sm:$0xff]
      %v496 = vld [vmem:[#allocation2 + $0xa] sm:$0xff]
      %v497 = vld [vmem:[#allocation2 + $0x1a] sm:$0xff]
      %v498 = vld [vmem:[#allocation2 + $0x22] sm:$0xff]
      %v499 = vld [vmem:[#allocation2 + $0x32] sm:$0xff]
      %v500 = vld [vmem:[#allocation2 + $0x3a] sm:$0xff]
      %v501 = vld [vmem:[#allocation2 + $0x4a] sm:$0xff]
      %v502 = vld [vmem:[#allocation2 + $0x52] sm:$0xff]
      %v503 = vld [vmem:[#allocation2 + $0x62] sm:$0xff]
      %v504 = vld [vmem:[#allocation2 + $0x6a] sm:$0xff]
      %v505 = vld [vmem:[#allocation2 + $0x7a] sm:$0xff]
      %v506 = vld [vmem:[#allocation2 + $0x82] sm:$0xff]
      %v507 = vld [vmem:[#allocation2 + $0x92] sm:$0xff]
      %v508 = vld [vmem:[#allocation2 + $0x9a] sm:$0xff]
      %v509 = vld [vmem:[#allocation2 + $0xaa] sm:$0xff]
      %v510 = vld [vmem:[#allocation2 + $0xb2] sm:$0xff]
      %v511 = vld [vmem:[#allocation2 + $0xc2] sm:$0xff]
      %v512 = vld [vmem:[#allocation2 + $0xca] sm:$0xff]
      %v513 = vld [vmem:[#allocation2 + $0xda] sm:$0xff]
      %v514 = vld [vmem:[#allocation2 + $0xe2] sm:$0xff]
      %v515 = vld [vmem:[#allocation2 + $0xf2] sm:$0xff]
      %v516 = vld [vmem:[#allocation2 + $0xfa] sm:$0xff]
      %v517 = vld [vmem:[#allocation2 + $0x10a] sm:$0xff]
      %v518 = vld [vmem:[#allocation2 + $0x112] sm:$0xff]
      %v519 = vld [vmem:[#allocation2 + $0x122] sm:$0xff]
      %v520 = vld [vmem:[#allocation2 + $0x12a] sm:$0xff]
      %v521 = vld [vmem:[#allocation2 + $0x13a] sm:$0xff]
      %v522 = vld [vmem:[#allocation2 + $0x142] sm:$0xff]
      %v523 = vld [vmem:[#allocation2 + $0x152] sm:$0xff]
      %v524 = vld [vmem:[#allocation2 + $0x15a] sm:$0xff]
      %v525 = vld [vmem:[#allocation2 + $0x16a] sm:$0xff]
      %v526 = vld [vmem:[#allocation2 + $0x172] sm:$0xff]
      %v527 = vpack.c.bf16 %v496, %v495
      %v528 = vpack.c.bf16 %v498, %v497
      %v529 = vpack.c.bf16 %v500, %v499
      %v530 = vpack.c.bf16 %v502, %v501
      %v531 = vpack.c.bf16 %v504, %v503
      %v532 = vpack.c.bf16 %v506, %v505
      %v533 = vpack.c.bf16 %v508, %v507
      %v534 = vpack.c.bf16 %v510, %v509
      %v535 = vpack.c.bf16 %v512, %v511
      %v536 = vpack.c.bf16 %v514, %v513
      %v537 = vpack.c.bf16 %v516, %v515
      %v538 = vpack.c.bf16 %v518, %v517
      %v539 = vpack.c.bf16 %v520, %v519
      %v540 = vpack.c.bf16 %v522, %v521
      %v541 = vpack.c.bf16 %v524, %v523
      %v542 = vpack.c.bf16 %v526, %v525
      %543 = vst [vmem:[#allocation3 + $0x10] sm:$0xff] %v527
      %544 = vst [vmem:[#allocation3 + $0x58] sm:$0xff] %v528
      %545 = vst [vmem:[#allocation3 + $0xa0] sm:$0xff] %v529
      %546 = vst [vmem:[#allocation3 + $0xe8] sm:$0xff] %v530
      %547 = vst [vmem:[#allocation3 + $0x130] sm:$0xff] %v531
      %548 = vst [vmem:[#allocation3 + $0x178] sm:$0xff] %v532
      %549 = vst [vmem:[#allocation3 + $0x1c0] sm:$0xff] %v533
      %550 = vst [vmem:[#allocation3 + $0x208] sm:$0xff] %v534
      %551 = vst [vmem:[#allocation3 + $0x250] sm:$0xff] %v535
      %552 = vst [vmem:[#allocation3 + $0x298] sm:$0xff] %v536
      %553 = vst [vmem:[#allocation3 + $0x2e0] sm:$0xff] %v537
      %554 = vst [vmem:[#allocation3 + $0x328] sm:$0xff] %v538
      %555 = vst [vmem:[#allocation3 + $0x370] sm:$0xff] %v539
      %556 = vst [vmem:[#allocation3 + $0x3b8] sm:$0xff] %v540
      %557 = vst [vmem:[#allocation3 + $0x400] sm:$0xff] %v541
      %558 = vst [vmem:[#allocation3 + $0x448] sm:$0xff] %v542
      %v559 = vld [vmem:[%s334] sm:$0xff]
      %v560 = vld [vmem:[%s334 + $0x8] sm:$0xff]
      %v561 = vld [vmem:[%s334 + $0x18] sm:$0xff]
      %v562 = vld [vmem:[%s334 + $0x20] sm:$0xff]
      %v563 = vld [vmem:[%s334 + $0x30] sm:$0xff]
      %v564 = vld [vmem:[%s334 + $0x38] sm:$0xff]
      %v565 = vld [vmem:[%s334 + $0x48] sm:$0xff]
      %v566 = vld [vmem:[%s334 + $0x50] sm:$0xff]
      %v567 = vld [vmem:[%s334 + $0x60] sm:$0xff]
      %v568 = vld [vmem:[%s334 + $0x68] sm:$0xff]
      %v569 = vld [vmem:[%s334 + $0x78] sm:$0xff]
      %v570 = vld [vmem:[%s334 + $0x80] sm:$0xff]
      %v571 = vld [vmem:[%s334 + $0x90] sm:$0xff]
      %v572 = vld [vmem:[%s334 + $0x98] sm:$0xff]
      %v573 = vld [vmem:[%s334 + $0xa8] sm:$0xff]
      %v574 = vld [vmem:[%s334 + $0xb0] sm:$0xff]
      %v575 = vld [vmem:[%s334 + $0xc0] sm:$0xff]
      %v576 = vld [vmem:[%s334 + $0xc8] sm:$0xff]
      %v577 = vld [vmem:[%s334 + $0xd8] sm:$0xff]
      %v578 = vld [vmem:[%s334 + $0xe0] sm:$0xff]
      %v579 = vld [vmem:[%s334 + $0xf0] sm:$0xff]
      %v580 = vld [vmem:[%s334 + $0xf8] sm:$0xff]
      %v581 = vld [vmem:[%s334 + $0x108] sm:$0xff]
      %v582 = vld [vmem:[%s334 + $0x110] sm:$0xff]
      %v583 = vld [vmem:[%s334 + $0x120] sm:$0xff]
      %v584 = vld [vmem:[%s334 + $0x128] sm:$0xff]
      %v585 = vld [vmem:[%s334 + $0x138] sm:$0xff]
      %v586 = vld [vmem:[%s334 + $0x140] sm:$0xff]
      %v587 = vld [vmem:[%s334 + $0x150] sm:$0xff]
      %v588 = vld [vmem:[%s334 + $0x158] sm:$0xff]
      %v589 = vld [vmem:[%s334 + $0x168] sm:$0xff]
      %v590 = vld [vmem:[%s334 + $0x170] sm:$0xff]
      %v591 = vpack.c.bf16 %v560, %v559
      %v592 = vpack.c.bf16 %v562, %v561
      %v593 = vpack.c.bf16 %v564, %v563
      %v594 = vpack.c.bf16 %v566, %v565
      %v595 = vpack.c.bf16 %v568, %v567
      %v596 = vpack.c.bf16 %v570, %v569
      %v597 = vpack.c.bf16 %v572, %v571
      %v598 = vpack.c.bf16 %v574, %v573
      %v599 = vpack.c.bf16 %v576, %v575
      %v600 = vpack.c.bf16 %v578, %v577
      %v601 = vpack.c.bf16 %v580, %v579
      %v602 = vpack.c.bf16 %v582, %v581
      %v603 = vpack.c.bf16 %v584, %v583
      %v604 = vpack.c.bf16 %v586, %v585
      %v605 = vpack.c.bf16 %v588, %v587
      %v606 = vpack.c.bf16 %v590, %v589
      %607 = vst [vmem:[#allocation3 + $0x18] sm:$0xff] %v591
      %608 = vst [vmem:[#allocation3 + $0x60] sm:$0xff] %v592
      %609 = vst [vmem:[#allocation3 + $0xa8] sm:$0xff] %v593
      %610 = vst [vmem:[#allocation3 + $0xf0] sm:$0xff] %v594
      %611 = vst [vmem:[#allocation3 + $0x138] sm:$0xff] %v595
      %612 = vst [vmem:[#allocation3 + $0x180] sm:$0xff] %v596
      %613 = vst [vmem:[#allocation3 + $0x1c8] sm:$0xff] %v597
      %614 = vst [vmem:[#allocation3 + $0x210] sm:$0xff] %v598
      %615 = vst [vmem:[#allocation3 + $0x258] sm:$0xff] %v599
      %616 = vst [vmem:[#allocation3 + $0x2a0] sm:$0xff] %v600
      %617 = vst [vmem:[#allocation3 + $0x2e8] sm:$0xff] %v601
      %618 = vst [vmem:[#allocation3 + $0x330] sm:$0xff] %v602
      %619 = vst [vmem:[#allocation3 + $0x378] sm:$0xff] %v603
      %620 = vst [vmem:[#allocation3 + $0x3c0] sm:$0xff] %v604
      %621 = vst [vmem:[#allocation3 + $0x408] sm:$0xff] %v605
      %622 = vst [vmem:[#allocation3 + $0x450] sm:$0xff] %v606
      %v623 = vld [vmem:[%s334 + $0x1] sm:$0xff]
      %v624 = vld [vmem:[%s334 + $0x9] sm:$0xff]
      %v625 = vld [vmem:[%s334 + $0x19] sm:$0xff]
      %v626 = vld [vmem:[%s334 + $0x21] sm:$0xff]
      %v627 = vld [vmem:[%s334 + $0x31] sm:$0xff]
      %v628 = vld [vmem:[%s334 + $0x39] sm:$0xff]
      %v629 = vld [vmem:[%s334 + $0x49] sm:$0xff]
      %v630 = vld [vmem:[%s334 + $0x51] sm:$0xff]
      %v631 = vld [vmem:[%s334 + $0x61] sm:$0xff]
      %v632 = vld [vmem:[%s334 + $0x69] sm:$0xff]
      %v633 = vld [vmem:[%s334 + $0x79] sm:$0xff]
      %v634 = vld [vmem:[%s334 + $0x81] sm:$0xff]
      %v635 = vld [vmem:[%s334 + $0x91] sm:$0xff]
      %v636 = vld [vmem:[%s334 + $0x99] sm:$0xff]
      %v637 = vld [vmem:[%s334 + $0xa9] sm:$0xff]
      %v638 = vld [vmem:[%s334 + $0xb1] sm:$0xff]
      %v639 = vld [vmem:[%s334 + $0xc1] sm:$0xff]
      %v640 = vld [vmem:[%s334 + $0xc9] sm:$0xff]
      %v641 = vld [vmem:[%s334 + $0xd9] sm:$0xff]
      %v642 = vld [vmem:[%s334 + $0xe1] sm:$0xff]
      %v643 = vld [vmem:[%s334 + $0xf1] sm:$0xff]
      %v644 = vld [vmem:[%s334 + $0xf9] sm:$0xff]
      %v645 = vld [vmem:[%s334 + $0x109] sm:$0xff]
      %v646 = vld [vmem:[%s334 + $0x111] sm:$0xff]
      %v647 = vld [vmem:[%s334 + $0x121] sm:$0xff]
      %v648 = vld [vmem:[%s334 + $0x129] sm:$0xff]
      %v649 = vld [vmem:[%s334 + $0x139] sm:$0xff]
      %v650 = vld [vmem:[%s334 + $0x141] sm:$0xff]
      %v651 = vld [vmem:[%s334 + $0x151] sm:$0xff]
      %v652 = vld [vmem:[%s334 + $0x159] sm:$0xff]
      %v653 = vld [vmem:[%s334 + $0x169] sm:$0xff]
      %v654 = vld [vmem:[%s334 + $0x171] sm:$0xff]
      %v655 = vpack.c.bf16 %v624, %v623
      %v656 = vpack.c.bf16 %v626, %v625
      %v657 = vpack.c.bf16 %v628, %v627
      %v658 = vpack.c.bf16 %v630, %v629
      %v659 = vpack.c.bf16 %v632, %v631
      %v660 = vpack.c.bf16 %v634, %v633
      %v661 = vpack.c.bf16 %v636, %v635
      %v662 = vpack.c.bf16 %v638, %v637
      %v663 = vpack.c.bf16 %v640, %v639
      %v664 = vpack.c.bf16 %v642, %v641
      %v665 = vpack.c.bf16 %v644, %v643
      %v666 = vpack.c.bf16 %v646, %v645
      %v667 = vpack.c.bf16 %v648, %v647
      %v668 = vpack.c.bf16 %v650, %v649
      %v669 = vpack.c.bf16 %v652, %v651
      %v670 = vpack.c.bf16 %v654, %v653
      %671 = vst [vmem:[#allocation3 + $0x20] sm:$0xff] %v655
      %672 = vst [vmem:[#allocation3 + $0x68] sm:$0xff] %v656
      %673 = vst [vmem:[#allocation3 + $0xb0] sm:$0xff] %v657
      %674 = vst [vmem:[#allocation3 + $0xf8] sm:$0xff] %v658
      %675 = vst [vmem:[#allocation3 + $0x140] sm:$0xff] %v659
      %676 = vst [vmem:[#allocation3 + $0x188] sm:$0xff] %v660
      %677 = vst [vmem:[#allocation3 + $0x1d0] sm:$0xff] %v661
      %678 = vst [vmem:[#allocation3 + $0x218] sm:$0xff] %v662
      %679 = vst [vmem:[#allocation3 + $0x260] sm:$0xff] %v663
      %680 = vst [vmem:[#allocation3 + $0x2a8] sm:$0xff] %v664
      %681 = vst [vmem:[#allocation3 + $0x2f0] sm:$0xff] %v665
      %682 = vst [vmem:[#allocation3 + $0x338] sm:$0xff] %v666
      %683 = vst [vmem:[#allocation3 + $0x380] sm:$0xff] %v667
      %684 = vst [vmem:[#allocation3 + $0x3c8] sm:$0xff] %v668
      %685 = vst [vmem:[#allocation3 + $0x410] sm:$0xff] %v669
      %686 = vst [vmem:[#allocation3 + $0x458] sm:$0xff] %v670
      %v687 = vld [vmem:[%s334 + $0x2] sm:$0xff]
      %v688 = vld [vmem:[%s334 + $0xa] sm:$0xff]
      %v689 = vld [vmem:[%s334 + $0x1a] sm:$0xff]
      %v690 = vld [vmem:[%s334 + $0x22] sm:$0xff]
      %v691 = vld [vmem:[%s334 + $0x32] sm:$0xff]
      %v692 = vld [vmem:[%s334 + $0x3a] sm:$0xff]
      %v693 = vld [vmem:[%s334 + $0x4a] sm:$0xff]
      %v694 = vld [vmem:[%s334 + $0x52] sm:$0xff]
      %v695 = vld [vmem:[%s334 + $0x62] sm:$0xff]
      %v696 = vld [vmem:[%s334 + $0x6a] sm:$0xff]
      %v697 = vld [vmem:[%s334 + $0x7a] sm:$0xff]
      %v698 = vld [vmem:[%s334 + $0x82] sm:$0xff]
      %v699 = vld [vmem:[%s334 + $0x92] sm:$0xff]
      %v700 = vld [vmem:[%s334 + $0x9a] sm:$0xff]
      %v701 = vld [vmem:[%s334 + $0xaa] sm:$0xff]
      %v702 = vld [vmem:[%s334 + $0xb2] sm:$0xff]
      %v703 = vld [vmem:[%s334 + $0xc2] sm:$0xff]
      %v704 = vld [vmem:[%s334 + $0xca] sm:$0xff]
      %v705 = vld [vmem:[%s334 + $0xda] sm:$0xff]
      %v706 = vld [vmem:[%s334 + $0xe2] sm:$0xff]
      %v707 = vld [vmem:[%s334 + $0xf2] sm:$0xff]
      %v708 = vld [vmem:[%s334 + $0xfa] sm:$0xff]
      %v709 = vld [vmem:[%s334 + $0x10a] sm:$0xff]
      %v710 = vld [vmem:[%s334 + $0x112] sm:$0xff]
      %v711 = vld [vmem:[%s334 + $0x122] sm:$0xff]
      %v712 = vld [vmem:[%s334 + $0x12a] sm:$0xff]
      %v713 = vld [vmem:[%s334 + $0x13a] sm:$0xff]
      %v714 = vld [vmem:[%s334 + $0x142] sm:$0xff]
      %v715 = vld [vmem:[%s334 + $0x152] sm:$0xff]
      %v716 = vld [vmem:[%s334 + $0x15a] sm:$0xff]
      %v717 = vld [vmem:[%s334 + $0x16a] sm:$0xff]
      %v718 = vld [vmem:[%s334 + $0x172] sm:$0xff]
      %v719 = vpack.c.bf16 %v688, %v687
      %v720 = vpack.c.bf16 %v690, %v689
      %v721 = vpack.c.bf16 %v692, %v691
      %v722 = vpack.c.bf16 %v694, %v693
      %v723 = vpack.c.bf16 %v696, %v695
      %v724 = vpack.c.bf16 %v698, %v697
      %v725 = vpack.c.bf16 %v700, %v699
      %v726 = vpack.c.bf16 %v702, %v701
      %v727 = vpack.c.bf16 %v704, %v703
      %v728 = vpack.c.bf16 %v706, %v705
      %v729 = vpack.c.bf16 %v708, %v707
      %v730 = vpack.c.bf16 %v710, %v709
      %v731 = vpack.c.bf16 %v712, %v711
      %v732 = vpack.c.bf16 %v714, %v713
      %v733 = vpack.c.bf16 %v716, %v715
      %v734 = vpack.c.bf16 %v718, %v717
      %735 = vst [vmem:[#allocation3 + $0x28] sm:$0xff] %v719
      %736 = vst [vmem:[#allocation3 + $0x70] sm:$0xff] %v720
      %737 = vst [vmem:[#allocation3 + $0xb8] sm:$0xff] %v721
      %738 = vst [vmem:[#allocation3 + $0x100] sm:$0xff] %v722
      %739 = vst [vmem:[#allocation3 + $0x148] sm:$0xff] %v723
      %740 = vst [vmem:[#allocation3 + $0x190] sm:$0xff] %v724
      %741 = vst [vmem:[#allocation3 + $0x1d8] sm:$0xff] %v725
      %742 = vst [vmem:[#allocation3 + $0x220] sm:$0xff] %v726
      %743 = vst [vmem:[#allocation3 + $0x268] sm:$0xff] %v727
      %744 = vst [vmem:[#allocation3 + $0x2b0] sm:$0xff] %v728
      %745 = vst [vmem:[#allocation3 + $0x2f8] sm:$0xff] %v729
      %746 = vst [vmem:[#allocation3 + $0x340] sm:$0xff] %v730
      %747 = vst [vmem:[#allocation3 + $0x388] sm:$0xff] %v731
      %748 = vst [vmem:[#allocation3 + $0x3d0] sm:$0xff] %v732
      %749 = vst [vmem:[#allocation3 + $0x418] sm:$0xff] %v733
      %750 = vst [vmem:[#allocation3 + $0x460] sm:$0xff] %v734
      %s751 = scalar_lea.vmem [#allocation2], 48
      %v752 = vld [vmem:[%s751] sm:$0xff]
      %v753 = vld [vmem:[%s751 + $0x8] sm:$0xff]
      %v754 = vld [vmem:[%s751 + $0x18] sm:$0xff]
      %v755 = vld [vmem:[%s751 + $0x20] sm:$0xff]
      %v756 = vld [vmem:[%s751 + $0x30] sm:$0xff]
      %v757 = vld [vmem:[%s751 + $0x38] sm:$0xff]
      %v758 = vld [vmem:[%s751 + $0x48] sm:$0xff]
      %v759 = vld [vmem:[%s751 + $0x50] sm:$0xff]
      %v760 = vld [vmem:[%s751 + $0x60] sm:$0xff]
      %v761 = vld [vmem:[%s751 + $0x68] sm:$0xff]
      %v762 = vld [vmem:[%s751 + $0x78] sm:$0xff]
      %v763 = vld [vmem:[%s751 + $0x80] sm:$0xff]
      %v764 = vld [vmem:[%s751 + $0x90] sm:$0xff]
      %v765 = vld [vmem:[%s751 + $0x98] sm:$0xff]
      %v766 = vld [vmem:[%s751 + $0xa8] sm:$0xff]
      %v767 = vld [vmem:[%s751 + $0xb0] sm:$0xff]
      %v768 = vld [vmem:[%s751 + $0xc0] sm:$0xff]
      %v769 = vld [vmem:[%s751 + $0xc8] sm:$0xff]
      %v770 = vld [vmem:[%s751 + $0xd8] sm:$0xff]
      %v771 = vld [vmem:[%s751 + $0xe0] sm:$0xff]
      %v772 = vld [vmem:[%s751 + $0xf0] sm:$0xff]
      %v773 = vld [vmem:[%s751 + $0xf8] sm:$0xff]
      %v774 = vld [vmem:[%s751 + $0x108] sm:$0xff]
      %v775 = vld [vmem:[%s751 + $0x110] sm:$0xff]
      %v776 = vld [vmem:[%s751 + $0x120] sm:$0xff]
      %v777 = vld [vmem:[%s751 + $0x128] sm:$0xff]
      %v778 = vld [vmem:[%s751 + $0x138] sm:$0xff]
      %v779 = vld [vmem:[%s751 + $0x140] sm:$0xff]
      %v780 = vld [vmem:[%s751 + $0x150] sm:$0xff]
      %v781 = vld [vmem:[%s751 + $0x158] sm:$0xff]
      %v782 = vld [vmem:[%s751 + $0x168] sm:$0xff]
      %v783 = vld [vmem:[%s751 + $0x170] sm:$0xff]
      %v784 = vpack.c.bf16 %v753, %v752
      %v785 = vpack.c.bf16 %v755, %v754
      %v786 = vpack.c.bf16 %v757, %v756
      %v787 = vpack.c.bf16 %v759, %v758
      %v788 = vpack.c.bf16 %v761, %v760
      %v789 = vpack.c.bf16 %v763, %v762
      %v790 = vpack.c.bf16 %v765, %v764
      %v791 = vpack.c.bf16 %v767, %v766
      %v792 = vpack.c.bf16 %v769, %v768
      %v793 = vpack.c.bf16 %v771, %v770
      %v794 = vpack.c.bf16 %v773, %v772
      %v795 = vpack.c.bf16 %v775, %v774
      %v796 = vpack.c.bf16 %v777, %v776
      %v797 = vpack.c.bf16 %v779, %v778
      %v798 = vpack.c.bf16 %v781, %v780
      %v799 = vpack.c.bf16 %v783, %v782
      %800 = vst [vmem:[#allocation3 + $0x30] sm:$0xff] %v784
      %801 = vst [vmem:[#allocation3 + $0x78] sm:$0xff] %v785
      %802 = vst [vmem:[#allocation3 + $0xc0] sm:$0xff] %v786
      %803 = vst [vmem:[#allocation3 + $0x108] sm:$0xff] %v787
      %804 = vst [vmem:[#allocation3 + $0x150] sm:$0xff] %v788
      %805 = vst [vmem:[#allocation3 + $0x198] sm:$0xff] %v789
      %806 = vst [vmem:[#allocation3 + $0x1e0] sm:$0xff] %v790
      %807 = vst [vmem:[#allocation3 + $0x228] sm:$0xff] %v791
      %808 = vst [vmem:[#allocation3 + $0x270] sm:$0xff] %v792
      %809 = vst [vmem:[#allocation3 + $0x2b8] sm:$0xff] %v793
      %810 = vst [vmem:[#allocation3 + $0x300] sm:$0xff] %v794
      %811 = vst [vmem:[#allocation3 + $0x348] sm:$0xff] %v795
      %812 = vst [vmem:[#allocation3 + $0x390] sm:$0xff] %v796
      %813 = vst [vmem:[#allocation3 + $0x3d8] sm:$0xff] %v797
      %814 = vst [vmem:[#allocation3 + $0x420] sm:$0xff] %v798
      %815 = vst [vmem:[#allocation3 + $0x468] sm:$0xff] %v799
      %v816 = vld [vmem:[%s751 + $0x1] sm:$0xff]
      %v817 = vld [vmem:[%s751 + $0x9] sm:$0xff]
      %v818 = vld [vmem:[%s751 + $0x19] sm:$0xff]
      %v819 = vld [vmem:[%s751 + $0x21] sm:$0xff]
      %v820 = vld [vmem:[%s751 + $0x31] sm:$0xff]
      %v821 = vld [vmem:[%s751 + $0x39] sm:$0xff]
      %v822 = vld [vmem:[%s751 + $0x49] sm:$0xff]
      %v823 = vld [vmem:[%s751 + $0x51] sm:$0xff]
      %v824 = vld [vmem:[%s751 + $0x61] sm:$0xff]
      %v825 = vld [vmem:[%s751 + $0x69] sm:$0xff]
      %v826 = vld [vmem:[%s751 + $0x79] sm:$0xff]
      %v827 = vld [vmem:[%s751 + $0x81] sm:$0xff]
      %v828 = vld [vmem:[%s751 + $0x91] sm:$0xff]
      %v829 = vld [vmem:[%s751 + $0x99] sm:$0xff]
      %v830 = vld [vmem:[%s751 + $0xa9] sm:$0xff]
      %v831 = vld [vmem:[%s751 + $0xb1] sm:$0xff]
      %v832 = vld [vmem:[%s751 + $0xc1] sm:$0xff]
      %v833 = vld [vmem:[%s751 + $0xc9] sm:$0xff]
      %v834 = vld [vmem:[%s751 + $0xd9] sm:$0xff]
      %v835 = vld [vmem:[%s751 + $0xe1] sm:$0xff]
      %v836 = vld [vmem:[%s751 + $0xf1] sm:$0xff]
      %v837 = vld [vmem:[%s751 + $0xf9] sm:$0xff]
      %v838 = vld [vmem:[%s751 + $0x109] sm:$0xff]
      %v839 = vld [vmem:[%s751 + $0x111] sm:$0xff]
      %v840 = vld [vmem:[%s751 + $0x121] sm:$0xff]
      %v841 = vld [vmem:[%s751 + $0x129] sm:$0xff]
      %v842 = vld [vmem:[%s751 + $0x139] sm:$0xff]
      %v843 = vld [vmem:[%s751 + $0x141] sm:$0xff]
      %v844 = vld [vmem:[%s751 + $0x151] sm:$0xff]
      %v845 = vld [vmem:[%s751 + $0x159] sm:$0xff]
      %v846 = vld [vmem:[%s751 + $0x169] sm:$0xff]
      %v847 = vld [vmem:[%s751 + $0x171] sm:$0xff]
      %v848 = vpack.c.bf16 %v817, %v816
      %v849 = vpack.c.bf16 %v819, %v818
      %v850 = vpack.c.bf16 %v821, %v820
      %v851 = vpack.c.bf16 %v823, %v822
      %v852 = vpack.c.bf16 %v825, %v824
      %v853 = vpack.c.bf16 %v827, %v826
      %v854 = vpack.c.bf16 %v829, %v828
      %v855 = vpack.c.bf16 %v831, %v830
      %v856 = vpack.c.bf16 %v833, %v832
      %v857 = vpack.c.bf16 %v835, %v834
      %v858 = vpack.c.bf16 %v837, %v836
      %v859 = vpack.c.bf16 %v839, %v838
      %v860 = vpack.c.bf16 %v841, %v840
      %v861 = vpack.c.bf16 %v843, %v842
      %v862 = vpack.c.bf16 %v845, %v844
      %v863 = vpack.c.bf16 %v847, %v846
      %864 = vst [vmem:[#allocation3 + $0x38] sm:$0xff] %v848
      %865 = vst [vmem:[#allocation3 + $0x80] sm:$0xff] %v849
      %866 = vst [vmem:[#allocation3 + $0xc8] sm:$0xff] %v850
      %867 = vst [vmem:[#allocation3 + $0x110] sm:$0xff] %v851
      %868 = vst [vmem:[#allocation3 + $0x158] sm:$0xff] %v852
      %869 = vst [vmem:[#allocation3 + $0x1a0] sm:$0xff] %v853
      %870 = vst [vmem:[#allocation3 + $0x1e8] sm:$0xff] %v854
      %871 = vst [vmem:[#allocation3 + $0x230] sm:$0xff] %v855
      %872 = vst [vmem:[#allocation3 + $0x278] sm:$0xff] %v856
      %873 = vst [vmem:[#allocation3 + $0x2c0] sm:$0xff] %v857
      %874 = vst [vmem:[#allocation3 + $0x308] sm:$0xff] %v858
      %875 = vst [vmem:[#allocation3 + $0x350] sm:$0xff] %v859
      %876 = vst [vmem:[#allocation3 + $0x398] sm:$0xff] %v860
      %877 = vst [vmem:[#allocation3 + $0x3e0] sm:$0xff] %v861
      %878 = vst [vmem:[#allocation3 + $0x428] sm:$0xff] %v862
      %879 = vst [vmem:[#allocation3 + $0x470] sm:$0xff] %v863
      %v880 = vld [vmem:[%s751 + $0x2] sm:$0xff]
      %v881 = vld [vmem:[%s751 + $0xa] sm:$0xff]
      %v882 = vld [vmem:[%s751 + $0x1a] sm:$0xff]
      %v883 = vld [vmem:[%s751 + $0x22] sm:$0xff]
      %v884 = vld [vmem:[%s751 + $0x32] sm:$0xff]
      %v885 = vld [vmem:[%s751 + $0x3a] sm:$0xff]
      %v886 = vld [vmem:[%s751 + $0x4a] sm:$0xff]
      %v887 = vld [vmem:[%s751 + $0x52] sm:$0xff]
      %v888 = vld [vmem:[%s751 + $0x62] sm:$0xff]
      %v889 = vld [vmem:[%s751 + $0x6a] sm:$0xff]
      %v890 = vld [vmem:[%s751 + $0x7a] sm:$0xff]
      %v891 = vld [vmem:[%s751 + $0x82] sm:$0xff]
      %v892 = vld [vmem:[%s751 + $0x92] sm:$0xff]
      %v893 = vld [vmem:[%s751 + $0x9a] sm:$0xff]
      %v894 = vld [vmem:[%s751 + $0xaa] sm:$0xff]
      %v895 = vld [vmem:[%s751 + $0xb2] sm:$0xff]
      %v896 = vld [vmem:[%s751 + $0xc2] sm:$0xff]
      %v897 = vld [vmem:[%s751 + $0xca] sm:$0xff]
      %v898 = vld [vmem:[%s751 + $0xda] sm:$0xff]
      %v899 = vld [vmem:[%s751 + $0xe2] sm:$0xff]
      %v900 = vld [vmem:[%s751 + $0xf2] sm:$0xff]
      %v901 = vld [vmem:[%s751 + $0xfa] sm:$0xff]
      %v902 = vld [vmem:[%s751 + $0x10a] sm:$0xff]
      %v903 = vld [vmem:[%s751 + $0x112] sm:$0xff]
      %v904 = vld [vmem:[%s751 + $0x122] sm:$0xff]
      %v905 = vld [vmem:[%s751 + $0x12a] sm:$0xff]
      %v906 = vld [vmem:[%s751 + $0x13a] sm:$0xff]
      %v907 = vld [vmem:[%s751 + $0x142] sm:$0xff]
      %v908 = vld [vmem:[%s751 + $0x152] sm:$0xff]
      %v909 = vld [vmem:[%s751 + $0x15a] sm:$0xff]
      %v910 = vld [vmem:[%s751 + $0x16a] sm:$0xff]
      %v911 = vld [vmem:[%s751 + $0x172] sm:$0xff]
      %v912 = vpack.c.bf16 %v881, %v880
      %v913 = vpack.c.bf16 %v883, %v882
      %v914 = vpack.c.bf16 %v885, %v884
      %v915 = vpack.c.bf16 %v887, %v886
      %v916 = vpack.c.bf16 %v889, %v888
      %v917 = vpack.c.bf16 %v891, %v890
      %v918 = vpack.c.bf16 %v893, %v892
      %v919 = vpack.c.bf16 %v895, %v894
      %v920 = vpack.c.bf16 %v897, %v896
      %v921 = vpack.c.bf16 %v899, %v898
      %v922 = vpack.c.bf16 %v901, %v900
      %v923 = vpack.c.bf16 %v903, %v902
      %v924 = vpack.c.bf16 %v905, %v904
      %v925 = vpack.c.bf16 %v907, %v906
      %v926 = vpack.c.bf16 %v909, %v908
      %v927 = vpack.c.bf16 %v911, %v910
      %928 = vst [vmem:[#allocation3 + $0x40] sm:$0xff] %v912
      %929 = vst [vmem:[#allocation3 + $0x88] sm:$0xff] %v913
      %930 = vst [vmem:[#allocation3 + $0xd0] sm:$0xff] %v914
      %931 = vst [vmem:[#allocation3 + $0x118] sm:$0xff] %v915
      %932 = vst [vmem:[#allocation3 + $0x160] sm:$0xff] %v916
      %933 = vst [vmem:[#allocation3 + $0x1a8] sm:$0xff] %v917
      %934 = vst [vmem:[#allocation3 + $0x1f0] sm:$0xff] %v918
      %935 = vst [vmem:[#allocation3 + $0x238] sm:$0xff] %v919
      %936 = vst [vmem:[#allocation3 + $0x280] sm:$0xff] %v920
      %937 = vst [vmem:[#allocation3 + $0x2c8] sm:$0xff] %v921
      %938 = vst [vmem:[#allocation3 + $0x310] sm:$0xff] %v922
      %939 = vst [vmem:[#allocation3 + $0x358] sm:$0xff] %v923
      %940 = vst [vmem:[#allocation3 + $0x3a0] sm:$0xff] %v924
      %941 = vst [vmem:[#allocation3 + $0x3e8] sm:$0xff] %v925
      %942 = vst [vmem:[#allocation3 + $0x430] sm:$0xff] %v926
      %943 = vst [vmem:[#allocation3 + $0x478] sm:$0xff] %v927
      %v944 = vld [vmem:[#allocation3] sm:$0xff]
      %v945 = vld [vmem:[#allocation3 + $0x8] sm:$0xff]
      %v946 = vld [vmem:[#allocation3 + $0x10] sm:$0xff]
      %v947 = vld [vmem:[#allocation3 + $0x18] sm:$0xff]
      %v948 = vld [vmem:[#allocation3 + $0x20] sm:$0xff]
      %v949 = vld [vmem:[#allocation3 + $0x28] sm:$0xff]
      %v950 = vld [vmem:[#allocation3 + $0x30] sm:$0xff]
      %v951 = vld [vmem:[#allocation3 + $0x38] sm:$0xff]
      %v952 = vld [vmem:[#allocation3 + $0x40] sm:$0xff]
      %v953 = vld [vmem:[#allocation3 + $0x48] sm:$0xff]
      %v954 = vld [vmem:[#allocation3 + $0x50] sm:$0xff]
      %v955 = vld [vmem:[#allocation3 + $0x58] sm:$0xff]
      %v956 = vld [vmem:[#allocation3 + $0x60] sm:$0xff]
      %v957 = vld [vmem:[#allocation3 + $0x68] sm:$0xff]
      %v958 = vld [vmem:[#allocation3 + $0x70] sm:$0xff]
      %v959 = vld [vmem:[#allocation3 + $0x78] sm:$0xff]
      %v960 = vld [vmem:[#allocation3 + $0x80] sm:$0xff]
      %v961 = vld [vmem:[#allocation3 + $0x88] sm:$0xff]
      %v962 = vld [vmem:[#allocation3 + $0x90] sm:$0xff]
      %v963 = vld [vmem:[#allocation3 + $0x98] sm:$0xff]
      %v964 = vld [vmem:[#allocation3 + $0xa0] sm:$0xff]
      %v965 = vld [vmem:[#allocation3 + $0xa8] sm:$0xff]
      %v966 = vld [vmem:[#allocation3 + $0xb0] sm:$0xff]
      %v967 = vld [vmem:[#allocation3 + $0xb8] sm:$0xff]
      %v968 = vld [vmem:[#allocation3 + $0xc0] sm:$0xff]
      %v969 = vld [vmem:[#allocation3 + $0xc8] sm:$0xff]
      %v970 = vld [vmem:[#allocation3 + $0xd0] sm:$0xff]
      %v971 = vld [vmem:[#allocation3 + $0xd8] sm:$0xff]
      %v972 = vld [vmem:[#allocation3 + $0xe0] sm:$0xff]
      %v973 = vld [vmem:[#allocation3 + $0xe8] sm:$0xff]
      %v974 = vld [vmem:[#allocation3 + $0xf0] sm:$0xff]
      %v975 = vld [vmem:[#allocation3 + $0xf8] sm:$0xff]
      %v976 = vld [vmem:[#allocation3 + $0x100] sm:$0xff]
      %v977 = vld [vmem:[#allocation3 + $0x108] sm:$0xff]
      %v978 = vld [vmem:[#allocation3 + $0x110] sm:$0xff]
      %v979 = vld [vmem:[#allocation3 + $0x118] sm:$0xff]
      %v980 = vld [vmem:[#allocation3 + $0x120] sm:$0xff]
      %v981 = vld [vmem:[#allocation3 + $0x128] sm:$0xff]
      %v982 = vld [vmem:[#allocation3 + $0x130] sm:$0xff]
      %v983 = vld [vmem:[#allocation3 + $0x138] sm:$0xff]
      %v984 = vld [vmem:[#allocation3 + $0x140] sm:$0xff]
      %v985 = vld [vmem:[#allocation3 + $0x148] sm:$0xff]
      %v986 = vld [vmem:[#allocation3 + $0x150] sm:$0xff]
      %v987 = vld [vmem:[#allocation3 + $0x158] sm:$0xff]
      %v988 = vld [vmem:[#allocation3 + $0x160] sm:$0xff]
      %v989 = vld [vmem:[#allocation3 + $0x168] sm:$0xff]
      %v990 = vld [vmem:[#allocation3 + $0x170] sm:$0xff]
      %v991 = vld [vmem:[#allocation3 + $0x178] sm:$0xff]
      %v992 = vld [vmem:[#allocation3 + $0x180] sm:$0xff]
      %v993 = vld [vmem:[#allocation3 + $0x188] sm:$0xff]
      %v994 = vld [vmem:[#allocation3 + $0x190] sm:$0xff]
      %v995 = vld [vmem:[#allocation3 + $0x198] sm:$0xff]
      %v996 = vld [vmem:[#allocation3 + $0x1a0] sm:$0xff]
      %v997 = vld [vmem:[#allocation3 + $0x1a8] sm:$0xff]
      %v998 = vld [vmem:[#allocation3 + $0x1b0] sm:$0xff]
      %v999 = vld [vmem:[#allocation3 + $0x1b8] sm:$0xff]
      %v1000 = vld [vmem:[#allocation3 + $0x1c0] sm:$0xff]
      %v1001 = vld [vmem:[#allocation3 + $0x1c8] sm:$0xff]
      %v1002 = vld [vmem:[#allocation3 + $0x1d0] sm:$0xff]
      %v1003 = vld [vmem:[#allocation3 + $0x1d8] sm:$0xff]
      %v1004 = vld [vmem:[#allocation3 + $0x1e0] sm:$0xff]
      %v1005 = vld [vmem:[#allocation3 + $0x1e8] sm:$0xff]
      %v1006 = vld [vmem:[#allocation3 + $0x1f0] sm:$0xff]
      %v1007 = vld [vmem:[#allocation3 + $0x1f8] sm:$0xff]
      %v1008 = vld [vmem:[#allocation3 + $0x200] sm:$0xff]
      %v1009 = vld [vmem:[#allocation3 + $0x208] sm:$0xff]
      %v1010 = vld [vmem:[#allocation3 + $0x210] sm:$0xff]
      %v1011 = vld [vmem:[#allocation3 + $0x218] sm:$0xff]
      %v1012 = vld [vmem:[#allocation3 + $0x220] sm:$0xff]
      %v1013 = vld [vmem:[#allocation3 + $0x228] sm:$0xff]
      %v1014 = vld [vmem:[#allocation3 + $0x230] sm:$0xff]
      %v1015 = vld [vmem:[#allocation3 + $0x238] sm:$0xff]
      %v1016 = vld [vmem:[#allocation3 + $0x240] sm:$0xff]
      %v1017 = vld [vmem:[#allocation3 + $0x248] sm:$0xff]
      %v1018 = vld [vmem:[#allocation3 + $0x250] sm:$0xff]
      %v1019 = vld [vmem:[#allocation3 + $0x258] sm:$0xff]
      %v1020 = vld [vmem:[#allocation3 + $0x260] sm:$0xff]
      %v1021 = vld [vmem:[#allocation3 + $0x268] sm:$0xff]
      %v1022 = vld [vmem:[#allocation3 + $0x270] sm:$0xff]
      %v1023 = vld [vmem:[#allocation3 + $0x278] sm:$0xff]
      %v1024 = vld [vmem:[#allocation3 + $0x280] sm:$0xff]
      %v1025 = vld [vmem:[#allocation3 + $0x288] sm:$0xff]
      %v1026 = vld [vmem:[#allocation3 + $0x290] sm:$0xff]
      %v1027 = vld [vmem:[#allocation3 + $0x298] sm:$0xff]
      %v1028 = vld [vmem:[#allocation3 + $0x2a0] sm:$0xff]
      %v1029 = vld [vmem:[#allocation3 + $0x2a8] sm:$0xff]
      %v1030 = vld [vmem:[#allocation3 + $0x2b0] sm:$0xff]
      %v1031 = vld [vmem:[#allocation3 + $0x2b8] sm:$0xff]
      %v1032 = vld [vmem:[#allocation3 + $0x2c0] sm:$0xff]
      %v1033 = vld [vmem:[#allocation3 + $0x2c8] sm:$0xff]
      %v1034 = vld [vmem:[#allocation3 + $0x2d0] sm:$0xff]
      %v1035 = vld [vmem:[#allocation3 + $0x2d8] sm:$0xff]
      %v1036 = vld [vmem:[#allocation3 + $0x2e0] sm:$0xff]
      %v1037 = vld [vmem:[#allocation3 + $0x2e8] sm:$0xff]
      %v1038 = vld [vmem:[#allocation3 + $0x2f0] sm:$0xff]
      %v1039 = vld [vmem:[#allocation3 + $0x2f8] sm:$0xff]
      %v1040 = vld [vmem:[#allocation3 + $0x300] sm:$0xff]
      %v1041 = vld [vmem:[#allocation3 + $0x308] sm:$0xff]
      %v1042 = vld [vmem:[#allocation3 + $0x310] sm:$0xff]
      %v1043 = vld [vmem:[#allocation3 + $0x318] sm:$0xff]
      %v1044 = vld [vmem:[#allocation3 + $0x320] sm:$0xff]
      %v1045 = vld [vmem:[#allocation3 + $0x328] sm:$0xff]
      %v1046 = vld [vmem:[#allocation3 + $0x330] sm:$0xff]
      %v1047 = vld [vmem:[#allocation3 + $0x338] sm:$0xff]
      %v1048 = vld [vmem:[#allocation3 + $0x340] sm:$0xff]
      %v1049 = vld [vmem:[#allocation3 + $0x348] sm:$0xff]
      %v1050 = vld [vmem:[#allocation3 + $0x350] sm:$0xff]
      %v1051 = vld [vmem:[#allocation3 + $0x358] sm:$0xff]
      %v1052 = vld [vmem:[#allocation3 + $0x360] sm:$0xff]
      %v1053 = vld [vmem:[#allocation3 + $0x368] sm:$0xff]
      %v1054 = vld [vmem:[#allocation3 + $0x370] sm:$0xff]
      %v1055 = vld [vmem:[#allocation3 + $0x378] sm:$0xff]
      %v1056 = vld [vmem:[#allocation3 + $0x380] sm:$0xff]
      %v1057 = vld [vmem:[#allocation3 + $0x388] sm:$0xff]
      %v1058 = vld [vmem:[#allocation3 + $0x390] sm:$0xff]
      %v1059 = vld [vmem:[#allocation3 + $0x398] sm:$0xff]
      %v1060 = vld [vmem:[#allocation3 + $0x3a0] sm:$0xff]
      %v1061 = vld [vmem:[#allocation3 + $0x3a8] sm:$0xff]
      %v1062 = vld [vmem:[#allocation3 + $0x3b0] sm:$0xff]
      %v1063 = vld [vmem:[#allocation3 + $0x3b8] sm:$0xff]
      %v1064 = vld [vmem:[#allocation3 + $0x3c0] sm:$0xff]
      %v1065 = vld [vmem:[#allocation3 + $0x3c8] sm:$0xff]
      %v1066 = vld [vmem:[#allocation3 + $0x3d0] sm:$0xff]
      %v1067 = vld [vmem:[#allocation3 + $0x3d8] sm:$0xff]
      %v1068 = vld [vmem:[#allocation3 + $0x3e0] sm:$0xff]
      %v1069 = vld [vmem:[#allocation3 + $0x3e8] sm:$0xff]
      %v1070 = vld [vmem:[#allocation3 + $0x3f0] sm:$0xff]
      %v1071 = vld [vmem:[#allocation3 + $0x3f8] sm:$0xff]
      %v1072 = vld [vmem:[#allocation3 + $0x400] sm:$0xff]
      %v1073 = vld [vmem:[#allocation3 + $0x408] sm:$0xff]
      %v1074 = vld [vmem:[#allocation3 + $0x410] sm:$0xff]
      %v1075 = vld [vmem:[#allocation3 + $0x418] sm:$0xff]
      %v1076 = vld [vmem:[#allocation3 + $0x420] sm:$0xff]
      %v1077 = vld [vmem:[#allocation3 + $0x428] sm:$0xff]
      %v1078 = vld [vmem:[#allocation3 + $0x430] sm:$0xff]
      %v1079 = vld [vmem:[#allocation3 + $0x438] sm:$0xff]
      %v1080 = vld [vmem:[#allocation3 + $0x440] sm:$0xff]
      %v1081 = vld [vmem:[#allocation3 + $0x448] sm:$0xff]
      %v1082 = vld [vmem:[#allocation3 + $0x450] sm:$0xff]
      %v1083 = vld [vmem:[#allocation3 + $0x458] sm:$0xff]
      %v1084 = vld [vmem:[#allocation3 + $0x460] sm:$0xff]
      %v1085 = vld [vmem:[#allocation3 + $0x468] sm:$0xff]
      %v1086 = vld [vmem:[#allocation3 + $0x470] sm:$0xff]
      %v1087 = vld [vmem:[#allocation3 + $0x478] sm:$0xff]
      %v1088 = vld [vmem:[%s1] sm:$0xf]
      %v1089 = vld [vmem:[%s1 + $0x4] sm:$0xf]
      %v1090 = vld [vmem:[%s1 + $0x8] sm:$0xf]
      %v1091 = vld [vmem:[%s1 + $0xc] sm:$0xf]
      %v1092 = vld [vmem:[%s1 + $0x10] sm:$0xf]
      %v1093 = vld [vmem:[%s1 + $0x14] sm:$0xf]
      %v1094 = vld [vmem:[%s1 + $0x18] sm:$0xf]
      %v1095 = vld [vmem:[%s1 + $0x1c] sm:$0xf]
      %v1096 = vld [vmem:[%s1 + $0x20] sm:$0xf]
      %v1097 = vld [vmem:[%s1 + $0x24] sm:$0xf]
      %v1098 = vld [vmem:[%s1 + $0x28] sm:$0xf]
      %v1099 = vld [vmem:[%s1 + $0x2c] sm:$0xf]
      %v1100 = vld [vmem:[%s1 + $0x30] sm:$0xf]
      %v1101 = vld [vmem:[%s1 + $0x34] sm:$0xf]
      %v1102 = vld [vmem:[%s1 + $0x38] sm:$0xf]
      %v1103 = vld [vmem:[%s1 + $0x3c] sm:$0xf]
      %v1104 = vld [vmem:[%s1 + $0x40] sm:$0xf]
      %v1105 = vld [vmem:[%s1 + $0x44] sm:$0xf]
      %v1106 = vld [vmem:[%s1 + $0x48] sm:$0xf]
      %v1107 = vld [vmem:[%s1 + $0x4c] sm:$0xf]
      %v1108 = vld [vmem:[%s1 + $0x50] sm:$0xf]
      %v1109 = vld [vmem:[%s1 + $0x54] sm:$0xf]
      %v1110 = vld [vmem:[%s1 + $0x58] sm:$0xf]
      %v1111 = vld [vmem:[%s1 + $0x5c] sm:$0xf]
      %v1112 = vld [vmem:[%s1 + $0x60] sm:$0xf]
      %v1113 = vld [vmem:[%s1 + $0x64] sm:$0xf]
      %v1114 = vld [vmem:[%s1 + $0x68] sm:$0xf]
      %v1115 = vld [vmem:[%s1 + $0x6c] sm:$0xf]
      %v1116 = vld [vmem:[%s1 + $0x70] sm:$0xf]
      %v1117 = vld [vmem:[%s1 + $0x74] sm:$0xf]
      %v1118 = vld [vmem:[%s1 + $0x78] sm:$0xf]
      %v1119 = vld [vmem:[%s1 + $0x7c] sm:$0xf]
      %v1120 = vld [vmem:[%s1 + $0x80] sm:$0xf]
      %v1121 = vld [vmem:[%s1 + $0x84] sm:$0xf]
      %v1122 = vld [vmem:[%s1 + $0x88] sm:$0xf]
      %v1123 = vld [vmem:[%s1 + $0x8c] sm:$0xf]
      %v1124 = vld [vmem:[%s1 + $0x90] sm:$0xf]
      %v1125 = vld [vmem:[%s1 + $0x94] sm:$0xf]
      %v1126 = vld [vmem:[%s1 + $0x98] sm:$0xf]
      %v1127 = vld [vmem:[%s1 + $0x9c] sm:$0xf]
      %v1128 = vld [vmem:[%s1 + $0xa0] sm:$0xf]
      %v1129 = vld [vmem:[%s1 + $0xa4] sm:$0xf]
      %v1130 = vld [vmem:[%s1 + $0xa8] sm:$0xf]
      %v1131 = vld [vmem:[%s1 + $0xac] sm:$0xf]
      %v1132 = vld [vmem:[%s1 + $0xb0] sm:$0xf]
      %v1133 = vld [vmem:[%s1 + $0xb4] sm:$0xf]
      %v1134 = vld [vmem:[%s1 + $0xb8] sm:$0xf]
      %v1135 = vld [vmem:[%s1 + $0xbc] sm:$0xf]
      %v1136 = vld [vmem:[%s1 + $0xc0] sm:$0xf]
      %v1137 = vld [vmem:[%s1 + $0xc4] sm:$0xf]
      %v1138 = vld [vmem:[%s1 + $0xc8] sm:$0xf]
      %v1139 = vld [vmem:[%s1 + $0xcc] sm:$0xf]
      %v1140 = vld [vmem:[%s1 + $0xd0] sm:$0xf]
      %v1141 = vld [vmem:[%s1 + $0xd4] sm:$0xf]
      %v1142 = vld [vmem:[%s1 + $0xd8] sm:$0xf]
      %v1143 = vld [vmem:[%s1 + $0xdc] sm:$0xf]
      %v1144 = vld [vmem:[%s1 + $0xe0] sm:$0xf]
      %v1145 = vld [vmem:[%s1 + $0xe4] sm:$0xf]
      %v1146 = vld [vmem:[%s1 + $0xe8] sm:$0xf]
      %v1147 = vld [vmem:[%s1 + $0xec] sm:$0xf]
      %v1148 = vld [vmem:[%s1 + $0xf0] sm:$0xf]
      %v1149 = vld [vmem:[%s1 + $0xf4] sm:$0xf]
      %v1150 = vld [vmem:[%s1 + $0xf8] sm:$0xf]
      %v1151 = vld [vmem:[%s1 + $0xfc] sm:$0xf]
      %v1152 = vld [vmem:[%s1 + $0x100] sm:$0xf]
      %v1153 = vld [vmem:[%s1 + $0x104] sm:$0xf]
      %v1154 = vld [vmem:[%s1 + $0x108] sm:$0xf]
      %v1155 = vld [vmem:[%s1 + $0x10c] sm:$0xf]
      %v1156 = vld [vmem:[%s1 + $0x110] sm:$0xf]
      %v1157 = vld [vmem:[%s1 + $0x114] sm:$0xf]
      %v1158 = vld [vmem:[%s1 + $0x118] sm:$0xf]
      %v1159 = vld [vmem:[%s1 + $0x11c] sm:$0xf]
      %v1160 = vld [vmem:[%s1 + $0x120] sm:$0xf]
      %v1161 = vld [vmem:[%s1 + $0x124] sm:$0xf]
      %v1162 = vld [vmem:[%s1 + $0x128] sm:$0xf]
      %v1163 = vld [vmem:[%s1 + $0x12c] sm:$0xf]
      %v1164 = vld [vmem:[%s1 + $0x130] sm:$0xf]
      %v1165 = vld [vmem:[%s1 + $0x134] sm:$0xf]
      %v1166 = vld [vmem:[%s1 + $0x138] sm:$0xf]
      %v1167 = vld [vmem:[%s1 + $0x13c] sm:$0xf]
      %v1168 = vld [vmem:[%s1 + $0x140] sm:$0xf]
      %v1169 = vld [vmem:[%s1 + $0x144] sm:$0xf]
      %v1170 = vld [vmem:[%s1 + $0x148] sm:$0xf]
      %v1171 = vld [vmem:[%s1 + $0x14c] sm:$0xf]
      %v1172 = vld [vmem:[%s1 + $0x150] sm:$0xf]
      %v1173 = vld [vmem:[%s1 + $0x154] sm:$0xf]
      %v1174 = vld [vmem:[%s1 + $0x158] sm:$0xf]
      %v1175 = vld [vmem:[%s1 + $0x15c] sm:$0xf]
      %v1176 = vld [vmem:[%s1 + $0x160] sm:$0xf]
      %v1177 = vld [vmem:[%s1 + $0x164] sm:$0xf]
      %v1178 = vld [vmem:[%s1 + $0x168] sm:$0xf]
      %v1179 = vld [vmem:[%s1 + $0x16c] sm:$0xf]
      %v1180 = vld [vmem:[%s1 + $0x170] sm:$0xf]
      %v1181 = vld [vmem:[%s1 + $0x174] sm:$0xf]
      %v1182 = vld [vmem:[%s1 + $0x178] sm:$0xf]
      %v1183 = vld [vmem:[%s1 + $0x17c] sm:$0xf]
      %v1184 = vld [vmem:[%s1 + $0x180] sm:$0xf]
      %v1185 = vld [vmem:[%s1 + $0x184] sm:$0xf]
      %v1186 = vld [vmem:[%s1 + $0x188] sm:$0xf]
      %v1187 = vld [vmem:[%s1 + $0x18c] sm:$0xf]
      %v1188 = vld [vmem:[%s1 + $0x190] sm:$0xf]
      %v1189 = vld [vmem:[%s1 + $0x194] sm:$0xf]
      %v1190 = vld [vmem:[%s1 + $0x198] sm:$0xf]
      %v1191 = vld [vmem:[%s1 + $0x19c] sm:$0xf]
      %v1192 = vld [vmem:[%s1 + $0x1a0] sm:$0xf]
      %v1193 = vld [vmem:[%s1 + $0x1a4] sm:$0xf]
      %v1194 = vld [vmem:[%s1 + $0x1a8] sm:$0xf]
      %v1195 = vld [vmem:[%s1 + $0x1ac] sm:$0xf]
      %v1196 = vld [vmem:[%s1 + $0x1b0] sm:$0xf]
      %v1197 = vld [vmem:[%s1 + $0x1b4] sm:$0xf]
      %v1198 = vld [vmem:[%s1 + $0x1b8] sm:$0xf]
      %v1199 = vld [vmem:[%s1 + $0x1bc] sm:$0xf]
      %v1200 = vld [vmem:[%s1 + $0x1c0] sm:$0xf]
      %v1201 = vld [vmem:[%s1 + $0x1c4] sm:$0xf]
      %v1202 = vld [vmem:[%s1 + $0x1c8] sm:$0xf]
      %v1203 = vld [vmem:[%s1 + $0x1cc] sm:$0xf]
      %v1204 = vld [vmem:[%s1 + $0x1d0] sm:$0xf]
      %v1205 = vld [vmem:[%s1 + $0x1d4] sm:$0xf]
      %v1206 = vld [vmem:[%s1 + $0x1d8] sm:$0xf]
      %v1207 = vld [vmem:[%s1 + $0x1dc] sm:$0xf]
      %v1208 = vld [vmem:[%s1 + $0x1e0] sm:$0xf]
      %v1209 = vld [vmem:[%s1 + $0x1e4] sm:$0xf]
      %v1210 = vld [vmem:[%s1 + $0x1e8] sm:$0xf]
      %v1211 = vld [vmem:[%s1 + $0x1ec] sm:$0xf]
      %v1212 = vld [vmem:[%s1 + $0x1f0] sm:$0xf]
      %v1213 = vld [vmem:[%s1 + $0x1f4] sm:$0xf]
      %v1214 = vld [vmem:[%s1 + $0x1f8] sm:$0xf]
      %v1215 = vld [vmem:[%s1 + $0x1fc] sm:$0xf]
      %v1216 = vld [vmem:[%s1 + $0x200] sm:$0xf]
      %v1217 = vld [vmem:[%s1 + $0x204] sm:$0xf]
      %v1218 = vld [vmem:[%s1 + $0x208] sm:$0xf]
      %v1219 = vld [vmem:[%s1 + $0x20c] sm:$0xf]
      %v1220 = vld [vmem:[%s1 + $0x210] sm:$0xf]
      %v1221 = vld [vmem:[%s1 + $0x214] sm:$0xf]
      %v1222 = vld [vmem:[%s1 + $0x218] sm:$0xf]
      %v1223 = vld [vmem:[%s1 + $0x21c] sm:$0xf]
      %v1224 = vld [vmem:[%s1 + $0x220] sm:$0xf]
      %v1225 = vld [vmem:[%s1 + $0x224] sm:$0xf]
      %v1226 = vld [vmem:[%s1 + $0x228] sm:$0xf]
      %v1227 = vld [vmem:[%s1 + $0x22c] sm:$0xf]
      %v1228 = vld [vmem:[%s1 + $0x230] sm:$0xf]
      %v1229 = vld [vmem:[%s1 + $0x234] sm:$0xf]
      %v1230 = vld [vmem:[%s1 + $0x238] sm:$0xf]
      %v1231 = vld [vmem:[%s1 + $0x23c] sm:$0xf]
      %v1376 = vunpack.c.l.b16 %v1088
      %v1377 = vunpack.c.l.b16 %v1089
      %v1378 = vunpack.c.l.b16 %v1090
      %v1379 = vunpack.c.l.b16 %v1091
      %v1380 = vunpack.c.l.b16 %v1092
      %v1381 = vunpack.c.l.b16 %v1093
      %v1382 = vunpack.c.l.b16 %v1094
      %v1383 = vunpack.c.l.b16 %v1095
      %v1384 = vunpack.c.l.b16 %v1096
      %v1385 = vunpack.c.l.b16 %v1097
      %v1386 = vunpack.c.l.b16 %v1098
      %v1387 = vunpack.c.l.b16 %v1099
      %v1388 = vunpack.c.l.b16 %v1100
      %v1389 = vunpack.c.l.b16 %v1101
      %v1390 = vunpack.c.l.b16 %v1102
      %v1391 = vunpack.c.l.b16 %v1103
      %v1392 = vunpack.c.l.b16 %v1104
      %v1393 = vunpack.c.l.b16 %v1105
      %v1394 = vunpack.c.l.b16 %v1106
      %v1395 = vunpack.c.l.b16 %v1107
      %v1396 = vunpack.c.l.b16 %v1108
      %v1397 = vunpack.c.l.b16 %v1109
      %v1398 = vunpack.c.l.b16 %v1110
      %v1399 = vunpack.c.l.b16 %v1111
      %v1400 = vunpack.c.l.b16 %v1112
      %v1401 = vunpack.c.l.b16 %v1113
      %v1402 = vunpack.c.l.b16 %v1114
      %v1403 = vunpack.c.l.b16 %v1115
      %v1404 = vunpack.c.l.b16 %v1116
      %v1405 = vunpack.c.l.b16 %v1117
      %v1406 = vunpack.c.l.b16 %v1118
      %v1407 = vunpack.c.l.b16 %v1119
      %v1408 = vunpack.c.l.b16 %v1120
      %v1409 = vunpack.c.l.b16 %v1121
      %v1410 = vunpack.c.l.b16 %v1122
      %v1411 = vunpack.c.l.b16 %v1123
      %v1412 = vunpack.c.l.b16 %v1124
      %v1413 = vunpack.c.l.b16 %v1125
      %v1414 = vunpack.c.l.b16 %v1126
      %v1415 = vunpack.c.l.b16 %v1127
      %v1416 = vunpack.c.l.b16 %v1128
      %v1417 = vunpack.c.l.b16 %v1129
      %v1418 = vunpack.c.l.b16 %v1130
      %v1419 = vunpack.c.l.b16 %v1131
      %v1420 = vunpack.c.l.b16 %v1132
      %v1421 = vunpack.c.l.b16 %v1133
      %v1422 = vunpack.c.l.b16 %v1134
      %v1423 = vunpack.c.l.b16 %v1135
      %v1424 = vunpack.c.l.b16 %v1136
      %v1425 = vunpack.c.l.b16 %v1137
      %v1426 = vunpack.c.l.b16 %v1138
      %v1427 = vunpack.c.l.b16 %v1139
      %v1428 = vunpack.c.l.b16 %v1140
      %v1429 = vunpack.c.l.b16 %v1141
      %v1430 = vunpack.c.l.b16 %v1142
      %v1431 = vunpack.c.l.b16 %v1143
      %v1432 = vunpack.c.l.b16 %v1144
      %v1433 = vunpack.c.l.b16 %v1145
      %v1434 = vunpack.c.l.b16 %v1146
      %v1435 = vunpack.c.l.b16 %v1147
      %v1436 = vunpack.c.l.b16 %v1148
      %v1437 = vunpack.c.l.b16 %v1149
      %v1438 = vunpack.c.l.b16 %v1150
      %v1439 = vunpack.c.l.b16 %v1151
      %v1440 = vunpack.c.l.b16 %v1152
      %v1441 = vunpack.c.l.b16 %v1153
      %v1442 = vunpack.c.l.b16 %v1154
      %v1443 = vunpack.c.l.b16 %v1155
      %v1444 = vunpack.c.l.b16 %v1156
      %v1445 = vunpack.c.l.b16 %v1157
      %v1446 = vunpack.c.l.b16 %v1158
      %v1447 = vunpack.c.l.b16 %v1159
      %v1448 = vunpack.c.l.b16 %v1160
      %v1449 = vunpack.c.l.b16 %v1161
      %v1450 = vunpack.c.l.b16 %v1162
      %v1451 = vunpack.c.l.b16 %v1163
      %v1452 = vunpack.c.l.b16 %v1164
      %v1453 = vunpack.c.l.b16 %v1165
      %v1454 = vunpack.c.l.b16 %v1166
      %v1455 = vunpack.c.l.b16 %v1167
      %v1456 = vunpack.c.l.b16 %v1168
      %v1457 = vunpack.c.l.b16 %v1169
      %v1458 = vunpack.c.l.b16 %v1170
      %v1459 = vunpack.c.l.b16 %v1171
      %v1460 = vunpack.c.l.b16 %v1172
      %v1461 = vunpack.c.l.b16 %v1173
      %v1462 = vunpack.c.l.b16 %v1174
      %v1463 = vunpack.c.l.b16 %v1175
      %v1464 = vunpack.c.l.b16 %v1176
      %v1465 = vunpack.c.l.b16 %v1177
      %v1466 = vunpack.c.l.b16 %v1178
      %v1467 = vunpack.c.l.b16 %v1179
      %v1468 = vunpack.c.l.b16 %v1180
      %v1469 = vunpack.c.l.b16 %v1181
      %v1470 = vunpack.c.l.b16 %v1182
      %v1471 = vunpack.c.l.b16 %v1183
      %v1472 = vunpack.c.l.b16 %v1184
      %v1473 = vunpack.c.l.b16 %v1185
      %v1474 = vunpack.c.l.b16 %v1186
      %v1475 = vunpack.c.l.b16 %v1187
      %v1476 = vunpack.c.l.b16 %v1188
      %v1477 = vunpack.c.l.b16 %v1189
      %v1478 = vunpack.c.l.b16 %v1190
      %v1479 = vunpack.c.l.b16 %v1191
      %v1480 = vunpack.c.l.b16 %v1192
      %v1481 = vunpack.c.l.b16 %v1193
      %v1482 = vunpack.c.l.b16 %v1194
      %v1483 = vunpack.c.l.b16 %v1195
      %v1484 = vunpack.c.l.b16 %v1196
      %v1485 = vunpack.c.l.b16 %v1197
      %v1486 = vunpack.c.l.b16 %v1198
      %v1487 = vunpack.c.l.b16 %v1199
      %v1488 = vunpack.c.l.b16 %v1200
      %v1489 = vunpack.c.l.b16 %v1201
      %v1490 = vunpack.c.l.b16 %v1202
      %v1491 = vunpack.c.l.b16 %v1203
      %v1492 = vunpack.c.l.b16 %v1204
      %v1493 = vunpack.c.l.b16 %v1205
      %v1494 = vunpack.c.l.b16 %v1206
      %v1495 = vunpack.c.l.b16 %v1207
      %v1496 = vunpack.c.l.b16 %v1208
      %v1497 = vunpack.c.l.b16 %v1209
      %v1498 = vunpack.c.l.b16 %v1210
      %v1499 = vunpack.c.l.b16 %v1211
      %v1500 = vunpack.c.l.b16 %v1212
      %v1501 = vunpack.c.l.b16 %v1213
      %v1502 = vunpack.c.l.b16 %v1214
      %v1503 = vunpack.c.l.b16 %v1215
      %v1504 = vunpack.c.l.b16 %v1216
      %v1505 = vunpack.c.l.b16 %v1217
      %v1506 = vunpack.c.l.b16 %v1218
      %v1507 = vunpack.c.l.b16 %v1219
      %v1508 = vunpack.c.l.b16 %v1220
      %v1509 = vunpack.c.l.b16 %v1221
      %v1510 = vunpack.c.l.b16 %v1222
      %v1511 = vunpack.c.l.b16 %v1223
      %v1512 = vunpack.c.l.b16 %v1224
      %v1513 = vunpack.c.l.b16 %v1225
      %v1514 = vunpack.c.l.b16 %v1226
      %v1515 = vunpack.c.l.b16 %v1227
      %v1516 = vunpack.c.l.b16 %v1228
      %v1517 = vunpack.c.l.b16 %v1229
      %v1518 = vunpack.c.l.b16 %v1230
      %v1519 = vunpack.c.l.b16 %v1231
      %v1520 = vpack.c.b16 %v1377, %v1376
      %v1521 = vpack.c.b16 %v1379, %v1378
      %v1522 = vpack.c.b16 %v1381, %v1380
      %v1523 = vpack.c.b16 %v1383, %v1382
      %v1524 = vpack.c.b16 %v1385, %v1384
      %v1525 = vpack.c.b16 %v1387, %v1386
      %v1526 = vpack.c.b16 %v1389, %v1388
      %v1527 = vpack.c.b16 %v1391, %v1390
      %v1528 = vpack.c.b16 %v1393, %v1392
      %v1529 = vpack.c.b16 %v1395, %v1394
      %v1530 = vpack.c.b16 %v1397, %v1396
      %v1531 = vpack.c.b16 %v1399, %v1398
      %v1532 = vpack.c.b16 %v1401, %v1400
      %v1533 = vpack.c.b16 %v1403, %v1402
      %v1534 = vpack.c.b16 %v1405, %v1404
      %v1535 = vpack.c.b16 %v1407, %v1406
      %v1536 = vpack.c.b16 %v1409, %v1408
      %v1537 = vpack.c.b16 %v1411, %v1410
      %v1538 = vpack.c.b16 %v1413, %v1412
      %v1539 = vpack.c.b16 %v1415, %v1414
      %v1540 = vpack.c.b16 %v1417, %v1416
      %v1541 = vpack.c.b16 %v1419, %v1418
      %v1542 = vpack.c.b16 %v1421, %v1420
      %v1543 = vpack.c.b16 %v1423, %v1422
      %v1544 = vpack.c.b16 %v1425, %v1424
      %v1545 = vpack.c.b16 %v1427, %v1426
      %v1546 = vpack.c.b16 %v1429, %v1428
      %v1547 = vpack.c.b16 %v1431, %v1430
      %v1548 = vpack.c.b16 %v1433, %v1432
      %v1549 = vpack.c.b16 %v1435, %v1434
      %v1550 = vpack.c.b16 %v1437, %v1436
      %v1551 = vpack.c.b16 %v1439, %v1438
      %v1552 = vpack.c.b16 %v1441, %v1440
      %v1553 = vpack.c.b16 %v1443, %v1442
      %v1554 = vpack.c.b16 %v1445, %v1444
      %v1555 = vpack.c.b16 %v1447, %v1446
      %v1556 = vpack.c.b16 %v1449, %v1448
      %v1557 = vpack.c.b16 %v1451, %v1450
      %v1558 = vpack.c.b16 %v1453, %v1452
      %v1559 = vpack.c.b16 %v1455, %v1454
      %v1560 = vpack.c.b16 %v1457, %v1456
      %v1561 = vpack.c.b16 %v1459, %v1458
      %v1562 = vpack.c.b16 %v1461, %v1460
      %v1563 = vpack.c.b16 %v1463, %v1462
      %v1564 = vpack.c.b16 %v1465, %v1464
      %v1565 = vpack.c.b16 %v1467, %v1466
      %v1566 = vpack.c.b16 %v1469, %v1468
      %v1567 = vpack.c.b16 %v1471, %v1470
      %v1568 = vpack.c.b16 %v1473, %v1472
      %v1569 = vpack.c.b16 %v1475, %v1474
      %v1570 = vpack.c.b16 %v1477, %v1476
      %v1571 = vpack.c.b16 %v1479, %v1478
      %v1572 = vpack.c.b16 %v1481, %v1480
      %v1573 = vpack.c.b16 %v1483, %v1482
      %v1574 = vpack.c.b16 %v1485, %v1484
      %v1575 = vpack.c.b16 %v1487, %v1486
      %v1576 = vpack.c.b16 %v1489, %v1488
      %v1577 = vpack.c.b16 %v1491, %v1490
      %v1578 = vpack.c.b16 %v1493, %v1492
      %v1579 = vpack.c.b16 %v1495, %v1494
      %v1580 = vpack.c.b16 %v1497, %v1496
      %v1581 = vpack.c.b16 %v1499, %v1498
      %v1582 = vpack.c.b16 %v1501, %v1500
      %v1583 = vpack.c.b16 %v1503, %v1502
      %v1584 = vpack.c.b16 %v1505, %v1504
      %v1585 = vpack.c.b16 %v1507, %v1506
      %v1586 = vpack.c.b16 %v1509, %v1508
      %v1587 = vpack.c.b16 %v1511, %v1510
      %v1588 = vpack.c.b16 %v1513, %v1512
      %v1589 = vpack.c.b16 %v1515, %v1514
      %v1590 = vpack.c.b16 %v1517, %v1516
      %v1591 = vpack.c.b16 %v1519, %v1518
      %1664 = vmatprep.subr.bf16.mxu0 0
      %1665 = vmatpush1.bf16.msra.mxu0 %v1520
      %1666 = vmatprep.subr.bf16.mxu0 0
      %1667 = vmatpush1.bf16.msra.mxu0 %v1521
      %1668 = vmatprep.subr.bf16.mxu0 0
      %1669 = vmatpush1.bf16.msra.mxu0 %v1522
      %1670 = vmatprep.subr.bf16.mxu0 0
      %1671 = vmatpush1.bf16.msra.mxu0 %v1523
      %1672 = vmatprep.subr.bf16.mxu0 0
      %1673 = vmatpush1.bf16.msra.mxu0 %v1524
      %1674 = vmatprep.subr.bf16.mxu0 0
      %1675 = vmatpush1.bf16.msra.mxu0 %v1525
      %1676 = vmatprep.subr.bf16.mxu0 0
      %1677 = vmatpush1.bf16.msra.mxu0 %v1526
      %1678 = vmatprep.subr.bf16.mxu0 0
      %1679 = vmatpush1.bf16.msra.mxu0 %v1527
      %1680 = vmatprep.subr.bf16.mxu0 0
      %1681 = vmatpush1.bf16.msra.mxu0 %v1528
      %1682 = vmatprep.subr.bf16.mxu0 0
      %1683 = vmatpush1.bf16.msra.mxu0 %v1529
      %1684 = vmatprep.subr.bf16.mxu0 0
      %1685 = vmatpush1.bf16.msra.mxu0 %v1530
      %1686 = vmatprep.subr.bf16.mxu0 0
      %1687 = vmatpush1.bf16.msra.mxu0 %v1531
      %1688 = vmatprep.subr.bf16.mxu0 0
      %1689 = vmatpush1.bf16.msra.mxu0 %v1532
      %1690 = vmatprep.subr.bf16.mxu0 0
      %1691 = vmatpush1.bf16.msra.mxu0 %v1533
      %1692 = vmatprep.subr.bf16.mxu0 0
      %1693 = vmatpush1.bf16.msra.mxu0 %v1534
      %1694 = vmatprep.subr.bf16.mxu0 0
      %1695 = vmatpush1.bf16.msra.mxu0 %v1535
      %1696 = vmatprep.mubr.bf16.mxu0 %v945
      %1697 = vmatmul.mubr.bf16.gmra.mrb[0].mxu0 %v944
      %v1698 = vpop.f32.mrb[0].mxu0
      %v1699 = vadd.f32 0.0, %v1698
      %v1700 = vpop.f32.mrb[0].mxu0
      %v1701 = vpop.f32.mrb[0].mxu0
      %v1702 = vadd.f32 0.0, %v1701
      %v1703 = vpop.f32.mrb[0].mxu0
      %1704 = vmatprep.mubr.bf16.mxu0 %v954
      %1705 = vmatmul.mubr.bf16.gmra.mrb[0].mxu0 %v953
      %v1706 = vpop.f32.mrb[0].mxu0
      %v1707 = vadd.f32 0.0, %v1706
      %v1708 = vpop.f32.mrb[0].mxu0
      %v1709 = vpop.f32.mrb[0].mxu0
      %v1710 = vadd.f32 0.0, %v1709
      %v1711 = vpop.f32.mrb[0].mxu0
      %1712 = vmatprep.mubr.bf16.mxu0 %v963
      %1713 = vmatmul.mubr.bf16.gmra.mrb[0].mxu0 %v962
      %v1714 = vpop.f32.mrb[0].mxu0
      %v1715 = vadd.f32 0.0, %v1714
      %v1716 = vpop.f32.mrb[0].mxu0
      %v1717 = vpop.f32.mrb[0].mxu0
      %v1718 = vadd.f32 0.0, %v1717
      %v1719 = vpop.f32.mrb[0].mxu0
      %1720 = vmatprep.mubr.bf16.mxu0 %v972
      %1721 = vmatmul.mubr.bf16.gmra.mrb[0].mxu0 %v971
      %v1722 = vpop.f32.mrb[0].mxu0
      %v1723 = vadd.f32 0.0, %v1722
      %v1724 = vpop.f32.mrb[0].mxu0
      %v1725 = vpop.f32.mrb[0].mxu0
      %v1726 = vadd.f32 0.0, %v1725
      %v1727 = vpop.f32.mrb[0].mxu0
      %1728 = vmatprep.mubr.bf16.mxu0 %v981
      %1729 = vmatmul.mubr.bf16.gmra.mrb[0].mxu0 %v980
      %v1730 = vpop.f32.mrb[0].mxu0
      %v1731 = vadd.f32 0.0, %v1730
      %v1732 = vpop.f32.mrb[0].mxu0
      %v1733 = vpop.f32.mrb[0].mxu0
      %v1734 = vadd.f32 0.0, %v1733
      %v1735 = vpop.f32.mrb[0].mxu0
      %1736 = vmatprep.mubr.bf16.mxu0 %v990
      %1737 = vmatmul.mubr.bf16.gmra.mrb[0].mxu0 %v989
      %v1738 = vpop.f32.mrb[0].mxu0
      %v1739 = vadd.f32 0.0, %v1738
      %v1740 = vpop.f32.mrb[0].mxu0
      %v1741 = vpop.f32.mrb[0].mxu0
      %v1742 = vadd.f32 0.0, %v1741
      %v1743 = vpop.f32.mrb[0].mxu0
      %1744 = vmatprep.mubr.bf16.mxu0 %v999
      %1745 = vmatmul.mubr.bf16.gmra.mrb[0].mxu0 %v998
      %v1746 = vpop.f32.mrb[0].mxu0
      %v1747 = vadd.f32 0.0, %v1746
      %v1748 = vpop.f32.mrb[0].mxu0
      %v1749 = vpop.f32.mrb[0].mxu0
      %v1750 = vadd.f32 0.0, %v1749
      %v1751 = vpop.f32.mrb[0].mxu0
      %1752 = vmatprep.mubr.bf16.mxu0 %v1008
      %1753 = vmatmul.mubr.bf16.gmra.mrb[0].mxu0 %v1007
      %v1754 = vpop.f32.mrb[0].mxu0
      %v1755 = vadd.f32 0.0, %v1754
      %v1756 = vpop.f32.mrb[0].mxu0
      %v1757 = vpop.f32.mrb[0].mxu0
      %v1758 = vadd.f32 0.0, %v1757
      %v1759 = vpop.f32.mrb[0].mxu0
      %1760 = vmatprep.mubr.bf16.mxu0 %v1017
      %1761 = vmatmul.mubr.bf16.gmra.mrb[0].mxu0 %v1016
      %v1762 = vpop.f32.mrb[0].mxu0
      %v1763 = vadd.f32 0.0, %v1762
      %v1764 = vpop.f32.mrb[0].mxu0
      %v1765 = vpop.f32.mrb[0].mxu0
      %v1766 = vadd.f32 0.0, %v1765
      %v1767 = vpop.f32.mrb[0].mxu0
      %1768 = vmatprep.mubr.bf16.mxu0 %v1026
      %1769 = vmatmul.mubr.bf16.gmra.mrb[0].mxu0 %v1025
      %v1770 = vpop.f32.mrb[0].mxu0
      %v1771 = vadd.f32 0.0, %v1770
      %v1772 = vpop.f32.mrb[0].mxu0
      %v1773 = vpop.f32.mrb[0].mxu0
      %v1774 = vadd.f32 0.0, %v1773
      %v1775 = vpop.f32.mrb[0].mxu0
      %1776 = vmatprep.mubr.bf16.mxu0 %v1035
      %1777 = vmatmul.mubr.bf16.gmra.mrb[0].mxu0 %v1034
      %v1778 = vpop.f32.mrb[0].mxu0
      %v1779 = vadd.f32 0.0, %v1778
      %v1780 = vpop.f32.mrb[0].mxu0
      %v1781 = vpop.f32.mrb[0].mxu0
      %v1782 = vadd.f32 0.0, %v1781
      %v1783 = vpop.f32.mrb[0].mxu0
      %1784 = vmatprep.mubr.bf16.mxu0 %v1044
      %1785 = vmatmul.mubr.bf16.gmra.mrb[0].mxu0 %v1043
      %v1786 = vpop.f32.mrb[0].mxu0
      %v1787 = vadd.f32 0.0, %v1786
      %v1788 = vpop.f32.mrb[0].mxu0
      %v1789 = vpop.f32.mrb[0].mxu0
      %v1790 = vadd.f32 0.0, %v1789
      %v1791 = vpop.f32.mrb[0].mxu0
      %1792 = vmatprep.mubr.bf16.mxu0 %v1053
      %1793 = vmatmul.mubr.bf16.gmra.mrb[0].mxu0 %v1052
      %v1794 = vpop.f32.mrb[0].mxu0
      %v1795 = vadd.f32 0.0, %v1794
      %v1796 = vpop.f32.mrb[0].mxu0
      %v1797 = vpop.f32.mrb[0].mxu0
      %v1798 = vadd.f32 0.0, %v1797
      %v1799 = vpop.f32.mrb[0].mxu0
      %1800 = vmatprep.mubr.bf16.mxu0 %v1062
      %1801 = vmatmul.mubr.bf16.gmra.mrb[0].mxu0 %v1061
      %v1802 = vpop.f32.mrb[0].mxu0
      %v1803 = vadd.f32 0.0, %v1802
      %v1804 = vpop.f32.mrb[0].mxu0
      %v1805 = vpop.f32.mrb[0].mxu0
      %v1806 = vadd.f32 0.0, %v1805
      %v1807 = vpop.f32.mrb[0].mxu0
      %1808 = vmatprep.mubr.bf16.mxu0 %v1071
      %1809 = vmatmul.mubr.bf16.gmra.mrb[0].mxu0 %v1070
      %v1810 = vpop.f32.mrb[0].mxu0
      %v1811 = vadd.f32 0.0, %v1810
      %v1812 = vpop.f32.mrb[0].mxu0
      %v1813 = vpop.f32.mrb[0].mxu0
      %v1814 = vadd.f32 0.0, %v1813
      %v1815 = vpop.f32.mrb[0].mxu0
      %1816 = vmatprep.mubr.bf16.mxu0 %v1080
      %1817 = vmatmul.mubr.bf16.gmra.mrb[0].mxu0 %v1079
      %v1818 = vpop.f32.mrb[0].mxu0
      %v1819 = vadd.f32 0.0, %v1818
      %v1820 = vpop.f32.mrb[0].mxu0
      %v1821 = vpop.f32.mrb[0].mxu0
      %v1822 = vadd.f32 0.0, %v1821
      %v1823 = vpop.f32.mrb[0].mxu0
      %1824 = vdwg.mxu0
      %1825 = vmatprep.subr.bf16.mxu0 0
      %1826 = vmatpush1.bf16.msra.mxu0 %v1536
      %1827 = vmatprep.subr.bf16.mxu0 0
      %1828 = vmatpush1.bf16.msra.mxu0 %v1537
      %1829 = vmatprep.subr.bf16.mxu0 0
      %1830 = vmatpush1.bf16.msra.mxu0 %v1538
      %1831 = vmatprep.subr.bf16.mxu0 0
      %1832 = vmatpush1.bf16.msra.mxu0 %v1539
      %1833 = vmatprep.subr.bf16.mxu0 0
      %1834 = vmatpush1.bf16.msra.mxu0 %v1540
      %1835 = vmatprep.subr.bf16.mxu0 0
      %1836 = vmatpush1.bf16.msra.mxu0 %v1541
      %1837 = vmatprep.subr.bf16.mxu0 0
      %1838 = vmatpush1.bf16.msra.mxu0 %v1542
      %1839 = vmatprep.subr.bf16.mxu0 0
      %1840 = vmatpush1.bf16.msra.mxu0 %v1543
      %1841 = vmatprep.subr.bf16.mxu0 0
      %1842 = vmatpush1.bf16.msra.mxu0 %v1544
      %1843 = vmatprep.subr.bf16.mxu0 0
      %1844 = vmatpush1.bf16.msra.mxu0 %v1545
      %1845 = vmatprep.subr.bf16.mxu0 0
      %1846 = vmatpush1.bf16.msra.mxu0 %v1546
      %1847 = vmatprep.subr.bf16.mxu0 0
      %1848 = vmatpush1.bf16.msra.mxu0 %v1547
      %1849 = vmatprep.subr.bf16.mxu0 0
      %1850 = vmatpush1.bf16.msra.mxu0 %v1548
      %1851 = vmatprep.subr.bf16.mxu0 0
      %1852 = vmatpush1.bf16.msra.mxu0 %v1549
      %1853 = vmatprep.subr.bf16.mxu0 0
      %1854 = vmatpush1.bf16.msra.mxu0 %v1550
      %1855 = vmatprep.subr.bf16.mxu0 0
      %1856 = vmatpush1.bf16.msra.mxu0 %v1551
      %1857 = vmatprep.mubr.bf16.mxu0 %v947
      %1858 = vmatmul.mubr.bf16.gmra.mrb[0].mxu0 %v946
      %v1859 = vpop.f32.mrb[0].mxu0
      %v1860 = vadd.f32 %v1699, %v1859
      %v1861 = vpop.f32.mrb[0].mxu0
      %v1862 = vpop.f32.mrb[0].mxu0
      %v1863 = vadd.f32 %v1702, %v1862
      %v1864 = vpop.f32.mrb[0].mxu0
      %1865 = vmatprep.mubr.bf16.mxu0 %v956
      %1866 = vmatmul.mubr.bf16.gmra.mrb[0].mxu0 %v955
      %v1867 = vpop.f32.mrb[0].mxu0
      %v1868 = vadd.f32 %v1707, %v1867
      %v1869 = vpop.f32.mrb[0].mxu0
      %v1870 = vpop.f32.mrb[0].mxu0
      %v1871 = vadd.f32 %v1710, %v1870
      %v1872 = vpop.f32.mrb[0].mxu0
      %1873 = vmatprep.mubr.bf16.mxu0 %v965
      %1874 = vmatmul.mubr.bf16.gmra.mrb[0].mxu0 %v964
      %v1875 = vpop.f32.mrb[0].mxu0
      %v1876 = vadd.f32 %v1715, %v1875
      %v1877 = vpop.f32.mrb[0].mxu0
      %v1878 = vpop.f32.mrb[0].mxu0
      %v1879 = vadd.f32 %v1718, %v1878
      %v1880 = vpop.f32.mrb[0].mxu0
      %1881 = vmatprep.mubr.bf16.mxu0 %v974
      %1882 = vmatmul.mubr.bf16.gmra.mrb[0].mxu0 %v973
      %v1883 = vpop.f32.mrb[0].mxu0
      %v1884 = vadd.f32 %v1723, %v1883
      %v1885 = vpop.f32.mrb[0].mxu0
      %v1886 = vpop.f32.mrb[0].mxu0
      %v1887 = vadd.f32 %v1726, %v1886
      %v1888 = vpop.f32.mrb[0].mxu0
      %1889 = vmatprep.mubr.bf16.mxu0 %v983
      %1890 = vmatmul.mubr.bf16.gmra.mrb[0].mxu0 %v982
      %v1891 = vpop.f32.mrb[0].mxu0
      %v1892 = vadd.f32 %v1731, %v1891
      %v1893 = vpop.f32.mrb[0].mxu0
      %v1894 = vpop.f32.mrb[0].mxu0
      %v1895 = vadd.f32 %v1734, %v1894
      %v1896 = vpop.f32.mrb[0].mxu0
      %1897 = vmatprep.mubr.bf16.mxu0 %v992
      %1898 = vmatmul.mubr.bf16.gmra.mrb[0].mxu0 %v991
      %v1899 = vpop.f32.mrb[0].mxu0
      %v1900 = vadd.f32 %v1739, %v1899
      %v1901 = vpop.f32.mrb[0].mxu0
      %v1902 = vpop.f32.mrb[0].mxu0
      %v1903 = vadd.f32 %v1742, %v1902
      %v1904 = vpop.f32.mrb[0].mxu0
      %1905 = vmatprep.mubr.bf16.mxu0 %v1001
      %1906 = vmatmul.mubr.bf16.gmra.mrb[0].mxu0 %v1000
      %v1907 = vpop.f32.mrb[0].mxu0
      %v1908 = vadd.f32 %v1747, %v1907
      %v1909 = vpop.f32.mrb[0].mxu0
      %v1910 = vpop.f32.mrb[0].mxu0
      %v1911 = vadd.f32 %v1750, %v1910
      %v1912 = vpop.f32.mrb[0].mxu0
      %1913 = vmatprep.mubr.bf16.mxu0 %v1010
      %1914 = vmatmul.mubr.bf16.gmra.mrb[0].mxu0 %v1009
      %v1915 = vpop.f32.mrb[0].mxu0
      %v1916 = vadd.f32 %v1755, %v1915
      %v1917 = vpop.f32.mrb[0].mxu0
      %v1918 = vpop.f32.mrb[0].mxu0
      %v1919 = vadd.f32 %v1758, %v1918
      %v1920 = vpop.f32.mrb[0].mxu0
      %1921 = vmatprep.mubr.bf16.mxu0 %v1019
      %1922 = vmatmul.mubr.bf16.gmra.mrb[0].mxu0 %v1018
      %v1923 = vpop.f32.mrb[0].mxu0
      %v1924 = vadd.f32 %v1763, %v1923
      %v1925 = vpop.f32.mrb[0].mxu0
      %v1926 = vpop.f32.mrb[0].mxu0
      %v1927 = vadd.f32 %v1766, %v1926
      %v1928 = vpop.f32.mrb[0].mxu0
      %1929 = vmatprep.mubr.bf16.mxu0 %v1028
      %1930 = vmatmul.mubr.bf16.gmra.mrb[0].mxu0 %v1027
      %v1931 = vpop.f32.mrb[0].mxu0
      %v1932 = vadd.f32 %v1771, %v1931
      %v1933 = vpop.f32.mrb[0].mxu0
      %v1934 = vpop.f32.mrb[0].mxu0
      %v1935 = vadd.f32 %v1774, %v1934
      %v1936 = vpop.f32.mrb[0].mxu0
      %1937 = vmatprep.mubr.bf16.mxu0 %v1037
      %1938 = vmatmul.mubr.bf16.gmra.mrb[0].mxu0 %v1036
      %v1939 = vpop.f32.mrb[0].mxu0
      %v1940 = vadd.f32 %v1779, %v1939
      %v1941 = vpop.f32.mrb[0].mxu0
      %v1942 = vpop.f32.mrb[0].mxu0
      %v1943 = vadd.f32 %v1782, %v1942
      %v1944 = vpop.f32.mrb[0].mxu0
      %1945 = vmatprep.mubr.bf16.mxu0 %v1046
      %1946 = vmatmul.mubr.bf16.gmra.mrb[0].mxu0 %v1045
      %v1947 = vpop.f32.mrb[0].mxu0
      %v1948 = vadd.f32 %v1787, %v1947
      %v1949 = vpop.f32.mrb[0].mxu0
      %v1950 = vpop.f32.mrb[0].mxu0
      %v1951 = vadd.f32 %v1790, %v1950
      %v1952 = vpop.f32.mrb[0].mxu0
      %1953 = vmatprep.mubr.bf16.mxu0 %v1055
      %1954 = vmatmul.mubr.bf16.gmra.mrb[0].mxu0 %v1054
      %v1955 = vpop.f32.mrb[0].mxu0
      %v1956 = vadd.f32 %v1795, %v1955
      %v1957 = vpop.f32.mrb[0].mxu0
      %v1958 = vpop.f32.mrb[0].mxu0
      %v1959 = vadd.f32 %v1798, %v1958
      %v1960 = vpop.f32.mrb[0].mxu0
      %1961 = vmatprep.mubr.bf16.mxu0 %v1064
      %1962 = vmatmul.mubr.bf16.gmra.mrb[0].mxu0 %v1063
      %v1963 = vpop.f32.mrb[0].mxu0
      %v1964 = vadd.f32 %v1803, %v1963
      %v1965 = vpop.f32.mrb[0].mxu0
      %v1966 = vpop.f32.mrb[0].mxu0
      %v1967 = vadd.f32 %v1806, %v1966
      %v1968 = vpop.f32.mrb[0].mxu0
      %1969 = vmatprep.mubr.bf16.mxu0 %v1073
      %1970 = vmatmul.mubr.bf16.gmra.mrb[0].mxu0 %v1072
      %v1971 = vpop.f32.mrb[0].mxu0
      %v1972 = vadd.f32 %v1811, %v1971
      %v1973 = vpop.f32.mrb[0].mxu0
      %v1974 = vpop.f32.mrb[0].mxu0
      %v1975 = vadd.f32 %v1814, %v1974
      %v1976 = vpop.f32.mrb[0].mxu0
      %1977 = vmatprep.mubr.bf16.mxu0 %v1082
      %1978 = vmatmul.mubr.bf16.gmra.mrb[0].mxu0 %v1081
      %v1979 = vpop.f32.mrb[0].mxu0
      %v1980 = vadd.f32 %v1819, %v1979
      %v1981 = vpop.f32.mrb[0].mxu0
      %v1982 = vpop.f32.mrb[0].mxu0
      %v1983 = vadd.f32 %v1822, %v1982
      %v1984 = vpop.f32.mrb[0].mxu0
      %1985 = vdwg.mxu0
      %1986 = vmatprep.subr.bf16.mxu0 0
      %1987 = vmatpush1.bf16.msra.mxu0 %v1552
      %1988 = vmatprep.subr.bf16.mxu0 0
      %1989 = vmatpush1.bf16.msra.mxu0 %v1553
      %1990 = vmatprep.subr.bf16.mxu0 0
      %1991 = vmatpush1.bf16.msra.mxu0 %v1554
      %1992 = vmatprep.subr.bf16.mxu0 0
      %1993 = vmatpush1.bf16.msra.mxu0 %v1555
      %1994 = vmatprep.subr.bf16.mxu0 0
      %1995 = vmatpush1.bf16.msra.mxu0 %v1556
      %1996 = vmatprep.subr.bf16.mxu0 0
      %1997 = vmatpush1.bf16.msra.mxu0 %v1557
      %1998 = vmatprep.subr.bf16.mxu0 0
      %1999 = vmatpush1.bf16.msra.mxu0 %v1558
      %2000 = vmatprep.subr.bf16.mxu0 0
      %2001 = vmatpush1.bf16.msra.mxu0 %v1559
      %2002 = vmatprep.subr.bf16.mxu0 0
      %2003 = vmatpush1.bf16.msra.mxu0 %v1560
      %2004 = vmatprep.subr.bf16.mxu0 0
      %2005 = vmatpush1.bf16.msra.mxu0 %v1561
      %2006 = vmatprep.subr.bf16.mxu0 0
      %2007 = vmatpush1.bf16.msra.mxu0 %v1562
      %2008 = vmatprep.subr.bf16.mxu0 0
      %2009 = vmatpush1.bf16.msra.mxu0 %v1563
      %2010 = vmatprep.subr.bf16.mxu0 0
      %2011 = vmatpush1.bf16.msra.mxu0 %v1564
      %2012 = vmatprep.subr.bf16.mxu0 0
      %2013 = vmatpush1.bf16.msra.mxu0 %v1565
      %2014 = vmatprep.subr.bf16.mxu0 0
      %2015 = vmatpush1.bf16.msra.mxu0 %v1566
      %2016 = vmatprep.subr.bf16.mxu0 0
      %2017 = vmatpush1.bf16.msra.mxu0 %v1567
      %2018 = vmatprep.mubr.bf16.mxu0 %v949
      %2019 = vmatmul.mubr.bf16.gmra.mrb[0].mxu0 %v948
      %v2020 = vpop.f32.mrb[0].mxu0
      %v2021 = vadd.f32 %v1860, %v2020
      %v2022 = vpop.f32.mrb[0].mxu0
      %v2023 = vpop.f32.mrb[0].mxu0
      %v2024 = vadd.f32 %v1863, %v2023
      %v2025 = vpop.f32.mrb[0].mxu0
      %2026 = vmatprep.mubr.bf16.mxu0 %v958
      %2027 = vmatmul.mubr.bf16.gmra.mrb[0].mxu0 %v957
      %v2028 = vpop.f32.mrb[0].mxu0
      %v2029 = vadd.f32 %v1868, %v2028
      %v2030 = vpop.f32.mrb[0].mxu0
      %v2031 = vpop.f32.mrb[0].mxu0
      %v2032 = vadd.f32 %v1871, %v2031
      %v2033 = vpop.f32.mrb[0].mxu0
      %2034 = vmatprep.mubr.bf16.mxu0 %v967
      %2035 = vmatmul.mubr.bf16.gmra.mrb[0].mxu0 %v966
      %v2036 = vpop.f32.mrb[0].mxu0
      %v2037 = vadd.f32 %v1876, %v2036
      %v2038 = vpop.f32.mrb[0].mxu0
      %v2039 = vpop.f32.mrb[0].mxu0
      %v2040 = vadd.f32 %v1879, %v2039
      %v2041 = vpop.f32.mrb[0].mxu0
      %2042 = vmatprep.mubr.bf16.mxu0 %v976
      %2043 = vmatmul.mubr.bf16.gmra.mrb[0].mxu0 %v975
      %v2044 = vpop.f32.mrb[0].mxu0
      %v2045 = vadd.f32 %v1884, %v2044
      %v2046 = vpop.f32.mrb[0].mxu0
      %v2047 = vpop.f32.mrb[0].mxu0
      %v2048 = vadd.f32 %v1887, %v2047
      %v2049 = vpop.f32.mrb[0].mxu0
      %2050 = vmatprep.mubr.bf16.mxu0 %v985
      %2051 = vmatmul.mubr.bf16.gmra.mrb[0].mxu0 %v984
      %v2052 = vpop.f32.mrb[0].mxu0
      %v2053 = vadd.f32 %v1892, %v2052
      %v2054 = vpop.f32.mrb[0].mxu0
      %v2055 = vpop.f32.mrb[0].mxu0
      %v2056 = vadd.f32 %v1895, %v2055
      %v2057 = vpop.f32.mrb[0].mxu0
      %2058 = vmatprep.mubr.bf16.mxu0 %v994
      %2059 = vmatmul.mubr.bf16.gmra.mrb[0].mxu0 %v993
      %v2060 = vpop.f32.mrb[0].mxu0
      %v2061 = vadd.f32 %v1900, %v2060
      %v2062 = vpop.f32.mrb[0].mxu0
      %v2063 = vpop.f32.mrb[0].mxu0
      %v2064 = vadd.f32 %v1903, %v2063
      %v2065 = vpop.f32.mrb[0].mxu0
      %2066 = vmatprep.mubr.bf16.mxu0 %v1003
      %2067 = vmatmul.mubr.bf16.gmra.mrb[0].mxu0 %v1002
      %v2068 = vpop.f32.mrb[0].mxu0
      %v2069 = vadd.f32 %v1908, %v2068
      %v2070 = vpop.f32.mrb[0].mxu0
      %v2071 = vpop.f32.mrb[0].mxu0
      %v2072 = vadd.f32 %v1911, %v2071
      %v2073 = vpop.f32.mrb[0].mxu0
      %2074 = vmatprep.mubr.bf16.mxu0 %v1012
      %2075 = vmatmul.mubr.bf16.gmra.mrb[0].mxu0 %v1011
      %v2076 = vpop.f32.mrb[0].mxu0
      %v2077 = vadd.f32 %v1916, %v2076
      %v2078 = vpop.f32.mrb[0].mxu0
      %v2079 = vpop.f32.mrb[0].mxu0
      %v2080 = vadd.f32 %v1919, %v2079
      %v2081 = vpop.f32.mrb[0].mxu0
      %2082 = vmatprep.mubr.bf16.mxu0 %v1021
      %2083 = vmatmul.mubr.bf16.gmra.mrb[0].mxu0 %v1020
      %v2084 = vpop.f32.mrb[0].mxu0
      %v2085 = vadd.f32 %v1924, %v2084
      %v2086 = vpop.f32.mrb[0].mxu0
      %v2087 = vpop.f32.mrb[0].mxu0
      %v2088 = vadd.f32 %v1927, %v2087
      %v2089 = vpop.f32.mrb[0].mxu0
      %2090 = vmatprep.mubr.bf16.mxu0 %v1030
      %2091 = vmatmul.mubr.bf16.gmra.mrb[0].mxu0 %v1029
      %v2092 = vpop.f32.mrb[0].mxu0
      %v2093 = vadd.f32 %v1932, %v2092
      %v2094 = vpop.f32.mrb[0].mxu0
      %v2095 = vpop.f32.mrb[0].mxu0
      %v2096 = vadd.f32 %v1935, %v2095
      %v2097 = vpop.f32.mrb[0].mxu0
      %2098 = vmatprep.mubr.bf16.mxu0 %v1039
      %2099 = vmatmul.mubr.bf16.gmra.mrb[0].mxu0 %v1038
      %v2100 = vpop.f32.mrb[0].mxu0
      %v2101 = vadd.f32 %v1940, %v2100
      %v2102 = vpop.f32.mrb[0].mxu0
      %v2103 = vpop.f32.mrb[0].mxu0
      %v2104 = vadd.f32 %v1943, %v2103
      %v2105 = vpop.f32.mrb[0].mxu0
      %2106 = vmatprep.mubr.bf16.mxu0 %v1048
      %2107 = vmatmul.mubr.bf16.gmra.mrb[0].mxu0 %v1047
      %v2108 = vpop.f32.mrb[0].mxu0
      %v2109 = vadd.f32 %v1948, %v2108
      %v2110 = vpop.f32.mrb[0].mxu0
      %v2111 = vpop.f32.mrb[0].mxu0
      %v2112 = vadd.f32 %v1951, %v2111
      %v2113 = vpop.f32.mrb[0].mxu0
      %2114 = vmatprep.mubr.bf16.mxu0 %v1057
      %2115 = vmatmul.mubr.bf16.gmra.mrb[0].mxu0 %v1056
      %v2116 = vpop.f32.mrb[0].mxu0
      %v2117 = vadd.f32 %v1956, %v2116
      %v2118 = vpop.f32.mrb[0].mxu0
      %v2119 = vpop.f32.mrb[0].mxu0
      %v2120 = vadd.f32 %v1959, %v2119
      %v2121 = vpop.f32.mrb[0].mxu0
      %2122 = vmatprep.mubr.bf16.mxu0 %v1066
      %2123 = vmatmul.mubr.bf16.gmra.mrb[0].mxu0 %v1065
      %v2124 = vpop.f32.mrb[0].mxu0
      %v2125 = vadd.f32 %v1964, %v2124
      %v2126 = vpop.f32.mrb[0].mxu0
      %v2127 = vpop.f32.mrb[0].mxu0
      %v2128 = vadd.f32 %v1967, %v2127
      %v2129 = vpop.f32.mrb[0].mxu0
      %2130 = vmatprep.mubr.bf16.mxu0 %v1075
      %2131 = vmatmul.mubr.bf16.gmra.mrb[0].mxu0 %v1074
      %v2132 = vpop.f32.mrb[0].mxu0
      %v2133 = vadd.f32 %v1972, %v2132
      %v2134 = vpop.f32.mrb[0].mxu0
      %v2135 = vpop.f32.mrb[0].mxu0
      %v2136 = vadd.f32 %v1975, %v2135
      %v2137 = vpop.f32.mrb[0].mxu0
      %2138 = vmatprep.mubr.bf16.mxu0 %v1084
      %2139 = vmatmul.mubr.bf16.gmra.mrb[0].mxu0 %v1083
      %v2140 = vpop.f32.mrb[0].mxu0
      %v2141 = vadd.f32 %v1980, %v2140
      %v2142 = vpop.f32.mrb[0].mxu0
      %v2143 = vpop.f32.mrb[0].mxu0
      %v2144 = vadd.f32 %v1983, %v2143
      %v2145 = vpop.f32.mrb[0].mxu0
      %2146 = vdwg.mxu0
      %2147 = vmatprep.subr.bf16.mxu0 0
      %2148 = vmatpush1.bf16.msra.mxu0 %v1568
      %2149 = vmatprep.subr.bf16.mxu0 0
      %2150 = vmatpush1.bf16.msra.mxu0 %v1569
      %2151 = vmatprep.subr.bf16.mxu0 0
      %2152 = vmatpush1.bf16.msra.mxu0 %v1570
      %2153 = vmatprep.subr.bf16.mxu0 0
      %2154 = vmatpush1.bf16.msra.mxu0 %v1571
      %2155 = vmatprep.subr.bf16.mxu0 0
      %2156 = vmatpush1.bf16.msra.mxu0 %v1572
      %2157 = vmatprep.subr.bf16.mxu0 0
      %2158 = vmatpush1.bf16.msra.mxu0 %v1573
      %2159 = vmatprep.subr.bf16.mxu0 0
      %2160 = vmatpush1.bf16.msra.mxu0 %v1574
      %2161 = vmatprep.subr.bf16.mxu0 0
      %2162 = vmatpush1.bf16.msra.mxu0 %v1575
      %2163 = vmatprep.subr.bf16.mxu0 0
      %2164 = vmatpush1.bf16.msra.mxu0 %v1576
      %2165 = vmatprep.subr.bf16.mxu0 0
      %2166 = vmatpush1.bf16.msra.mxu0 %v1577
      %2167 = vmatprep.subr.bf16.mxu0 0
      %2168 = vmatpush1.bf16.msra.mxu0 %v1578
      %2169 = vmatprep.subr.bf16.mxu0 0
      %2170 = vmatpush1.bf16.msra.mxu0 %v1579
      %2171 = vmatprep.subr.bf16.mxu0 0
      %2172 = vmatpush1.bf16.msra.mxu0 %v1580
      %2173 = vmatprep.subr.bf16.mxu0 0
      %2174 = vmatpush1.bf16.msra.mxu0 %v1581
      %2175 = vmatprep.subr.bf16.mxu0 0
      %2176 = vmatpush1.bf16.msra.mxu0 %v1582
      %2177 = vmatprep.subr.bf16.mxu0 0
      %2178 = vmatpush1.bf16.msra.mxu0 %v1583
      %2179 = vmatprep.mubr.bf16.mxu0 %v951
      %2180 = vmatmul.mubr.bf16.gmra.mrb[0].mxu0 %v950
      %v2181 = vpop.f32.mrb[0].mxu0
      %v2182 = vadd.f32 %v2021, %v2181
      %v2183 = vpop.f32.mrb[0].mxu0
      %v2184 = vpop.f32.mrb[0].mxu0
      %v2185 = vadd.f32 %v2024, %v2184
      %v2186 = vpop.f32.mrb[0].mxu0
      %2187 = vmatprep.mubr.bf16.mxu0 %v960
      %2188 = vmatmul.mubr.bf16.gmra.mrb[0].mxu0 %v959
      %v2189 = vpop.f32.mrb[0].mxu0
      %v2190 = vadd.f32 %v2029, %v2189
      %v2191 = vpop.f32.mrb[0].mxu0
      %v2192 = vpop.f32.mrb[0].mxu0
      %v2193 = vadd.f32 %v2032, %v2192
      %v2194 = vpop.f32.mrb[0].mxu0
      %2195 = vmatprep.mubr.bf16.mxu0 %v969
      %2196 = vmatmul.mubr.bf16.gmra.mrb[0].mxu0 %v968
      %v2197 = vpop.f32.mrb[0].mxu0
      %v2198 = vadd.f32 %v2037, %v2197
      %v2199 = vpop.f32.mrb[0].mxu0
      %v2200 = vpop.f32.mrb[0].mxu0
      %v2201 = vadd.f32 %v2040, %v2200
      %v2202 = vpop.f32.mrb[0].mxu0
      %2203 = vmatprep.mubr.bf16.mxu0 %v978
      %2204 = vmatmul.mubr.bf16.gmra.mrb[0].mxu0 %v977
      %v2205 = vpop.f32.mrb[0].mxu0
      %v2206 = vadd.f32 %v2045, %v2205
      %v2207 = vpop.f32.mrb[0].mxu0
      %v2208 = vpop.f32.mrb[0].mxu0
      %v2209 = vadd.f32 %v2048, %v2208
      %v2210 = vpop.f32.mrb[0].mxu0
      %2211 = vmatprep.mubr.bf16.mxu0 %v987
      %2212 = vmatmul.mubr.bf16.gmra.mrb[0].mxu0 %v986
      %v2213 = vpop.f32.mrb[0].mxu0
      %v2214 = vadd.f32 %v2053, %v2213
      %v2215 = vpop.f32.mrb[0].mxu0
      %v2216 = vpop.f32.mrb[0].mxu0
      %v2217 = vadd.f32 %v2056, %v2216
      %v2218 = vpop.f32.mrb[0].mxu0
      %2219 = vmatprep.mubr.bf16.mxu0 %v996
      %2220 = vmatmul.mubr.bf16.gmra.mrb[0].mxu0 %v995
      %v2221 = vpop.f32.mrb[0].mxu0
      %v2222 = vadd.f32 %v2061, %v2221
      %v2223 = vpop.f32.mrb[0].mxu0
      %v2224 = vpop.f32.mrb[0].mxu0
      %v2225 = vadd.f32 %v2064, %v2224
      %v2226 = vpop.f32.mrb[0].mxu0
      %2227 = vmatprep.mubr.bf16.mxu0 %v1005
      %2228 = vmatmul.mubr.bf16.gmra.mrb[0].mxu0 %v1004
      %v2229 = vpop.f32.mrb[0].mxu0
      %v2230 = vadd.f32 %v2069, %v2229
      %v2231 = vpop.f32.mrb[0].mxu0
      %v2232 = vpop.f32.mrb[0].mxu0
      %v2233 = vadd.f32 %v2072, %v2232
      %v2234 = vpop.f32.mrb[0].mxu0
      %2235 = vmatprep.mubr.bf16.mxu0 %v1014
      %2236 = vmatmul.mubr.bf16.gmra.mrb[0].mxu0 %v1013
      %v2237 = vpop.f32.mrb[0].mxu0
      %v2238 = vadd.f32 %v2077, %v2237
      %v2239 = vpop.f32.mrb[0].mxu0
      %v2240 = vpop.f32.mrb[0].mxu0
      %v2241 = vadd.f32 %v2080, %v2240
      %v2242 = vpop.f32.mrb[0].mxu0
      %2243 = vmatprep.mubr.bf16.mxu0 %v1023
      %2244 = vmatmul.mubr.bf16.gmra.mrb[0].mxu0 %v1022
      %v2245 = vpop.f32.mrb[0].mxu0
      %v2246 = vadd.f32 %v2085, %v2245
      %v2247 = vpop.f32.mrb[0].mxu0
      %v2248 = vpop.f32.mrb[0].mxu0
      %v2249 = vadd.f32 %v2088, %v2248
      %v2250 = vpop.f32.mrb[0].mxu0
      %2251 = vmatprep.mubr.bf16.mxu0 %v1032
      %2252 = vmatmul.mubr.bf16.gmra.mrb[0].mxu0 %v1031
      %v2253 = vpop.f32.mrb[0].mxu0
      %v2254 = vadd.f32 %v2093, %v2253
      %v2255 = vpop.f32.mrb[0].mxu0
      %v2256 = vpop.f32.mrb[0].mxu0
      %v2257 = vadd.f32 %v2096, %v2256
      %v2258 = vpop.f32.mrb[0].mxu0
      %2259 = vmatprep.mubr.bf16.mxu0 %v1041
      %2260 = vmatmul.mubr.bf16.gmra.mrb[0].mxu0 %v1040
      %v2261 = vpop.f32.mrb[0].mxu0
      %v2262 = vadd.f32 %v2101, %v2261
      %v2263 = vpop.f32.mrb[0].mxu0
      %v2264 = vpop.f32.mrb[0].mxu0
      %v2265 = vadd.f32 %v2104, %v2264
      %v2266 = vpop.f32.mrb[0].mxu0
      %2267 = vmatprep.mubr.bf16.mxu0 %v1050
      %2268 = vmatmul.mubr.bf16.gmra.mrb[0].mxu0 %v1049
      %v2269 = vpop.f32.mrb[0].mxu0
      %v2270 = vadd.f32 %v2109, %v2269
      %v2271 = vpop.f32.mrb[0].mxu0
      %v2272 = vpop.f32.mrb[0].mxu0
      %v2273 = vadd.f32 %v2112, %v2272
      %v2274 = vpop.f32.mrb[0].mxu0
      %2275 = vmatprep.mubr.bf16.mxu0 %v1059
      %2276 = vmatmul.mubr.bf16.gmra.mrb[0].mxu0 %v1058
      %v2277 = vpop.f32.mrb[0].mxu0
      %v2278 = vadd.f32 %v2117, %v2277
      %v2279 = vpop.f32.mrb[0].mxu0
      %v2280 = vpop.f32.mrb[0].mxu0
      %v2281 = vadd.f32 %v2120, %v2280
      %v2282 = vpop.f32.mrb[0].mxu0
      %2283 = vmatprep.mubr.bf16.mxu0 %v1068
      %2284 = vmatmul.mubr.bf16.gmra.mrb[0].mxu0 %v1067
      %v2285 = vpop.f32.mrb[0].mxu0
      %v2286 = vadd.f32 %v2125, %v2285
      %v2287 = vpop.f32.mrb[0].mxu0
      %v2288 = vpop.f32.mrb[0].mxu0
      %v2289 = vadd.f32 %v2128, %v2288
      %v2290 = vpop.f32.mrb[0].mxu0
      %2291 = vmatprep.mubr.bf16.mxu0 %v1077
      %2292 = vmatmul.mubr.bf16.gmra.mrb[0].mxu0 %v1076
      %v2293 = vpop.f32.mrb[0].mxu0
      %v2294 = vadd.f32 %v2133, %v2293
      %v2295 = vpop.f32.mrb[0].mxu0
      %v2296 = vpop.f32.mrb[0].mxu0
      %v2297 = vadd.f32 %v2136, %v2296
      %v2298 = vpop.f32.mrb[0].mxu0
      %2299 = vmatprep.mubr.bf16.mxu0 %v1086
      %2300 = vmatmul.mubr.bf16.gmra.mrb[0].mxu0 %v1085
      %v2301 = vpop.f32.mrb[0].mxu0
      %v2302 = vadd.f32 %v2141, %v2301
      %v2303 = vpop.f32.mrb[0].mxu0
      %v2304 = vpop.f32.mrb[0].mxu0
      %v2305 = vadd.f32 %v2144, %v2304
      %v2306 = vpop.f32.mrb[0].mxu0
      %2307 = vdwg.mxu0
      %2308 = vmatprep.subr.bf16.mxu0 0
      %2309 = vmatpush1.bf16.msra.mxu0 %v1584
      %2310 = vmatprep.subr.bf16.mxu0 0
      %2311 = vmatpush1.bf16.msra.mxu0 %v1585
      %2312 = vmatprep.subr.bf16.mxu0 0
      %2313 = vmatpush1.bf16.msra.mxu0 %v1586
      %2314 = vmatprep.subr.bf16.mxu0 0
      %2315 = vmatpush1.bf16.msra.mxu0 %v1587
      %2316 = vmatprep.subr.bf16.mxu0 0
      %2317 = vmatpush1.bf16.msra.mxu0 %v1588
      %2318 = vmatprep.subr.bf16.mxu0 0
      %2319 = vmatpush1.bf16.msra.mxu0 %v1589
      %2320 = vmatprep.subr.bf16.mxu0 0
      %2321 = vmatpush1.bf16.msra.mxu0 %v1590
      %2322 = vmatprep.subr.bf16.mxu0 0
      %2323 = vmatpush1.bf16.msra.mxu0 %v1591
      %2324 = vmatprep.subr.bf16.mxu0 0
      %2325 = vmatpush1.bf16.msra.mxu0 0
      %2326 = vmatprep.subr.bf16.mxu0 0
      %2327 = vmatpush1.bf16.msra.mxu0 0
      %2328 = vmatprep.subr.bf16.mxu0 0
      %2329 = vmatpush1.bf16.msra.mxu0 0
      %2330 = vmatprep.subr.bf16.mxu0 0
      %2331 = vmatpush1.bf16.msra.mxu0 0
      %2332 = vmatprep.subr.bf16.mxu0 0
      %2333 = vmatpush1.bf16.msra.mxu0 0
      %2334 = vmatprep.subr.bf16.mxu0 0
      %2335 = vmatpush1.bf16.msra.mxu0 0
      %2336 = vmatprep.subr.bf16.mxu0 0
      %2337 = vmatpush1.bf16.msra.mxu0 0
      %2338 = vmatprep.subr.bf16.mxu0 0
      %2339 = vmatpush1.bf16.msra.mxu0 0
      %2340 = vmatprep.mubr.bf16.mxu0 0
      %2341 = vmatmul.mubr.bf16.gmra.mrb[0].mxu0 %v952
      %v2342 = vpop.f32.mrb[0].mxu0
      %v2343 = vadd.f32 %v2182, %v2342
      %v2344 = vpop.f32.mrb[0].mxu0
      %v2345 = vpop.f32.mrb[0].mxu0
      %v2346 = vadd.f32 %v2185, %v2345
      %v2347 = vpop.f32.mrb[0].mxu0
      %2348 = vmatprep.mubr.bf16.mxu0 0
      %2349 = vmatmul.mubr.bf16.gmra.mrb[0].mxu0 %v961
      %v2350 = vpop.f32.mrb[0].mxu0
      %v2351 = vadd.f32 %v2190, %v2350
      %v2352 = vpop.f32.mrb[0].mxu0
      %v2353 = vpop.f32.mrb[0].mxu0
      %v2354 = vadd.f32 %v2193, %v2353
      %v2355 = vpop.f32.mrb[0].mxu0
      %2356 = vmatprep.mubr.bf16.mxu0 0
      %2357 = vmatmul.mubr.bf16.gmra.mrb[0].mxu0 %v970
      %v2358 = vpop.f32.mrb[0].mxu0
      %v2359 = vadd.f32 %v2198, %v2358
      %v2360 = vpop.f32.mrb[0].mxu0
      %v2361 = vpop.f32.mrb[0].mxu0
      %v2362 = vadd.f32 %v2201, %v2361
      %v2363 = vpop.f32.mrb[0].mxu0
      %2364 = vmatprep.mubr.bf16.mxu0 0
      %2365 = vmatmul.mubr.bf16.gmra.mrb[0].mxu0 %v979
      %v2366 = vpop.f32.mrb[0].mxu0
      %v2367 = vadd.f32 %v2206, %v2366
      %v2368 = vpop.f32.mrb[0].mxu0
      %v2369 = vpop.f32.mrb[0].mxu0
      %v2370 = vadd.f32 %v2209, %v2369
      %v2371 = vpop.f32.mrb[0].mxu0
      %2372 = vmatprep.mubr.bf16.mxu0 0
      %2373 = vmatmul.mubr.bf16.gmra.mrb[0].mxu0 %v988
      %v2374 = vpop.f32.mrb[0].mxu0
      %v2375 = vadd.f32 %v2214, %v2374
      %v2376 = vpop.f32.mrb[0].mxu0
      %v2377 = vpop.f32.mrb[0].mxu0
      %v2378 = vadd.f32 %v2217, %v2377
      %v2379 = vpop.f32.mrb[0].mxu0
      %2380 = vmatprep.mubr.bf16.mxu0 0
      %2381 = vmatmul.mubr.bf16.gmra.mrb[0].mxu0 %v997
      %v2382 = vpop.f32.mrb[0].mxu0
      %v2383 = vadd.f32 %v2222, %v2382
      %v2384 = vpop.f32.mrb[0].mxu0
      %v2385 = vpop.f32.mrb[0].mxu0
      %v2386 = vadd.f32 %v2225, %v2385
      %v2387 = vpop.f32.mrb[0].mxu0
      %2388 = vmatprep.mubr.bf16.mxu0 0
      %2389 = vmatmul.mubr.bf16.gmra.mrb[0].mxu0 %v1006
      %v2390 = vpop.f32.mrb[0].mxu0
      %v2391 = vadd.f32 %v2230, %v2390
      %v2392 = vpop.f32.mrb[0].mxu0
      %v2393 = vpop.f32.mrb[0].mxu0
      %v2394 = vadd.f32 %v2233, %v2393
      %v2395 = vpop.f32.mrb[0].mxu0
      %2396 = vmatprep.mubr.bf16.mxu0 0
      %2397 = vmatmul.mubr.bf16.gmra.mrb[0].mxu0 %v1015
      %v2398 = vpop.f32.mrb[0].mxu0
      %v2399 = vadd.f32 %v2238, %v2398
      %v2400 = vpop.f32.mrb[0].mxu0
      %v2401 = vpop.f32.mrb[0].mxu0
      %v2402 = vadd.f32 %v2241, %v2401
      %v2403 = vpop.f32.mrb[0].mxu0
      %2404 = vmatprep.mubr.bf16.mxu0 0
      %2405 = vmatmul.mubr.bf16.gmra.mrb[0].mxu0 %v1024
      %v2406 = vpop.f32.mrb[0].mxu0
      %v2407 = vadd.f32 %v2246, %v2406
      %v2408 = vpop.f32.mrb[0].mxu0
      %v2409 = vpop.f32.mrb[0].mxu0
      %v2410 = vadd.f32 %v2249, %v2409
      %v2411 = vpop.f32.mrb[0].mxu0
      %2412 = vmatprep.mubr.bf16.mxu0 0
      %2413 = vmatmul.mubr.bf16.gmra.mrb[0].mxu0 %v1033
      %v2414 = vpop.f32.mrb[0].mxu0
      %v2415 = vadd.f32 %v2254, %v2414
      %v2416 = vpop.f32.mrb[0].mxu0
      %v2417 = vpop.f32.mrb[0].mxu0
      %v2418 = vadd.f32 %v2257, %v2417
      %v2419 = vpop.f32.mrb[0].mxu0
      %2420 = vmatprep.mubr.bf16.mxu0 0
      %2421 = vmatmul.mubr.bf16.gmra.mrb[0].mxu0 %v1042
      %v2422 = vpop.f32.mrb[0].mxu0
      %v2423 = vadd.f32 %v2262, %v2422
      %v2424 = vpop.f32.mrb[0].mxu0
      %v2425 = vpop.f32.mrb[0].mxu0
      %v2426 = vadd.f32 %v2265, %v2425
      %v2427 = vpop.f32.mrb[0].mxu0
      %2428 = vmatprep.mubr.bf16.mxu0 0
      %2429 = vmatmul.mubr.bf16.gmra.mrb[0].mxu0 %v1051
      %v2430 = vpop.f32.mrb[0].mxu0
      %v2431 = vadd.f32 %v2270, %v2430
      %v2432 = vpop.f32.mrb[0].mxu0
      %v2433 = vpop.f32.mrb[0].mxu0
      %v2434 = vadd.f32 %v2273, %v2433
      %v2435 = vpop.f32.mrb[0].mxu0
      %2436 = vmatprep.mubr.bf16.mxu0 0
      %2437 = vmatmul.mubr.bf16.gmra.mrb[0].mxu0 %v1060
      %v2438 = vpop.f32.mrb[0].mxu0
      %v2439 = vadd.f32 %v2278, %v2438
      %v2440 = vpop.f32.mrb[0].mxu0
      %v2441 = vpop.f32.mrb[0].mxu0
      %v2442 = vadd.f32 %v2281, %v2441
      %v2443 = vpop.f32.mrb[0].mxu0
      %2444 = vmatprep.mubr.bf16.mxu0 0
      %2445 = vmatmul.mubr.bf16.gmra.mrb[0].mxu0 %v1069
      %v2446 = vpop.f32.mrb[0].mxu0
      %v2447 = vadd.f32 %v2286, %v2446
      %v2448 = vpop.f32.mrb[0].mxu0
      %v2449 = vpop.f32.mrb[0].mxu0
      %v2450 = vadd.f32 %v2289, %v2449
      %v2451 = vpop.f32.mrb[0].mxu0
      %2452 = vmatprep.mubr.bf16.mxu0 0
      %2453 = vmatmul.mubr.bf16.gmra.mrb[0].mxu0 %v1078
      %v2454 = vpop.f32.mrb[0].mxu0
      %v2455 = vadd.f32 %v2294, %v2454
      %v2456 = vpop.f32.mrb[0].mxu0
      %v2457 = vpop.f32.mrb[0].mxu0
      %v2458 = vadd.f32 %v2297, %v2457
      %v2459 = vpop.f32.mrb[0].mxu0
      %2460 = vmatprep.mubr.bf16.mxu0 0
      %2461 = vmatmul.mubr.bf16.gmra.mrb[0].mxu0 %v1087
      %v2462 = vpop.f32.mrb[0].mxu0
      %v2463 = vadd.f32 %v2302, %v2462
      %v2464 = vpop.f32.mrb[0].mxu0
      %v2465 = vpop.f32.mrb[0].mxu0
      %v2466 = vadd.f32 %v2305, %v2465
      %v2467 = vpop.f32.mrb[0].mxu0
      %2468 = vdwg.mxu0
      %v2469 = vpack.c.bf16 %v2346, %v2343
      %v2470 = vpack.c.bf16 %v2354, %v2351
      %v2471 = vpack.c.bf16 %v2362, %v2359
      %v2472 = vpack.c.bf16 %v2370, %v2367
      %v2473 = vpack.c.bf16 %v2378, %v2375
      %v2474 = vpack.c.bf16 %v2386, %v2383
      %v2475 = vpack.c.bf16 %v2394, %v2391
      %v2476 = vpack.c.bf16 %v2402, %v2399
      %v2477 = vpack.c.bf16 %v2410, %v2407
      %v2478 = vpack.c.bf16 %v2418, %v2415
      %v2479 = vpack.c.bf16 %v2426, %v2423
      %v2480 = vpack.c.bf16 %v2434, %v2431
      %v2481 = vpack.c.bf16 %v2442, %v2439
      %v2482 = vpack.c.bf16 %v2450, %v2447
      %v2483 = vpack.c.bf16 %v2458, %v2455
      %v2484 = vpack.c.bf16 %v2466, %v2463
      %v2501 = vunpack.c.l.b16 %v2469
      %v2502 = vunpack.c.h.b16 %v2469
      %v2503 = vunpack.c.l.b16 %v2470
      %v2504 = vunpack.c.h.b16 %v2470
      %v2505 = vunpack.c.l.b16 %v2471
      %v2506 = vunpack.c.h.b16 %v2471
      %v2507 = vunpack.c.l.b16 %v2472
      %v2508 = vunpack.c.h.b16 %v2472
      %v2509 = vunpack.c.l.b16 %v2473
      %v2510 = vunpack.c.h.b16 %v2473
      %v2511 = vunpack.c.l.b16 %v2474
      %v2512 = vunpack.c.h.b16 %v2474
      %v2513 = vunpack.c.l.b16 %v2475
      %v2514 = vunpack.c.h.b16 %v2475
      %v2515 = vunpack.c.l.b16 %v2476
      %v2516 = vunpack.c.h.b16 %v2476
      %v2517 = vunpack.c.l.b16 %v2477
      %v2518 = vunpack.c.h.b16 %v2477
      %v2519 = vunpack.c.l.b16 %v2478
      %v2520 = vunpack.c.h.b16 %v2478
      %v2521 = vunpack.c.l.b16 %v2479
      %v2522 = vunpack.c.h.b16 %v2479
      %v2523 = vunpack.c.l.b16 %v2480
      %v2524 = vunpack.c.h.b16 %v2480
      %v2525 = vunpack.c.l.b16 %v2481
      %v2526 = vunpack.c.h.b16 %v2481
      %v2527 = vunpack.c.l.b16 %v2482
      %v2528 = vunpack.c.h.b16 %v2482
      %v2529 = vunpack.c.l.b16 %v2483
      %v2530 = vunpack.c.h.b16 %v2483
      %v2531 = vunpack.c.l.b16 %v2484
      %v2532 = vunpack.c.h.b16 %v2484
      %v2533 = vpack.c.b16 %v2501, %v2501
      %v2534 = vpack.c.b16 %v2502, %v2502
      %v2535 = vpack.c.b16 %v2503, %v2503
      %v2536 = vpack.c.b16 %v2504, %v2504
      %v2537 = vpack.c.b16 %v2505, %v2505
      %v2538 = vpack.c.b16 %v2506, %v2506
      %v2539 = vpack.c.b16 %v2507, %v2507
      %v2540 = vpack.c.b16 %v2508, %v2508
      %v2541 = vpack.c.b16 %v2509, %v2509
      %v2542 = vpack.c.b16 %v2510, %v2510
      %v2543 = vpack.c.b16 %v2511, %v2511
      %v2544 = vpack.c.b16 %v2512, %v2512
      %v2545 = vpack.c.b16 %v2513, %v2513
      %v2546 = vpack.c.b16 %v2514, %v2514
      %v2547 = vpack.c.b16 %v2515, %v2515
      %v2548 = vpack.c.b16 %v2516, %v2516
      %v2549 = vpack.c.b16 %v2517, %v2517
      %v2550 = vpack.c.b16 %v2518, %v2518
      %v2551 = vpack.c.b16 %v2519, %v2519
      %v2552 = vpack.c.b16 %v2520, %v2520
      %v2553 = vpack.c.b16 %v2521, %v2521
      %v2554 = vpack.c.b16 %v2522, %v2522
      %v2555 = vpack.c.b16 %v2523, %v2523
      %v2556 = vpack.c.b16 %v2524, %v2524
      %v2557 = vpack.c.b16 %v2525, %v2525
      %v2558 = vpack.c.b16 %v2526, %v2526
      %v2559 = vpack.c.b16 %v2527, %v2527
      %v2560 = vpack.c.b16 %v2528, %v2528
      %v2561 = vpack.c.b16 %v2529, %v2529
      %v2562 = vpack.c.b16 %v2530, %v2530
      %v2563 = vpack.c.b16 %v2531, %v2531
      %v2564 = vpack.c.b16 %v2532, %v2532
      %2597 = vst [vmem:[%s208] sm:$0xf] %v2533
      %2598 = vst [vmem:[%s208 + $0x4] sm:$0xf] %v2534
      %2599 = vst [vmem:[%s208 + $0x8] sm:$0xf] %v2535
      %2600 = vst [vmem:[%s208 + $0xc] sm:$0xf] %v2536
      %2601 = vst [vmem:[%s208 + $0x10] sm:$0xf] %v2537
      %2602 = vst [vmem:[%s208 + $0x14] sm:$0xf] %v2538
      %2603 = vst [vmem:[%s208 + $0x18] sm:$0xf] %v2539
      %2604 = vst [vmem:[%s208 + $0x1c] sm:$0xf] %v2540
      %2605 = vst [vmem:[%s208 + $0x20] sm:$0xf] %v2541
      %2606 = vst [vmem:[%s208 + $0x24] sm:$0xf] %v2542
      %2607 = vst [vmem:[%s208 + $0x28] sm:$0xf] %v2543
      %2608 = vst [vmem:[%s208 + $0x2c] sm:$0xf] %v2544
      %2609 = vst [vmem:[%s208 + $0x30] sm:$0xf] %v2545
      %2610 = vst [vmem:[%s208 + $0x34] sm:$0xf] %v2546
      %2611 = vst [vmem:[%s208 + $0x38] sm:$0xf] %v2547
      %2612 = vst [vmem:[%s208 + $0x3c] sm:$0xf] %v2548
      %2613 = vst [vmem:[%s208 + $0x40] sm:$0xf] %v2549
      %2614 = vst [vmem:[%s208 + $0x44] sm:$0xf] %v2550
      %2615 = vst [vmem:[%s208 + $0x48] sm:$0xf] %v2551
      %2616 = vst [vmem:[%s208 + $0x4c] sm:$0xf] %v2552
      %2617 = vst [vmem:[%s208 + $0x50] sm:$0xf] %v2553
      %2618 = vst [vmem:[%s208 + $0x54] sm:$0xf] %v2554
      %2619 = vst [vmem:[%s208 + $0x58] sm:$0xf] %v2555
      %2620 = vst [vmem:[%s208 + $0x5c] sm:$0xf] %v2556
      %2621 = vst [vmem:[%s208 + $0x60] sm:$0xf] %v2557
      %2622 = vst [vmem:[%s208 + $0x64] sm:$0xf] %v2558
      %2623 = vst [vmem:[%s208 + $0x68] sm:$0xf] %v2559
      %2624 = vst [vmem:[%s208 + $0x6c] sm:$0xf] %v2560
      %2625 = vst [vmem:[%s208 + $0x70] sm:$0xf] %v2561
      %2626 = vst [vmem:[%s208 + $0x74] sm:$0xf] %v2562
      %2627 = vst [vmem:[%s208 + $0x78] sm:$0xf] %v2563
      %2628 = vst [vmem:[%s208 + $0x7c] sm:$0xf] %v2564
      %v2629 = vadd.f32 %v2343, %v2346
      %v2630 = vadd.f32 %v2629, %v2351
      %v2631 = vadd.f32 %v2630, %v2354
      %v2632 = vadd.f32 %v2631, %v2359
      %v2633 = vadd.f32 %v2632, %v2362
      %v2634 = vadd.f32 %v2633, %v2367
      %v2635 = vadd.f32 %v2634, %v2370
      %v2636 = vadd.f32 %v2635, %v2375
      %v2637 = vadd.f32 %v2636, %v2378
      %v2638 = vadd.f32 %v2637, %v2383
      %v2639 = vadd.f32 %v2638, %v2386
      %v2640 = vadd.f32 %v2639, %v2391
      %v2641 = vadd.f32 %v2640, %v2394
      %v2642 = vadd.f32 %v2641, %v2399
      %v2643 = vadd.f32 %v2642, %v2402
      %v2644 = vadd.f32 %v2643, %v2407
      %v2645 = vadd.f32 %v2644, %v2410
      %v2646 = vadd.f32 %v2645, %v2415
      %v2647 = vadd.f32 %v2646, %v2418
      %v2648 = vadd.f32 %v2647, %v2423
      %v2649 = vadd.f32 %v2648, %v2426
      %v2650 = vadd.f32 %v2649, %v2431
      %v2651 = vadd.f32 %v2650, %v2434
      %v2652 = vadd.f32 %v2651, %v2439
      %v2653 = vadd.f32 %v2652, %v2442
      %v2654 = vadd.f32 %v2653, %v2447
      %v2655 = vadd.f32 %v2654, %v2450
      %v2656 = vadd.f32 %v2655, %v2455
      %v2657 = vadd.f32 %v2656, %v2458
      %v2658 = vadd.f32 %v2657, %v2463
      %v2659 = vadd.f32 %v2658, %v2466
      %v2660 = vrot.slane %v2659, 4
      %v2661 = vadd.f32 %v2659, %v2660
      %v2662 = vrot.slane %v2661, 2
      %v2663 = vadd.f32 %v2661, %v2662
      %v2664 = vrot.slane %v2663, 1
      %v2665 = vadd.f32 %v2663, %v2664
      %2666 = vst [vmem:[%s211] sm:$0x1] %v2665
      %v2667 = vmul.f32 %v2343, %v2343
      %v2668 = vmul.f32 %v2346, %v2346
      %v2669 = vmul.f32 %v2351, %v2351
      %v2670 = vmul.f32 %v2354, %v2354
      %v2671 = vmul.f32 %v2359, %v2359
      %v2672 = vmul.f32 %v2362, %v2362
      %v2673 = vmul.f32 %v2367, %v2367
      %v2674 = vmul.f32 %v2370, %v2370
      %v2675 = vmul.f32 %v2375, %v2375
      %v2676 = vmul.f32 %v2378, %v2378
      %v2677 = vmul.f32 %v2383, %v2383
      %v2678 = vmul.f32 %v2386, %v2386
      %v2679 = vmul.f32 %v2391, %v2391
      %v2680 = vmul.f32 %v2394, %v2394
      %v2681 = vmul.f32 %v2399, %v2399
      %v2682 = vmul.f32 %v2402, %v2402
      %v2683 = vmul.f32 %v2407, %v2407
      %v2684 = vmul.f32 %v2410, %v2410
      %v2685 = vmul.f32 %v2415, %v2415
      %v2686 = vmul.f32 %v2418, %v2418
      %v2687 = vmul.f32 %v2423, %v2423
      %v2688 = vmul.f32 %v2426, %v2426
      %v2689 = vmul.f32 %v2431, %v2431
      %v2690 = vmul.f32 %v2434, %v2434
      %v2691 = vmul.f32 %v2439, %v2439
      %v2692 = vmul.f32 %v2442, %v2442
      %v2693 = vmul.f32 %v2447, %v2447
      %v2694 = vmul.f32 %v2450, %v2450
      %v2695 = vmul.f32 %v2455, %v2455
      %v2696 = vmul.f32 %v2458, %v2458
      %v2697 = vmul.f32 %v2463, %v2463
      %v2698 = vmul.f32 %v2466, %v2466
      %v2699 = vadd.f32 %v2667, %v2668
      %v2700 = vadd.f32 %v2699, %v2669
      %v2701 = vadd.f32 %v2700, %v2670
      %v2702 = vadd.f32 %v2701, %v2671
      %v2703 = vadd.f32 %v2702, %v2672
      %v2704 = vadd.f32 %v2703, %v2673
      %v2705 = vadd.f32 %v2704, %v2674
      %v2706 = vadd.f32 %v2705, %v2675
      %v2707 = vadd.f32 %v2706, %v2676
      %v2708 = vadd.f32 %v2707, %v2677
      %v2709 = vadd.f32 %v2708, %v2678
      %v2710 = vadd.f32 %v2709, %v2679
      %v2711 = vadd.f32 %v2710, %v2680
      %v2712 = vadd.f32 %v2711, %v2681
      %v2713 = vadd.f32 %v2712, %v2682
      %v2714 = vadd.f32 %v2713, %v2683
      %v2715 = vadd.f32 %v2714, %v2684
      %v2716 = vadd.f32 %v2715, %v2685
      %v2717 = vadd.f32 %v2716, %v2686
      %v2718 = vadd.f32 %v2717, %v2687
      %v2719 = vadd.f32 %v2718, %v2688
      %v2720 = vadd.f32 %v2719, %v2689
      %v2721 = vadd.f32 %v2720, %v2690
      %v2722 = vadd.f32 %v2721, %v2691
      %v2723 = vadd.f32 %v2722, %v2692
      %v2724 = vadd.f32 %v2723, %v2693
      %v2725 = vadd.f32 %v2724, %v2694
      %v2726 = vadd.f32 %v2725, %v2695
      %v2727 = vadd.f32 %v2726, %v2696
      %v2728 = vadd.f32 %v2727, %v2697
      %v2729 = vadd.f32 %v2728, %v2698
      %v2730 = vrot.slane %v2729, 4
      %v2731 = vadd.f32 %v2729, %v2730
      %v2732 = vrot.slane %v2731, 2
      %v2733 = vadd.f32 %v2731, %v2732
      %v2734 = vrot.slane %v2733, 1
      %v2735 = vadd.f32 %v2733, %v2734
      %2736 = vst [vmem:[%s214] sm:$0x1] %v2735
      %p2737 = scmp.lt.s32.totalorder %s16, 1
      %s2738 = scalar_select %p2737, %s16, 1
      %s2739 = smul.addr %s2738, 32
      %s2740 = smul.addr %s2739, 4
      %s2741 = scalar_lea.vmem %s2, %s2740
      %p2742 = scmp.lt.s32.totalorder %s16, 1
      %s2743 = scalar_select %p2742, %s16, 1
      %s2744 = scalar_lea.vmem %s3, %s2743
      %p2745 = scmp.lt.s32.totalorder %s16, 1
      %s2746 = scalar_select %p2745, %s16, 1
      %s2747 = scalar_lea.vmem %s4, %s2746
      // Predicated region
      $region29: #{residual_maxi_block_nchw.9} parent=27 // pred_check
        %p2748 = pneg %p81
      $region30: #{residual_maxi_block_nchw.9} parent=27 // pred_check_branch
        %2750 = sbr.rel (%p2748) target = $region32
      $region31: #{residual_maxi_block_nchw.9} parent=27 // pred_region
        _
      $region32: #{residual_maxi_block_nchw.9} parent=27 // pred_fallthru
        _
      // Predicated region
      $region33: #{residual_maxi_block_nchw.9} parent=27 // pred_check
        %p2751 = pneg %p107
      $region34: #{residual_maxi_block_nchw.9} parent=27 // pred_check_branch
        %2753 = sbr.rel (%p2751) target = $region36
      $region35: #{residual_maxi_block_nchw.9} parent=27 // pred_region
        _
      $region36: #{residual_maxi_block_nchw.9} parent=27 // pred_fallthru
        _
      // Predicated region
      $region37: #{residual_maxi_block_nchw.9} parent=27 // pred_check
        %p2754 = pneg %p133
      $region38: #{residual_maxi_block_nchw.9} parent=27 // pred_check_branch
        %2756 = sbr.rel (%p2754) target = $region40
      $region39: #{residual_maxi_block_nchw.9} parent=27 // pred_region
        _
      $region40: #{residual_maxi_block_nchw.9} parent=27 // pred_fallthru
        _
    $region28: #{residual_maxi_block_nchw.9} parent=5 // pred_fallthru
      _
    %p2757 = scmp.le.s32.totalorder 2, %s11
    // Predicated region
    $region41: #{residual_maxi_block_nchw.9} parent=5 // pred_check
      %p2758 = pneg %p2757
    $region42: #{residual_maxi_block_nchw.9} parent=5 // pred_check_branch
      %2760 = sbr.rel (%p2758) target = $region44
    $region43: #{residual_maxi_block_nchw.9} parent=5 // pred_region
      %s2761 = ssub.s32 %s11, 2
      // Predicated region
      $region45: #{residual_maxi_block_nchw.9} parent=43 // pred_check
        %p2762 = pneg %p87
      $region46: #{residual_maxi_block_nchw.9} parent=43 // pred_check_branch
        %2764 = sbr.rel (%p2762) target = $region48
      $region47: #{residual_maxi_block_nchw.9} parent=43 // pred_region
        %p2765 = scmp.lt.s32.totalorder %s17, 1
        %s2766 = scalar_select %p2765, %s17, 1
        %s2767 = smul.addr %s2766, 32
        %s2768 = smul.addr %s2767, 4
        %s2769 = scalar_lea.vmem %s2, %s2768
      $region48: #{residual_maxi_block_nchw.9} parent=43 // pred_fallthru
        _
      // Predicated region
      $region49: #{residual_maxi_block_nchw.9} parent=43 // pred_check
        %p2770 = pneg %p113
      $region50: #{residual_maxi_block_nchw.9} parent=43 // pred_check_branch
        %2772 = sbr.rel (%p2770) target = $region52
      $region51: #{residual_maxi_block_nchw.9} parent=43 // pred_region
        %p2773 = scmp.lt.s32.totalorder %s17, 1
        %s2774 = scalar_select %p2773, %s17, 1
        %s2775 = scalar_lea.vmem %s3, %s2774
      $region52: #{residual_maxi_block_nchw.9} parent=43 // pred_fallthru
        _
      // Predicated region
      $region53: #{residual_maxi_block_nchw.9} parent=43 // pred_check
        %p2776 = pneg %p139
      $region54: #{residual_maxi_block_nchw.9} parent=43 // pred_check_branch
        %2778 = sbr.rel (%p2776) target = $region56
      $region55: #{residual_maxi_block_nchw.9} parent=43 // pred_region
        %p2779 = scmp.lt.s32.totalorder %s17, 1
        %s2780 = scalar_select %p2779, %s17, 1
        %s2781 = scalar_lea.vmem %s4, %s2780
      $region56: #{residual_maxi_block_nchw.9} parent=43 // pred_fallthru
        _
    $region44: #{residual_maxi_block_nchw.9} parent=5 // pred_fallthru
      _
  $region6: #{residual_maxi_block_nchw.9} parent=0 // loop_footer
    %s15 = sadd.s32 1, %s11
  $region7: #{residual_maxi_block_nchw.9} parent=0 // loop_footer_branch
    %10 = sbr.rel target = $region3
  $region8: #{residual_maxi_block_nchw.9} parent=0 // loop_exit
    _

// kernel: residual_maxi_block_nchw.10
$region0: #{residual_maxi_block_nchw.10}
  #allocation0 [shape = 'u32[]', space=smem, size = 0x4, offset = 0x4, fixed_abs, tag = 'smem constant byte address 0x4 - core index']
  #allocation1 [shape = 'u32[144,128]{1,0:T(1,128)}', space=vmem, size = 0x12000, scoped, tag = 'internal scratch']
  #allocation2 [shape = 'f32[18,18,128]{2,1,0:T(8,128)}', space=vmem, size = 0x36000, scoped, tag = 'scratch operand']
  #allocation3 [shape = 'bf16[256,1152]{1,0:T(16,128)(2,1)}', space=vmem, size = 0x90000, scoped, tag = 'scratch operand']
  %s0 = inlined_call_operand.vmem [shape: bf16[2,16,16,128], index: 0, kind: input, shape index: {}]
  %s1 = inlined_call_operand.vmem [shape: bf16[1152,128], index: 1, kind: input, shape index: {}]
  %s2 = inlined_call_operand.vmem [shape: f32[1,128], index: 2, kind: input, shape index: {}]
  %s3 = inlined_call_operand.vmem [shape: f32[1,128], index: 3, kind: input, shape index: {}]
  %s4 = inlined_call_operand.vmem [shape: bf16[2,16,16,128], index: 4, kind: output, shape index: {0}]
  %s5 = inlined_call_operand.vmem [shape: f32[2,1,128], index: 5, kind: output, shape index: {1}]
  %s6 = inlined_call_operand.vmem [shape: f32[2,1,128], index: 6, kind: output, shape index: {2}]
  %7 = xla_tuple %s4, %s5, %s6
  %s8 = sld [smem:[#allocation0]]
  $region65: #{residual_maxi_block_nchw.10} parent=0
    _
  %s10 = ssub.s32 1, %s8
  %s11 = scalar_select 0, %s10, %s8
  loop: start=0, step=1, limit=4
  $region2: #{residual_maxi_block_nchw.10} parent=0 // loop_pre_header
    _
  $region3: #{residual_maxi_block_nchw.10} parent=0 // loop_header
    %s13 = sphi 0, %s17
    %p14 = scmp.ge.s32.totalorder %s13, 4
    %s23 = sphi 0, %s25
    %s26 = sphi 0, %s23
    %s27 = sphi 0, %s26
    %s43 = sphi 0, %s27
    %s47 = sphi 0, %s47
    %s49 = sphi 0, %s47
    %s50 = sphi 0, %s49
    %s64 = sphi 0, %s50
    %s68 = sphi 0, %s68
    %s70 = sphi 0, %s68
    %s71 = sphi 0, %s70
    %s85 = sphi 0, %s71
    %s89 = sphi 0, %s89
    %s91 = sphi 0, %s89
    %s92 = sphi 0, %s91
    %s106 = sphi 0, %s92
    %s112 = sphi 0, %s114
    %s115 = sphi 0, %s112
    %s116 = sphi 0, %s115
    %s132 = sphi 0, %s116
    %s138 = sphi 0, %s140
    %s141 = sphi 0, %s138
    %s142 = sphi 0, %s141
    %s158 = sphi 0, %s142
    %s164 = sphi 0, %s166
    %s167 = sphi 0, %s164
    %s168 = sphi 0, %s167
    %s184 = sphi 0, %s168
  $region4: #{residual_maxi_block_nchw.10} parent=0 // loop_header_branch
    %16 = sbr.rel (%p14) target = $region8
  $region5: #{residual_maxi_block_nchw.10} parent=0 // loop_body
    %s18 = ssub.s32 %s13, 1
    %s19 = ssub.s32 %s13, 2
    %s20 = sadd.s32 %s13, 1
    %s21 = ssub.s32 %s13, %s20
    %p22 = scmp.eq.s32.totalorder %s21, 0
    %s24 = sadd.s32 %s23, 1
    %s25 = scalar_select %p22, %s23, %s24
    %p28 = pneg %p22
    %p29 = scmp.eq.s32.totalorder %s13, 1
    %p30 = por %p28, %p29
    %p31 = scmp.ne.s32.totalorder %s23, %s26
    %p32 = scmp.eq.s32.totalorder %s13, 0
    %p33 = por %p31, %p32
    %p34 = scmp.ne.s32.totalorder %s23, %s26
    %p35 = scmp.eq.s32.totalorder %s18, 1
    %p36 = por %p34, %p35
    %p37 = scmp.ne.s32.totalorder %s26, %s27
    %p38 = scmp.eq.s32.totalorder %s18, 0
    %p39 = por %p37, %p38
    %p40 = scmp.ne.s32.totalorder %s26, %s27
    %p41 = scmp.eq.s32.totalorder %s19, 1
    %p42 = por %p40, %p41
    %p44 = scmp.ne.s32.totalorder %s27, %s43
    %p45 = scmp.eq.s32.totalorder %s19, 0
    %p46 = por %p44, %p45
    %s48 = sadd.s32 %s47, 1
    %p51 = scmp.eq.s32.totalorder %s13, 1
    %p52 = scmp.ne.s32.totalorder %s47, %s49
    %p53 = scmp.eq.s32.totalorder %s13, 0
    %p54 = por %p52, %p53
    %p55 = scmp.ne.s32.totalorder %s47, %s49
    %p56 = scmp.eq.s32.totalorder %s18, 1
    %p57 = por %p55, %p56
    %p58 = scmp.ne.s32.totalorder %s49, %s50
    %p59 = scmp.eq.s32.totalorder %s18, 0
    %p60 = por %p58, %p59
    %p61 = scmp.ne.s32.totalorder %s49, %s50
    %p62 = scmp.eq.s32.totalorder %s19, 1
    %p63 = por %p61, %p62
    %p65 = scmp.ne.s32.totalorder %s50, %s64
    %p66 = scmp.eq.s32.totalorder %s19, 0
    %p67 = por %p65, %p66
    %s69 = sadd.s32 %s68, 1
    %p72 = scmp.eq.s32.totalorder %s13, 1
    %p73 = scmp.ne.s32.totalorder %s68, %s70
    %p74 = scmp.eq.s32.totalorder %s13, 0
    %p75 = por %p73, %p74
    %p76 = scmp.ne.s32.totalorder %s68, %s70
    %p77 = scmp.eq.s32.totalorder %s18, 1
    %p78 = por %p76, %p77
    %p79 = scmp.ne.s32.totalorder %s70, %s71
    %p80 = scmp.eq.s32.totalorder %s18, 0
    %p81 = por %p79, %p80
    %p82 = scmp.ne.s32.totalorder %s70, %s71
    %p83 = scmp.eq.s32.totalorder %s19, 1
    %p84 = por %p82, %p83
    %p86 = scmp.ne.s32.totalorder %s71, %s85
    %p87 = scmp.eq.s32.totalorder %s19, 0
    %p88 = por %p86, %p87
    %s90 = sadd.s32 %s89, 1
    %p93 = scmp.eq.s32.totalorder %s13, 1
    %p94 = scmp.ne.s32.totalorder %s89, %s91
    %p95 = scmp.eq.s32.totalorder %s13, 0
    %p96 = por %p94, %p95
    %p97 = scmp.ne.s32.totalorder %s89, %s91
    %p98 = scmp.eq.s32.totalorder %s18, 1
    %p99 = por %p97, %p98
    %p100 = scmp.ne.s32.totalorder %s91, %s92
    %p101 = scmp.eq.s32.totalorder %s18, 0
    %p102 = por %p100, %p101
    %p103 = scmp.ne.s32.totalorder %s91, %s92
    %p104 = scmp.eq.s32.totalorder %s19, 1
    %p105 = por %p103, %p104
    %p107 = scmp.ne.s32.totalorder %s92, %s106
    %p108 = scmp.eq.s32.totalorder %s19, 0
    %p109 = por %p107, %p108
    %s110 = ssub.s32 %s13, %s20
    %p111 = scmp.eq.s32.totalorder %s110, 0
    %s113 = sadd.s32 %s112, 1
    %s114 = scalar_select %p111, %s112, %s113
    %p117 = pneg %p111
    %p118 = scmp.eq.s32.totalorder %s13, 1
    %p119 = por %p117, %p118
    %p120 = scmp.ne.s32.totalorder %s112, %s115
    %p121 = scmp.eq.s32.totalorder %s13, 0
    %p122 = por %p120, %p121
    %p123 = scmp.ne.s32.totalorder %s112, %s115
    %p124 = scmp.eq.s32.totalorder %s18, 1
    %p125 = por %p123, %p124
    %p126 = scmp.ne.s32.totalorder %s115, %s116
    %p127 = scmp.eq.s32.totalorder %s18, 0
    %p128 = por %p126, %p127
    %p129 = scmp.ne.s32.totalorder %s115, %s116
    %p130 = scmp.eq.s32.totalorder %s19, 1
    %p131 = por %p129, %p130
    %p133 = scmp.ne.s32.totalorder %s116, %s132
    %p134 = scmp.eq.s32.totalorder %s19, 0
    %p135 = por %p133, %p134
    %s136 = ssub.s32 %s13, %s20
    %p137 = scmp.eq.s32.totalorder %s136, 0
    %s139 = sadd.s32 %s138, 1
    %s140 = scalar_select %p137, %s138, %s139
    %p143 = pneg %p137
    %p144 = scmp.eq.s32.totalorder %s13, 1
    %p145 = por %p143, %p144
    %p146 = scmp.ne.s32.totalorder %s138, %s141
    %p147 = scmp.eq.s32.totalorder %s13, 0
    %p148 = por %p146, %p147
    %p149 = scmp.ne.s32.totalorder %s138, %s141
    %p150 = scmp.eq.s32.totalorder %s18, 1
    %p151 = por %p149, %p150
    %p152 = scmp.ne.s32.totalorder %s141, %s142
    %p153 = scmp.eq.s32.totalorder %s18, 0
    %p154 = por %p152, %p153
    %p155 = scmp.ne.s32.totalorder %s141, %s142
    %p156 = scmp.eq.s32.totalorder %s19, 1
    %p157 = por %p155, %p156
    %p159 = scmp.ne.s32.totalorder %s142, %s158
    %p160 = scmp.eq.s32.totalorder %s19, 0
    %p161 = por %p159, %p160
    %s162 = ssub.s32 %s13, %s20
    %p163 = scmp.eq.s32.totalorder %s162, 0
    %s165 = sadd.s32 %s164, 1
    %s166 = scalar_select %p163, %s164, %s165
    %p169 = pneg %p163
    %p170 = scmp.eq.s32.totalorder %s13, 1
    %p171 = por %p169, %p170
    %p172 = scmp.ne.s32.totalorder %s164, %s167
    %p173 = scmp.eq.s32.totalorder %s13, 0
    %p174 = por %p172, %p173
    %p175 = scmp.ne.s32.totalorder %s164, %s167
    %p176 = scmp.eq.s32.totalorder %s18, 1
    %p177 = por %p175, %p176
    %p178 = scmp.ne.s32.totalorder %s167, %s168
    %p179 = scmp.eq.s32.totalorder %s18, 0
    %p180 = por %p178, %p179
    %p181 = scmp.ne.s32.totalorder %s167, %s168
    %p182 = scmp.eq.s32.totalorder %s19, 1
    %p183 = por %p181, %p182
    %p185 = scmp.ne.s32.totalorder %s168, %s184
    %p186 = scmp.eq.s32.totalorder %s19, 0
    %p187 = por %p185, %p186
    %p188 = scmp.le.s32.totalorder 1, %s13
    %p189 = scmp.lt.s32.totalorder %s13, 3
    %p190 = pnand %p188, %p189
    %p191 = pneg %p190
    // Predicated region
    $region9: #{residual_maxi_block_nchw.10} parent=5 // pred_check
      _
    $region10: #{residual_maxi_block_nchw.10} parent=5 // pred_check_branch
      %193 = sbr.rel (%p190) target = $region12
    $region11: #{residual_maxi_block_nchw.10} parent=5 // pred_region
      %s194 = ssub.s32 %s13, 1
      // Predicated region
      $region13: #{residual_maxi_block_nchw.10} parent=11 // pred_check
        %p195 = pneg %p60
      $region14: #{residual_maxi_block_nchw.10} parent=11 // pred_check_branch
        %197 = sbr.rel (%p195) target = $region16
      $region15: #{residual_maxi_block_nchw.10} parent=11 // pred_region
        _
      $region16: #{residual_maxi_block_nchw.10} parent=11 // pred_fallthru
        _
      // Predicated region
      $region17: #{residual_maxi_block_nchw.10} parent=11 // pred_check
        %p198 = pneg %p81
      $region18: #{residual_maxi_block_nchw.10} parent=11 // pred_check_branch
        %200 = sbr.rel (%p198) target = $region20
      $region19: #{residual_maxi_block_nchw.10} parent=11 // pred_region
        _
      $region20: #{residual_maxi_block_nchw.10} parent=11 // pred_fallthru
        _
      // Predicated region
      $region21: #{residual_maxi_block_nchw.10} parent=11 // pred_check
        %p201 = pneg %p102
      $region22: #{residual_maxi_block_nchw.10} parent=11 // pred_check_branch
        %203 = sbr.rel (%p201) target = $region24
      $region23: #{residual_maxi_block_nchw.10} parent=11 // pred_region
        _
      $region24: #{residual_maxi_block_nchw.10} parent=11 // pred_fallthru
        _
    $region12: #{residual_maxi_block_nchw.10} parent=5 // pred_fallthru
      _
    %p204 = scmp.lt.s32.totalorder %s13, 2
    // Predicated region
    $region25: #{residual_maxi_block_nchw.10} parent=5 // pred_check
      %p205 = pneg %p204
    $region26: #{residual_maxi_block_nchw.10} parent=5 // pred_check_branch
      %207 = sbr.rel (%p205) target = $region28
    $region27: #{residual_maxi_block_nchw.10} parent=5 // pred_region
      // Predicated region
      $region29: #{residual_maxi_block_nchw.10} parent=27 // pred_check
        %p208 = pneg %p33
      $region30: #{residual_maxi_block_nchw.10} parent=27 // pred_check_branch
        %210 = sbr.rel (%p208) target = $region32
      $region31: #{residual_maxi_block_nchw.10} parent=27 // pred_region
        %p211 = scmp.lt.s32.totalorder %s13, 1
        %s212 = scalar_select %p211, %s13, 1
        %s213 = smul.addr %s212, 32
        %s214 = smul.addr %s213, 4
        %s215 = scalar_lea.vmem %s0, %s214
      $region32: #{residual_maxi_block_nchw.10} parent=27 // pred_fallthru
        _
    $region28: #{residual_maxi_block_nchw.10} parent=5 // pred_fallthru
      _
    %p216 = scmp.le.s32.totalorder 1, %s13
    %p217 = scmp.lt.s32.totalorder %s13, 3
    %p218 = pnand %p216, %p217
    %p219 = pneg %p218
    // Predicated region
    $region33: #{residual_maxi_block_nchw.10} parent=5 // pred_check
      _
    $region34: #{residual_maxi_block_nchw.10} parent=5 // pred_check_branch
      %221 = sbr.rel (%p218) target = $region36
    $region35: #{residual_maxi_block_nchw.10} parent=5 // pred_region
      %s222 = ssub.s32 %s13, 1
      %p223 = scmp.lt.s32.totalorder %s18, 1
      %s224 = scalar_select %p223, %s18, 1
      %s225 = smul.addr %s224, 32
      %s226 = smul.addr %s225, 4
      %s227 = scalar_lea.vmem %s0, %s226
      %p228 = pneg %p39
      %p229 = pneg %p36
      %p230 = pneg %p60
      %p231 = pneg %p57
      %p232 = pneg %p81
      %p233 = pneg %p78
      %p234 = pneg %p102
      %p235 = pneg %p99
      %p236 = pneg %p128
      %p237 = pneg %p125
      %p238 = scmp.lt.s32.totalorder %s18, 1
      %s239 = scalar_select %p238, %s18, 1
      %s240 = smul.addr %s239, 32
      %s241 = smul.addr %s240, 4
      %s242 = scalar_lea.vmem %s4, %s241
      %p243 = pneg %p154
      %p244 = pneg %p151
      %p245 = scmp.lt.s32.totalorder %s18, 1
      %s246 = scalar_select %p245, %s18, 1
      %s247 = scalar_lea.vmem %s5, %s246
      %p248 = pneg %p180
      %p249 = pneg %p177
      %p250 = scmp.lt.s32.totalorder %s18, 1
      %s251 = scalar_select %p250, %s18, 1
      %s252 = scalar_lea.vmem %s6, %s251
      %p253 = scmp.lt.s32.totalorder %s18, 1
      %s254 = scalar_select %p253, %s18, 1
      %s255 = smul.addr %s254, 32
      %s256 = smul.addr %s255, 4
      %s257 = scalar_lea.vmem %s0, %s256
      %p258 = scmp.lt.s32.totalorder %s18, 1
      %s259 = scalar_select %p258, %s18, 1
      %s260 = smul.addr %s259, 32
      %s261 = smul.addr %s260, 4
      %s262 = scalar_lea.vmem %s4, %s261
      %p263 = scmp.lt.s32.totalorder %s18, 1
      %s264 = scalar_select %p263, %s18, 1
      %s265 = scalar_lea.vmem %s5, %s264
      %p266 = scmp.lt.s32.totalorder %s18, 1
      %s267 = scalar_select %p266, %s18, 1
      %s268 = scalar_lea.vmem %s6, %s267
      %v270 = vld [vmem:[%s257] sm:$0xf]
      %v271 = vld [vmem:[%s257 + $0x4] sm:$0xf]
      %v272 = vld [vmem:[%s257 + $0x8] sm:$0xf]
      %v273 = vld [vmem:[%s257 + $0xc] sm:$0xf]
      %v274 = vld [vmem:[%s257 + $0x10] sm:$0xf]
      %v275 = vld [vmem:[%s257 + $0x14] sm:$0xf]
      %v276 = vld [vmem:[%s257 + $0x18] sm:$0xf]
      %v277 = vld [vmem:[%s257 + $0x1c] sm:$0xf]
      %v278 = vld [vmem:[%s257 + $0x20] sm:$0xf]
      %v279 = vld [vmem:[%s257 + $0x24] sm:$0xf]
      %v280 = vld [vmem:[%s257 + $0x28] sm:$0xf]
      %v281 = vld [vmem:[%s257 + $0x2c] sm:$0xf]
      %v282 = vld [vmem:[%s257 + $0x30] sm:$0xf]
      %v283 = vld [vmem:[%s257 + $0x34] sm:$0xf]
      %v284 = vld [vmem:[%s257 + $0x38] sm:$0xf]
      %v285 = vld [vmem:[%s257 + $0x3c] sm:$0xf]
      %v286 = vld [vmem:[%s257 + $0x40] sm:$0xf]
      %v287 = vld [vmem:[%s257 + $0x44] sm:$0xf]
      %v288 = vld [vmem:[%s257 + $0x48] sm:$0xf]
      %v289 = vld [vmem:[%s257 + $0x4c] sm:$0xf]
      %v290 = vld [vmem:[%s257 + $0x50] sm:$0xf]
      %v291 = vld [vmem:[%s257 + $0x54] sm:$0xf]
      %v292 = vld [vmem:[%s257 + $0x58] sm:$0xf]
      %v293 = vld [vmem:[%s257 + $0x5c] sm:$0xf]
      %v294 = vld [vmem:[%s257 + $0x60] sm:$0xf]
      %v295 = vld [vmem:[%s257 + $0x64] sm:$0xf]
      %v296 = vld [vmem:[%s257 + $0x68] sm:$0xf]
      %v297 = vld [vmem:[%s257 + $0x6c] sm:$0xf]
      %v298 = vld [vmem:[%s257 + $0x70] sm:$0xf]
      %v299 = vld [vmem:[%s257 + $0x74] sm:$0xf]
      %v300 = vld [vmem:[%s257 + $0x78] sm:$0xf]
      %v301 = vld [vmem:[%s257 + $0x7c] sm:$0xf]
      %v302 = vunpack.c.l.bf16 %v270
      %v303 = vunpack.c.l.bf16 %v271
      %v304 = vunpack.c.l.bf16 %v272
      %v305 = vunpack.c.l.bf16 %v273
      %v306 = vunpack.c.l.bf16 %v274
      %v307 = vunpack.c.l.bf16 %v275
      %v308 = vunpack.c.l.bf16 %v276
      %v309 = vunpack.c.l.bf16 %v277
      %v310 = vunpack.c.l.bf16 %v278
      %v311 = vunpack.c.l.bf16 %v279
      %v312 = vunpack.c.l.bf16 %v280
      %v313 = vunpack.c.l.bf16 %v281
      %v314 = vunpack.c.l.bf16 %v282
      %v315 = vunpack.c.l.bf16 %v283
      %v316 = vunpack.c.l.bf16 %v284
      %v317 = vunpack.c.l.bf16 %v285
      %v318 = vunpack.c.l.bf16 %v286
      %v319 = vunpack.c.l.bf16 %v287
      %v320 = vunpack.c.l.bf16 %v288
      %v321 = vunpack.c.l.bf16 %v289
      %v322 = vunpack.c.l.bf16 %v290
      %v323 = vunpack.c.l.bf16 %v291
      %v324 = vunpack.c.l.bf16 %v292
      %v325 = vunpack.c.l.bf16 %v293
      %v326 = vunpack.c.l.bf16 %v294
      %v327 = vunpack.c.l.bf16 %v295
      %v328 = vunpack.c.l.bf16 %v296
      %v329 = vunpack.c.l.bf16 %v297
      %v330 = vunpack.c.l.bf16 %v298
      %v331 = vunpack.c.l.bf16 %v299
      %v332 = vunpack.c.l.bf16 %v300
      %v333 = vunpack.c.l.bf16 %v301
      %v334 = vld [vmem:[%s2] sm:$0x1]
      %v336 = vlaneseq
      %v337 = vshrl.u32 %v336, 7
      %v338 = vsub.s32 0, %v337
      %v339 = vrot.slane %v334, %v338
      %v341 = vmul.f32 %v302, %v339
      %v342 = vmul.f32 %v303, %v339
      %v343 = vmul.f32 %v304, %v339
      %v344 = vmul.f32 %v305, %v339
      %v345 = vmul.f32 %v306, %v339
      %v346 = vmul.f32 %v307, %v339
      %v347 = vmul.f32 %v308, %v339
      %v348 = vmul.f32 %v309, %v339
      %v349 = vmul.f32 %v310, %v339
      %v350 = vmul.f32 %v311, %v339
      %v351 = vmul.f32 %v312, %v339
      %v352 = vmul.f32 %v313, %v339
      %v353 = vmul.f32 %v314, %v339
      %v354 = vmul.f32 %v315, %v339
      %v355 = vmul.f32 %v316, %v339
      %v356 = vmul.f32 %v317, %v339
      %v357 = vmul.f32 %v318, %v339
      %v358 = vmul.f32 %v319, %v339
      %v359 = vmul.f32 %v320, %v339
      %v360 = vmul.f32 %v321, %v339
      %v361 = vmul.f32 %v322, %v339
      %v362 = vmul.f32 %v323, %v339
      %v363 = vmul.f32 %v324, %v339
      %v364 = vmul.f32 %v325, %v339
      %v365 = vmul.f32 %v326, %v339
      %v366 = vmul.f32 %v327, %v339
      %v367 = vmul.f32 %v328, %v339
      %v368 = vmul.f32 %v329, %v339
      %v369 = vmul.f32 %v330, %v339
      %v370 = vmul.f32 %v331, %v339
      %v371 = vmul.f32 %v332, %v339
      %v372 = vmul.f32 %v333, %v339
      %v373 = vld [vmem:[%s3] sm:$0x1]
      %v375 = vlaneseq
      %v376 = vshrl.u32 %v375, 7
      %v377 = vsub.s32 0, %v376
      %v378 = vrot.slane %v373, %v377
      %v380 = vadd.f32 %v341, %v378
      %v381 = vadd.f32 %v342, %v378
      %v382 = vadd.f32 %v343, %v378
      %v383 = vadd.f32 %v344, %v378
      %v384 = vadd.f32 %v345, %v378
      %v385 = vadd.f32 %v346, %v378
      %v386 = vadd.f32 %v347, %v378
      %v387 = vadd.f32 %v348, %v378
      %v388 = vadd.f32 %v349, %v378
      %v389 = vadd.f32 %v350, %v378
      %v390 = vadd.f32 %v351, %v378
      %v391 = vadd.f32 %v352, %v378
      %v392 = vadd.f32 %v353, %v378
      %v393 = vadd.f32 %v354, %v378
      %v394 = vadd.f32 %v355, %v378
      %v395 = vadd.f32 %v356, %v378
      %v396 = vadd.f32 %v357, %v378
      %v397 = vadd.f32 %v358, %v378
      %v398 = vadd.f32 %v359, %v378
      %v399 = vadd.f32 %v360, %v378
      %v400 = vadd.f32 %v361, %v378
      %v401 = vadd.f32 %v362, %v378
      %v402 = vadd.f32 %v363, %v378
      %v403 = vadd.f32 %v364, %v378
      %v404 = vadd.f32 %v365, %v378
      %v405 = vadd.f32 %v366, %v378
      %v406 = vadd.f32 %v367, %v378
      %v407 = vadd.f32 %v368, %v378
      %v408 = vadd.f32 %v369, %v378
      %v409 = vadd.f32 %v370, %v378
      %v410 = vadd.f32 %v371, %v378
      %v411 = vadd.f32 %v372, %v378
      %v412 = vmax.f32 %v380, 0.0
      %v413 = vmax.f32 %v381, 0.0
      %v414 = vmax.f32 %v382, 0.0
      %v415 = vmax.f32 %v383, 0.0
      %v416 = vmax.f32 %v384, 0.0
      %v417 = vmax.f32 %v385, 0.0
      %v418 = vmax.f32 %v386, 0.0
      %v419 = vmax.f32 %v387, 0.0
      %v420 = vmax.f32 %v388, 0.0
      %v421 = vmax.f32 %v389, 0.0
      %v422 = vmax.f32 %v390, 0.0
      %v423 = vmax.f32 %v391, 0.0
      %v424 = vmax.f32 %v392, 0.0
      %v425 = vmax.f32 %v393, 0.0
      %v426 = vmax.f32 %v394, 0.0
      %v427 = vmax.f32 %v395, 0.0
      %v428 = vmax.f32 %v396, 0.0
      %v429 = vmax.f32 %v397, 0.0
      %v430 = vmax.f32 %v398, 0.0
      %v431 = vmax.f32 %v399, 0.0
      %v432 = vmax.f32 %v400, 0.0
      %v433 = vmax.f32 %v401, 0.0
      %v434 = vmax.f32 %v402, 0.0
      %v435 = vmax.f32 %v403, 0.0
      %v436 = vmax.f32 %v404, 0.0
      %v437 = vmax.f32 %v405, 0.0
      %v438 = vmax.f32 %v406, 0.0
      %v439 = vmax.f32 %v407, 0.0
      %v440 = vmax.f32 %v408, 0.0
      %v441 = vmax.f32 %v409, 0.0
      %v442 = vmax.f32 %v410, 0.0
      %v443 = vmax.f32 %v411, 0.0
      %444 = vst [vmem:[#allocation2] sm:$0xff] 0.0
      %445 = vst [vmem:[#allocation2 + $0x8] sm:$0xff] 0.0
      %446 = vst [vmem:[#allocation2 + $0x10] sm:$0x3] 0.0
      %447 = vst [vmem:[#allocation2 + $0x18] sm:$0xff] 0.0
      %448 = vst [vmem:[#allocation2 + $0x20] sm:$0xff] 0.0
      %449 = vst [vmem:[#allocation2 + $0x28] sm:$0x3] 0.0
      %450 = vst [vmem:[#allocation2 + $0x30] sm:$0xff] 0.0
      %451 = vst [vmem:[#allocation2 + $0x38] sm:$0xff] 0.0
      %452 = vst [vmem:[#allocation2 + $0x40] sm:$0x3] 0.0
      %453 = vst [vmem:[#allocation2 + $0x48] sm:$0xff] 0.0
      %454 = vst [vmem:[#allocation2 + $0x50] sm:$0xff] 0.0
      %455 = vst [vmem:[#allocation2 + $0x58] sm:$0x3] 0.0
      %456 = vst [vmem:[#allocation2 + $0x60] sm:$0xff] 0.0
      %457 = vst [vmem:[#allocation2 + $0x68] sm:$0xff] 0.0
      %458 = vst [vmem:[#allocation2 + $0x70] sm:$0x3] 0.0
      %459 = vst [vmem:[#allocation2 + $0x78] sm:$0xff] 0.0
      %460 = vst [vmem:[#allocation2 + $0x80] sm:$0xff] 0.0
      %461 = vst [vmem:[#allocation2 + $0x88] sm:$0x3] 0.0
      %462 = vst [vmem:[#allocation2 + $0x90] sm:$0xff] 0.0
      %463 = vst [vmem:[#allocation2 + $0x98] sm:$0xff] 0.0
      %464 = vst [vmem:[#allocation2 + $0xa0] sm:$0x3] 0.0
      %465 = vst [vmem:[#allocation2 + $0xa8] sm:$0xff] 0.0
      %466 = vst [vmem:[#allocation2 + $0xb0] sm:$0xff] 0.0
      %467 = vst [vmem:[#allocation2 + $0xb8] sm:$0x3] 0.0
      %468 = vst [vmem:[#allocation2 + $0xc0] sm:$0xff] 0.0
      %469 = vst [vmem:[#allocation2 + $0xc8] sm:$0xff] 0.0
      %470 = vst [vmem:[#allocation2 + $0xd0] sm:$0x3] 0.0
      %471 = vst [vmem:[#allocation2 + $0xd8] sm:$0xff] 0.0
      %472 = vst [vmem:[#allocation2 + $0xe0] sm:$0xff] 0.0
      %473 = vst [vmem:[#allocation2 + $0xe8] sm:$0x3] 0.0
      %474 = vst [vmem:[#allocation2 + $0xf0] sm:$0xff] 0.0
      %475 = vst [vmem:[#allocation2 + $0xf8] sm:$0xff] 0.0
      %476 = vst [vmem:[#allocation2 + $0x100] sm:$0x3] 0.0
      %477 = vst [vmem:[#allocation2 + $0x108] sm:$0xff] 0.0
      %478 = vst [vmem:[#allocation2 + $0x110] sm:$0xff] 0.0
      %479 = vst [vmem:[#allocation2 + $0x118] sm:$0x3] 0.0
      %480 = vst [vmem:[#allocation2 + $0x120] sm:$0xff] 0.0
      %481 = vst [vmem:[#allocation2 + $0x128] sm:$0xff] 0.0
      %482 = vst [vmem:[#allocation2 + $0x130] sm:$0x3] 0.0
      %483 = vst [vmem:[#allocation2 + $0x138] sm:$0xff] 0.0
      %484 = vst [vmem:[#allocation2 + $0x140] sm:$0xff] 0.0
      %485 = vst [vmem:[#allocation2 + $0x148] sm:$0x3] 0.0
      %486 = vst [vmem:[#allocation2 + $0x150] sm:$0xff] 0.0
      %487 = vst [vmem:[#allocation2 + $0x158] sm:$0xff] 0.0
      %488 = vst [vmem:[#allocation2 + $0x160] sm:$0x3] 0.0
      %489 = vst [vmem:[#allocation2 + $0x168] sm:$0xff] 0.0
      %490 = vst [vmem:[#allocation2 + $0x170] sm:$0xff] 0.0
      %491 = vst [vmem:[#allocation2 + $0x178] sm:$0x3] 0.0
      %492 = vst [vmem:[#allocation2 + $0x180] sm:$0xff] 0.0
      %493 = vst [vmem:[#allocation2 + $0x188] sm:$0xff] 0.0
      %494 = vst [vmem:[#allocation2 + $0x190] sm:$0x3] 0.0
      %495 = vst [vmem:[#allocation2 + $0x198] sm:$0xff] 0.0
      %496 = vst [vmem:[#allocation2 + $0x1a0] sm:$0xff] 0.0
      %497 = vst [vmem:[#allocation2 + $0x1a8] sm:$0x3] 0.0
      %s498 = scalar_lea.vmem [#allocation2], 24
      %499 = vst [vmem:[%s498 + $0x1] sm:$0xff] %v412
      %500 = vst [vmem:[%s498 + $0x9] sm:$0xff] %v413
      %501 = vst [vmem:[%s498 + $0x19] sm:$0xff] %v414
      %502 = vst [vmem:[%s498 + $0x21] sm:$0xff] %v415
      %503 = vst [vmem:[%s498 + $0x31] sm:$0xff] %v416
      %504 = vst [vmem:[%s498 + $0x39] sm:$0xff] %v417
      %505 = vst [vmem:[%s498 + $0x49] sm:$0xff] %v418
      %506 = vst [vmem:[%s498 + $0x51] sm:$0xff] %v419
      %507 = vst [vmem:[%s498 + $0x61] sm:$0xff] %v420
      %508 = vst [vmem:[%s498 + $0x69] sm:$0xff] %v421
      %509 = vst [vmem:[%s498 + $0x79] sm:$0xff] %v422
      %510 = vst [vmem:[%s498 + $0x81] sm:$0xff] %v423
      %511 = vst [vmem:[%s498 + $0x91] sm:$0xff] %v424
      %512 = vst [vmem:[%s498 + $0x99] sm:$0xff] %v425
      %513 = vst [vmem:[%s498 + $0xa9] sm:$0xff] %v426
      %514 = vst [vmem:[%s498 + $0xb1] sm:$0xff] %v427
      %515 = vst [vmem:[%s498 + $0xc1] sm:$0xff] %v428
      %516 = vst [vmem:[%s498 + $0xc9] sm:$0xff] %v429
      %517 = vst [vmem:[%s498 + $0xd9] sm:$0xff] %v430
      %518 = vst [vmem:[%s498 + $0xe1] sm:$0xff] %v431
      %519 = vst [vmem:[%s498 + $0xf1] sm:$0xff] %v432
      %520 = vst [vmem:[%s498 + $0xf9] sm:$0xff] %v433
      %521 = vst [vmem:[%s498 + $0x109] sm:$0xff] %v434
      %522 = vst [vmem:[%s498 + $0x111] sm:$0xff] %v435
      %523 = vst [vmem:[%s498 + $0x121] sm:$0xff] %v436
      %524 = vst [vmem:[%s498 + $0x129] sm:$0xff] %v437
      %525 = vst [vmem:[%s498 + $0x139] sm:$0xff] %v438
      %526 = vst [vmem:[%s498 + $0x141] sm:$0xff] %v439
      %527 = vst [vmem:[%s498 + $0x151] sm:$0xff] %v440
      %528 = vst [vmem:[%s498 + $0x159] sm:$0xff] %v441
      %529 = vst [vmem:[%s498 + $0x169] sm:$0xff] %v442
      %530 = vst [vmem:[%s498 + $0x171] sm:$0xff] %v443
      %v531 = vld [vmem:[#allocation2] sm:$0xff]
      %v532 = vld [vmem:[#allocation2 + $0x8] sm:$0xff]
      %v533 = vld [vmem:[#allocation2 + $0x18] sm:$0xff]
      %v534 = vld [vmem:[#allocation2 + $0x20] sm:$0xff]
      %v535 = vld [vmem:[#allocation2 + $0x30] sm:$0xff]
      %v536 = vld [vmem:[#allocation2 + $0x38] sm:$0xff]
      %v537 = vld [vmem:[#allocation2 + $0x48] sm:$0xff]
      %v538 = vld [vmem:[#allocation2 + $0x50] sm:$0xff]
      %v539 = vld [vmem:[#allocation2 + $0x60] sm:$0xff]
      %v540 = vld [vmem:[#allocation2 + $0x68] sm:$0xff]
      %v541 = vld [vmem:[#allocation2 + $0x78] sm:$0xff]
      %v542 = vld [vmem:[#allocation2 + $0x80] sm:$0xff]
      %v543 = vld [vmem:[#allocation2 + $0x90] sm:$0xff]
      %v544 = vld [vmem:[#allocation2 + $0x98] sm:$0xff]
      %v545 = vld [vmem:[#allocation2 + $0xa8] sm:$0xff]
      %v546 = vld [vmem:[#allocation2 + $0xb0] sm:$0xff]
      %v547 = vld [vmem:[#allocation2 + $0xc0] sm:$0xff]
      %v548 = vld [vmem:[#allocation2 + $0xc8] sm:$0xff]
      %v549 = vld [vmem:[#allocation2 + $0xd8] sm:$0xff]
      %v550 = vld [vmem:[#allocation2 + $0xe0] sm:$0xff]
      %v551 = vld [vmem:[#allocation2 + $0xf0] sm:$0xff]
      %v552 = vld [vmem:[#allocation2 + $0xf8] sm:$0xff]
      %v553 = vld [vmem:[#allocation2 + $0x108] sm:$0xff]
      %v554 = vld [vmem:[#allocation2 + $0x110] sm:$0xff]
      %v555 = vld [vmem:[#allocation2 + $0x120] sm:$0xff]
      %v556 = vld [vmem:[#allocation2 + $0x128] sm:$0xff]
      %v557 = vld [vmem:[#allocation2 + $0x138] sm:$0xff]
      %v558 = vld [vmem:[#allocation2 + $0x140] sm:$0xff]
      %v559 = vld [vmem:[#allocation2 + $0x150] sm:$0xff]
      %v560 = vld [vmem:[#allocation2 + $0x158] sm:$0xff]
      %v561 = vld [vmem:[#allocation2 + $0x168] sm:$0xff]
      %v562 = vld [vmem:[#allocation2 + $0x170] sm:$0xff]
      %v563 = vpack.c.bf16 %v532, %v531
      %v564 = vpack.c.bf16 %v534, %v533
      %v565 = vpack.c.bf16 %v536, %v535
      %v566 = vpack.c.bf16 %v538, %v537
      %v567 = vpack.c.bf16 %v540, %v539
      %v568 = vpack.c.bf16 %v542, %v541
      %v569 = vpack.c.bf16 %v544, %v543
      %v570 = vpack.c.bf16 %v546, %v545
      %v571 = vpack.c.bf16 %v548, %v547
      %v572 = vpack.c.bf16 %v550, %v549
      %v573 = vpack.c.bf16 %v552, %v551
      %v574 = vpack.c.bf16 %v554, %v553
      %v575 = vpack.c.bf16 %v556, %v555
      %v576 = vpack.c.bf16 %v558, %v557
      %v577 = vpack.c.bf16 %v560, %v559
      %v578 = vpack.c.bf16 %v562, %v561
      %579 = vst [vmem:[#allocation3] sm:$0xff] %v563
      %580 = vst [vmem:[#allocation3 + $0x48] sm:$0xff] %v564
      %581 = vst [vmem:[#allocation3 + $0x90] sm:$0xff] %v565
      %582 = vst [vmem:[#allocation3 + $0xd8] sm:$0xff] %v566
      %583 = vst [vmem:[#allocation3 + $0x120] sm:$0xff] %v567
      %584 = vst [vmem:[#allocation3 + $0x168] sm:$0xff] %v568
      %585 = vst [vmem:[#allocation3 + $0x1b0] sm:$0xff] %v569
      %586 = vst [vmem:[#allocation3 + $0x1f8] sm:$0xff] %v570
      %587 = vst [vmem:[#allocation3 + $0x240] sm:$0xff] %v571
      %588 = vst [vmem:[#allocation3 + $0x288] sm:$0xff] %v572
      %589 = vst [vmem:[#allocation3 + $0x2d0] sm:$0xff] %v573
      %590 = vst [vmem:[#allocation3 + $0x318] sm:$0xff] %v574
      %591 = vst [vmem:[#allocation3 + $0x360] sm:$0xff] %v575
      %592 = vst [vmem:[#allocation3 + $0x3a8] sm:$0xff] %v576
      %593 = vst [vmem:[#allocation3 + $0x3f0] sm:$0xff] %v577
      %594 = vst [vmem:[#allocation3 + $0x438] sm:$0xff] %v578
      %v595 = vld [vmem:[#allocation2 + $0x1] sm:$0xff]
      %v596 = vld [vmem:[#allocation2 + $0x9] sm:$0xff]
      %v597 = vld [vmem:[#allocation2 + $0x19] sm:$0xff]
      %v598 = vld [vmem:[#allocation2 + $0x21] sm:$0xff]
      %v599 = vld [vmem:[#allocation2 + $0x31] sm:$0xff]
      %v600 = vld [vmem:[#allocation2 + $0x39] sm:$0xff]
      %v601 = vld [vmem:[#allocation2 + $0x49] sm:$0xff]
      %v602 = vld [vmem:[#allocation2 + $0x51] sm:$0xff]
      %v603 = vld [vmem:[#allocation2 + $0x61] sm:$0xff]
      %v604 = vld [vmem:[#allocation2 + $0x69] sm:$0xff]
      %v605 = vld [vmem:[#allocation2 + $0x79] sm:$0xff]
      %v606 = vld [vmem:[#allocation2 + $0x81] sm:$0xff]
      %v607 = vld [vmem:[#allocation2 + $0x91] sm:$0xff]
      %v608 = vld [vmem:[#allocation2 + $0x99] sm:$0xff]
      %v609 = vld [vmem:[#allocation2 + $0xa9] sm:$0xff]
      %v610 = vld [vmem:[#allocation2 + $0xb1] sm:$0xff]
      %v611 = vld [vmem:[#allocation2 + $0xc1] sm:$0xff]
      %v612 = vld [vmem:[#allocation2 + $0xc9] sm:$0xff]
      %v613 = vld [vmem:[#allocation2 + $0xd9] sm:$0xff]
      %v614 = vld [vmem:[#allocation2 + $0xe1] sm:$0xff]
      %v615 = vld [vmem:[#allocation2 + $0xf1] sm:$0xff]
      %v616 = vld [vmem:[#allocation2 + $0xf9] sm:$0xff]
      %v617 = vld [vmem:[#allocation2 + $0x109] sm:$0xff]
      %v618 = vld [vmem:[#allocation2 + $0x111] sm:$0xff]
      %v619 = vld [vmem:[#allocation2 + $0x121] sm:$0xff]
      %v620 = vld [vmem:[#allocation2 + $0x129] sm:$0xff]
      %v621 = vld [vmem:[#allocation2 + $0x139] sm:$0xff]
      %v622 = vld [vmem:[#allocation2 + $0x141] sm:$0xff]
      %v623 = vld [vmem:[#allocation2 + $0x151] sm:$0xff]
      %v624 = vld [vmem:[#allocation2 + $0x159] sm:$0xff]
      %v625 = vld [vmem:[#allocation2 + $0x169] sm:$0xff]
      %v626 = vld [vmem:[#allocation2 + $0x171] sm:$0xff]
      %v627 = vpack.c.bf16 %v596, %v595
      %v628 = vpack.c.bf16 %v598, %v597
      %v629 = vpack.c.bf16 %v600, %v599
      %v630 = vpack.c.bf16 %v602, %v601
      %v631 = vpack.c.bf16 %v604, %v603
      %v632 = vpack.c.bf16 %v606, %v605
      %v633 = vpack.c.bf16 %v608, %v607
      %v634 = vpack.c.bf16 %v610, %v609
      %v635 = vpack.c.bf16 %v612, %v611
      %v636 = vpack.c.bf16 %v614, %v613
      %v637 = vpack.c.bf16 %v616, %v615
      %v638 = vpack.c.bf16 %v618, %v617
      %v639 = vpack.c.bf16 %v620, %v619
      %v640 = vpack.c.bf16 %v622, %v621
      %v641 = vpack.c.bf16 %v624, %v623
      %v642 = vpack.c.bf16 %v626, %v625
      %643 = vst [vmem:[#allocation3 + $0x8] sm:$0xff] %v627
      %644 = vst [vmem:[#allocation3 + $0x50] sm:$0xff] %v628
      %645 = vst [vmem:[#allocation3 + $0x98] sm:$0xff] %v629
      %646 = vst [vmem:[#allocation3 + $0xe0] sm:$0xff] %v630
      %647 = vst [vmem:[#allocation3 + $0x128] sm:$0xff] %v631
      %648 = vst [vmem:[#allocation3 + $0x170] sm:$0xff] %v632
      %649 = vst [vmem:[#allocation3 + $0x1b8] sm:$0xff] %v633
      %650 = vst [vmem:[#allocation3 + $0x200] sm:$0xff] %v634
      %651 = vst [vmem:[#allocation3 + $0x248] sm:$0xff] %v635
      %652 = vst [vmem:[#allocation3 + $0x290] sm:$0xff] %v636
      %653 = vst [vmem:[#allocation3 + $0x2d8] sm:$0xff] %v637
      %654 = vst [vmem:[#allocation3 + $0x320] sm:$0xff] %v638
      %655 = vst [vmem:[#allocation3 + $0x368] sm:$0xff] %v639
      %656 = vst [vmem:[#allocation3 + $0x3b0] sm:$0xff] %v640
      %657 = vst [vmem:[#allocation3 + $0x3f8] sm:$0xff] %v641
      %658 = vst [vmem:[#allocation3 + $0x440] sm:$0xff] %v642
      %v659 = vld [vmem:[#allocation2 + $0x2] sm:$0xff]
      %v660 = vld [vmem:[#allocation2 + $0xa] sm:$0xff]
      %v661 = vld [vmem:[#allocation2 + $0x1a] sm:$0xff]
      %v662 = vld [vmem:[#allocation2 + $0x22] sm:$0xff]
      %v663 = vld [vmem:[#allocation2 + $0x32] sm:$0xff]
      %v664 = vld [vmem:[#allocation2 + $0x3a] sm:$0xff]
      %v665 = vld [vmem:[#allocation2 + $0x4a] sm:$0xff]
      %v666 = vld [vmem:[#allocation2 + $0x52] sm:$0xff]
      %v667 = vld [vmem:[#allocation2 + $0x62] sm:$0xff]
      %v668 = vld [vmem:[#allocation2 + $0x6a] sm:$0xff]
      %v669 = vld [vmem:[#allocation2 + $0x7a] sm:$0xff]
      %v670 = vld [vmem:[#allocation2 + $0x82] sm:$0xff]
      %v671 = vld [vmem:[#allocation2 + $0x92] sm:$0xff]
      %v672 = vld [vmem:[#allocation2 + $0x9a] sm:$0xff]
      %v673 = vld [vmem:[#allocation2 + $0xaa] sm:$0xff]
      %v674 = vld [vmem:[#allocation2 + $0xb2] sm:$0xff]
      %v675 = vld [vmem:[#allocation2 + $0xc2] sm:$0xff]
      %v676 = vld [vmem:[#allocation2 + $0xca] sm:$0xff]
      %v677 = vld [vmem:[#allocation2 + $0xda] sm:$0xff]
      %v678 = vld [vmem:[#allocation2 + $0xe2] sm:$0xff]
      %v679 = vld [vmem:[#allocation2 + $0xf2] sm:$0xff]
      %v680 = vld [vmem:[#allocation2 + $0xfa] sm:$0xff]
      %v681 = vld [vmem:[#allocation2 + $0x10a] sm:$0xff]
      %v682 = vld [vmem:[#allocation2 + $0x112] sm:$0xff]
      %v683 = vld [vmem:[#allocation2 + $0x122] sm:$0xff]
      %v684 = vld [vmem:[#allocation2 + $0x12a] sm:$0xff]
      %v685 = vld [vmem:[#allocation2 + $0x13a] sm:$0xff]
      %v686 = vld [vmem:[#allocation2 + $0x142] sm:$0xff]
      %v687 = vld [vmem:[#allocation2 + $0x152] sm:$0xff]
      %v688 = vld [vmem:[#allocation2 + $0x15a] sm:$0xff]
      %v689 = vld [vmem:[#allocation2 + $0x16a] sm:$0xff]
      %v690 = vld [vmem:[#allocation2 + $0x172] sm:$0xff]
      %v691 = vpack.c.bf16 %v660, %v659
      %v692 = vpack.c.bf16 %v662, %v661
      %v693 = vpack.c.bf16 %v664, %v663
      %v694 = vpack.c.bf16 %v666, %v665
      %v695 = vpack.c.bf16 %v668, %v667
      %v696 = vpack.c.bf16 %v670, %v669
      %v697 = vpack.c.bf16 %v672, %v671
      %v698 = vpack.c.bf16 %v674, %v673
      %v699 = vpack.c.bf16 %v676, %v675
      %v700 = vpack.c.bf16 %v678, %v677
      %v701 = vpack.c.bf16 %v680, %v679
      %v702 = vpack.c.bf16 %v682, %v681
      %v703 = vpack.c.bf16 %v684, %v683
      %v704 = vpack.c.bf16 %v686, %v685
      %v705 = vpack.c.bf16 %v688, %v687
      %v706 = vpack.c.bf16 %v690, %v689
      %707 = vst [vmem:[#allocation3 + $0x10] sm:$0xff] %v691
      %708 = vst [vmem:[#allocation3 + $0x58] sm:$0xff] %v692
      %709 = vst [vmem:[#allocation3 + $0xa0] sm:$0xff] %v693
      %710 = vst [vmem:[#allocation3 + $0xe8] sm:$0xff] %v694
      %711 = vst [vmem:[#allocation3 + $0x130] sm:$0xff] %v695
      %712 = vst [vmem:[#allocation3 + $0x178] sm:$0xff] %v696
      %713 = vst [vmem:[#allocation3 + $0x1c0] sm:$0xff] %v697
      %714 = vst [vmem:[#allocation3 + $0x208] sm:$0xff] %v698
      %715 = vst [vmem:[#allocation3 + $0x250] sm:$0xff] %v699
      %716 = vst [vmem:[#allocation3 + $0x298] sm:$0xff] %v700
      %717 = vst [vmem:[#allocation3 + $0x2e0] sm:$0xff] %v701
      %718 = vst [vmem:[#allocation3 + $0x328] sm:$0xff] %v702
      %719 = vst [vmem:[#allocation3 + $0x370] sm:$0xff] %v703
      %720 = vst [vmem:[#allocation3 + $0x3b8] sm:$0xff] %v704
      %721 = vst [vmem:[#allocation3 + $0x400] sm:$0xff] %v705
      %722 = vst [vmem:[#allocation3 + $0x448] sm:$0xff] %v706
      %v723 = vld [vmem:[%s498] sm:$0xff]
      %v724 = vld [vmem:[%s498 + $0x8] sm:$0xff]
      %v725 = vld [vmem:[%s498 + $0x18] sm:$0xff]
      %v726 = vld [vmem:[%s498 + $0x20] sm:$0xff]
      %v727 = vld [vmem:[%s498 + $0x30] sm:$0xff]
      %v728 = vld [vmem:[%s498 + $0x38] sm:$0xff]
      %v729 = vld [vmem:[%s498 + $0x48] sm:$0xff]
      %v730 = vld [vmem:[%s498 + $0x50] sm:$0xff]
      %v731 = vld [vmem:[%s498 + $0x60] sm:$0xff]
      %v732 = vld [vmem:[%s498 + $0x68] sm:$0xff]
      %v733 = vld [vmem:[%s498 + $0x78] sm:$0xff]
      %v734 = vld [vmem:[%s498 + $0x80] sm:$0xff]
      %v735 = vld [vmem:[%s498 + $0x90] sm:$0xff]
      %v736 = vld [vmem:[%s498 + $0x98] sm:$0xff]
      %v737 = vld [vmem:[%s498 + $0xa8] sm:$0xff]
      %v738 = vld [vmem:[%s498 + $0xb0] sm:$0xff]
      %v739 = vld [vmem:[%s498 + $0xc0] sm:$0xff]
      %v740 = vld [vmem:[%s498 + $0xc8] sm:$0xff]
      %v741 = vld [vmem:[%s498 + $0xd8] sm:$0xff]
      %v742 = vld [vmem:[%s498 + $0xe0] sm:$0xff]
      %v743 = vld [vmem:[%s498 + $0xf0] sm:$0xff]
      %v744 = vld [vmem:[%s498 + $0xf8] sm:$0xff]
      %v745 = vld [vmem:[%s498 + $0x108] sm:$0xff]
      %v746 = vld [vmem:[%s498 + $0x110] sm:$0xff]
      %v747 = vld [vmem:[%s498 + $0x120] sm:$0xff]
      %v748 = vld [vmem:[%s498 + $0x128] sm:$0xff]
      %v749 = vld [vmem:[%s498 + $0x138] sm:$0xff]
      %v750 = vld [vmem:[%s498 + $0x140] sm:$0xff]
      %v751 = vld [vmem:[%s498 + $0x150] sm:$0xff]
      %v752 = vld [vmem:[%s498 + $0x158] sm:$0xff]
      %v753 = vld [vmem:[%s498 + $0x168] sm:$0xff]
      %v754 = vld [vmem:[%s498 + $0x170] sm:$0xff]
      %v755 = vpack.c.bf16 %v724, %v723
      %v756 = vpack.c.bf16 %v726, %v725
      %v757 = vpack.c.bf16 %v728, %v727
      %v758 = vpack.c.bf16 %v730, %v729
      %v759 = vpack.c.bf16 %v732, %v731
      %v760 = vpack.c.bf16 %v734, %v733
      %v761 = vpack.c.bf16 %v736, %v735
      %v762 = vpack.c.bf16 %v738, %v737
      %v763 = vpack.c.bf16 %v740, %v739
      %v764 = vpack.c.bf16 %v742, %v741
      %v765 = vpack.c.bf16 %v744, %v743
      %v766 = vpack.c.bf16 %v746, %v745
      %v767 = vpack.c.bf16 %v748, %v747
      %v768 = vpack.c.bf16 %v750, %v749
      %v769 = vpack.c.bf16 %v752, %v751
      %v770 = vpack.c.bf16 %v754, %v753
      %771 = vst [vmem:[#allocation3 + $0x18] sm:$0xff] %v755
      %772 = vst [vmem:[#allocation3 + $0x60] sm:$0xff] %v756
      %773 = vst [vmem:[#allocation3 + $0xa8] sm:$0xff] %v757
      %774 = vst [vmem:[#allocation3 + $0xf0] sm:$0xff] %v758
      %775 = vst [vmem:[#allocation3 + $0x138] sm:$0xff] %v759
      %776 = vst [vmem:[#allocation3 + $0x180] sm:$0xff] %v760
      %777 = vst [vmem:[#allocation3 + $0x1c8] sm:$0xff] %v761
      %778 = vst [vmem:[#allocation3 + $0x210] sm:$0xff] %v762
      %779 = vst [vmem:[#allocation3 + $0x258] sm:$0xff] %v763
      %780 = vst [vmem:[#allocation3 + $0x2a0] sm:$0xff] %v764
      %781 = vst [vmem:[#allocation3 + $0x2e8] sm:$0xff] %v765
      %782 = vst [vmem:[#allocation3 + $0x330] sm:$0xff] %v766
      %783 = vst [vmem:[#allocation3 + $0x378] sm:$0xff] %v767
      %784 = vst [vmem:[#allocation3 + $0x3c0] sm:$0xff] %v768
      %785 = vst [vmem:[#allocation3 + $0x408] sm:$0xff] %v769
      %786 = vst [vmem:[#allocation3 + $0x450] sm:$0xff] %v770
      %v787 = vld [vmem:[%s498 + $0x1] sm:$0xff]
      %v788 = vld [vmem:[%s498 + $0x9] sm:$0xff]
      %v789 = vld [vmem:[%s498 + $0x19] sm:$0xff]
      %v790 = vld [vmem:[%s498 + $0x21] sm:$0xff]
      %v791 = vld [vmem:[%s498 + $0x31] sm:$0xff]
      %v792 = vld [vmem:[%s498 + $0x39] sm:$0xff]
      %v793 = vld [vmem:[%s498 + $0x49] sm:$0xff]
      %v794 = vld [vmem:[%s498 + $0x51] sm:$0xff]
      %v795 = vld [vmem:[%s498 + $0x61] sm:$0xff]
      %v796 = vld [vmem:[%s498 + $0x69] sm:$0xff]
      %v797 = vld [vmem:[%s498 + $0x79] sm:$0xff]
      %v798 = vld [vmem:[%s498 + $0x81] sm:$0xff]
      %v799 = vld [vmem:[%s498 + $0x91] sm:$0xff]
      %v800 = vld [vmem:[%s498 + $0x99] sm:$0xff]
      %v801 = vld [vmem:[%s498 + $0xa9] sm:$0xff]
      %v802 = vld [vmem:[%s498 + $0xb1] sm:$0xff]
      %v803 = vld [vmem:[%s498 + $0xc1] sm:$0xff]
      %v804 = vld [vmem:[%s498 + $0xc9] sm:$0xff]
      %v805 = vld [vmem:[%s498 + $0xd9] sm:$0xff]
      %v806 = vld [vmem:[%s498 + $0xe1] sm:$0xff]
      %v807 = vld [vmem:[%s498 + $0xf1] sm:$0xff]
      %v808 = vld [vmem:[%s498 + $0xf9] sm:$0xff]
      %v809 = vld [vmem:[%s498 + $0x109] sm:$0xff]
      %v810 = vld [vmem:[%s498 + $0x111] sm:$0xff]
      %v811 = vld [vmem:[%s498 + $0x121] sm:$0xff]
      %v812 = vld [vmem:[%s498 + $0x129] sm:$0xff]
      %v813 = vld [vmem:[%s498 + $0x139] sm:$0xff]
      %v814 = vld [vmem:[%s498 + $0x141] sm:$0xff]
      %v815 = vld [vmem:[%s498 + $0x151] sm:$0xff]
      %v816 = vld [vmem:[%s498 + $0x159] sm:$0xff]
      %v817 = vld [vmem:[%s498 + $0x169] sm:$0xff]
      %v818 = vld [vmem:[%s498 + $0x171] sm:$0xff]
      %v819 = vpack.c.bf16 %v788, %v787
      %v820 = vpack.c.bf16 %v790, %v789
      %v821 = vpack.c.bf16 %v792, %v791
      %v822 = vpack.c.bf16 %v794, %v793
      %v823 = vpack.c.bf16 %v796, %v795
      %v824 = vpack.c.bf16 %v798, %v797
      %v825 = vpack.c.bf16 %v800, %v799
      %v826 = vpack.c.bf16 %v802, %v801
      %v827 = vpack.c.bf16 %v804, %v803
      %v828 = vpack.c.bf16 %v806, %v805
      %v829 = vpack.c.bf16 %v808, %v807
      %v830 = vpack.c.bf16 %v810, %v809
      %v831 = vpack.c.bf16 %v812, %v811
      %v832 = vpack.c.bf16 %v814, %v813
      %v833 = vpack.c.bf16 %v816, %v815
      %v834 = vpack.c.bf16 %v818, %v817
      %835 = vst [vmem:[#allocation3 + $0x20] sm:$0xff] %v819
      %836 = vst [vmem:[#allocation3 + $0x68] sm:$0xff] %v820
      %837 = vst [vmem:[#allocation3 + $0xb0] sm:$0xff] %v821
      %838 = vst [vmem:[#allocation3 + $0xf8] sm:$0xff] %v822
      %839 = vst [vmem:[#allocation3 + $0x140] sm:$0xff] %v823
      %840 = vst [vmem:[#allocation3 + $0x188] sm:$0xff] %v824
      %841 = vst [vmem:[#allocation3 + $0x1d0] sm:$0xff] %v825
      %842 = vst [vmem:[#allocation3 + $0x218] sm:$0xff] %v826
      %843 = vst [vmem:[#allocation3 + $0x260] sm:$0xff] %v827
      %844 = vst [vmem:[#allocation3 + $0x2a8] sm:$0xff] %v828
      %845 = vst [vmem:[#allocation3 + $0x2f0] sm:$0xff] %v829
      %846 = vst [vmem:[#allocation3 + $0x338] sm:$0xff] %v830
      %847 = vst [vmem:[#allocation3 + $0x380] sm:$0xff] %v831
      %848 = vst [vmem:[#allocation3 + $0x3c8] sm:$0xff] %v832
      %849 = vst [vmem:[#allocation3 + $0x410] sm:$0xff] %v833
      %850 = vst [vmem:[#allocation3 + $0x458] sm:$0xff] %v834
      %v851 = vld [vmem:[%s498 + $0x2] sm:$0xff]
      %v852 = vld [vmem:[%s498 + $0xa] sm:$0xff]
      %v853 = vld [vmem:[%s498 + $0x1a] sm:$0xff]
      %v854 = vld [vmem:[%s498 + $0x22] sm:$0xff]
      %v855 = vld [vmem:[%s498 + $0x32] sm:$0xff]
      %v856 = vld [vmem:[%s498 + $0x3a] sm:$0xff]
      %v857 = vld [vmem:[%s498 + $0x4a] sm:$0xff]
      %v858 = vld [vmem:[%s498 + $0x52] sm:$0xff]
      %v859 = vld [vmem:[%s498 + $0x62] sm:$0xff]
      %v860 = vld [vmem:[%s498 + $0x6a] sm:$0xff]
      %v861 = vld [vmem:[%s498 + $0x7a] sm:$0xff]
      %v862 = vld [vmem:[%s498 + $0x82] sm:$0xff]
      %v863 = vld [vmem:[%s498 + $0x92] sm:$0xff]
      %v864 = vld [vmem:[%s498 + $0x9a] sm:$0xff]
      %v865 = vld [vmem:[%s498 + $0xaa] sm:$0xff]
      %v866 = vld [vmem:[%s498 + $0xb2] sm:$0xff]
      %v867 = vld [vmem:[%s498 + $0xc2] sm:$0xff]
      %v868 = vld [vmem:[%s498 + $0xca] sm:$0xff]
      %v869 = vld [vmem:[%s498 + $0xda] sm:$0xff]
      %v870 = vld [vmem:[%s498 + $0xe2] sm:$0xff]
      %v871 = vld [vmem:[%s498 + $0xf2] sm:$0xff]
      %v872 = vld [vmem:[%s498 + $0xfa] sm:$0xff]
      %v873 = vld [vmem:[%s498 + $0x10a] sm:$0xff]
      %v874 = vld [vmem:[%s498 + $0x112] sm:$0xff]
      %v875 = vld [vmem:[%s498 + $0x122] sm:$0xff]
      %v876 = vld [vmem:[%s498 + $0x12a] sm:$0xff]
      %v877 = vld [vmem:[%s498 + $0x13a] sm:$0xff]
      %v878 = vld [vmem:[%s498 + $0x142] sm:$0xff]
      %v879 = vld [vmem:[%s498 + $0x152] sm:$0xff]
      %v880 = vld [vmem:[%s498 + $0x15a] sm:$0xff]
      %v881 = vld [vmem:[%s498 + $0x16a] sm:$0xff]
      %v882 = vld [vmem:[%s498 + $0x172] sm:$0xff]
      %v883 = vpack.c.bf16 %v852, %v851
      %v884 = vpack.c.bf16 %v854, %v853
      %v885 = vpack.c.bf16 %v856, %v855
      %v886 = vpack.c.bf16 %v858, %v857
      %v887 = vpack.c.bf16 %v860, %v859
      %v888 = vpack.c.bf16 %v862, %v861
      %v889 = vpack.c.bf16 %v864, %v863
      %v890 = vpack.c.bf16 %v866, %v865
      %v891 = vpack.c.bf16 %v868, %v867
      %v892 = vpack.c.bf16 %v870, %v869
      %v893 = vpack.c.bf16 %v872, %v871
      %v894 = vpack.c.bf16 %v874, %v873
      %v895 = vpack.c.bf16 %v876, %v875
      %v896 = vpack.c.bf16 %v878, %v877
      %v897 = vpack.c.bf16 %v880, %v879
      %v898 = vpack.c.bf16 %v882, %v881
      %899 = vst [vmem:[#allocation3 + $0x28] sm:$0xff] %v883
      %900 = vst [vmem:[#allocation3 + $0x70] sm:$0xff] %v884
      %901 = vst [vmem:[#allocation3 + $0xb8] sm:$0xff] %v885
      %902 = vst [vmem:[#allocation3 + $0x100] sm:$0xff] %v886
      %903 = vst [vmem:[#allocation3 + $0x148] sm:$0xff] %v887
      %904 = vst [vmem:[#allocation3 + $0x190] sm:$0xff] %v888
      %905 = vst [vmem:[#allocation3 + $0x1d8] sm:$0xff] %v889
      %906 = vst [vmem:[#allocation3 + $0x220] sm:$0xff] %v890
      %907 = vst [vmem:[#allocation3 + $0x268] sm:$0xff] %v891
      %908 = vst [vmem:[#allocation3 + $0x2b0] sm:$0xff] %v892
      %909 = vst [vmem:[#allocation3 + $0x2f8] sm:$0xff] %v893
      %910 = vst [vmem:[#allocation3 + $0x340] sm:$0xff] %v894
      %911 = vst [vmem:[#allocation3 + $0x388] sm:$0xff] %v895
      %912 = vst [vmem:[#allocation3 + $0x3d0] sm:$0xff] %v896
      %913 = vst [vmem:[#allocation3 + $0x418] sm:$0xff] %v897
      %914 = vst [vmem:[#allocation3 + $0x460] sm:$0xff] %v898
      %s915 = scalar_lea.vmem [#allocation2], 48
      %v916 = vld [vmem:[%s915] sm:$0xff]
      %v917 = vld [vmem:[%s915 + $0x8] sm:$0xff]
      %v918 = vld [vmem:[%s915 + $0x18] sm:$0xff]
      %v919 = vld [vmem:[%s915 + $0x20] sm:$0xff]
      %v920 = vld [vmem:[%s915 + $0x30] sm:$0xff]
      %v921 = vld [vmem:[%s915 + $0x38] sm:$0xff]
      %v922 = vld [vmem:[%s915 + $0x48] sm:$0xff]
      %v923 = vld [vmem:[%s915 + $0x50] sm:$0xff]
      %v924 = vld [vmem:[%s915 + $0x60] sm:$0xff]
      %v925 = vld [vmem:[%s915 + $0x68] sm:$0xff]
      %v926 = vld [vmem:[%s915 + $0x78] sm:$0xff]
      %v927 = vld [vmem:[%s915 + $0x80] sm:$0xff]
      %v928 = vld [vmem:[%s915 + $0x90] sm:$0xff]
      %v929 = vld [vmem:[%s915 + $0x98] sm:$0xff]
      %v930 = vld [vmem:[%s915 + $0xa8] sm:$0xff]
      %v931 = vld [vmem:[%s915 + $0xb0] sm:$0xff]
      %v932 = vld [vmem:[%s915 + $0xc0] sm:$0xff]
      %v933 = vld [vmem:[%s915 + $0xc8] sm:$0xff]
      %v934 = vld [vmem:[%s915 + $0xd8] sm:$0xff]
      %v935 = vld [vmem:[%s915 + $0xe0] sm:$0xff]
      %v936 = vld [vmem:[%s915 + $0xf0] sm:$0xff]
      %v937 = vld [vmem:[%s915 + $0xf8] sm:$0xff]
      %v938 = vld [vmem:[%s915 + $0x108] sm:$0xff]
      %v939 = vld [vmem:[%s915 + $0x110] sm:$0xff]
      %v940 = vld [vmem:[%s915 + $0x120] sm:$0xff]
      %v941 = vld [vmem:[%s915 + $0x128] sm:$0xff]
      %v942 = vld [vmem:[%s915 + $0x138] sm:$0xff]
      %v943 = vld [vmem:[%s915 + $0x140] sm:$0xff]
      %v944 = vld [vmem:[%s915 + $0x150] sm:$0xff]
      %v945 = vld [vmem:[%s915 + $0x158] sm:$0xff]
      %v946 = vld [vmem:[%s915 + $0x168] sm:$0xff]
      %v947 = vld [vmem:[%s915 + $0x170] sm:$0xff]
      %v948 = vpack.c.bf16 %v917, %v916
      %v949 = vpack.c.bf16 %v919, %v918
      %v950 = vpack.c.bf16 %v921, %v920
      %v951 = vpack.c.bf16 %v923, %v922
      %v952 = vpack.c.bf16 %v925, %v924
      %v953 = vpack.c.bf16 %v927, %v926
      %v954 = vpack.c.bf16 %v929, %v928
      %v955 = vpack.c.bf16 %v931, %v930
      %v956 = vpack.c.bf16 %v933, %v932
      %v957 = vpack.c.bf16 %v935, %v934
      %v958 = vpack.c.bf16 %v937, %v936
      %v959 = vpack.c.bf16 %v939, %v938
      %v960 = vpack.c.bf16 %v941, %v940
      %v961 = vpack.c.bf16 %v943, %v942
      %v962 = vpack.c.bf16 %v945, %v944
      %v963 = vpack.c.bf16 %v947, %v946
      %964 = vst [vmem:[#allocation3 + $0x30] sm:$0xff] %v948
      %965 = vst [vmem:[#allocation3 + $0x78] sm:$0xff] %v949
      %966 = vst [vmem:[#allocation3 + $0xc0] sm:$0xff] %v950
      %967 = vst [vmem:[#allocation3 + $0x108] sm:$0xff] %v951
      %968 = vst [vmem:[#allocation3 + $0x150] sm:$0xff] %v952
      %969 = vst [vmem:[#allocation3 + $0x198] sm:$0xff] %v953
      %970 = vst [vmem:[#allocation3 + $0x1e0] sm:$0xff] %v954
      %971 = vst [vmem:[#allocation3 + $0x228] sm:$0xff] %v955
      %972 = vst [vmem:[#allocation3 + $0x270] sm:$0xff] %v956
      %973 = vst [vmem:[#allocation3 + $0x2b8] sm:$0xff] %v957
      %974 = vst [vmem:[#allocation3 + $0x300] sm:$0xff] %v958
      %975 = vst [vmem:[#allocation3 + $0x348] sm:$0xff] %v959
      %976 = vst [vmem:[#allocation3 + $0x390] sm:$0xff] %v960
      %977 = vst [vmem:[#allocation3 + $0x3d8] sm:$0xff] %v961
      %978 = vst [vmem:[#allocation3 + $0x420] sm:$0xff] %v962
      %979 = vst [vmem:[#allocation3 + $0x468] sm:$0xff] %v963
      %v980 = vld [vmem:[%s915 + $0x1] sm:$0xff]
      %v981 = vld [vmem:[%s915 + $0x9] sm:$0xff]
      %v982 = vld [vmem:[%s915 + $0x19] sm:$0xff]
      %v983 = vld [vmem:[%s915 + $0x21] sm:$0xff]
      %v984 = vld [vmem:[%s915 + $0x31] sm:$0xff]
      %v985 = vld [vmem:[%s915 + $0x39] sm:$0xff]
      %v986 = vld [vmem:[%s915 + $0x49] sm:$0xff]
      %v987 = vld [vmem:[%s915 + $0x51] sm:$0xff]
      %v988 = vld [vmem:[%s915 + $0x61] sm:$0xff]
      %v989 = vld [vmem:[%s915 + $0x69] sm:$0xff]
      %v990 = vld [vmem:[%s915 + $0x79] sm:$0xff]
      %v991 = vld [vmem:[%s915 + $0x81] sm:$0xff]
      %v992 = vld [vmem:[%s915 + $0x91] sm:$0xff]
      %v993 = vld [vmem:[%s915 + $0x99] sm:$0xff]
      %v994 = vld [vmem:[%s915 + $0xa9] sm:$0xff]
      %v995 = vld [vmem:[%s915 + $0xb1] sm:$0xff]
      %v996 = vld [vmem:[%s915 + $0xc1] sm:$0xff]
      %v997 = vld [vmem:[%s915 + $0xc9] sm:$0xff]
      %v998 = vld [vmem:[%s915 + $0xd9] sm:$0xff]
      %v999 = vld [vmem:[%s915 + $0xe1] sm:$0xff]
      %v1000 = vld [vmem:[%s915 + $0xf1] sm:$0xff]
      %v1001 = vld [vmem:[%s915 + $0xf9] sm:$0xff]
      %v1002 = vld [vmem:[%s915 + $0x109] sm:$0xff]
      %v1003 = vld [vmem:[%s915 + $0x111] sm:$0xff]
      %v1004 = vld [vmem:[%s915 + $0x121] sm:$0xff]
      %v1005 = vld [vmem:[%s915 + $0x129] sm:$0xff]
      %v1006 = vld [vmem:[%s915 + $0x139] sm:$0xff]
      %v1007 = vld [vmem:[%s915 + $0x141] sm:$0xff]
      %v1008 = vld [vmem:[%s915 + $0x151] sm:$0xff]
      %v1009 = vld [vmem:[%s915 + $0x159] sm:$0xff]
      %v1010 = vld [vmem:[%s915 + $0x169] sm:$0xff]
      %v1011 = vld [vmem:[%s915 + $0x171] sm:$0xff]
      %v1012 = vpack.c.bf16 %v981, %v980
      %v1013 = vpack.c.bf16 %v983, %v982
      %v1014 = vpack.c.bf16 %v985, %v984
      %v1015 = vpack.c.bf16 %v987, %v986
      %v1016 = vpack.c.bf16 %v989, %v988
      %v1017 = vpack.c.bf16 %v991, %v990
      %v1018 = vpack.c.bf16 %v993, %v992
      %v1019 = vpack.c.bf16 %v995, %v994
      %v1020 = vpack.c.bf16 %v997, %v996
      %v1021 = vpack.c.bf16 %v999, %v998
      %v1022 = vpack.c.bf16 %v1001, %v1000
      %v1023 = vpack.c.bf16 %v1003, %v1002
      %v1024 = vpack.c.bf16 %v1005, %v1004
      %v1025 = vpack.c.bf16 %v1007, %v1006
      %v1026 = vpack.c.bf16 %v1009, %v1008
      %v1027 = vpack.c.bf16 %v1011, %v1010
      %1028 = vst [vmem:[#allocation3 + $0x38] sm:$0xff] %v1012
      %1029 = vst [vmem:[#allocation3 + $0x80] sm:$0xff] %v1013
      %1030 = vst [vmem:[#allocation3 + $0xc8] sm:$0xff] %v1014
      %1031 = vst [vmem:[#allocation3 + $0x110] sm:$0xff] %v1015
      %1032 = vst [vmem:[#allocation3 + $0x158] sm:$0xff] %v1016
      %1033 = vst [vmem:[#allocation3 + $0x1a0] sm:$0xff] %v1017
      %1034 = vst [vmem:[#allocation3 + $0x1e8] sm:$0xff] %v1018
      %1035 = vst [vmem:[#allocation3 + $0x230] sm:$0xff] %v1019
      %1036 = vst [vmem:[#allocation3 + $0x278] sm:$0xff] %v1020
      %1037 = vst [vmem:[#allocation3 + $0x2c0] sm:$0xff] %v1021
      %1038 = vst [vmem:[#allocation3 + $0x308] sm:$0xff] %v1022
      %1039 = vst [vmem:[#allocation3 + $0x350] sm:$0xff] %v1023
      %1040 = vst [vmem:[#allocation3 + $0x398] sm:$0xff] %v1024
      %1041 = vst [vmem:[#allocation3 + $0x3e0] sm:$0xff] %v1025
      %1042 = vst [vmem:[#allocation3 + $0x428] sm:$0xff] %v1026
      %1043 = vst [vmem:[#allocation3 + $0x470] sm:$0xff] %v1027
      %v1044 = vld [vmem:[%s915 + $0x2] sm:$0xff]
      %v1045 = vld [vmem:[%s915 + $0xa] sm:$0xff]
      %v1046 = vld [vmem:[%s915 + $0x1a] sm:$0xff]
      %v1047 = vld [vmem:[%s915 + $0x22] sm:$0xff]
      %v1048 = vld [vmem:[%s915 + $0x32] sm:$0xff]
      %v1049 = vld [vmem:[%s915 + $0x3a] sm:$0xff]
      %v1050 = vld [vmem:[%s915 + $0x4a] sm:$0xff]
      %v1051 = vld [vmem:[%s915 + $0x52] sm:$0xff]
      %v1052 = vld [vmem:[%s915 + $0x62] sm:$0xff]
      %v1053 = vld [vmem:[%s915 + $0x6a] sm:$0xff]
      %v1054 = vld [vmem:[%s915 + $0x7a] sm:$0xff]
      %v1055 = vld [vmem:[%s915 + $0x82] sm:$0xff]
      %v1056 = vld [vmem:[%s915 + $0x92] sm:$0xff]
      %v1057 = vld [vmem:[%s915 + $0x9a] sm:$0xff]
      %v1058 = vld [vmem:[%s915 + $0xaa] sm:$0xff]
      %v1059 = vld [vmem:[%s915 + $0xb2] sm:$0xff]
      %v1060 = vld [vmem:[%s915 + $0xc2] sm:$0xff]
      %v1061 = vld [vmem:[%s915 + $0xca] sm:$0xff]
      %v1062 = vld [vmem:[%s915 + $0xda] sm:$0xff]
      %v1063 = vld [vmem:[%s915 + $0xe2] sm:$0xff]
      %v1064 = vld [vmem:[%s915 + $0xf2] sm:$0xff]
      %v1065 = vld [vmem:[%s915 + $0xfa] sm:$0xff]
      %v1066 = vld [vmem:[%s915 + $0x10a] sm:$0xff]
      %v1067 = vld [vmem:[%s915 + $0x112] sm:$0xff]
      %v1068 = vld [vmem:[%s915 + $0x122] sm:$0xff]
      %v1069 = vld [vmem:[%s915 + $0x12a] sm:$0xff]
      %v1070 = vld [vmem:[%s915 + $0x13a] sm:$0xff]
      %v1071 = vld [vmem:[%s915 + $0x142] sm:$0xff]
      %v1072 = vld [vmem:[%s915 + $0x152] sm:$0xff]
      %v1073 = vld [vmem:[%s915 + $0x15a] sm:$0xff]
      %v1074 = vld [vmem:[%s915 + $0x16a] sm:$0xff]
      %v1075 = vld [vmem:[%s915 + $0x172] sm:$0xff]
      %v1076 = vpack.c.bf16 %v1045, %v1044
      %v1077 = vpack.c.bf16 %v1047, %v1046
      %v1078 = vpack.c.bf16 %v1049, %v1048
      %v1079 = vpack.c.bf16 %v1051, %v1050
      %v1080 = vpack.c.bf16 %v1053, %v1052
      %v1081 = vpack.c.bf16 %v1055, %v1054
      %v1082 = vpack.c.bf16 %v1057, %v1056
      %v1083 = vpack.c.bf16 %v1059, %v1058
      %v1084 = vpack.c.bf16 %v1061, %v1060
      %v1085 = vpack.c.bf16 %v1063, %v1062
      %v1086 = vpack.c.bf16 %v1065, %v1064
      %v1087 = vpack.c.bf16 %v1067, %v1066
      %v1088 = vpack.c.bf16 %v1069, %v1068
      %v1089 = vpack.c.bf16 %v1071, %v1070
      %v1090 = vpack.c.bf16 %v1073, %v1072
      %v1091 = vpack.c.bf16 %v1075, %v1074
      %1092 = vst [vmem:[#allocation3 + $0x40] sm:$0xff] %v1076
      %1093 = vst [vmem:[#allocation3 + $0x88] sm:$0xff] %v1077
      %1094 = vst [vmem:[#allocation3 + $0xd0] sm:$0xff] %v1078
      %1095 = vst [vmem:[#allocation3 + $0x118] sm:$0xff] %v1079
      %1096 = vst [vmem:[#allocation3 + $0x160] sm:$0xff] %v1080
      %1097 = vst [vmem:[#allocation3 + $0x1a8] sm:$0xff] %v1081
      %1098 = vst [vmem:[#allocation3 + $0x1f0] sm:$0xff] %v1082
      %1099 = vst [vmem:[#allocation3 + $0x238] sm:$0xff] %v1083
      %1100 = vst [vmem:[#allocation3 + $0x280] sm:$0xff] %v1084
      %1101 = vst [vmem:[#allocation3 + $0x2c8] sm:$0xff] %v1085
      %1102 = vst [vmem:[#allocation3 + $0x310] sm:$0xff] %v1086
      %1103 = vst [vmem:[#allocation3 + $0x358] sm:$0xff] %v1087
      %1104 = vst [vmem:[#allocation3 + $0x3a0] sm:$0xff] %v1088
      %1105 = vst [vmem:[#allocation3 + $0x3e8] sm:$0xff] %v1089
      %1106 = vst [vmem:[#allocation3 + $0x430] sm:$0xff] %v1090
      %1107 = vst [vmem:[#allocation3 + $0x478] sm:$0xff] %v1091
      %v1108 = vld [vmem:[#allocation3] sm:$0xff]
      %v1109 = vld [vmem:[#allocation3 + $0x8] sm:$0xff]
      %v1110 = vld [vmem:[#allocation3 + $0x10] sm:$0xff]
      %v1111 = vld [vmem:[#allocation3 + $0x18] sm:$0xff]
      %v1112 = vld [vmem:[#allocation3 + $0x20] sm:$0xff]
      %v1113 = vld [vmem:[#allocation3 + $0x28] sm:$0xff]
      %v1114 = vld [vmem:[#allocation3 + $0x30] sm:$0xff]
      %v1115 = vld [vmem:[#allocation3 + $0x38] sm:$0xff]
      %v1116 = vld [vmem:[#allocation3 + $0x40] sm:$0xff]
      %v1117 = vld [vmem:[#allocation3 + $0x48] sm:$0xff]
      %v1118 = vld [vmem:[#allocation3 + $0x50] sm:$0xff]
      %v1119 = vld [vmem:[#allocation3 + $0x58] sm:$0xff]
      %v1120 = vld [vmem:[#allocation3 + $0x60] sm:$0xff]
      %v1121 = vld [vmem:[#allocation3 + $0x68] sm:$0xff]
      %v1122 = vld [vmem:[#allocation3 + $0x70] sm:$0xff]
      %v1123 = vld [vmem:[#allocation3 + $0x78] sm:$0xff]
      %v1124 = vld [vmem:[#allocation3 + $0x80] sm:$0xff]
      %v1125 = vld [vmem:[#allocation3 + $0x88] sm:$0xff]
      %v1126 = vld [vmem:[#allocation3 + $0x90] sm:$0xff]
      %v1127 = vld [vmem:[#allocation3 + $0x98] sm:$0xff]
      %v1128 = vld [vmem:[#allocation3 + $0xa0] sm:$0xff]
      %v1129 = vld [vmem:[#allocation3 + $0xa8] sm:$0xff]
      %v1130 = vld [vmem:[#allocation3 + $0xb0] sm:$0xff]
      %v1131 = vld [vmem:[#allocation3 + $0xb8] sm:$0xff]
      %v1132 = vld [vmem:[#allocation3 + $0xc0] sm:$0xff]
      %v1133 = vld [vmem:[#allocation3 + $0xc8] sm:$0xff]
      %v1134 = vld [vmem:[#allocation3 + $0xd0] sm:$0xff]
      %v1135 = vld [vmem:[#allocation3 + $0xd8] sm:$0xff]
      %v1136 = vld [vmem:[#allocation3 + $0xe0] sm:$0xff]
      %v1137 = vld [vmem:[#allocation3 + $0xe8] sm:$0xff]
      %v1138 = vld [vmem:[#allocation3 + $0xf0] sm:$0xff]
      %v1139 = vld [vmem:[#allocation3 + $0xf8] sm:$0xff]
      %v1140 = vld [vmem:[#allocation3 + $0x100] sm:$0xff]
      %v1141 = vld [vmem:[#allocation3 + $0x108] sm:$0xff]
      %v1142 = vld [vmem:[#allocation3 + $0x110] sm:$0xff]
      %v1143 = vld [vmem:[#allocation3 + $0x118] sm:$0xff]
      %v1144 = vld [vmem:[#allocation3 + $0x120] sm:$0xff]
      %v1145 = vld [vmem:[#allocation3 + $0x128] sm:$0xff]
      %v1146 = vld [vmem:[#allocation3 + $0x130] sm:$0xff]
      %v1147 = vld [vmem:[#allocation3 + $0x138] sm:$0xff]
      %v1148 = vld [vmem:[#allocation3 + $0x140] sm:$0xff]
      %v1149 = vld [vmem:[#allocation3 + $0x148] sm:$0xff]
      %v1150 = vld [vmem:[#allocation3 + $0x150] sm:$0xff]
      %v1151 = vld [vmem:[#allocation3 + $0x158] sm:$0xff]
      %v1152 = vld [vmem:[#allocation3 + $0x160] sm:$0xff]
      %v1153 = vld [vmem:[#allocation3 + $0x168] sm:$0xff]
      %v1154 = vld [vmem:[#allocation3 + $0x170] sm:$0xff]
      %v1155 = vld [vmem:[#allocation3 + $0x178] sm:$0xff]
      %v1156 = vld [vmem:[#allocation3 + $0x180] sm:$0xff]
      %v1157 = vld [vmem:[#allocation3 + $0x188] sm:$0xff]
      %v1158 = vld [vmem:[#allocation3 + $0x190] sm:$0xff]
      %v1159 = vld [vmem:[#allocation3 + $0x198] sm:$0xff]
      %v1160 = vld [vmem:[#allocation3 + $0x1a0] sm:$0xff]
      %v1161 = vld [vmem:[#allocation3 + $0x1a8] sm:$0xff]
      %v1162 = vld [vmem:[#allocation3 + $0x1b0] sm:$0xff]
      %v1163 = vld [vmem:[#allocation3 + $0x1b8] sm:$0xff]
      %v1164 = vld [vmem:[#allocation3 + $0x1c0] sm:$0xff]
      %v1165 = vld [vmem:[#allocation3 + $0x1c8] sm:$0xff]
      %v1166 = vld [vmem:[#allocation3 + $0x1d0] sm:$0xff]
      %v1167 = vld [vmem:[#allocation3 + $0x1d8] sm:$0xff]
      %v1168 = vld [vmem:[#allocation3 + $0x1e0] sm:$0xff]
      %v1169 = vld [vmem:[#allocation3 + $0x1e8] sm:$0xff]
      %v1170 = vld [vmem:[#allocation3 + $0x1f0] sm:$0xff]
      %v1171 = vld [vmem:[#allocation3 + $0x1f8] sm:$0xff]
      %v1172 = vld [vmem:[#allocation3 + $0x200] sm:$0xff]
      %v1173 = vld [vmem:[#allocation3 + $0x208] sm:$0xff]
      %v1174 = vld [vmem:[#allocation3 + $0x210] sm:$0xff]
      %v1175 = vld [vmem:[#allocation3 + $0x218] sm:$0xff]
      %v1176 = vld [vmem:[#allocation3 + $0x220] sm:$0xff]
      %v1177 = vld [vmem:[#allocation3 + $0x228] sm:$0xff]
      %v1178 = vld [vmem:[#allocation3 + $0x230] sm:$0xff]
      %v1179 = vld [vmem:[#allocation3 + $0x238] sm:$0xff]
      %v1180 = vld [vmem:[#allocation3 + $0x240] sm:$0xff]
      %v1181 = vld [vmem:[#allocation3 + $0x248] sm:$0xff]
      %v1182 = vld [vmem:[#allocation3 + $0x250] sm:$0xff]
      %v1183 = vld [vmem:[#allocation3 + $0x258] sm:$0xff]
      %v1184 = vld [vmem:[#allocation3 + $0x260] sm:$0xff]
      %v1185 = vld [vmem:[#allocation3 + $0x268] sm:$0xff]
      %v1186 = vld [vmem:[#allocation3 + $0x270] sm:$0xff]
      %v1187 = vld [vmem:[#allocation3 + $0x278] sm:$0xff]
      %v1188 = vld [vmem:[#allocation3 + $0x280] sm:$0xff]
      %v1189 = vld [vmem:[#allocation3 + $0x288] sm:$0xff]
      %v1190 = vld [vmem:[#allocation3 + $0x290] sm:$0xff]
      %v1191 = vld [vmem:[#allocation3 + $0x298] sm:$0xff]
      %v1192 = vld [vmem:[#allocation3 + $0x2a0] sm:$0xff]
      %v1193 = vld [vmem:[#allocation3 + $0x2a8] sm:$0xff]
      %v1194 = vld [vmem:[#allocation3 + $0x2b0] sm:$0xff]
      %v1195 = vld [vmem:[#allocation3 + $0x2b8] sm:$0xff]
      %v1196 = vld [vmem:[#allocation3 + $0x2c0] sm:$0xff]
      %v1197 = vld [vmem:[#allocation3 + $0x2c8] sm:$0xff]
      %v1198 = vld [vmem:[#allocation3 + $0x2d0] sm:$0xff]
      %v1199 = vld [vmem:[#allocation3 + $0x2d8] sm:$0xff]
      %v1200 = vld [vmem:[#allocation3 + $0x2e0] sm:$0xff]
      %v1201 = vld [vmem:[#allocation3 + $0x2e8] sm:$0xff]
      %v1202 = vld [vmem:[#allocation3 + $0x2f0] sm:$0xff]
      %v1203 = vld [vmem:[#allocation3 + $0x2f8] sm:$0xff]
      %v1204 = vld [vmem:[#allocation3 + $0x300] sm:$0xff]
      %v1205 = vld [vmem:[#allocation3 + $0x308] sm:$0xff]
      %v1206 = vld [vmem:[#allocation3 + $0x310] sm:$0xff]
      %v1207 = vld [vmem:[#allocation3 + $0x318] sm:$0xff]
      %v1208 = vld [vmem:[#allocation3 + $0x320] sm:$0xff]
      %v1209 = vld [vmem:[#allocation3 + $0x328] sm:$0xff]
      %v1210 = vld [vmem:[#allocation3 + $0x330] sm:$0xff]
      %v1211 = vld [vmem:[#allocation3 + $0x338] sm:$0xff]
      %v1212 = vld [vmem:[#allocation3 + $0x340] sm:$0xff]
      %v1213 = vld [vmem:[#allocation3 + $0x348] sm:$0xff]
      %v1214 = vld [vmem:[#allocation3 + $0x350] sm:$0xff]
      %v1215 = vld [vmem:[#allocation3 + $0x358] sm:$0xff]
      %v1216 = vld [vmem:[#allocation3 + $0x360] sm:$0xff]
      %v1217 = vld [vmem:[#allocation3 + $0x368] sm:$0xff]
      %v1218 = vld [vmem:[#allocation3 + $0x370] sm:$0xff]
      %v1219 = vld [vmem:[#allocation3 + $0x378] sm:$0xff]
      %v1220 = vld [vmem:[#allocation3 + $0x380] sm:$0xff]
      %v1221 = vld [vmem:[#allocation3 + $0x388] sm:$0xff]
      %v1222 = vld [vmem:[#allocation3 + $0x390] sm:$0xff]
      %v1223 = vld [vmem:[#allocation3 + $0x398] sm:$0xff]
      %v1224 = vld [vmem:[#allocation3 + $0x3a0] sm:$0xff]
      %v1225 = vld [vmem:[#allocation3 + $0x3a8] sm:$0xff]
      %v1226 = vld [vmem:[#allocation3 + $0x3b0] sm:$0xff]
      %v1227 = vld [vmem:[#allocation3 + $0x3b8] sm:$0xff]
      %v1228 = vld [vmem:[#allocation3 + $0x3c0] sm:$0xff]
      %v1229 = vld [vmem:[#allocation3 + $0x3c8] sm:$0xff]
      %v1230 = vld [vmem:[#allocation3 + $0x3d0] sm:$0xff]
      %v1231 = vld [vmem:[#allocation3 + $0x3d8] sm:$0xff]
      %v1232 = vld [vmem:[#allocation3 + $0x3e0] sm:$0xff]
      %v1233 = vld [vmem:[#allocation3 + $0x3e8] sm:$0xff]
      %v1234 = vld [vmem:[#allocation3 + $0x3f0] sm:$0xff]
      %v1235 = vld [vmem:[#allocation3 + $0x3f8] sm:$0xff]
      %v1236 = vld [vmem:[#allocation3 + $0x400] sm:$0xff]
      %v1237 = vld [vmem:[#allocation3 + $0x408] sm:$0xff]
      %v1238 = vld [vmem:[#allocation3 + $0x410] sm:$0xff]
      %v1239 = vld [vmem:[#allocation3 + $0x418] sm:$0xff]
      %v1240 = vld [vmem:[#allocation3 + $0x420] sm:$0xff]
      %v1241 = vld [vmem:[#allocation3 + $0x428] sm:$0xff]
      %v1242 = vld [vmem:[#allocation3 + $0x430] sm:$0xff]
      %v1243 = vld [vmem:[#allocation3 + $0x438] sm:$0xff]
      %v1244 = vld [vmem:[#allocation3 + $0x440] sm:$0xff]
      %v1245 = vld [vmem:[#allocation3 + $0x448] sm:$0xff]
      %v1246 = vld [vmem:[#allocation3 + $0x450] sm:$0xff]
      %v1247 = vld [vmem:[#allocation3 + $0x458] sm:$0xff]
      %v1248 = vld [vmem:[#allocation3 + $0x460] sm:$0xff]
      %v1249 = vld [vmem:[#allocation3 + $0x468] sm:$0xff]
      %v1250 = vld [vmem:[#allocation3 + $0x470] sm:$0xff]
      %v1251 = vld [vmem:[#allocation3 + $0x478] sm:$0xff]
      %v1252 = vld [vmem:[%s1] sm:$0xf]
      %v1253 = vld [vmem:[%s1 + $0x4] sm:$0xf]
      %v1254 = vld [vmem:[%s1 + $0x8] sm:$0xf]
      %v1255 = vld [vmem:[%s1 + $0xc] sm:$0xf]
      %v1256 = vld [vmem:[%s1 + $0x10] sm:$0xf]
      %v1257 = vld [vmem:[%s1 + $0x14] sm:$0xf]
      %v1258 = vld [vmem:[%s1 + $0x18] sm:$0xf]
      %v1259 = vld [vmem:[%s1 + $0x1c] sm:$0xf]
      %v1260 = vld [vmem:[%s1 + $0x20] sm:$0xf]
      %v1261 = vld [vmem:[%s1 + $0x24] sm:$0xf]
      %v1262 = vld [vmem:[%s1 + $0x28] sm:$0xf]
      %v1263 = vld [vmem:[%s1 + $0x2c] sm:$0xf]
      %v1264 = vld [vmem:[%s1 + $0x30] sm:$0xf]
      %v1265 = vld [vmem:[%s1 + $0x34] sm:$0xf]
      %v1266 = vld [vmem:[%s1 + $0x38] sm:$0xf]
      %v1267 = vld [vmem:[%s1 + $0x3c] sm:$0xf]
      %v1268 = vld [vmem:[%s1 + $0x40] sm:$0xf]
      %v1269 = vld [vmem:[%s1 + $0x44] sm:$0xf]
      %v1270 = vld [vmem:[%s1 + $0x48] sm:$0xf]
      %v1271 = vld [vmem:[%s1 + $0x4c] sm:$0xf]
      %v1272 = vld [vmem:[%s1 + $0x50] sm:$0xf]
      %v1273 = vld [vmem:[%s1 + $0x54] sm:$0xf]
      %v1274 = vld [vmem:[%s1 + $0x58] sm:$0xf]
      %v1275 = vld [vmem:[%s1 + $0x5c] sm:$0xf]
      %v1276 = vld [vmem:[%s1 + $0x60] sm:$0xf]
      %v1277 = vld [vmem:[%s1 + $0x64] sm:$0xf]
      %v1278 = vld [vmem:[%s1 + $0x68] sm:$0xf]
      %v1279 = vld [vmem:[%s1 + $0x6c] sm:$0xf]
      %v1280 = vld [vmem:[%s1 + $0x70] sm:$0xf]
      %v1281 = vld [vmem:[%s1 + $0x74] sm:$0xf]
      %v1282 = vld [vmem:[%s1 + $0x78] sm:$0xf]
      %v1283 = vld [vmem:[%s1 + $0x7c] sm:$0xf]
      %v1284 = vld [vmem:[%s1 + $0x80] sm:$0xf]
      %v1285 = vld [vmem:[%s1 + $0x84] sm:$0xf]
      %v1286 = vld [vmem:[%s1 + $0x88] sm:$0xf]
      %v1287 = vld [vmem:[%s1 + $0x8c] sm:$0xf]
      %v1288 = vld [vmem:[%s1 + $0x90] sm:$0xf]
      %v1289 = vld [vmem:[%s1 + $0x94] sm:$0xf]
      %v1290 = vld [vmem:[%s1 + $0x98] sm:$0xf]
      %v1291 = vld [vmem:[%s1 + $0x9c] sm:$0xf]
      %v1292 = vld [vmem:[%s1 + $0xa0] sm:$0xf]
      %v1293 = vld [vmem:[%s1 + $0xa4] sm:$0xf]
      %v1294 = vld [vmem:[%s1 + $0xa8] sm:$0xf]
      %v1295 = vld [vmem:[%s1 + $0xac] sm:$0xf]
      %v1296 = vld [vmem:[%s1 + $0xb0] sm:$0xf]
      %v1297 = vld [vmem:[%s1 + $0xb4] sm:$0xf]
      %v1298 = vld [vmem:[%s1 + $0xb8] sm:$0xf]
      %v1299 = vld [vmem:[%s1 + $0xbc] sm:$0xf]
      %v1300 = vld [vmem:[%s1 + $0xc0] sm:$0xf]
      %v1301 = vld [vmem:[%s1 + $0xc4] sm:$0xf]
      %v1302 = vld [vmem:[%s1 + $0xc8] sm:$0xf]
      %v1303 = vld [vmem:[%s1 + $0xcc] sm:$0xf]
      %v1304 = vld [vmem:[%s1 + $0xd0] sm:$0xf]
      %v1305 = vld [vmem:[%s1 + $0xd4] sm:$0xf]
      %v1306 = vld [vmem:[%s1 + $0xd8] sm:$0xf]
      %v1307 = vld [vmem:[%s1 + $0xdc] sm:$0xf]
      %v1308 = vld [vmem:[%s1 + $0xe0] sm:$0xf]
      %v1309 = vld [vmem:[%s1 + $0xe4] sm:$0xf]
      %v1310 = vld [vmem:[%s1 + $0xe8] sm:$0xf]
      %v1311 = vld [vmem:[%s1 + $0xec] sm:$0xf]
      %v1312 = vld [vmem:[%s1 + $0xf0] sm:$0xf]
      %v1313 = vld [vmem:[%s1 + $0xf4] sm:$0xf]
      %v1314 = vld [vmem:[%s1 + $0xf8] sm:$0xf]
      %v1315 = vld [vmem:[%s1 + $0xfc] sm:$0xf]
      %v1316 = vld [vmem:[%s1 + $0x100] sm:$0xf]
      %v1317 = vld [vmem:[%s1 + $0x104] sm:$0xf]
      %v1318 = vld [vmem:[%s1 + $0x108] sm:$0xf]
      %v1319 = vld [vmem:[%s1 + $0x10c] sm:$0xf]
      %v1320 = vld [vmem:[%s1 + $0x110] sm:$0xf]
      %v1321 = vld [vmem:[%s1 + $0x114] sm:$0xf]
      %v1322 = vld [vmem:[%s1 + $0x118] sm:$0xf]
      %v1323 = vld [vmem:[%s1 + $0x11c] sm:$0xf]
      %v1324 = vld [vmem:[%s1 + $0x120] sm:$0xf]
      %v1325 = vld [vmem:[%s1 + $0x124] sm:$0xf]
      %v1326 = vld [vmem:[%s1 + $0x128] sm:$0xf]
      %v1327 = vld [vmem:[%s1 + $0x12c] sm:$0xf]
      %v1328 = vld [vmem:[%s1 + $0x130] sm:$0xf]
      %v1329 = vld [vmem:[%s1 + $0x134] sm:$0xf]
      %v1330 = vld [vmem:[%s1 + $0x138] sm:$0xf]
      %v1331 = vld [vmem:[%s1 + $0x13c] sm:$0xf]
      %v1332 = vld [vmem:[%s1 + $0x140] sm:$0xf]
      %v1333 = vld [vmem:[%s1 + $0x144] sm:$0xf]
      %v1334 = vld [vmem:[%s1 + $0x148] sm:$0xf]
      %v1335 = vld [vmem:[%s1 + $0x14c] sm:$0xf]
      %v1336 = vld [vmem:[%s1 + $0x150] sm:$0xf]
      %v1337 = vld [vmem:[%s1 + $0x154] sm:$0xf]
      %v1338 = vld [vmem:[%s1 + $0x158] sm:$0xf]
      %v1339 = vld [vmem:[%s1 + $0x15c] sm:$0xf]
      %v1340 = vld [vmem:[%s1 + $0x160] sm:$0xf]
      %v1341 = vld [vmem:[%s1 + $0x164] sm:$0xf]
      %v1342 = vld [vmem:[%s1 + $0x168] sm:$0xf]
      %v1343 = vld [vmem:[%s1 + $0x16c] sm:$0xf]
      %v1344 = vld [vmem:[%s1 + $0x170] sm:$0xf]
      %v1345 = vld [vmem:[%s1 + $0x174] sm:$0xf]
      %v1346 = vld [vmem:[%s1 + $0x178] sm:$0xf]
      %v1347 = vld [vmem:[%s1 + $0x17c] sm:$0xf]
      %v1348 = vld [vmem:[%s1 + $0x180] sm:$0xf]
      %v1349 = vld [vmem:[%s1 + $0x184] sm:$0xf]
      %v1350 = vld [vmem:[%s1 + $0x188] sm:$0xf]
      %v1351 = vld [vmem:[%s1 + $0x18c] sm:$0xf]
      %v1352 = vld [vmem:[%s1 + $0x190] sm:$0xf]
      %v1353 = vld [vmem:[%s1 + $0x194] sm:$0xf]
      %v1354 = vld [vmem:[%s1 + $0x198] sm:$0xf]
      %v1355 = vld [vmem:[%s1 + $0x19c] sm:$0xf]
      %v1356 = vld [vmem:[%s1 + $0x1a0] sm:$0xf]
      %v1357 = vld [vmem:[%s1 + $0x1a4] sm:$0xf]
      %v1358 = vld [vmem:[%s1 + $0x1a8] sm:$0xf]
      %v1359 = vld [vmem:[%s1 + $0x1ac] sm:$0xf]
      %v1360 = vld [vmem:[%s1 + $0x1b0] sm:$0xf]
      %v1361 = vld [vmem:[%s1 + $0x1b4] sm:$0xf]
      %v1362 = vld [vmem:[%s1 + $0x1b8] sm:$0xf]
      %v1363 = vld [vmem:[%s1 + $0x1bc] sm:$0xf]
      %v1364 = vld [vmem:[%s1 + $0x1c0] sm:$0xf]
      %v1365 = vld [vmem:[%s1 + $0x1c4] sm:$0xf]
      %v1366 = vld [vmem:[%s1 + $0x1c8] sm:$0xf]
      %v1367 = vld [vmem:[%s1 + $0x1cc] sm:$0xf]
      %v1368 = vld [vmem:[%s1 + $0x1d0] sm:$0xf]
      %v1369 = vld [vmem:[%s1 + $0x1d4] sm:$0xf]
      %v1370 = vld [vmem:[%s1 + $0x1d8] sm:$0xf]
      %v1371 = vld [vmem:[%s1 + $0x1dc] sm:$0xf]
      %v1372 = vld [vmem:[%s1 + $0x1e0] sm:$0xf]
      %v1373 = vld [vmem:[%s1 + $0x1e4] sm:$0xf]
      %v1374 = vld [vmem:[%s1 + $0x1e8] sm:$0xf]
      %v1375 = vld [vmem:[%s1 + $0x1ec] sm:$0xf]
      %v1376 = vld [vmem:[%s1 + $0x1f0] sm:$0xf]
      %v1377 = vld [vmem:[%s1 + $0x1f4] sm:$0xf]
      %v1378 = vld [vmem:[%s1 + $0x1f8] sm:$0xf]
      %v1379 = vld [vmem:[%s1 + $0x1fc] sm:$0xf]
      %v1380 = vld [vmem:[%s1 + $0x200] sm:$0xf]
      %v1381 = vld [vmem:[%s1 + $0x204] sm:$0xf]
      %v1382 = vld [vmem:[%s1 + $0x208] sm:$0xf]
      %v1383 = vld [vmem:[%s1 + $0x20c] sm:$0xf]
      %v1384 = vld [vmem:[%s1 + $0x210] sm:$0xf]
      %v1385 = vld [vmem:[%s1 + $0x214] sm:$0xf]
      %v1386 = vld [vmem:[%s1 + $0x218] sm:$0xf]
      %v1387 = vld [vmem:[%s1 + $0x21c] sm:$0xf]
      %v1388 = vld [vmem:[%s1 + $0x220] sm:$0xf]
      %v1389 = vld [vmem:[%s1 + $0x224] sm:$0xf]
      %v1390 = vld [vmem:[%s1 + $0x228] sm:$0xf]
      %v1391 = vld [vmem:[%s1 + $0x22c] sm:$0xf]
      %v1392 = vld [vmem:[%s1 + $0x230] sm:$0xf]
      %v1393 = vld [vmem:[%s1 + $0x234] sm:$0xf]
      %v1394 = vld [vmem:[%s1 + $0x238] sm:$0xf]
      %v1395 = vld [vmem:[%s1 + $0x23c] sm:$0xf]
      %v1540 = vunpack.c.l.b16 %v1252
      %v1541 = vunpack.c.l.b16 %v1253
      %v1542 = vunpack.c.l.b16 %v1254
      %v1543 = vunpack.c.l.b16 %v1255
      %v1544 = vunpack.c.l.b16 %v1256
      %v1545 = vunpack.c.l.b16 %v1257
      %v1546 = vunpack.c.l.b16 %v1258
      %v1547 = vunpack.c.l.b16 %v1259
      %v1548 = vunpack.c.l.b16 %v1260
      %v1549 = vunpack.c.l.b16 %v1261
      %v1550 = vunpack.c.l.b16 %v1262
      %v1551 = vunpack.c.l.b16 %v1263
      %v1552 = vunpack.c.l.b16 %v1264
      %v1553 = vunpack.c.l.b16 %v1265
      %v1554 = vunpack.c.l.b16 %v1266
      %v1555 = vunpack.c.l.b16 %v1267
      %v1556 = vunpack.c.l.b16 %v1268
      %v1557 = vunpack.c.l.b16 %v1269
      %v1558 = vunpack.c.l.b16 %v1270
      %v1559 = vunpack.c.l.b16 %v1271
      %v1560 = vunpack.c.l.b16 %v1272
      %v1561 = vunpack.c.l.b16 %v1273
      %v1562 = vunpack.c.l.b16 %v1274
      %v1563 = vunpack.c.l.b16 %v1275
      %v1564 = vunpack.c.l.b16 %v1276
      %v1565 = vunpack.c.l.b16 %v1277
      %v1566 = vunpack.c.l.b16 %v1278
      %v1567 = vunpack.c.l.b16 %v1279
      %v1568 = vunpack.c.l.b16 %v1280
      %v1569 = vunpack.c.l.b16 %v1281
      %v1570 = vunpack.c.l.b16 %v1282
      %v1571 = vunpack.c.l.b16 %v1283
      %v1572 = vunpack.c.l.b16 %v1284
      %v1573 = vunpack.c.l.b16 %v1285
      %v1574 = vunpack.c.l.b16 %v1286
      %v1575 = vunpack.c.l.b16 %v1287
      %v1576 = vunpack.c.l.b16 %v1288
      %v1577 = vunpack.c.l.b16 %v1289
      %v1578 = vunpack.c.l.b16 %v1290
      %v1579 = vunpack.c.l.b16 %v1291
      %v1580 = vunpack.c.l.b16 %v1292
      %v1581 = vunpack.c.l.b16 %v1293
      %v1582 = vunpack.c.l.b16 %v1294
      %v1583 = vunpack.c.l.b16 %v1295
      %v1584 = vunpack.c.l.b16 %v1296
      %v1585 = vunpack.c.l.b16 %v1297
      %v1586 = vunpack.c.l.b16 %v1298
      %v1587 = vunpack.c.l.b16 %v1299
      %v1588 = vunpack.c.l.b16 %v1300
      %v1589 = vunpack.c.l.b16 %v1301
      %v1590 = vunpack.c.l.b16 %v1302
      %v1591 = vunpack.c.l.b16 %v1303
      %v1592 = vunpack.c.l.b16 %v1304
      %v1593 = vunpack.c.l.b16 %v1305
      %v1594 = vunpack.c.l.b16 %v1306
      %v1595 = vunpack.c.l.b16 %v1307
      %v1596 = vunpack.c.l.b16 %v1308
      %v1597 = vunpack.c.l.b16 %v1309
      %v1598 = vunpack.c.l.b16 %v1310
      %v1599 = vunpack.c.l.b16 %v1311
      %v1600 = vunpack.c.l.b16 %v1312
      %v1601 = vunpack.c.l.b16 %v1313
      %v1602 = vunpack.c.l.b16 %v1314
      %v1603 = vunpack.c.l.b16 %v1315
      %v1604 = vunpack.c.l.b16 %v1316
      %v1605 = vunpack.c.l.b16 %v1317
      %v1606 = vunpack.c.l.b16 %v1318
      %v1607 = vunpack.c.l.b16 %v1319
      %v1608 = vunpack.c.l.b16 %v1320
      %v1609 = vunpack.c.l.b16 %v1321
      %v1610 = vunpack.c.l.b16 %v1322
      %v1611 = vunpack.c.l.b16 %v1323
      %v1612 = vunpack.c.l.b16 %v1324
      %v1613 = vunpack.c.l.b16 %v1325
      %v1614 = vunpack.c.l.b16 %v1326
      %v1615 = vunpack.c.l.b16 %v1327
      %v1616 = vunpack.c.l.b16 %v1328
      %v1617 = vunpack.c.l.b16 %v1329
      %v1618 = vunpack.c.l.b16 %v1330
      %v1619 = vunpack.c.l.b16 %v1331
      %v1620 = vunpack.c.l.b16 %v1332
      %v1621 = vunpack.c.l.b16 %v1333
      %v1622 = vunpack.c.l.b16 %v1334
      %v1623 = vunpack.c.l.b16 %v1335
      %v1624 = vunpack.c.l.b16 %v1336
      %v1625 = vunpack.c.l.b16 %v1337
      %v1626 = vunpack.c.l.b16 %v1338
      %v1627 = vunpack.c.l.b16 %v1339
      %v1628 = vunpack.c.l.b16 %v1340
      %v1629 = vunpack.c.l.b16 %v1341
      %v1630 = vunpack.c.l.b16 %v1342
      %v1631 = vunpack.c.l.b16 %v1343
      %v1632 = vunpack.c.l.b16 %v1344
      %v1633 = vunpack.c.l.b16 %v1345
      %v1634 = vunpack.c.l.b16 %v1346
      %v1635 = vunpack.c.l.b16 %v1347
      %v1636 = vunpack.c.l.b16 %v1348
      %v1637 = vunpack.c.l.b16 %v1349
      %v1638 = vunpack.c.l.b16 %v1350
      %v1639 = vunpack.c.l.b16 %v1351
      %v1640 = vunpack.c.l.b16 %v1352
      %v1641 = vunpack.c.l.b16 %v1353
      %v1642 = vunpack.c.l.b16 %v1354
      %v1643 = vunpack.c.l.b16 %v1355
      %v1644 = vunpack.c.l.b16 %v1356
      %v1645 = vunpack.c.l.b16 %v1357
      %v1646 = vunpack.c.l.b16 %v1358
      %v1647 = vunpack.c.l.b16 %v1359
      %v1648 = vunpack.c.l.b16 %v1360
      %v1649 = vunpack.c.l.b16 %v1361
      %v1650 = vunpack.c.l.b16 %v1362
      %v1651 = vunpack.c.l.b16 %v1363
      %v1652 = vunpack.c.l.b16 %v1364
      %v1653 = vunpack.c.l.b16 %v1365
      %v1654 = vunpack.c.l.b16 %v1366
      %v1655 = vunpack.c.l.b16 %v1367
      %v1656 = vunpack.c.l.b16 %v1368
      %v1657 = vunpack.c.l.b16 %v1369
      %v1658 = vunpack.c.l.b16 %v1370
      %v1659 = vunpack.c.l.b16 %v1371
      %v1660 = vunpack.c.l.b16 %v1372
      %v1661 = vunpack.c.l.b16 %v1373
      %v1662 = vunpack.c.l.b16 %v1374
      %v1663 = vunpack.c.l.b16 %v1375
      %v1664 = vunpack.c.l.b16 %v1376
      %v1665 = vunpack.c.l.b16 %v1377
      %v1666 = vunpack.c.l.b16 %v1378
      %v1667 = vunpack.c.l.b16 %v1379
      %v1668 = vunpack.c.l.b16 %v1380
      %v1669 = vunpack.c.l.b16 %v1381
      %v1670 = vunpack.c.l.b16 %v1382
      %v1671 = vunpack.c.l.b16 %v1383
      %v1672 = vunpack.c.l.b16 %v1384
      %v1673 = vunpack.c.l.b16 %v1385
      %v1674 = vunpack.c.l.b16 %v1386
      %v1675 = vunpack.c.l.b16 %v1387
      %v1676 = vunpack.c.l.b16 %v1388
      %v1677 = vunpack.c.l.b16 %v1389
      %v1678 = vunpack.c.l.b16 %v1390
      %v1679 = vunpack.c.l.b16 %v1391
      %v1680 = vunpack.c.l.b16 %v1392
      %v1681 = vunpack.c.l.b16 %v1393
      %v1682 = vunpack.c.l.b16 %v1394
      %v1683 = vunpack.c.l.b16 %v1395
      %v1684 = vpack.c.b16 %v1541, %v1540
      %v1685 = vpack.c.b16 %v1543, %v1542
      %v1686 = vpack.c.b16 %v1545, %v1544
      %v1687 = vpack.c.b16 %v1547, %v1546
      %v1688 = vpack.c.b16 %v1549, %v1548
      %v1689 = vpack.c.b16 %v1551, %v1550
      %v1690 = vpack.c.b16 %v1553, %v1552
      %v1691 = vpack.c.b16 %v1555, %v1554
      %v1692 = vpack.c.b16 %v1557, %v1556
      %v1693 = vpack.c.b16 %v1559, %v1558
      %v1694 = vpack.c.b16 %v1561, %v1560
      %v1695 = vpack.c.b16 %v1563, %v1562
      %v1696 = vpack.c.b16 %v1565, %v1564
      %v1697 = vpack.c.b16 %v1567, %v1566
      %v1698 = vpack.c.b16 %v1569, %v1568
      %v1699 = vpack.c.b16 %v1571, %v1570
      %v1700 = vpack.c.b16 %v1573, %v1572
      %v1701 = vpack.c.b16 %v1575, %v1574
      %v1702 = vpack.c.b16 %v1577, %v1576
      %v1703 = vpack.c.b16 %v1579, %v1578
      %v1704 = vpack.c.b16 %v1581, %v1580
      %v1705 = vpack.c.b16 %v1583, %v1582
      %v1706 = vpack.c.b16 %v1585, %v1584
      %v1707 = vpack.c.b16 %v1587, %v1586
      %v1708 = vpack.c.b16 %v1589, %v1588
      %v1709 = vpack.c.b16 %v1591, %v1590
      %v1710 = vpack.c.b16 %v1593, %v1592
      %v1711 = vpack.c.b16 %v1595, %v1594
      %v1712 = vpack.c.b16 %v1597, %v1596
      %v1713 = vpack.c.b16 %v1599, %v1598
      %v1714 = vpack.c.b16 %v1601, %v1600
      %v1715 = vpack.c.b16 %v1603, %v1602
      %v1716 = vpack.c.b16 %v1605, %v1604
      %v1717 = vpack.c.b16 %v1607, %v1606
      %v1718 = vpack.c.b16 %v1609, %v1608
      %v1719 = vpack.c.b16 %v1611, %v1610
      %v1720 = vpack.c.b16 %v1613, %v1612
      %v1721 = vpack.c.b16 %v1615, %v1614
      %v1722 = vpack.c.b16 %v1617, %v1616
      %v1723 = vpack.c.b16 %v1619, %v1618
      %v1724 = vpack.c.b16 %v1621, %v1620
      %v1725 = vpack.c.b16 %v1623, %v1622
      %v1726 = vpack.c.b16 %v1625, %v1624
      %v1727 = vpack.c.b16 %v1627, %v1626
      %v1728 = vpack.c.b16 %v1629, %v1628
      %v1729 = vpack.c.b16 %v1631, %v1630
      %v1730 = vpack.c.b16 %v1633, %v1632
      %v1731 = vpack.c.b16 %v1635, %v1634
      %v1732 = vpack.c.b16 %v1637, %v1636
      %v1733 = vpack.c.b16 %v1639, %v1638
      %v1734 = vpack.c.b16 %v1641, %v1640
      %v1735 = vpack.c.b16 %v1643, %v1642
      %v1736 = vpack.c.b16 %v1645, %v1644
      %v1737 = vpack.c.b16 %v1647, %v1646
      %v1738 = vpack.c.b16 %v1649, %v1648
      %v1739 = vpack.c.b16 %v1651, %v1650
      %v1740 = vpack.c.b16 %v1653, %v1652
      %v1741 = vpack.c.b16 %v1655, %v1654
      %v1742 = vpack.c.b16 %v1657, %v1656
      %v1743 = vpack.c.b16 %v1659, %v1658
      %v1744 = vpack.c.b16 %v1661, %v1660
      %v1745 = vpack.c.b16 %v1663, %v1662
      %v1746 = vpack.c.b16 %v1665, %v1664
      %v1747 = vpack.c.b16 %v1667, %v1666
      %v1748 = vpack.c.b16 %v1669, %v1668
      %v1749 = vpack.c.b16 %v1671, %v1670
      %v1750 = vpack.c.b16 %v1673, %v1672
      %v1751 = vpack.c.b16 %v1675, %v1674
      %v1752 = vpack.c.b16 %v1677, %v1676
      %v1753 = vpack.c.b16 %v1679, %v1678
      %v1754 = vpack.c.b16 %v1681, %v1680
      %v1755 = vpack.c.b16 %v1683, %v1682
      %1828 = vmatprep.subr.bf16.mxu0 0
      %1829 = vmatpush1.bf16.msra.mxu0 %v1684
      %1830 = vmatprep.subr.bf16.mxu0 0
      %1831 = vmatpush1.bf16.msra.mxu0 %v1685
      %1832 = vmatprep.subr.bf16.mxu0 0
      %1833 = vmatpush1.bf16.msra.mxu0 %v1686
      %1834 = vmatprep.subr.bf16.mxu0 0
      %1835 = vmatpush1.bf16.msra.mxu0 %v1687
      %1836 = vmatprep.subr.bf16.mxu0 0
      %1837 = vmatpush1.bf16.msra.mxu0 %v1688
      %1838 = vmatprep.subr.bf16.mxu0 0
      %1839 = vmatpush1.bf16.msra.mxu0 %v1689
      %1840 = vmatprep.subr.bf16.mxu0 0
      %1841 = vmatpush1.bf16.msra.mxu0 %v1690
      %1842 = vmatprep.subr.bf16.mxu0 0
      %1843 = vmatpush1.bf16.msra.mxu0 %v1691
      %1844 = vmatprep.subr.bf16.mxu0 0
      %1845 = vmatpush1.bf16.msra.mxu0 %v1692
      %1846 = vmatprep.subr.bf16.mxu0 0
      %1847 = vmatpush1.bf16.msra.mxu0 %v1693
      %1848 = vmatprep.subr.bf16.mxu0 0
      %1849 = vmatpush1.bf16.msra.mxu0 %v1694
      %1850 = vmatprep.subr.bf16.mxu0 0
      %1851 = vmatpush1.bf16.msra.mxu0 %v1695
      %1852 = vmatprep.subr.bf16.mxu0 0
      %1853 = vmatpush1.bf16.msra.mxu0 %v1696
      %1854 = vmatprep.subr.bf16.mxu0 0
      %1855 = vmatpush1.bf16.msra.mxu0 %v1697
      %1856 = vmatprep.subr.bf16.mxu0 0
      %1857 = vmatpush1.bf16.msra.mxu0 %v1698
      %1858 = vmatprep.subr.bf16.mxu0 0
      %1859 = vmatpush1.bf16.msra.mxu0 %v1699
      %1860 = vmatprep.mubr.bf16.mxu0 %v1109
      %1861 = vmatmul.mubr.bf16.gmra.mrb[0].mxu0 %v1108
      %v1862 = vpop.f32.mrb[0].mxu0
      %v1863 = vadd.f32 0.0, %v1862
      %v1864 = vpop.f32.mrb[0].mxu0
      %v1865 = vpop.f32.mrb[0].mxu0
      %v1866 = vadd.f32 0.0, %v1865
      %v1867 = vpop.f32.mrb[0].mxu0
      %1868 = vmatprep.mubr.bf16.mxu0 %v1118
      %1869 = vmatmul.mubr.bf16.gmra.mrb[0].mxu0 %v1117
      %v1870 = vpop.f32.mrb[0].mxu0
      %v1871 = vadd.f32 0.0, %v1870
      %v1872 = vpop.f32.mrb[0].mxu0
      %v1873 = vpop.f32.mrb[0].mxu0
      %v1874 = vadd.f32 0.0, %v1873
      %v1875 = vpop.f32.mrb[0].mxu0
      %1876 = vmatprep.mubr.bf16.mxu0 %v1127
      %1877 = vmatmul.mubr.bf16.gmra.mrb[0].mxu0 %v1126
      %v1878 = vpop.f32.mrb[0].mxu0
      %v1879 = vadd.f32 0.0, %v1878
      %v1880 = vpop.f32.mrb[0].mxu0
      %v1881 = vpop.f32.mrb[0].mxu0
      %v1882 = vadd.f32 0.0, %v1881
      %v1883 = vpop.f32.mrb[0].mxu0
      %1884 = vmatprep.mubr.bf16.mxu0 %v1136
      %1885 = vmatmul.mubr.bf16.gmra.mrb[0].mxu0 %v1135
      %v1886 = vpop.f32.mrb[0].mxu0
      %v1887 = vadd.f32 0.0, %v1886
      %v1888 = vpop.f32.mrb[0].mxu0
      %v1889 = vpop.f32.mrb[0].mxu0
      %v1890 = vadd.f32 0.0, %v1889
      %v1891 = vpop.f32.mrb[0].mxu0
      %1892 = vmatprep.mubr.bf16.mxu0 %v1145
      %1893 = vmatmul.mubr.bf16.gmra.mrb[0].mxu0 %v1144
      %v1894 = vpop.f32.mrb[0].mxu0
      %v1895 = vadd.f32 0.0, %v1894
      %v1896 = vpop.f32.mrb[0].mxu0
      %v1897 = vpop.f32.mrb[0].mxu0
      %v1898 = vadd.f32 0.0, %v1897
      %v1899 = vpop.f32.mrb[0].mxu0
      %1900 = vmatprep.mubr.bf16.mxu0 %v1154
      %1901 = vmatmul.mubr.bf16.gmra.mrb[0].mxu0 %v1153
      %v1902 = vpop.f32.mrb[0].mxu0
      %v1903 = vadd.f32 0.0, %v1902
      %v1904 = vpop.f32.mrb[0].mxu0
      %v1905 = vpop.f32.mrb[0].mxu0
      %v1906 = vadd.f32 0.0, %v1905
      %v1907 = vpop.f32.mrb[0].mxu0
      %1908 = vmatprep.mubr.bf16.mxu0 %v1163
      %1909 = vmatmul.mubr.bf16.gmra.mrb[0].mxu0 %v1162
      %v1910 = vpop.f32.mrb[0].mxu0
      %v1911 = vadd.f32 0.0, %v1910
      %v1912 = vpop.f32.mrb[0].mxu0
      %v1913 = vpop.f32.mrb[0].mxu0
      %v1914 = vadd.f32 0.0, %v1913
      %v1915 = vpop.f32.mrb[0].mxu0
      %1916 = vmatprep.mubr.bf16.mxu0 %v1172
      %1917 = vmatmul.mubr.bf16.gmra.mrb[0].mxu0 %v1171
      %v1918 = vpop.f32.mrb[0].mxu0
      %v1919 = vadd.f32 0.0, %v1918
      %v1920 = vpop.f32.mrb[0].mxu0
      %v1921 = vpop.f32.mrb[0].mxu0
      %v1922 = vadd.f32 0.0, %v1921
      %v1923 = vpop.f32.mrb[0].mxu0
      %1924 = vmatprep.mubr.bf16.mxu0 %v1181
      %1925 = vmatmul.mubr.bf16.gmra.mrb[0].mxu0 %v1180
      %v1926 = vpop.f32.mrb[0].mxu0
      %v1927 = vadd.f32 0.0, %v1926
      %v1928 = vpop.f32.mrb[0].mxu0
      %v1929 = vpop.f32.mrb[0].mxu0
      %v1930 = vadd.f32 0.0, %v1929
      %v1931 = vpop.f32.mrb[0].mxu0
      %1932 = vmatprep.mubr.bf16.mxu0 %v1190
      %1933 = vmatmul.mubr.bf16.gmra.mrb[0].mxu0 %v1189
      %v1934 = vpop.f32.mrb[0].mxu0
      %v1935 = vadd.f32 0.0, %v1934
      %v1936 = vpop.f32.mrb[0].mxu0
      %v1937 = vpop.f32.mrb[0].mxu0
      %v1938 = vadd.f32 0.0, %v1937
      %v1939 = vpop.f32.mrb[0].mxu0
      %1940 = vmatprep.mubr.bf16.mxu0 %v1199
      %1941 = vmatmul.mubr.bf16.gmra.mrb[0].mxu0 %v1198
      %v1942 = vpop.f32.mrb[0].mxu0
      %v1943 = vadd.f32 0.0, %v1942
      %v1944 = vpop.f32.mrb[0].mxu0
      %v1945 = vpop.f32.mrb[0].mxu0
      %v1946 = vadd.f32 0.0, %v1945
      %v1947 = vpop.f32.mrb[0].mxu0
      %1948 = vmatprep.mubr.bf16.mxu0 %v1208
      %1949 = vmatmul.mubr.bf16.gmra.mrb[0].mxu0 %v1207
      %v1950 = vpop.f32.mrb[0].mxu0
      %v1951 = vadd.f32 0.0, %v1950
      %v1952 = vpop.f32.mrb[0].mxu0
      %v1953 = vpop.f32.mrb[0].mxu0
      %v1954 = vadd.f32 0.0, %v1953
      %v1955 = vpop.f32.mrb[0].mxu0
      %1956 = vmatprep.mubr.bf16.mxu0 %v1217
      %1957 = vmatmul.mubr.bf16.gmra.mrb[0].mxu0 %v1216
      %v1958 = vpop.f32.mrb[0].mxu0
      %v1959 = vadd.f32 0.0, %v1958
      %v1960 = vpop.f32.mrb[0].mxu0
      %v1961 = vpop.f32.mrb[0].mxu0
      %v1962 = vadd.f32 0.0, %v1961
      %v1963 = vpop.f32.mrb[0].mxu0
      %1964 = vmatprep.mubr.bf16.mxu0 %v1226
      %1965 = vmatmul.mubr.bf16.gmra.mrb[0].mxu0 %v1225
      %v1966 = vpop.f32.mrb[0].mxu0
      %v1967 = vadd.f32 0.0, %v1966
      %v1968 = vpop.f32.mrb[0].mxu0
      %v1969 = vpop.f32.mrb[0].mxu0
      %v1970 = vadd.f32 0.0, %v1969
      %v1971 = vpop.f32.mrb[0].mxu0
      %1972 = vmatprep.mubr.bf16.mxu0 %v1235
      %1973 = vmatmul.mubr.bf16.gmra.mrb[0].mxu0 %v1234
      %v1974 = vpop.f32.mrb[0].mxu0
      %v1975 = vadd.f32 0.0, %v1974
      %v1976 = vpop.f32.mrb[0].mxu0
      %v1977 = vpop.f32.mrb[0].mxu0
      %v1978 = vadd.f32 0.0, %v1977
      %v1979 = vpop.f32.mrb[0].mxu0
      %1980 = vmatprep.mubr.bf16.mxu0 %v1244
      %1981 = vmatmul.mubr.bf16.gmra.mrb[0].mxu0 %v1243
      %v1982 = vpop.f32.mrb[0].mxu0
      %v1983 = vadd.f32 0.0, %v1982
      %v1984 = vpop.f32.mrb[0].mxu0
      %v1985 = vpop.f32.mrb[0].mxu0
      %v1986 = vadd.f32 0.0, %v1985
      %v1987 = vpop.f32.mrb[0].mxu0
      %1988 = vdwg.mxu0
      %1989 = vmatprep.subr.bf16.mxu0 0
      %1990 = vmatpush1.bf16.msra.mxu0 %v1700
      %1991 = vmatprep.subr.bf16.mxu0 0
      %1992 = vmatpush1.bf16.msra.mxu0 %v1701
      %1993 = vmatprep.subr.bf16.mxu0 0
      %1994 = vmatpush1.bf16.msra.mxu0 %v1702
      %1995 = vmatprep.subr.bf16.mxu0 0
      %1996 = vmatpush1.bf16.msra.mxu0 %v1703
      %1997 = vmatprep.subr.bf16.mxu0 0
      %1998 = vmatpush1.bf16.msra.mxu0 %v1704
      %1999 = vmatprep.subr.bf16.mxu0 0
      %2000 = vmatpush1.bf16.msra.mxu0 %v1705
      %2001 = vmatprep.subr.bf16.mxu0 0
      %2002 = vmatpush1.bf16.msra.mxu0 %v1706
      %2003 = vmatprep.subr.bf16.mxu0 0
      %2004 = vmatpush1.bf16.msra.mxu0 %v1707
      %2005 = vmatprep.subr.bf16.mxu0 0
      %2006 = vmatpush1.bf16.msra.mxu0 %v1708
      %2007 = vmatprep.subr.bf16.mxu0 0
      %2008 = vmatpush1.bf16.msra.mxu0 %v1709
      %2009 = vmatprep.subr.bf16.mxu0 0
      %2010 = vmatpush1.bf16.msra.mxu0 %v1710
      %2011 = vmatprep.subr.bf16.mxu0 0
      %2012 = vmatpush1.bf16.msra.mxu0 %v1711
      %2013 = vmatprep.subr.bf16.mxu0 0
      %2014 = vmatpush1.bf16.msra.mxu0 %v1712
      %2015 = vmatprep.subr.bf16.mxu0 0
      %2016 = vmatpush1.bf16.msra.mxu0 %v1713
      %2017 = vmatprep.subr.bf16.mxu0 0
      %2018 = vmatpush1.bf16.msra.mxu0 %v1714
      %2019 = vmatprep.subr.bf16.mxu0 0
      %2020 = vmatpush1.bf16.msra.mxu0 %v1715
      %2021 = vmatprep.mubr.bf16.mxu0 %v1111
      %2022 = vmatmul.mubr.bf16.gmra.mrb[0].mxu0 %v1110
      %v2023 = vpop.f32.mrb[0].mxu0
      %v2024 = vadd.f32 %v1863, %v2023
      %v2025 = vpop.f32.mrb[0].mxu0
      %v2026 = vpop.f32.mrb[0].mxu0
      %v2027 = vadd.f32 %v1866, %v2026
      %v2028 = vpop.f32.mrb[0].mxu0
      %2029 = vmatprep.mubr.bf16.mxu0 %v1120
      %2030 = vmatmul.mubr.bf16.gmra.mrb[0].mxu0 %v1119
      %v2031 = vpop.f32.mrb[0].mxu0
      %v2032 = vadd.f32 %v1871, %v2031
      %v2033 = vpop.f32.mrb[0].mxu0
      %v2034 = vpop.f32.mrb[0].mxu0
      %v2035 = vadd.f32 %v1874, %v2034
      %v2036 = vpop.f32.mrb[0].mxu0
      %2037 = vmatprep.mubr.bf16.mxu0 %v1129
      %2038 = vmatmul.mubr.bf16.gmra.mrb[0].mxu0 %v1128
      %v2039 = vpop.f32.mrb[0].mxu0
      %v2040 = vadd.f32 %v1879, %v2039
      %v2041 = vpop.f32.mrb[0].mxu0
      %v2042 = vpop.f32.mrb[0].mxu0
      %v2043 = vadd.f32 %v1882, %v2042
      %v2044 = vpop.f32.mrb[0].mxu0
      %2045 = vmatprep.mubr.bf16.mxu0 %v1138
      %2046 = vmatmul.mubr.bf16.gmra.mrb[0].mxu0 %v1137
      %v2047 = vpop.f32.mrb[0].mxu0
      %v2048 = vadd.f32 %v1887, %v2047
      %v2049 = vpop.f32.mrb[0].mxu0
      %v2050 = vpop.f32.mrb[0].mxu0
      %v2051 = vadd.f32 %v1890, %v2050
      %v2052 = vpop.f32.mrb[0].mxu0
      %2053 = vmatprep.mubr.bf16.mxu0 %v1147
      %2054 = vmatmul.mubr.bf16.gmra.mrb[0].mxu0 %v1146
      %v2055 = vpop.f32.mrb[0].mxu0
      %v2056 = vadd.f32 %v1895, %v2055
      %v2057 = vpop.f32.mrb[0].mxu0
      %v2058 = vpop.f32.mrb[0].mxu0
      %v2059 = vadd.f32 %v1898, %v2058
      %v2060 = vpop.f32.mrb[0].mxu0
      %2061 = vmatprep.mubr.bf16.mxu0 %v1156
      %2062 = vmatmul.mubr.bf16.gmra.mrb[0].mxu0 %v1155
      %v2063 = vpop.f32.mrb[0].mxu0
      %v2064 = vadd.f32 %v1903, %v2063
      %v2065 = vpop.f32.mrb[0].mxu0
      %v2066 = vpop.f32.mrb[0].mxu0
      %v2067 = vadd.f32 %v1906, %v2066
      %v2068 = vpop.f32.mrb[0].mxu0
      %2069 = vmatprep.mubr.bf16.mxu0 %v1165
      %2070 = vmatmul.mubr.bf16.gmra.mrb[0].mxu0 %v1164
      %v2071 = vpop.f32.mrb[0].mxu0
      %v2072 = vadd.f32 %v1911, %v2071
      %v2073 = vpop.f32.mrb[0].mxu0
      %v2074 = vpop.f32.mrb[0].mxu0
      %v2075 = vadd.f32 %v1914, %v2074
      %v2076 = vpop.f32.mrb[0].mxu0
      %2077 = vmatprep.mubr.bf16.mxu0 %v1174
      %2078 = vmatmul.mubr.bf16.gmra.mrb[0].mxu0 %v1173
      %v2079 = vpop.f32.mrb[0].mxu0
      %v2080 = vadd.f32 %v1919, %v2079
      %v2081 = vpop.f32.mrb[0].mxu0
      %v2082 = vpop.f32.mrb[0].mxu0
      %v2083 = vadd.f32 %v1922, %v2082
      %v2084 = vpop.f32.mrb[0].mxu0
      %2085 = vmatprep.mubr.bf16.mxu0 %v1183
      %2086 = vmatmul.mubr.bf16.gmra.mrb[0].mxu0 %v1182
      %v2087 = vpop.f32.mrb[0].mxu0
      %v2088 = vadd.f32 %v1927, %v2087
      %v2089 = vpop.f32.mrb[0].mxu0
      %v2090 = vpop.f32.mrb[0].mxu0
      %v2091 = vadd.f32 %v1930, %v2090
      %v2092 = vpop.f32.mrb[0].mxu0
      %2093 = vmatprep.mubr.bf16.mxu0 %v1192
      %2094 = vmatmul.mubr.bf16.gmra.mrb[0].mxu0 %v1191
      %v2095 = vpop.f32.mrb[0].mxu0
      %v2096 = vadd.f32 %v1935, %v2095
      %v2097 = vpop.f32.mrb[0].mxu0
      %v2098 = vpop.f32.mrb[0].mxu0
      %v2099 = vadd.f32 %v1938, %v2098
      %v2100 = vpop.f32.mrb[0].mxu0
      %2101 = vmatprep.mubr.bf16.mxu0 %v1201
      %2102 = vmatmul.mubr.bf16.gmra.mrb[0].mxu0 %v1200
      %v2103 = vpop.f32.mrb[0].mxu0
      %v2104 = vadd.f32 %v1943, %v2103
      %v2105 = vpop.f32.mrb[0].mxu0
      %v2106 = vpop.f32.mrb[0].mxu0
      %v2107 = vadd.f32 %v1946, %v2106
      %v2108 = vpop.f32.mrb[0].mxu0
      %2109 = vmatprep.mubr.bf16.mxu0 %v1210
      %2110 = vmatmul.mubr.bf16.gmra.mrb[0].mxu0 %v1209
      %v2111 = vpop.f32.mrb[0].mxu0
      %v2112 = vadd.f32 %v1951, %v2111
      %v2113 = vpop.f32.mrb[0].mxu0
      %v2114 = vpop.f32.mrb[0].mxu0
      %v2115 = vadd.f32 %v1954, %v2114
      %v2116 = vpop.f32.mrb[0].mxu0
      %2117 = vmatprep.mubr.bf16.mxu0 %v1219
      %2118 = vmatmul.mubr.bf16.gmra.mrb[0].mxu0 %v1218
      %v2119 = vpop.f32.mrb[0].mxu0
      %v2120 = vadd.f32 %v1959, %v2119
      %v2121 = vpop.f32.mrb[0].mxu0
      %v2122 = vpop.f32.mrb[0].mxu0
      %v2123 = vadd.f32 %v1962, %v2122
      %v2124 = vpop.f32.mrb[0].mxu0
      %2125 = vmatprep.mubr.bf16.mxu0 %v1228
      %2126 = vmatmul.mubr.bf16.gmra.mrb[0].mxu0 %v1227
      %v2127 = vpop.f32.mrb[0].mxu0
      %v2128 = vadd.f32 %v1967, %v2127
      %v2129 = vpop.f32.mrb[0].mxu0
      %v2130 = vpop.f32.mrb[0].mxu0
      %v2131 = vadd.f32 %v1970, %v2130
      %v2132 = vpop.f32.mrb[0].mxu0
      %2133 = vmatprep.mubr.bf16.mxu0 %v1237
      %2134 = vmatmul.mubr.bf16.gmra.mrb[0].mxu0 %v1236
      %v2135 = vpop.f32.mrb[0].mxu0
      %v2136 = vadd.f32 %v1975, %v2135
      %v2137 = vpop.f32.mrb[0].mxu0
      %v2138 = vpop.f32.mrb[0].mxu0
      %v2139 = vadd.f32 %v1978, %v2138
      %v2140 = vpop.f32.mrb[0].mxu0
      %2141 = vmatprep.mubr.bf16.mxu0 %v1246
      %2142 = vmatmul.mubr.bf16.gmra.mrb[0].mxu0 %v1245
      %v2143 = vpop.f32.mrb[0].mxu0
      %v2144 = vadd.f32 %v1983, %v2143
      %v2145 = vpop.f32.mrb[0].mxu0
      %v2146 = vpop.f32.mrb[0].mxu0
      %v2147 = vadd.f32 %v1986, %v2146
      %v2148 = vpop.f32.mrb[0].mxu0
      %2149 = vdwg.mxu0
      %2150 = vmatprep.subr.bf16.mxu0 0
      %2151 = vmatpush1.bf16.msra.mxu0 %v1716
      %2152 = vmatprep.subr.bf16.mxu0 0
      %2153 = vmatpush1.bf16.msra.mxu0 %v1717
      %2154 = vmatprep.subr.bf16.mxu0 0
      %2155 = vmatpush1.bf16.msra.mxu0 %v1718
      %2156 = vmatprep.subr.bf16.mxu0 0
      %2157 = vmatpush1.bf16.msra.mxu0 %v1719
      %2158 = vmatprep.subr.bf16.mxu0 0
      %2159 = vmatpush1.bf16.msra.mxu0 %v1720
      %2160 = vmatprep.subr.bf16.mxu0 0
      %2161 = vmatpush1.bf16.msra.mxu0 %v1721
      %2162 = vmatprep.subr.bf16.mxu0 0
      %2163 = vmatpush1.bf16.msra.mxu0 %v1722
      %2164 = vmatprep.subr.bf16.mxu0 0
      %2165 = vmatpush1.bf16.msra.mxu0 %v1723
      %2166 = vmatprep.subr.bf16.mxu0 0
      %2167 = vmatpush1.bf16.msra.mxu0 %v1724
      %2168 = vmatprep.subr.bf16.mxu0 0
      %2169 = vmatpush1.bf16.msra.mxu0 %v1725
      %2170 = vmatprep.subr.bf16.mxu0 0
      %2171 = vmatpush1.bf16.msra.mxu0 %v1726
      %2172 = vmatprep.subr.bf16.mxu0 0
      %2173 = vmatpush1.bf16.msra.mxu0 %v1727
      %2174 = vmatprep.subr.bf16.mxu0 0
      %2175 = vmatpush1.bf16.msra.mxu0 %v1728
      %2176 = vmatprep.subr.bf16.mxu0 0
      %2177 = vmatpush1.bf16.msra.mxu0 %v1729
      %2178 = vmatprep.subr.bf16.mxu0 0
      %2179 = vmatpush1.bf16.msra.mxu0 %v1730
      %2180 = vmatprep.subr.bf16.mxu0 0
      %2181 = vmatpush1.bf16.msra.mxu0 %v1731
      %2182 = vmatprep.mubr.bf16.mxu0 %v1113
      %2183 = vmatmul.mubr.bf16.gmra.mrb[0].mxu0 %v1112
      %v2184 = vpop.f32.mrb[0].mxu0
      %v2185 = vadd.f32 %v2024, %v2184
      %v2186 = vpop.f32.mrb[0].mxu0
      %v2187 = vpop.f32.mrb[0].mxu0
      %v2188 = vadd.f32 %v2027, %v2187
      %v2189 = vpop.f32.mrb[0].mxu0
      %2190 = vmatprep.mubr.bf16.mxu0 %v1122
      %2191 = vmatmul.mubr.bf16.gmra.mrb[0].mxu0 %v1121
      %v2192 = vpop.f32.mrb[0].mxu0
      %v2193 = vadd.f32 %v2032, %v2192
      %v2194 = vpop.f32.mrb[0].mxu0
      %v2195 = vpop.f32.mrb[0].mxu0
      %v2196 = vadd.f32 %v2035, %v2195
      %v2197 = vpop.f32.mrb[0].mxu0
      %2198 = vmatprep.mubr.bf16.mxu0 %v1131
      %2199 = vmatmul.mubr.bf16.gmra.mrb[0].mxu0 %v1130
      %v2200 = vpop.f32.mrb[0].mxu0
      %v2201 = vadd.f32 %v2040, %v2200
      %v2202 = vpop.f32.mrb[0].mxu0
      %v2203 = vpop.f32.mrb[0].mxu0
      %v2204 = vadd.f32 %v2043, %v2203
      %v2205 = vpop.f32.mrb[0].mxu0
      %2206 = vmatprep.mubr.bf16.mxu0 %v1140
      %2207 = vmatmul.mubr.bf16.gmra.mrb[0].mxu0 %v1139
      %v2208 = vpop.f32.mrb[0].mxu0
      %v2209 = vadd.f32 %v2048, %v2208
      %v2210 = vpop.f32.mrb[0].mxu0
      %v2211 = vpop.f32.mrb[0].mxu0
      %v2212 = vadd.f32 %v2051, %v2211
      %v2213 = vpop.f32.mrb[0].mxu0
      %2214 = vmatprep.mubr.bf16.mxu0 %v1149
      %2215 = vmatmul.mubr.bf16.gmra.mrb[0].mxu0 %v1148
      %v2216 = vpop.f32.mrb[0].mxu0
      %v2217 = vadd.f32 %v2056, %v2216
      %v2218 = vpop.f32.mrb[0].mxu0
      %v2219 = vpop.f32.mrb[0].mxu0
      %v2220 = vadd.f32 %v2059, %v2219
      %v2221 = vpop.f32.mrb[0].mxu0
      %2222 = vmatprep.mubr.bf16.mxu0 %v1158
      %2223 = vmatmul.mubr.bf16.gmra.mrb[0].mxu0 %v1157
      %v2224 = vpop.f32.mrb[0].mxu0
      %v2225 = vadd.f32 %v2064, %v2224
      %v2226 = vpop.f32.mrb[0].mxu0
      %v2227 = vpop.f32.mrb[0].mxu0
      %v2228 = vadd.f32 %v2067, %v2227
      %v2229 = vpop.f32.mrb[0].mxu0
      %2230 = vmatprep.mubr.bf16.mxu0 %v1167
      %2231 = vmatmul.mubr.bf16.gmra.mrb[0].mxu0 %v1166
      %v2232 = vpop.f32.mrb[0].mxu0
      %v2233 = vadd.f32 %v2072, %v2232
      %v2234 = vpop.f32.mrb[0].mxu0
      %v2235 = vpop.f32.mrb[0].mxu0
      %v2236 = vadd.f32 %v2075, %v2235
      %v2237 = vpop.f32.mrb[0].mxu0
      %2238 = vmatprep.mubr.bf16.mxu0 %v1176
      %2239 = vmatmul.mubr.bf16.gmra.mrb[0].mxu0 %v1175
      %v2240 = vpop.f32.mrb[0].mxu0
      %v2241 = vadd.f32 %v2080, %v2240
      %v2242 = vpop.f32.mrb[0].mxu0
      %v2243 = vpop.f32.mrb[0].mxu0
      %v2244 = vadd.f32 %v2083, %v2243
      %v2245 = vpop.f32.mrb[0].mxu0
      %2246 = vmatprep.mubr.bf16.mxu0 %v1185
      %2247 = vmatmul.mubr.bf16.gmra.mrb[0].mxu0 %v1184
      %v2248 = vpop.f32.mrb[0].mxu0
      %v2249 = vadd.f32 %v2088, %v2248
      %v2250 = vpop.f32.mrb[0].mxu0
      %v2251 = vpop.f32.mrb[0].mxu0
      %v2252 = vadd.f32 %v2091, %v2251
      %v2253 = vpop.f32.mrb[0].mxu0
      %2254 = vmatprep.mubr.bf16.mxu0 %v1194
      %2255 = vmatmul.mubr.bf16.gmra.mrb[0].mxu0 %v1193
      %v2256 = vpop.f32.mrb[0].mxu0
      %v2257 = vadd.f32 %v2096, %v2256
      %v2258 = vpop.f32.mrb[0].mxu0
      %v2259 = vpop.f32.mrb[0].mxu0
      %v2260 = vadd.f32 %v2099, %v2259
      %v2261 = vpop.f32.mrb[0].mxu0
      %2262 = vmatprep.mubr.bf16.mxu0 %v1203
      %2263 = vmatmul.mubr.bf16.gmra.mrb[0].mxu0 %v1202
      %v2264 = vpop.f32.mrb[0].mxu0
      %v2265 = vadd.f32 %v2104, %v2264
      %v2266 = vpop.f32.mrb[0].mxu0
      %v2267 = vpop.f32.mrb[0].mxu0
      %v2268 = vadd.f32 %v2107, %v2267
      %v2269 = vpop.f32.mrb[0].mxu0
      %2270 = vmatprep.mubr.bf16.mxu0 %v1212
      %2271 = vmatmul.mubr.bf16.gmra.mrb[0].mxu0 %v1211
      %v2272 = vpop.f32.mrb[0].mxu0
      %v2273 = vadd.f32 %v2112, %v2272
      %v2274 = vpop.f32.mrb[0].mxu0
      %v2275 = vpop.f32.mrb[0].mxu0
      %v2276 = vadd.f32 %v2115, %v2275
      %v2277 = vpop.f32.mrb[0].mxu0
      %2278 = vmatprep.mubr.bf16.mxu0 %v1221
      %2279 = vmatmul.mubr.bf16.gmra.mrb[0].mxu0 %v1220
      %v2280 = vpop.f32.mrb[0].mxu0
      %v2281 = vadd.f32 %v2120, %v2280
      %v2282 = vpop.f32.mrb[0].mxu0
      %v2283 = vpop.f32.mrb[0].mxu0
      %v2284 = vadd.f32 %v2123, %v2283
      %v2285 = vpop.f32.mrb[0].mxu0
      %2286 = vmatprep.mubr.bf16.mxu0 %v1230
      %2287 = vmatmul.mubr.bf16.gmra.mrb[0].mxu0 %v1229
      %v2288 = vpop.f32.mrb[0].mxu0
      %v2289 = vadd.f32 %v2128, %v2288
      %v2290 = vpop.f32.mrb[0].mxu0
      %v2291 = vpop.f32.mrb[0].mxu0
      %v2292 = vadd.f32 %v2131, %v2291
      %v2293 = vpop.f32.mrb[0].mxu0
      %2294 = vmatprep.mubr.bf16.mxu0 %v1239
      %2295 = vmatmul.mubr.bf16.gmra.mrb[0].mxu0 %v1238
      %v2296 = vpop.f32.mrb[0].mxu0
      %v2297 = vadd.f32 %v2136, %v2296
      %v2298 = vpop.f32.mrb[0].mxu0
      %v2299 = vpop.f32.mrb[0].mxu0
      %v2300 = vadd.f32 %v2139, %v2299
      %v2301 = vpop.f32.mrb[0].mxu0
      %2302 = vmatprep.mubr.bf16.mxu0 %v1248
      %2303 = vmatmul.mubr.bf16.gmra.mrb[0].mxu0 %v1247
      %v2304 = vpop.f32.mrb[0].mxu0
      %v2305 = vadd.f32 %v2144, %v2304
      %v2306 = vpop.f32.mrb[0].mxu0
      %v2307 = vpop.f32.mrb[0].mxu0
      %v2308 = vadd.f32 %v2147, %v2307
      %v2309 = vpop.f32.mrb[0].mxu0
      %2310 = vdwg.mxu0
      %2311 = vmatprep.subr.bf16.mxu0 0
      %2312 = vmatpush1.bf16.msra.mxu0 %v1732
      %2313 = vmatprep.subr.bf16.mxu0 0
      %2314 = vmatpush1.bf16.msra.mxu0 %v1733
      %2315 = vmatprep.subr.bf16.mxu0 0
      %2316 = vmatpush1.bf16.msra.mxu0 %v1734
      %2317 = vmatprep.subr.bf16.mxu0 0
      %2318 = vmatpush1.bf16.msra.mxu0 %v1735
      %2319 = vmatprep.subr.bf16.mxu0 0
      %2320 = vmatpush1.bf16.msra.mxu0 %v1736
      %2321 = vmatprep.subr.bf16.mxu0 0
      %2322 = vmatpush1.bf16.msra.mxu0 %v1737
      %2323 = vmatprep.subr.bf16.mxu0 0
      %2324 = vmatpush1.bf16.msra.mxu0 %v1738
      %2325 = vmatprep.subr.bf16.mxu0 0
      %2326 = vmatpush1.bf16.msra.mxu0 %v1739
      %2327 = vmatprep.subr.bf16.mxu0 0
      %2328 = vmatpush1.bf16.msra.mxu0 %v1740
      %2329 = vmatprep.subr.bf16.mxu0 0
      %2330 = vmatpush1.bf16.msra.mxu0 %v1741
      %2331 = vmatprep.subr.bf16.mxu0 0
      %2332 = vmatpush1.bf16.msra.mxu0 %v1742
      %2333 = vmatprep.subr.bf16.mxu0 0
      %2334 = vmatpush1.bf16.msra.mxu0 %v1743
      %2335 = vmatprep.subr.bf16.mxu0 0
      %2336 = vmatpush1.bf16.msra.mxu0 %v1744
      %2337 = vmatprep.subr.bf16.mxu0 0
      %2338 = vmatpush1.bf16.msra.mxu0 %v1745
      %2339 = vmatprep.subr.bf16.mxu0 0
      %2340 = vmatpush1.bf16.msra.mxu0 %v1746
      %2341 = vmatprep.subr.bf16.mxu0 0
      %2342 = vmatpush1.bf16.msra.mxu0 %v1747
      %2343 = vmatprep.mubr.bf16.mxu0 %v1115
      %2344 = vmatmul.mubr.bf16.gmra.mrb[0].mxu0 %v1114
      %v2345 = vpop.f32.mrb[0].mxu0
      %v2346 = vadd.f32 %v2185, %v2345
      %v2347 = vpop.f32.mrb[0].mxu0
      %v2348 = vpop.f32.mrb[0].mxu0
      %v2349 = vadd.f32 %v2188, %v2348
      %v2350 = vpop.f32.mrb[0].mxu0
      %2351 = vmatprep.mubr.bf16.mxu0 %v1124
      %2352 = vmatmul.mubr.bf16.gmra.mrb[0].mxu0 %v1123
      %v2353 = vpop.f32.mrb[0].mxu0
      %v2354 = vadd.f32 %v2193, %v2353
      %v2355 = vpop.f32.mrb[0].mxu0
      %v2356 = vpop.f32.mrb[0].mxu0
      %v2357 = vadd.f32 %v2196, %v2356
      %v2358 = vpop.f32.mrb[0].mxu0
      %2359 = vmatprep.mubr.bf16.mxu0 %v1133
      %2360 = vmatmul.mubr.bf16.gmra.mrb[0].mxu0 %v1132
      %v2361 = vpop.f32.mrb[0].mxu0
      %v2362 = vadd.f32 %v2201, %v2361
      %v2363 = vpop.f32.mrb[0].mxu0
      %v2364 = vpop.f32.mrb[0].mxu0
      %v2365 = vadd.f32 %v2204, %v2364
      %v2366 = vpop.f32.mrb[0].mxu0
      %2367 = vmatprep.mubr.bf16.mxu0 %v1142
      %2368 = vmatmul.mubr.bf16.gmra.mrb[0].mxu0 %v1141
      %v2369 = vpop.f32.mrb[0].mxu0
      %v2370 = vadd.f32 %v2209, %v2369
      %v2371 = vpop.f32.mrb[0].mxu0
      %v2372 = vpop.f32.mrb[0].mxu0
      %v2373 = vadd.f32 %v2212, %v2372
      %v2374 = vpop.f32.mrb[0].mxu0
      %2375 = vmatprep.mubr.bf16.mxu0 %v1151
      %2376 = vmatmul.mubr.bf16.gmra.mrb[0].mxu0 %v1150
      %v2377 = vpop.f32.mrb[0].mxu0
      %v2378 = vadd.f32 %v2217, %v2377
      %v2379 = vpop.f32.mrb[0].mxu0
      %v2380 = vpop.f32.mrb[0].mxu0
      %v2381 = vadd.f32 %v2220, %v2380
      %v2382 = vpop.f32.mrb[0].mxu0
      %2383 = vmatprep.mubr.bf16.mxu0 %v1160
      %2384 = vmatmul.mubr.bf16.gmra.mrb[0].mxu0 %v1159
      %v2385 = vpop.f32.mrb[0].mxu0
      %v2386 = vadd.f32 %v2225, %v2385
      %v2387 = vpop.f32.mrb[0].mxu0
      %v2388 = vpop.f32.mrb[0].mxu0
      %v2389 = vadd.f32 %v2228, %v2388
      %v2390 = vpop.f32.mrb[0].mxu0
      %2391 = vmatprep.mubr.bf16.mxu0 %v1169
      %2392 = vmatmul.mubr.bf16.gmra.mrb[0].mxu0 %v1168
      %v2393 = vpop.f32.mrb[0].mxu0
      %v2394 = vadd.f32 %v2233, %v2393
      %v2395 = vpop.f32.mrb[0].mxu0
      %v2396 = vpop.f32.mrb[0].mxu0
      %v2397 = vadd.f32 %v2236, %v2396
      %v2398 = vpop.f32.mrb[0].mxu0
      %2399 = vmatprep.mubr.bf16.mxu0 %v1178
      %2400 = vmatmul.mubr.bf16.gmra.mrb[0].mxu0 %v1177
      %v2401 = vpop.f32.mrb[0].mxu0
      %v2402 = vadd.f32 %v2241, %v2401
      %v2403 = vpop.f32.mrb[0].mxu0
      %v2404 = vpop.f32.mrb[0].mxu0
      %v2405 = vadd.f32 %v2244, %v2404
      %v2406 = vpop.f32.mrb[0].mxu0
      %2407 = vmatprep.mubr.bf16.mxu0 %v1187
      %2408 = vmatmul.mubr.bf16.gmra.mrb[0].mxu0 %v1186
      %v2409 = vpop.f32.mrb[0].mxu0
      %v2410 = vadd.f32 %v2249, %v2409
      %v2411 = vpop.f32.mrb[0].mxu0
      %v2412 = vpop.f32.mrb[0].mxu0
      %v2413 = vadd.f32 %v2252, %v2412
      %v2414 = vpop.f32.mrb[0].mxu0
      %2415 = vmatprep.mubr.bf16.mxu0 %v1196
      %2416 = vmatmul.mubr.bf16.gmra.mrb[0].mxu0 %v1195
      %v2417 = vpop.f32.mrb[0].mxu0
      %v2418 = vadd.f32 %v2257, %v2417
      %v2419 = vpop.f32.mrb[0].mxu0
      %v2420 = vpop.f32.mrb[0].mxu0
      %v2421 = vadd.f32 %v2260, %v2420
      %v2422 = vpop.f32.mrb[0].mxu0
      %2423 = vmatprep.mubr.bf16.mxu0 %v1205
      %2424 = vmatmul.mubr.bf16.gmra.mrb[0].mxu0 %v1204
      %v2425 = vpop.f32.mrb[0].mxu0
      %v2426 = vadd.f32 %v2265, %v2425
      %v2427 = vpop.f32.mrb[0].mxu0
      %v2428 = vpop.f32.mrb[0].mxu0
      %v2429 = vadd.f32 %v2268, %v2428
      %v2430 = vpop.f32.mrb[0].mxu0
      %2431 = vmatprep.mubr.bf16.mxu0 %v1214
      %2432 = vmatmul.mubr.bf16.gmra.mrb[0].mxu0 %v1213
      %v2433 = vpop.f32.mrb[0].mxu0
      %v2434 = vadd.f32 %v2273, %v2433
      %v2435 = vpop.f32.mrb[0].mxu0
      %v2436 = vpop.f32.mrb[0].mxu0
      %v2437 = vadd.f32 %v2276, %v2436
      %v2438 = vpop.f32.mrb[0].mxu0
      %2439 = vmatprep.mubr.bf16.mxu0 %v1223
      %2440 = vmatmul.mubr.bf16.gmra.mrb[0].mxu0 %v1222
      %v2441 = vpop.f32.mrb[0].mxu0
      %v2442 = vadd.f32 %v2281, %v2441
      %v2443 = vpop.f32.mrb[0].mxu0
      %v2444 = vpop.f32.mrb[0].mxu0
      %v2445 = vadd.f32 %v2284, %v2444
      %v2446 = vpop.f32.mrb[0].mxu0
      %2447 = vmatprep.mubr.bf16.mxu0 %v1232
      %2448 = vmatmul.mubr.bf16.gmra.mrb[0].mxu0 %v1231
      %v2449 = vpop.f32.mrb[0].mxu0
      %v2450 = vadd.f32 %v2289, %v2449
      %v2451 = vpop.f32.mrb[0].mxu0
      %v2452 = vpop.f32.mrb[0].mxu0
      %v2453 = vadd.f32 %v2292, %v2452
      %v2454 = vpop.f32.mrb[0].mxu0
      %2455 = vmatprep.mubr.bf16.mxu0 %v1241
      %2456 = vmatmul.mubr.bf16.gmra.mrb[0].mxu0 %v1240
      %v2457 = vpop.f32.mrb[0].mxu0
      %v2458 = vadd.f32 %v2297, %v2457
      %v2459 = vpop.f32.mrb[0].mxu0
      %v2460 = vpop.f32.mrb[0].mxu0
      %v2461 = vadd.f32 %v2300, %v2460
      %v2462 = vpop.f32.mrb[0].mxu0
      %2463 = vmatprep.mubr.bf16.mxu0 %v1250
      %2464 = vmatmul.mubr.bf16.gmra.mrb[0].mxu0 %v1249
      %v2465 = vpop.f32.mrb[0].mxu0
      %v2466 = vadd.f32 %v2305, %v2465
      %v2467 = vpop.f32.mrb[0].mxu0
      %v2468 = vpop.f32.mrb[0].mxu0
      %v2469 = vadd.f32 %v2308, %v2468
      %v2470 = vpop.f32.mrb[0].mxu0
      %2471 = vdwg.mxu0
      %2472 = vmatprep.subr.bf16.mxu0 0
      %2473 = vmatpush1.bf16.msra.mxu0 %v1748
      %2474 = vmatprep.subr.bf16.mxu0 0
      %2475 = vmatpush1.bf16.msra.mxu0 %v1749
      %2476 = vmatprep.subr.bf16.mxu0 0
      %2477 = vmatpush1.bf16.msra.mxu0 %v1750
      %2478 = vmatprep.subr.bf16.mxu0 0
      %2479 = vmatpush1.bf16.msra.mxu0 %v1751
      %2480 = vmatprep.subr.bf16.mxu0 0
      %2481 = vmatpush1.bf16.msra.mxu0 %v1752
      %2482 = vmatprep.subr.bf16.mxu0 0
      %2483 = vmatpush1.bf16.msra.mxu0 %v1753
      %2484 = vmatprep.subr.bf16.mxu0 0
      %2485 = vmatpush1.bf16.msra.mxu0 %v1754
      %2486 = vmatprep.subr.bf16.mxu0 0
      %2487 = vmatpush1.bf16.msra.mxu0 %v1755
      %2488 = vmatprep.subr.bf16.mxu0 0
      %2489 = vmatpush1.bf16.msra.mxu0 0
      %2490 = vmatprep.subr.bf16.mxu0 0
      %2491 = vmatpush1.bf16.msra.mxu0 0
      %2492 = vmatprep.subr.bf16.mxu0 0
      %2493 = vmatpush1.bf16.msra.mxu0 0
      %2494 = vmatprep.subr.bf16.mxu0 0
      %2495 = vmatpush1.bf16.msra.mxu0 0
      %2496 = vmatprep.subr.bf16.mxu0 0
      %2497 = vmatpush1.bf16.msra.mxu0 0
      %2498 = vmatprep.subr.bf16.mxu0 0
      %2499 = vmatpush1.bf16.msra.mxu0 0
      %2500 = vmatprep.subr.bf16.mxu0 0
      %2501 = vmatpush1.bf16.msra.mxu0 0
      %2502 = vmatprep.subr.bf16.mxu0 0
      %2503 = vmatpush1.bf16.msra.mxu0 0
      %2504 = vmatprep.mubr.bf16.mxu0 0
      %2505 = vmatmul.mubr.bf16.gmra.mrb[0].mxu0 %v1116
      %v2506 = vpop.f32.mrb[0].mxu0
      %v2507 = vadd.f32 %v2346, %v2506
      %v2508 = vpop.f32.mrb[0].mxu0
      %v2509 = vpop.f32.mrb[0].mxu0
      %v2510 = vadd.f32 %v2349, %v2509
      %v2511 = vpop.f32.mrb[0].mxu0
      %2512 = vmatprep.mubr.bf16.mxu0 0
      %2513 = vmatmul.mubr.bf16.gmra.mrb[0].mxu0 %v1125
      %v2514 = vpop.f32.mrb[0].mxu0
      %v2515 = vadd.f32 %v2354, %v2514
      %v2516 = vpop.f32.mrb[0].mxu0
      %v2517 = vpop.f32.mrb[0].mxu0
      %v2518 = vadd.f32 %v2357, %v2517
      %v2519 = vpop.f32.mrb[0].mxu0
      %2520 = vmatprep.mubr.bf16.mxu0 0
      %2521 = vmatmul.mubr.bf16.gmra.mrb[0].mxu0 %v1134
      %v2522 = vpop.f32.mrb[0].mxu0
      %v2523 = vadd.f32 %v2362, %v2522
      %v2524 = vpop.f32.mrb[0].mxu0
      %v2525 = vpop.f32.mrb[0].mxu0
      %v2526 = vadd.f32 %v2365, %v2525
      %v2527 = vpop.f32.mrb[0].mxu0
      %2528 = vmatprep.mubr.bf16.mxu0 0
      %2529 = vmatmul.mubr.bf16.gmra.mrb[0].mxu0 %v1143
      %v2530 = vpop.f32.mrb[0].mxu0
      %v2531 = vadd.f32 %v2370, %v2530
      %v2532 = vpop.f32.mrb[0].mxu0
      %v2533 = vpop.f32.mrb[0].mxu0
      %v2534 = vadd.f32 %v2373, %v2533
      %v2535 = vpop.f32.mrb[0].mxu0
      %2536 = vmatprep.mubr.bf16.mxu0 0
      %2537 = vmatmul.mubr.bf16.gmra.mrb[0].mxu0 %v1152
      %v2538 = vpop.f32.mrb[0].mxu0
      %v2539 = vadd.f32 %v2378, %v2538
      %v2540 = vpop.f32.mrb[0].mxu0
      %v2541 = vpop.f32.mrb[0].mxu0
      %v2542 = vadd.f32 %v2381, %v2541
      %v2543 = vpop.f32.mrb[0].mxu0
      %2544 = vmatprep.mubr.bf16.mxu0 0
      %2545 = vmatmul.mubr.bf16.gmra.mrb[0].mxu0 %v1161
      %v2546 = vpop.f32.mrb[0].mxu0
      %v2547 = vadd.f32 %v2386, %v2546
      %v2548 = vpop.f32.mrb[0].mxu0
      %v2549 = vpop.f32.mrb[0].mxu0
      %v2550 = vadd.f32 %v2389, %v2549
      %v2551 = vpop.f32.mrb[0].mxu0
      %2552 = vmatprep.mubr.bf16.mxu0 0
      %2553 = vmatmul.mubr.bf16.gmra.mrb[0].mxu0 %v1170
      %v2554 = vpop.f32.mrb[0].mxu0
      %v2555 = vadd.f32 %v2394, %v2554
      %v2556 = vpop.f32.mrb[0].mxu0
      %v2557 = vpop.f32.mrb[0].mxu0
      %v2558 = vadd.f32 %v2397, %v2557
      %v2559 = vpop.f32.mrb[0].mxu0
      %2560 = vmatprep.mubr.bf16.mxu0 0
      %2561 = vmatmul.mubr.bf16.gmra.mrb[0].mxu0 %v1179
      %v2562 = vpop.f32.mrb[0].mxu0
      %v2563 = vadd.f32 %v2402, %v2562
      %v2564 = vpop.f32.mrb[0].mxu0
      %v2565 = vpop.f32.mrb[0].mxu0
      %v2566 = vadd.f32 %v2405, %v2565
      %v2567 = vpop.f32.mrb[0].mxu0
      %2568 = vmatprep.mubr.bf16.mxu0 0
      %2569 = vmatmul.mubr.bf16.gmra.mrb[0].mxu0 %v1188
      %v2570 = vpop.f32.mrb[0].mxu0
      %v2571 = vadd.f32 %v2410, %v2570
      %v2572 = vpop.f32.mrb[0].mxu0
      %v2573 = vpop.f32.mrb[0].mxu0
      %v2574 = vadd.f32 %v2413, %v2573
      %v2575 = vpop.f32.mrb[0].mxu0
      %2576 = vmatprep.mubr.bf16.mxu0 0
      %2577 = vmatmul.mubr.bf16.gmra.mrb[0].mxu0 %v1197
      %v2578 = vpop.f32.mrb[0].mxu0
      %v2579 = vadd.f32 %v2418, %v2578
      %v2580 = vpop.f32.mrb[0].mxu0
      %v2581 = vpop.f32.mrb[0].mxu0
      %v2582 = vadd.f32 %v2421, %v2581
      %v2583 = vpop.f32.mrb[0].mxu0
      %2584 = vmatprep.mubr.bf16.mxu0 0
      %2585 = vmatmul.mubr.bf16.gmra.mrb[0].mxu0 %v1206
      %v2586 = vpop.f32.mrb[0].mxu0
      %v2587 = vadd.f32 %v2426, %v2586
      %v2588 = vpop.f32.mrb[0].mxu0
      %v2589 = vpop.f32.mrb[0].mxu0
      %v2590 = vadd.f32 %v2429, %v2589
      %v2591 = vpop.f32.mrb[0].mxu0
      %2592 = vmatprep.mubr.bf16.mxu0 0
      %2593 = vmatmul.mubr.bf16.gmra.mrb[0].mxu0 %v1215
      %v2594 = vpop.f32.mrb[0].mxu0
      %v2595 = vadd.f32 %v2434, %v2594
      %v2596 = vpop.f32.mrb[0].mxu0
      %v2597 = vpop.f32.mrb[0].mxu0
      %v2598 = vadd.f32 %v2437, %v2597
      %v2599 = vpop.f32.mrb[0].mxu0
      %2600 = vmatprep.mubr.bf16.mxu0 0
      %2601 = vmatmul.mubr.bf16.gmra.mrb[0].mxu0 %v1224
      %v2602 = vpop.f32.mrb[0].mxu0
      %v2603 = vadd.f32 %v2442, %v2602
      %v2604 = vpop.f32.mrb[0].mxu0
      %v2605 = vpop.f32.mrb[0].mxu0
      %v2606 = vadd.f32 %v2445, %v2605
      %v2607 = vpop.f32.mrb[0].mxu0
      %2608 = vmatprep.mubr.bf16.mxu0 0
      %2609 = vmatmul.mubr.bf16.gmra.mrb[0].mxu0 %v1233
      %v2610 = vpop.f32.mrb[0].mxu0
      %v2611 = vadd.f32 %v2450, %v2610
      %v2612 = vpop.f32.mrb[0].mxu0
      %v2613 = vpop.f32.mrb[0].mxu0
      %v2614 = vadd.f32 %v2453, %v2613
      %v2615 = vpop.f32.mrb[0].mxu0
      %2616 = vmatprep.mubr.bf16.mxu0 0
      %2617 = vmatmul.mubr.bf16.gmra.mrb[0].mxu0 %v1242
      %v2618 = vpop.f32.mrb[0].mxu0
      %v2619 = vadd.f32 %v2458, %v2618
      %v2620 = vpop.f32.mrb[0].mxu0
      %v2621 = vpop.f32.mrb[0].mxu0
      %v2622 = vadd.f32 %v2461, %v2621
      %v2623 = vpop.f32.mrb[0].mxu0
      %2624 = vmatprep.mubr.bf16.mxu0 0
      %2625 = vmatmul.mubr.bf16.gmra.mrb[0].mxu0 %v1251
      %v2626 = vpop.f32.mrb[0].mxu0
      %v2627 = vadd.f32 %v2466, %v2626
      %v2628 = vpop.f32.mrb[0].mxu0
      %v2629 = vpop.f32.mrb[0].mxu0
      %v2630 = vadd.f32 %v2469, %v2629
      %v2631 = vpop.f32.mrb[0].mxu0
      %2632 = vdwg.mxu0
      %v2633 = vpack.c.bf16 %v2510, %v2507
      %v2634 = vpack.c.bf16 %v2518, %v2515
      %v2635 = vpack.c.bf16 %v2526, %v2523
      %v2636 = vpack.c.bf16 %v2534, %v2531
      %v2637 = vpack.c.bf16 %v2542, %v2539
      %v2638 = vpack.c.bf16 %v2550, %v2547
      %v2639 = vpack.c.bf16 %v2558, %v2555
      %v2640 = vpack.c.bf16 %v2566, %v2563
      %v2641 = vpack.c.bf16 %v2574, %v2571
      %v2642 = vpack.c.bf16 %v2582, %v2579
      %v2643 = vpack.c.bf16 %v2590, %v2587
      %v2644 = vpack.c.bf16 %v2598, %v2595
      %v2645 = vpack.c.bf16 %v2606, %v2603
      %v2646 = vpack.c.bf16 %v2614, %v2611
      %v2647 = vpack.c.bf16 %v2622, %v2619
      %v2648 = vpack.c.bf16 %v2630, %v2627
      %v2665 = vunpack.c.l.b16 %v2633
      %v2666 = vunpack.c.h.b16 %v2633
      %v2667 = vunpack.c.l.b16 %v2634
      %v2668 = vunpack.c.h.b16 %v2634
      %v2669 = vunpack.c.l.b16 %v2635
      %v2670 = vunpack.c.h.b16 %v2635
      %v2671 = vunpack.c.l.b16 %v2636
      %v2672 = vunpack.c.h.b16 %v2636
      %v2673 = vunpack.c.l.b16 %v2637
      %v2674 = vunpack.c.h.b16 %v2637
      %v2675 = vunpack.c.l.b16 %v2638
      %v2676 = vunpack.c.h.b16 %v2638
      %v2677 = vunpack.c.l.b16 %v2639
      %v2678 = vunpack.c.h.b16 %v2639
      %v2679 = vunpack.c.l.b16 %v2640
      %v2680 = vunpack.c.h.b16 %v2640
      %v2681 = vunpack.c.l.b16 %v2641
      %v2682 = vunpack.c.h.b16 %v2641
      %v2683 = vunpack.c.l.b16 %v2642
      %v2684 = vunpack.c.h.b16 %v2642
      %v2685 = vunpack.c.l.b16 %v2643
      %v2686 = vunpack.c.h.b16 %v2643
      %v2687 = vunpack.c.l.b16 %v2644
      %v2688 = vunpack.c.h.b16 %v2644
      %v2689 = vunpack.c.l.b16 %v2645
      %v2690 = vunpack.c.h.b16 %v2645
      %v2691 = vunpack.c.l.b16 %v2646
      %v2692 = vunpack.c.h.b16 %v2646
      %v2693 = vunpack.c.l.b16 %v2647
      %v2694 = vunpack.c.h.b16 %v2647
      %v2695 = vunpack.c.l.b16 %v2648
      %v2696 = vunpack.c.h.b16 %v2648
      %v2697 = vpack.c.b16 %v2665, %v2665
      %v2698 = vpack.c.b16 %v2666, %v2666
      %v2699 = vpack.c.b16 %v2667, %v2667
      %v2700 = vpack.c.b16 %v2668, %v2668
      %v2701 = vpack.c.b16 %v2669, %v2669
      %v2702 = vpack.c.b16 %v2670, %v2670
      %v2703 = vpack.c.b16 %v2671, %v2671
      %v2704 = vpack.c.b16 %v2672, %v2672
      %v2705 = vpack.c.b16 %v2673, %v2673
      %v2706 = vpack.c.b16 %v2674, %v2674
      %v2707 = vpack.c.b16 %v2675, %v2675
      %v2708 = vpack.c.b16 %v2676, %v2676
      %v2709 = vpack.c.b16 %v2677, %v2677
      %v2710 = vpack.c.b16 %v2678, %v2678
      %v2711 = vpack.c.b16 %v2679, %v2679
      %v2712 = vpack.c.b16 %v2680, %v2680
      %v2713 = vpack.c.b16 %v2681, %v2681
      %v2714 = vpack.c.b16 %v2682, %v2682
      %v2715 = vpack.c.b16 %v2683, %v2683
      %v2716 = vpack.c.b16 %v2684, %v2684
      %v2717 = vpack.c.b16 %v2685, %v2685
      %v2718 = vpack.c.b16 %v2686, %v2686
      %v2719 = vpack.c.b16 %v2687, %v2687
      %v2720 = vpack.c.b16 %v2688, %v2688
      %v2721 = vpack.c.b16 %v2689, %v2689
      %v2722 = vpack.c.b16 %v2690, %v2690
      %v2723 = vpack.c.b16 %v2691, %v2691
      %v2724 = vpack.c.b16 %v2692, %v2692
      %v2725 = vpack.c.b16 %v2693, %v2693
      %v2726 = vpack.c.b16 %v2694, %v2694
      %v2727 = vpack.c.b16 %v2695, %v2695
      %v2728 = vpack.c.b16 %v2696, %v2696
      %2761 = vst [vmem:[%s262] sm:$0xf] %v2697
      %2762 = vst [vmem:[%s262 + $0x4] sm:$0xf] %v2698
      %2763 = vst [vmem:[%s262 + $0x8] sm:$0xf] %v2699
      %2764 = vst [vmem:[%s262 + $0xc] sm:$0xf] %v2700
      %2765 = vst [vmem:[%s262 + $0x10] sm:$0xf] %v2701
      %2766 = vst [vmem:[%s262 + $0x14] sm:$0xf] %v2702
      %2767 = vst [vmem:[%s262 + $0x18] sm:$0xf] %v2703
      %2768 = vst [vmem:[%s262 + $0x1c] sm:$0xf] %v2704
      %2769 = vst [vmem:[%s262 + $0x20] sm:$0xf] %v2705
      %2770 = vst [vmem:[%s262 + $0x24] sm:$0xf] %v2706
      %2771 = vst [vmem:[%s262 + $0x28] sm:$0xf] %v2707
      %2772 = vst [vmem:[%s262 + $0x2c] sm:$0xf] %v2708
      %2773 = vst [vmem:[%s262 + $0x30] sm:$0xf] %v2709
      %2774 = vst [vmem:[%s262 + $0x34] sm:$0xf] %v2710
      %2775 = vst [vmem:[%s262 + $0x38] sm:$0xf] %v2711
      %2776 = vst [vmem:[%s262 + $0x3c] sm:$0xf] %v2712
      %2777 = vst [vmem:[%s262 + $0x40] sm:$0xf] %v2713
      %2778 = vst [vmem:[%s262 + $0x44] sm:$0xf] %v2714
      %2779 = vst [vmem:[%s262 + $0x48] sm:$0xf] %v2715
      %2780 = vst [vmem:[%s262 + $0x4c] sm:$0xf] %v2716
      %2781 = vst [vmem:[%s262 + $0x50] sm:$0xf] %v2717
      %2782 = vst [vmem:[%s262 + $0x54] sm:$0xf] %v2718
      %2783 = vst [vmem:[%s262 + $0x58] sm:$0xf] %v2719
      %2784 = vst [vmem:[%s262 + $0x5c] sm:$0xf] %v2720
      %2785 = vst [vmem:[%s262 + $0x60] sm:$0xf] %v2721
      %2786 = vst [vmem:[%s262 + $0x64] sm:$0xf] %v2722
      %2787 = vst [vmem:[%s262 + $0x68] sm:$0xf] %v2723
      %2788 = vst [vmem:[%s262 + $0x6c] sm:$0xf] %v2724
      %2789 = vst [vmem:[%s262 + $0x70] sm:$0xf] %v2725
      %2790 = vst [vmem:[%s262 + $0x74] sm:$0xf] %v2726
      %2791 = vst [vmem:[%s262 + $0x78] sm:$0xf] %v2727
      %2792 = vst [vmem:[%s262 + $0x7c] sm:$0xf] %v2728
      %v2793 = vadd.f32 %v2507, %v2510
      %v2794 = vadd.f32 %v2793, %v2515
      %v2795 = vadd.f32 %v2794, %v2518
      %v2796 = vadd.f32 %v2795, %v2523
      %v2797 = vadd.f32 %v2796, %v2526
      %v2798 = vadd.f32 %v2797, %v2531
      %v2799 = vadd.f32 %v2798, %v2534
      %v2800 = vadd.f32 %v2799, %v2539
      %v2801 = vadd.f32 %v2800, %v2542
      %v2802 = vadd.f32 %v2801, %v2547
      %v2803 = vadd.f32 %v2802, %v2550
      %v2804 = vadd.f32 %v2803, %v2555
      %v2805 = vadd.f32 %v2804, %v2558
      %v2806 = vadd.f32 %v2805, %v2563
      %v2807 = vadd.f32 %v2806, %v2566
      %v2808 = vadd.f32 %v2807, %v2571
      %v2809 = vadd.f32 %v2808, %v2574
      %v2810 = vadd.f32 %v2809, %v2579
      %v2811 = vadd.f32 %v2810, %v2582
      %v2812 = vadd.f32 %v2811, %v2587
      %v2813 = vadd.f32 %v2812, %v2590
      %v2814 = vadd.f32 %v2813, %v2595
      %v2815 = vadd.f32 %v2814, %v2598
      %v2816 = vadd.f32 %v2815, %v2603
      %v2817 = vadd.f32 %v2816, %v2606
      %v2818 = vadd.f32 %v2817, %v2611
      %v2819 = vadd.f32 %v2818, %v2614
      %v2820 = vadd.f32 %v2819, %v2619
      %v2821 = vadd.f32 %v2820, %v2622
      %v2822 = vadd.f32 %v2821, %v2627
      %v2823 = vadd.f32 %v2822, %v2630
      %v2824 = vrot.slane %v2823, 4
      %v2825 = vadd.f32 %v2823, %v2824
      %v2826 = vrot.slane %v2825, 2
      %v2827 = vadd.f32 %v2825, %v2826
      %v2828 = vrot.slane %v2827, 1
      %v2829 = vadd.f32 %v2827, %v2828
      %2830 = vst [vmem:[%s265] sm:$0x1] %v2829
      %v2831 = vmul.f32 %v2507, %v2507
      %v2832 = vmul.f32 %v2510, %v2510
      %v2833 = vmul.f32 %v2515, %v2515
      %v2834 = vmul.f32 %v2518, %v2518
      %v2835 = vmul.f32 %v2523, %v2523
      %v2836 = vmul.f32 %v2526, %v2526
      %v2837 = vmul.f32 %v2531, %v2531
      %v2838 = vmul.f32 %v2534, %v2534
      %v2839 = vmul.f32 %v2539, %v2539
      %v2840 = vmul.f32 %v2542, %v2542
      %v2841 = vmul.f32 %v2547, %v2547
      %v2842 = vmul.f32 %v2550, %v2550
      %v2843 = vmul.f32 %v2555, %v2555
      %v2844 = vmul.f32 %v2558, %v2558
      %v2845 = vmul.f32 %v2563, %v2563
      %v2846 = vmul.f32 %v2566, %v2566
      %v2847 = vmul.f32 %v2571, %v2571
      %v2848 = vmul.f32 %v2574, %v2574
      %v2849 = vmul.f32 %v2579, %v2579
      %v2850 = vmul.f32 %v2582, %v2582
      %v2851 = vmul.f32 %v2587, %v2587
      %v2852 = vmul.f32 %v2590, %v2590
      %v2853 = vmul.f32 %v2595, %v2595
      %v2854 = vmul.f32 %v2598, %v2598
      %v2855 = vmul.f32 %v2603, %v2603
      %v2856 = vmul.f32 %v2606, %v2606
      %v2857 = vmul.f32 %v2611, %v2611
      %v2858 = vmul.f32 %v2614, %v2614
      %v2859 = vmul.f32 %v2619, %v2619
      %v2860 = vmul.f32 %v2622, %v2622
      %v2861 = vmul.f32 %v2627, %v2627
      %v2862 = vmul.f32 %v2630, %v2630
      %v2863 = vadd.f32 %v2831, %v2832
      %v2864 = vadd.f32 %v2863, %v2833
      %v2865 = vadd.f32 %v2864, %v2834
      %v2866 = vadd.f32 %v2865, %v2835
      %v2867 = vadd.f32 %v2866, %v2836
      %v2868 = vadd.f32 %v2867, %v2837
      %v2869 = vadd.f32 %v2868, %v2838
      %v2870 = vadd.f32 %v2869, %v2839
      %v2871 = vadd.f32 %v2870, %v2840
      %v2872 = vadd.f32 %v2871, %v2841
      %v2873 = vadd.f32 %v2872, %v2842
      %v2874 = vadd.f32 %v2873, %v2843
      %v2875 = vadd.f32 %v2874, %v2844
      %v2876 = vadd.f32 %v2875, %v2845
      %v2877 = vadd.f32 %v2876, %v2846
      %v2878 = vadd.f32 %v2877, %v2847
      %v2879 = vadd.f32 %v2878, %v2848
      %v2880 = vadd.f32 %v2879, %v2849
      %v2881 = vadd.f32 %v2880, %v2850
      %v2882 = vadd.f32 %v2881, %v2851
      %v2883 = vadd.f32 %v2882, %v2852
      %v2884 = vadd.f32 %v2883, %v2853
      %v2885 = vadd.f32 %v2884, %v2854
      %v2886 = vadd.f32 %v2885, %v2855
      %v2887 = vadd.f32 %v2886, %v2856
      %v2888 = vadd.f32 %v2887, %v2857
      %v2889 = vadd.f32 %v2888, %v2858
      %v2890 = vadd.f32 %v2889, %v2859
      %v2891 = vadd.f32 %v2890, %v2860
      %v2892 = vadd.f32 %v2891, %v2861
      %v2893 = vadd.f32 %v2892, %v2862
      %v2894 = vrot.slane %v2893, 4
      %v2895 = vadd.f32 %v2893, %v2894
      %v2896 = vrot.slane %v2895, 2
      %v2897 = vadd.f32 %v2895, %v2896
      %v2898 = vrot.slane %v2897, 1
      %v2899 = vadd.f32 %v2897, %v2898
      %2900 = vst [vmem:[%s268] sm:$0x1] %v2899
      %p2901 = scmp.lt.s32.totalorder %s18, 1
      %s2902 = scalar_select %p2901, %s18, 1
      %s2903 = smul.addr %s2902, 32
      %s2904 = smul.addr %s2903, 4
      %s2905 = scalar_lea.vmem %s4, %s2904
      %p2906 = scmp.lt.s32.totalorder %s18, 1
      %s2907 = scalar_select %p2906, %s18, 1
      %s2908 = scalar_lea.vmem %s5, %s2907
      %p2909 = scmp.lt.s32.totalorder %s18, 1
      %s2910 = scalar_select %p2909, %s18, 1
      %s2911 = scalar_lea.vmem %s6, %s2910
      // Predicated region
      $region37: #{residual_maxi_block_nchw.10} parent=35 // pred_check
        %p2912 = pneg %p125
      $region38: #{residual_maxi_block_nchw.10} parent=35 // pred_check_branch
        %2914 = sbr.rel (%p2912) target = $region40
      $region39: #{residual_maxi_block_nchw.10} parent=35 // pred_region
        _
      $region40: #{residual_maxi_block_nchw.10} parent=35 // pred_fallthru
        _
      // Predicated region
      $region41: #{residual_maxi_block_nchw.10} parent=35 // pred_check
        %p2915 = pneg %p151
      $region42: #{residual_maxi_block_nchw.10} parent=35 // pred_check_branch
        %2917 = sbr.rel (%p2915) target = $region44
      $region43: #{residual_maxi_block_nchw.10} parent=35 // pred_region
        _
      $region44: #{residual_maxi_block_nchw.10} parent=35 // pred_fallthru
        _
      // Predicated region
      $region45: #{residual_maxi_block_nchw.10} parent=35 // pred_check
        %p2918 = pneg %p177
      $region46: #{residual_maxi_block_nchw.10} parent=35 // pred_check_branch
        %2920 = sbr.rel (%p2918) target = $region48
      $region47: #{residual_maxi_block_nchw.10} parent=35 // pred_region
        _
      $region48: #{residual_maxi_block_nchw.10} parent=35 // pred_fallthru
        _
    $region36: #{residual_maxi_block_nchw.10} parent=5 // pred_fallthru
      _
    %p2921 = scmp.le.s32.totalorder 2, %s13
    // Predicated region
    $region49: #{residual_maxi_block_nchw.10} parent=5 // pred_check
      %p2922 = pneg %p2921
    $region50: #{residual_maxi_block_nchw.10} parent=5 // pred_check_branch
      %2924 = sbr.rel (%p2922) target = $region52
    $region51: #{residual_maxi_block_nchw.10} parent=5 // pred_region
      %s2925 = ssub.s32 %s13, 2
      // Predicated region
      $region53: #{residual_maxi_block_nchw.10} parent=51 // pred_check
        %p2926 = pneg %p131
      $region54: #{residual_maxi_block_nchw.10} parent=51 // pred_check_branch
        %2928 = sbr.rel (%p2926) target = $region56
      $region55: #{residual_maxi_block_nchw.10} parent=51 // pred_region
        %p2929 = scmp.lt.s32.totalorder %s19, 1
        %s2930 = scalar_select %p2929, %s19, 1
        %s2931 = smul.addr %s2930, 32
        %s2932 = smul.addr %s2931, 4
        %s2933 = scalar_lea.vmem %s4, %s2932
      $region56: #{residual_maxi_block_nchw.10} parent=51 // pred_fallthru
        _
      // Predicated region
      $region57: #{residual_maxi_block_nchw.10} parent=51 // pred_check
        %p2934 = pneg %p157
      $region58: #{residual_maxi_block_nchw.10} parent=51 // pred_check_branch
        %2936 = sbr.rel (%p2934) target = $region60
      $region59: #{residual_maxi_block_nchw.10} parent=51 // pred_region
        %p2937 = scmp.lt.s32.totalorder %s19, 1
        %s2938 = scalar_select %p2937, %s19, 1
        %s2939 = scalar_lea.vmem %s5, %s2938
      $region60: #{residual_maxi_block_nchw.10} parent=51 // pred_fallthru
        _
      // Predicated region
      $region61: #{residual_maxi_block_nchw.10} parent=51 // pred_check
        %p2940 = pneg %p183
      $region62: #{residual_maxi_block_nchw.10} parent=51 // pred_check_branch
        %2942 = sbr.rel (%p2940) target = $region64
      $region63: #{residual_maxi_block_nchw.10} parent=51 // pred_region
        %p2943 = scmp.lt.s32.totalorder %s19, 1
        %s2944 = scalar_select %p2943, %s19, 1
        %s2945 = scalar_lea.vmem %s6, %s2944
      $region64: #{residual_maxi_block_nchw.10} parent=51 // pred_fallthru
        _
    $region52: #{residual_maxi_block_nchw.10} parent=5 // pred_fallthru
      _
  $region6: #{residual_maxi_block_nchw.10} parent=0 // loop_footer
    %s17 = sadd.s32 1, %s13
  $region7: #{residual_maxi_block_nchw.10} parent=0 // loop_footer_branch
    %12 = sbr.rel target = $region3
  $region8: #{residual_maxi_block_nchw.10} parent=0 // loop_exit
    _

</llo_original>
